<compile_context>
chip_gen: v7x
topology: tpu7x:2x2x1
jax: 0.10.0
libtpu: 0.0.40
codegen_flags: <defaults>
</compile_context>

<pallas_src>
import functools

import jax
import jax.numpy as jnp
from jax import lax
from jax.experimental import pallas as pl
from jax.experimental.pallas import tpu as pltpu

HALO = 16  # halo rows fetched past each L-tile; >= K - 1 for K in {7, 5, 3}


def _round_up(x, m):
    return ((x + m - 1) // m) * m


def _vmem_limit(est_bytes):
    # >= default scoped limit on all chips, <= v7x physical 64 MiB w/ margin.
    return int(min(max(est_bytes, 32 << 20), 56 << 20))


# ----------------------------------------------------------------------------
# Conv1d(+folded BN) + ReLU + MaxPool1d(2) stage kernel.
# Grid = (batch, L-tile); each step processes one (TL, Cin) tile + 16-row halo.
# ----------------------------------------------------------------------------
def conv_bn_relu_pool_kernel(xm_ref, xh_ref, w_ref, b_ref, o_ref, *, TL, K):
    # xm_ref: (1, TL, Cin)      bf16 main tile of the zero-padded input
    # xh_ref: (1, HALO, Cin)    bf16 halo rows just past the tile
    # w_ref : (Cin, K*Cout)     bf16 BN-folded weight, columns grouped (k, co)
    # b_ref : (1, Cout)         f32  BN-folded bias
    # o_ref : (1, TL//2, Cout)  bf16
    cout = o_ref.shape[-1]
    # Window covering padded rows [t*TL, t*TL + TL + HALO).
    win = jnp.concatenate([xm_ref[0], xh_ref[0]], axis=0)   # (TL+HALO, Cin)
    # Single MXU matmul for the whole tile ("kn2row"):
    # y[r, k*Cout + co] = sum_ci win[r, ci] * W[k, ci, co].
    y = jnp.dot(win, w_ref[...], preferred_element_type=jnp.float32)
    # Per-tap combination: acc[j, co] = sum_k y[j + k, k*Cout + co].
    # TODO(synk): move the sublane shift to pltpu.roll (XLU slot) and pad each
    # tap's column group to a 128-lane-aligned slot for stage 3 (Cout=64).
    acc = jnp.zeros((TL, cout), jnp.float32)
    for k in range(K):                                       # static unroll
        acc = acc + y[k:k + TL, k * cout:(k + 1) * cout]
    acc = jnp.maximum(acc + b_ref[...], 0.0)                 # bias + ReLU
    pooled = jnp.max(acc.reshape(TL // 2, 2, cout), axis=1)  # MaxPool1d(2)
    o_ref[0] = pooled.astype(o_ref.dtype)


def conv_stage(x, w, b, *, K, max_tile=4096):
    # x: (B, L, Cin) bf16, channels-last.  Returns (B, L // 2, Cout) bf16.
    # Arbitrary L: pad up to a tile multiple, slice the true floor(L/2) pooled
    # rows back out.  Zero padding matches PyTorch 'same' zero padding, and
    # kept pooled rows only depend on conv rows [0, 2*(L//2)) < L, so padded
    # garbage rows can never win a kept MaxPool pair.
    B, L, Cin = x.shape
    Cout = b.shape[-1]
    pad = (K - 1) // 2
    assert K % 2 == 1 and K - 1 <= HALO           # PyTorch 'same' padding
    L_out = L // 2
    TL = _round_up(min(max_tile, _round_up(L, 32)), 32)
    L_pad = _round_up(L, TL)
    NT = L_pad // TL
    # `pad` zeros on the left; enough zeros on the right so both the conv right
    # padding and the last tile's halo (rows [L_pad, L_pad + HALO)) stay valid.
    x_pad = jnp.pad(x, ((0, 0), (pad, L_pad + HALO - pad - L), (0, 0)))
    kernel = functools.partial(conv_bn_relu_pool_kernel, TL=TL, K=K)
    vmem_est = (2 * (TL + HALO) * Cin * 2         # double-buffered input+halo
                + 2 * (TL // 2) * Cout * 2        # double-buffered output
                + (TL + HALO) * Cin * 2           # win concat temp
                + (TL + HALO) * K * Cout * 4      # y (f32 matmul result)
                + 2 * TL * Cout * 4               # acc / pooled temps
                + (2 << 20))
    out = pl.pallas_call(
        kernel,
        out_shape=jax.ShapeDtypeStruct((B, L_pad // 2, Cout), jnp.bfloat16),
        grid=(B, NT),
        in_specs=[
            pl.BlockSpec((1, TL, Cin), lambda bi, ti: (bi, ti, 0)),
            pl.BlockSpec((1, HALO, Cin),
                         lambda bi, ti: (bi, (ti + 1) * (TL // HALO), 0)),
            pl.BlockSpec((Cin, K * Cout), lambda bi, ti: (0, 0)),
            pl.BlockSpec((1, Cout), lambda bi, ti: (0, 0)),
        ],
        out_specs=pl.BlockSpec((1, TL // 2, Cout), lambda bi, ti: (bi, ti, 0)),
        compiler_params=pltpu.CompilerParams(
            dimension_semantics=("parallel", "parallel"),
            vmem_limit_bytes=_vmem_limit(vmem_est)),
    )(x_pad, x_pad, w, b)
    return out[:, :L_out, :]


# ----------------------------------------------------------------------------
# Bidirectional LSTM (last time-step only) + classification / regression heads.
# ----------------------------------------------------------------------------
def lstm_heads_kernel(x_ref, wih_f_ref, whh_f_ref, bf_ref,
                      wih_b_ref, bb_ref,
                      wc1_ref, bc1_ref, wc2_ref, bc2_ref,
                      wr1_ref, br1_ref, wr2_ref, br2_ref,
                      cls_ref, reg_ref, gx_ref, *, T, Bc, H, unroll, chunk):
    # x_ref : (T, Bc, 64) bf16 — conv features, time-major, this core's rows.
    # gx_ref: (T, Bc, 4H) bf16 VMEM scratch — hoisted input projection + bias.
    # Gate packing is (i, f, o, g) (reordered at weight-prep time) so sigmoid
    # and tanh each apply to one contiguous lane slice.
    F = x_ref.shape[-1]

    # Hoist the input projection off the latency-bound recurrence.  Computed in
    # static time-chunks so the transient f32 matmul result stays small; the
    # persistent scratch is bf16 (accumulation at use stays f32).
    for r0 in range(0, T, chunk):
        ch = min(chunk, T - r0)
        xc = x_ref[r0:r0 + ch].reshape(ch * Bc, F)
        g = (jnp.dot(xc, wih_f_ref[...], preferred_element_type=jnp.float32)
             + bf_ref[...])
        gx_ref[r0:r0 + ch] = g.reshape(ch, Bc, 4 * H).astype(gx_ref.dtype)

    whh = whh_f_ref[...]                                    # (H, 4H) bf16
    # TODO(synk): hold whh resident in MXU staging registers across the loop
    # (pltpu.matmul_push_rhs / matmul_acc_lhs / matmul_pop) instead of
    # re-pushing the same (64, 4H) RHS every step via jnp.dot.

    def cell(gates, c_prev):
        # TODO(synk): realign the sub-128-lane gate slices with pltpu.roll on
        # the idle XLU slot (or 128-lane gate groups) to shave per-step latency.
        s = jax.nn.sigmoid(gates[:, :3 * H])                # i, f, o together
        g = jnp.tanh(gates[:, 3 * H:])
        i, f, o = s[:, :H], s[:, H:2 * H], s[:, 2 * H:3 * H]
        c = f * c_prev + i * g
        return o * jnp.tanh(c), c

    def one_step(t, h, c):
        gates = gx_ref[t].astype(jnp.float32) + jnp.dot(
            h.astype(jnp.bfloat16), whh, preferred_element_type=jnp.float32)
        return cell(gates, c)

    h0 = jnp.zeros((Bc, H), jnp.float32)
    c0 = jnp.zeros((Bc, H), jnp.float32)

    # Main recurrence: always unrolled `unroll`x; the remaining T % unroll
    # steps run in a short static tail (no silent fallback to unroll=1).
    n_main = (T // unroll) * unroll

    def body(it, carry):
        h, c = carry
        base = it * unroll
        for u in range(unroll):                             # static unroll
            h, c = one_step(base + u, h, c)
        return h, c

    h_fwd, _ = lax.fori_loop(0, T // unroll, body, (h0, c0))
    for u in range(T - n_main):                             # 0..unroll-1 steps
        h_fwd, _ = one_step(n_main + u, h_fwd, _)

    # Reverse direction: position T-1 is its FIRST step from a zero state, so
    # the recurrent h @ W_hh_reverse term is exactly zero and is omitted.
    # (Valid ONLY because the heads consume lstm_out[:, -1, :].)
    gates_b = (jnp.dot(x_ref[T - 1], wih_b_ref[...],
                       preferred_element_type=jnp.float32) + bb_ref[...])
    h_bwd, _ = cell(gates_b, jnp.zeros((Bc, H), jnp.float32))

    feat = jnp.concatenate([h_fwd, h_bwd], axis=1).astype(jnp.bfloat16)

    # Dropout(p=0.2) is identity at inference.
    c1 = jnp.maximum(jnp.dot(feat, wc1_ref[...],
                             preferred_element_type=jnp.float32)
                     + bc1_ref[...], 0.0)
    cls = (jnp.dot(c1.astype(jnp.bfloat16), wc2_ref[...],
                   preferred_element_type=jnp.float32) + bc2_ref[...])
    r1 = jnp.maximum(jnp.dot(feat, wr1_ref[...],
                             preferred_element_type=jnp.float32)
                     + br1_ref[...], 0.0)
    reg = (jnp.dot(r1.astype(jnp.bfloat16), wr2_ref[...],
                   preferred_element_type=jnp.float32) + br2_ref[...])

    cls_ref[...] = cls.astype(cls_ref.dtype)
    reg_ref[...] = reg.astype(reg_ref.dtype)


def lstm_and_heads(x_btf, params, *, num_cores=1):
    # x_btf: (B, T, 64) bf16 conv features (== PyTorch permute(0, 2, 1)).
    # num_cores=2 splits the padded batch across the two v7x TensorCores
    # (dimension_semantics "parallel"); keep 1 on v5e/v6e (single TC) so the
    # serial recurrence is not run twice back-to-back.
    B, T, F = x_btf.shape
    H = 64
    unroll = 4
    chunk = min(T, 512)
    Bc = _round_up(max(1, -(-B // num_cores)), 8)      # per-core padded rows
    Bp = Bc * num_cores
    x_tbf = jnp.transpose(x_btf, (1, 0, 2))            # (T, B, 64) time-major
    x_tbf = jnp.pad(x_tbf, ((0, 0), (0, Bp - B), (0, 0)))
    kernel = functools.partial(lstm_heads_kernel, T=T, Bc=Bc, H=H,
                               unroll=unroll, chunk=chunk)
    w00 = lambda ci: (0, 0)
    vmem_est = (2 * T * Bc * F * 2                      # x block (bf16, x2)
                + T * Bc * 4 * H * 2                    # gx scratch (bf16)
                + 2 * chunk * Bc * 4 * H * 4            # chunked f32 temps
                + (8 << 20))
    cls, reg = pl.pallas_call(
        kernel,
        out_shape=(jax.ShapeDtypeStruct((Bp, 1), jnp.float32),
                   jax.ShapeDtypeStruct((Bp, 2), jnp.float32)),
        grid=(num_cores,),
        in_specs=[
            pl.BlockSpec((T, Bc, F), lambda ci: (0, ci, 0)),
            pl.BlockSpec((F, 4 * H), w00),
            pl.BlockSpec((H, 4 * H), w00),
            pl.BlockSpec((1, 4 * H), w00),
            pl.BlockSpec((F, 4 * H), w00),
            pl.BlockSpec((1, 4 * H), w00),
            pl.BlockSpec((2 * H, 64), w00),
            pl.BlockSpec((1, 64), w00),
            pl.BlockSpec((64, 1), w00),
            pl.BlockSpec((1, 1), w00),
            pl.BlockSpec((2 * H, 128), w00),
            pl.BlockSpec((1, 128), w00),
            pl.BlockSpec((128, 2), w00),
            pl.BlockSpec((1, 2), w00),
        ],
        out_specs=(pl.BlockSpec((Bc, 1), lambda ci: (ci, 0)),
                   pl.BlockSpec((Bc, 2), lambda ci: (ci, 0))),
        scratch_shapes=[pltpu.VMEM((T, Bc, 4 * H), jnp.bfloat16)],
        compiler_params=pltpu.CompilerParams(
            dimension_semantics=("parallel",),
            vmem_limit_bytes=_vmem_limit(vmem_est)),
    )(x_tbf,
      params["wih_f"], params["whh_f"], params["bf"],
      params["wih_b"], params["bb"],
      params["wc1"], params["bc1"], params["wc2"], params["bc2"],
      params["wr1"], params["br1"], params["wr2"], params["br2"])
    return cls[:B, 0], reg[:B]


# ----------------------------------------------------------------------------
# Full forward pass (glue + kernels).
# ----------------------------------------------------------------------------
def eeg_forward(x_ncw, params, *, conv_tile=4096, lstm_cores=1):
    # x_ncw: (B, 3, L) — PyTorch NCW conv input layout.
    x = jnp.transpose(x_ncw, (0, 2, 1)).astype(jnp.bfloat16)        # (B, L, 3)
    x = conv_stage(x, params["w1"], params["b1"], K=7, max_tile=conv_tile)
    x = conv_stage(x, params["w2"], params["b2"], K=5, max_tile=conv_tile)
    x = conv_stage(x, params["w3"], params["b3"], K=3, max_tile=conv_tile)
    cls, reg = lstm_and_heads(x, params, num_cores=lstm_cores)      # (B,), (B,2)
    return cls, reg


# ----------------------------------------------------------------------------
# Deterministic synthetic parameters (shapes per the PyTorch __init__),
# converted to the kernel layouts.
# ----------------------------------------------------------------------------
def init_params(key):
    keys = jax.random.split(key, 64)
    kit = iter(keys)

    def nrm(shape, scale=0.1):
        return scale * jax.random.normal(next(kit), shape, jnp.float32)

    def reorder_gates(m):
        # PyTorch LSTM gate order (i, f, g, o) -> kernel order (i, f, o, g).
        i, f, g, o = jnp.split(m, 4, axis=0)
        return jnp.concatenate([i, f, o, g], axis=0)

    params = {}
    eps = 1e-5
    for cin, cout, k, name in [(3, 16, 7, "1"), (16, 32, 5, "2"),
                               (32, 64, 3, "3")]:
        w = nrm((cout, cin, k))                 # PyTorch Conv1d weight layout
        b = nrm((cout,))
        gamma = 1.0 + nrm((cout,))
        beta = nrm((cout,))
        mean = nrm((cout,))
        var = jnp.abs(nrm((cout,))) + 1.0
        scale = gamma / jnp.sqrt(var + eps)     # fold eval-mode BN into conv
        w_f = w * scale[:, None, None]
        b_f = (b - mean) * scale + beta
        # (Cout, Cin, K) -> (Cin, K, Cout) -> (Cin, K*Cout): column k*Cout + co
        # holds tap k of output channel co (single-matmul "kn2row" layout).
        params["w" + name] = jnp.transpose(w_f, (1, 2, 0)).reshape(
            cin, k * cout).astype(jnp.bfloat16)
        params["b" + name] = b_f[None, :]

    H = 64
    # LSTM weights, PyTorch layout (4H, in)/(4H, H), gate order (i, f, g, o).
    wih_f = nrm((4 * H, 64))
    whh_f = nrm((4 * H, H))
    bih_f = nrm((4 * H,))
    bhh_f = nrm((4 * H,))
    wih_b = nrm((4 * H, 64))
    _whh_b = nrm((4 * H, H))    # unused: only lstm_out[:, -1, :] is consumed
    bih_b = nrm((4 * H,))
    bhh_b = nrm((4 * H,))
    params["wih_f"] = reorder_gates(wih_f).T.astype(jnp.bfloat16)
    params["whh_f"] = reorder_gates(whh_f).T.astype(jnp.bfloat16)
    params["bf"] = reorder_gates((bih_f + bhh_f)[:, None]).T
    params["wih_b"] = reorder_gates(wih_b).T.astype(jnp.bfloat16)
    params["bb"] = reorder_gates((bih_b + bhh_b)[:, None]).T

    # Heads (flatten_dim = 2 * H = 128), stored transposed for x @ W.
    params["wc1"] = nrm((64, 2 * H)).T.astype(jnp.bfloat16)
    params["bc1"] = nrm((64,))[None, :]
    params["wc2"] = nrm((1, 64)).T.astype(jnp.bfloat16)
    params["bc2"] = nrm((1,))[None, :]
    params["wr1"] = nrm((128, 2 * H)).T.astype(jnp.bfloat16)
    params["br1"] = nrm((128,))[None, :]
    params["wr2"] = nrm((2, 128)).T.astype(jnp.bfloat16)
    params["br2"] = nrm((2,))[None, :]
    return params


if __name__ == "__main__":
    key = jax.random.PRNGKey(0)
    pkey, xkey = jax.random.split(key)
    params = init_params(pkey)

    # Small shapes consistent with the module (original is (B, 3, 30000)):
    # L = 512 gives T = 512 / 8 = 64 LSTM steps; conv_tile=256 exercises the
    # multi-tile (L-tiled, haloed) conv path on stage 1.
    B, C, L = 2, 3, 512
    x = jax.random.normal(xkey, (B, C, L), jnp.float32)

    fwd = jax.jit(functools.partial(eeg_forward, conv_tile=256, lstm_cores=1))
    cls_out, reg_out = fwd(x, params)
    jax.block_until_ready((cls_out, reg_out))
    assert cls_out.shape == (B,), cls_out.shape
    assert reg_out.shape == (B, 2), reg_out.shape
    print("KERNEL_OK")
</pallas_src>

<mosaic_0001>
module attributes {stable_mosaic.version = 11 : i64} {
  func.func @conv_bn_relu_pool_kernel(%arg0: i32, %arg1: i32, %arg2: memref<1x256x3xbf16, #tpu.memory_space<vmem>>, %arg3: memref<1x16x3xbf16, #tpu.memory_space<vmem>>, %arg4: memref<3x112xbf16, #tpu.memory_space<vmem>>, %arg5: memref<1x16xf32, #tpu.memory_space<vmem>>, %arg6: memref<1x128x16xbf16, #tpu.memory_space<vmem>>) attributes {dimension_semantics = [#tpu.dimension_semantics<parallel>, #tpu.dimension_semantics<parallel>], iteration_bounds = array<i64: 2, 2>, scalar_prefetch = 0 : i64, scratch_operands = 0 : i64, tpu.core_type = #tpu.core_type<tc>, window_params = [{transform_indices = @transform_0, window_bounds = array<i64: 1, 256, 3>}, {transform_indices = @transform_1, window_bounds = array<i64: 1, 16, 3>}, {pipeline_mode = #tpu.pipeline_mode<synchronous>, transform_indices = @transform_2, window_bounds = array<i64: 3, 112>}, {pipeline_mode = #tpu.pipeline_mode<synchronous>, transform_indices = @transform_3, window_bounds = array<i64: 1, 16>}, {transform_indices = @transform_4, window_bounds = array<i64: 1, 128, 16>}]} {
    %c0 = arith.constant 0 : index
    %c0_0 = arith.constant 0 : index
    %c0_1 = arith.constant 0 : index
    %0 = vector.load %arg2[%c0, %c0_0, %c0_1] : memref<1x256x3xbf16, #tpu.memory_space<vmem>>, vector<1x256x3xbf16>
    %1 = vector.shape_cast %0 : vector<1x256x3xbf16> to vector<256x3xbf16>
    %c0_2 = arith.constant 0 : index
    %c0_3 = arith.constant 0 : index
    %c0_4 = arith.constant 0 : index
    %2 = vector.load %arg3[%c0_2, %c0_3, %c0_4] : memref<1x16x3xbf16, #tpu.memory_space<vmem>>, vector<1x16x3xbf16>
    %3 = vector.shape_cast %2 : vector<1x16x3xbf16> to vector<16x3xbf16>
    %4 = tpu.concatenate %1, %3 in 0 : vector<256x3xbf16>, vector<16x3xbf16> -> vector<272x3xbf16>
    %c0_5 = arith.constant 0 : index
    %c0_6 = arith.constant 0 : index
    %5 = vector.load %arg4[%c0_5, %c0_6] : memref<3x112xbf16, #tpu.memory_space<vmem>>, vector<3x112xbf16>
    %cst = arith.constant dense<0.000000e+00> : vector<272x112xf32>
    %6 = tpu.matmul %4, %5, %cst {dimension_numbers = #tpu.dot_dimension_numbers<[1], [0], [0], [1], [0, 0, 1, 1], [], []>} : vector<272x3xbf16>, vector<3x112xbf16>, vector<272x112xf32> -> vector<272x112xf32>
    %cst_7 = arith.constant 0.000000e+00 : f32
    %7 = vector.broadcast %cst_7 : f32 to vector<256x16xf32>
    %8 = vector.extract_strided_slice %6 {offsets = [0, 0], sizes = [256, 16], strides = [1, 1]} : vector<272x112xf32> to vector<256x16xf32>
    %9 = arith.addf %7, %8 : vector<256x16xf32>
    %10 = vector.extract_strided_slice %6 {offsets = [1, 16], sizes = [256, 16], strides = [1, 1]} : vector<272x112xf32> to vector<256x16xf32>
    %11 = arith.addf %9, %10 : vector<256x16xf32>
    %12 = vector.extract_strided_slice %6 {offsets = [2, 32], sizes = [256, 16], strides = [1, 1]} : vector<272x112xf32> to vector<256x16xf32>
    %13 = arith.addf %11, %12 : vector<256x16xf32>
    %14 = vector.extract_strided_slice %6 {offsets = [3, 48], sizes = [256, 16], strides = [1, 1]} : vector<272x112xf32> to vector<256x16xf32>
    %15 = arith.addf %13, %14 : vector<256x16xf32>
    %16 = vector.extract_strided_slice %6 {offsets = [4, 64], sizes = [256, 16], strides = [1, 1]} : vector<272x112xf32> to vector<256x16xf32>
    %17 = arith.addf %15, %16 : vector<256x16xf32>
    %18 = vector.extract_strided_slice %6 {offsets = [5, 80], sizes = [256, 16], strides = [1, 1]} : vector<272x112xf32> to vector<256x16xf32>
    %19 = arith.addf %17, %18 : vector<256x16xf32>
    %20 = vector.extract_strided_slice %6 {offsets = [6, 96], sizes = [256, 16], strides = [1, 1]} : vector<272x112xf32> to vector<256x16xf32>
    %21 = arith.addf %19, %20 : vector<256x16xf32>
    %c0_8 = arith.constant 0 : index
    %c0_9 = arith.constant 0 : index
    %22 = vector.load %arg5[%c0_8, %c0_9] : memref<1x16xf32, #tpu.memory_space<vmem>>, vector<1x16xf32>
    %23 = vector.broadcast %22 : vector<1x16xf32> to vector<256x16xf32>
    %24 = arith.addf %21, %23 : vector<256x16xf32>
    %cst_10 = arith.constant 0.000000e+00 : f32
    %25 = vector.broadcast %cst_10 : f32 to vector<256x16xf32>
    %26 = arith.maximumf %24, %25 : vector<256x16xf32>
    %27 = vector.shape_cast %26 : vector<256x16xf32> to vector<128x2x16xf32>
    %cst_11 = arith.constant dense<0xFF800000> : vector<128x16xf32>
    %28 = vector.multi_reduction <maximumf>, %27, %cst_11 [1] : vector<128x2x16xf32> to vector<128x16xf32>
    %29 = arith.truncf %28 : vector<128x16xf32> to vector<128x16xbf16>
    %c0_12 = arith.constant 0 : index
    %c0_13 = arith.constant 0 : index
    %c0_14 = arith.constant 0 : index
    %30 = vector.load %arg6[%c0_12, %c0_13, %c0_14] : memref<1x128x16xbf16, #tpu.memory_space<vmem>>, vector<1x128x16xbf16>
    %31 = vector.shape_cast %30 : vector<1x128x16xbf16> to vector<128x16xbf16>
    %32 = vector.shape_cast %29 : vector<128x16xbf16> to vector<1x128x16xbf16>
    tpu.vector_store %arg6[%c0_12, %c0_13, %c0_14], %32 {strides = array<i32>} : memref<1x128x16xbf16, #tpu.memory_space<vmem>>, vector<1x128x16xbf16>,
    return
  }
  func.func @transform_0(%arg0: i32, %arg1: i32) -> (i32, i32, i32) {
    %c0_i32 = arith.constant 0 : i32
    %c0_i32_0 = arith.constant 0 : i32
    return %arg0, %arg1, %c0_i32 : i32, i32, i32
  }
  func.func @transform_1(%arg0: i32, %arg1: i32) -> (i32, i32, i32) {
    %c1_i32 = arith.constant 1 : i32
    %0 = arith.addi %arg1, %c1_i32 : i32
    %c16_i32 = arith.constant 16 : i32
    %1 = arith.muli %0, %c16_i32 : i32
    %c0_i32 = arith.constant 0 : i32
    %c0_i32_0 = arith.constant 0 : i32
    return %arg0, %1, %c0_i32 : i32, i32, i32
  }
  func.func @transform_2(%arg0: i32, %arg1: i32) -> (i32, i32) {
    %c0_i32 = arith.constant 0 : i32
    %c0_i32_0 = arith.constant 0 : i32
    %c0_i32_1 = arith.constant 0 : i32
    return %c0_i32, %c0_i32_0 : i32, i32
  }
  func.func @transform_3(%arg0: i32, %arg1: i32) -> (i32, i32) {
    %c0_i32 = arith.constant 0 : i32
    %c0_i32_0 = arith.constant 0 : i32
    %c0_i32_1 = arith.constant 0 : i32
    return %c0_i32, %c0_i32_0 : i32, i32
  }
  func.func @transform_4(%arg0: i32, %arg1: i32) -> (i32, i32, i32) {
    %c0_i32 = arith.constant 0 : i32
    %c0_i32_0 = arith.constant 0 : i32
    return %arg0, %arg1, %c0_i32 : i32, i32, i32
  }
}

module attributes {stable_mosaic.version = 11 : i64} {
  func.func @conv_bn_relu_pool_kernel(%arg0: i32, %arg1: i32, %arg2: memref<1x256x16xbf16, #tpu.memory_space<vmem>>, %arg3: memref<1x16x16xbf16, #tpu.memory_space<vmem>>, %arg4: memref<16x160xbf16, #tpu.memory_space<vmem>>, %arg5: memref<1x32xf32, #tpu.memory_space<vmem>>, %arg6: memref<1x128x32xbf16, #tpu.memory_space<vmem>>) attributes {dimension_semantics = [#tpu.dimension_semantics<parallel>, #tpu.dimension_semantics<parallel>], iteration_bounds = array<i64: 2, 1>, scalar_prefetch = 0 : i64, scratch_operands = 0 : i64, tpu.core_type = #tpu.core_type<tc>, window_params = [{transform_indices = @transform_0, window_bounds = array<i64: 1, 256, 16>}, {transform_indices = @transform_1, window_bounds = array<i64: 1, 16, 16>}, {pipeline_mode = #tpu.pipeline_mode<synchronous>, transform_indices = @transform_2, window_bounds = array<i64: 16, 160>}, {pipeline_mode = #tpu.pipeline_mode<synchronous>, transform_indices = @transform_3, window_bounds = array<i64: 1, 32>}, {transform_indices = @transform_4, window_bounds = array<i64: 1, 128, 32>}]} {
    %c0 = arith.constant 0 : index
    %c0_0 = arith.constant 0 : index
    %c0_1 = arith.constant 0 : index
    %0 = vector.load %arg2[%c0, %c0_0, %c0_1] : memref<1x256x16xbf16, #tpu.memory_space<vmem>>, vector<1x256x16xbf16>
    %1 = vector.shape_cast %0 : vector<1x256x16xbf16> to vector<256x16xbf16>
    %c0_2 = arith.constant 0 : index
    %c0_3 = arith.constant 0 : index
    %c0_4 = arith.constant 0 : index
    %2 = vector.load %arg3[%c0_2, %c0_3, %c0_4] : memref<1x16x16xbf16, #tpu.memory_space<vmem>>, vector<1x16x16xbf16>
    %3 = vector.shape_cast %2 : vector<1x16x16xbf16> to vector<16x16xbf16>
    %4 = tpu.concatenate %1, %3 in 0 : vector<256x16xbf16>, vector<16x16xbf16> -> vector<272x16xbf16>
    %c0_5 = arith.constant 0 : index
    %c0_6 = arith.constant 0 : index
    %5 = vector.load %arg4[%c0_5, %c0_6] : memref<16x160xbf16, #tpu.memory_space<vmem>>, vector<16x160xbf16>
    %cst = arith.constant dense<0.000000e+00> : vector<272x160xf32>
    %6 = tpu.matmul %4, %5, %cst {dimension_numbers = #tpu.dot_dimension_numbers<[1], [0], [0], [1], [0, 0, 1, 1], [], []>} : vector<272x16xbf16>, vector<16x160xbf16>, vector<272x160xf32> -> vector<272x160xf32>
    %cst_7 = arith.constant 0.000000e+00 : f32
    %7 = vector.broadcast %cst_7 : f32 to vector<256x32xf32>
    %8 = vector.extract_strided_slice %6 {offsets = [0, 0], sizes = [256, 32], strides = [1, 1]} : vector<272x160xf32> to vector<256x32xf32>
    %9 = arith.addf %7, %8 : vector<256x32xf32>
    %10 = vector.extract_strided_slice %6 {offsets = [1, 32], sizes = [256, 32], strides = [1, 1]} : vector<272x160xf32> to vector<256x32xf32>
    %11 = arith.addf %9, %10 : vector<256x32xf32>
    %12 = vector.extract_strided_slice %6 {offsets = [2, 64], sizes = [256, 32], strides = [1, 1]} : vector<272x160xf32> to vector<256x32xf32>
    %13 = arith.addf %11, %12 : vector<256x32xf32>
    %14 = vector.extract_strided_slice %6 {offsets = [3, 96], sizes = [256, 32], strides = [1, 1]} : vector<272x160xf32> to vector<256x32xf32>
    %15 = arith.addf %13, %14 : vector<256x32xf32>
    %16 = vector.extract_strided_slice %6 {offsets = [4, 128], sizes = [256, 32], strides = [1, 1]} : vector<272x160xf32> to vector<256x32xf32>
    %17 = arith.addf %15, %16 : vector<256x32xf32>
    %c0_8 = arith.constant 0 : index
    %c0_9 = arith.constant 0 : index
    %18 = vector.load %arg5[%c0_8, %c0_9] : memref<1x32xf32, #tpu.memory_space<vmem>>, vector<1x32xf32>
    %19 = vector.broadcast %18 : vector<1x32xf32> to vector<256x32xf32>
    %20 = arith.addf %17, %19 : vector<256x32xf32>
    %cst_10 = arith.constant 0.000000e+00 : f32
    %21 = vector.broadcast %cst_10 : f32 to vector<256x32xf32>
    %22 = arith.maximumf %20, %21 : vector<256x32xf32>
    %23 = vector.shape_cast %22 : vector<256x32xf32> to vector<128x2x32xf32>
    %cst_11 = arith.constant dense<0xFF800000> : vector<128x32xf32>
    %24 = vector.multi_reduction <maximumf>, %23, %cst_11 [1] : vector<128x2x32xf32> to vector<128x32xf32>
    %25 = arith.truncf %24 : vector<128x32xf32> to vector<128x32xbf16>
    %c0_12 = arith.constant 0 : index
    %c0_13 = arith.constant 0 : index
    %c0_14 = arith.constant 0 : index
    %26 = vector.load %arg6[%c0_12, %c0_13, %c0_14] : memref<1x128x32xbf16, #tpu.memory_space<vmem>>, vector<1x128x32xbf16>
    %27 = vector.shape_cast %26 : vector<1x128x32xbf16> to vector<128x32xbf16>
    %28 = vector.shape_cast %25 : vector<128x32xbf16> to vector<1x128x32xbf16>
    tpu.vector_store %arg6[%c0_12, %c0_13, %c0_14], %28 {strides = array<i32>} : memref<1x128x32xbf16, #tpu.memory_space<vmem>>, vector<1x128x32xbf16>,
    return
  }
  func.func @transform_0(%arg0: i32, %arg1: i32) -> (i32, i32, i32) {
    %c0_i32 = arith.constant 0 : i32
    %c0_i32_0 = arith.constant 0 : i32
    return %arg0, %arg1, %c0_i32 : i32, i32, i32
  }
  func.func @transform_1(%arg0: i32, %arg1: i32) -> (i32, i32, i32) {
    %c1_i32 = arith.constant 1 : i32
    %0 = arith.addi %arg1, %c1_i32 : i32
    %c16_i32 = arith.constant 16 : i32
    %1 = arith.muli %0, %c16_i32 : i32
    %c0_i32 = arith.constant 0 : i32
    %c0_i32_0 = arith.constant 0 : i32
    return %arg0, %1, %c0_i32 : i32, i32, i32
  }
  func.func @transform_2(%arg0: i32, %arg1: i32) -> (i32, i32) {
    %c0_i32 = arith.constant 0 : i32
    %c0_i32_0 = arith.constant 0 : i32
    %c0_i32_1 = arith.constant 0 : i32
    return %c0_i32, %c0_i32_0 : i32, i32
  }
  func.func @transform_3(%arg0: i32, %arg1: i32) -> (i32, i32) {
    %c0_i32 = arith.constant 0 : i32
    %c0_i32_0 = arith.constant 0 : i32
    %c0_i32_1 = arith.constant 0 : i32
    return %c0_i32, %c0_i32_0 : i32, i32
  }
  func.func @transform_4(%arg0: i32, %arg1: i32) -> (i32, i32, i32) {
    %c0_i32 = arith.constant 0 : i32
    %c0_i32_0 = arith.constant 0 : i32
    return %arg0, %arg1, %c0_i32 : i32, i32, i32
  }
}

module attributes {stable_mosaic.version = 11 : i64} {
  func.func @conv_bn_relu_pool_kernel(%arg0: i32, %arg1: i32, %arg2: memref<1x128x32xbf16, #tpu.memory_space<vmem>>, %arg3: memref<1x16x32xbf16, #tpu.memory_space<vmem>>, %arg4: memref<32x192xbf16, #tpu.memory_space<vmem>>, %arg5: memref<1x64xf32, #tpu.memory_space<vmem>>, %arg6: memref<1x64x64xbf16, #tpu.memory_space<vmem>>) attributes {dimension_semantics = [#tpu.dimension_semantics<parallel>, #tpu.dimension_semantics<parallel>], iteration_bounds = array<i64: 2, 1>, scalar_prefetch = 0 : i64, scratch_operands = 0 : i64, tpu.core_type = #tpu.core_type<tc>, window_params = [{transform_indices = @transform_0, window_bounds = array<i64: 1, 128, 32>}, {transform_indices = @transform_1, window_bounds = array<i64: 1, 16, 32>}, {pipeline_mode = #tpu.pipeline_mode<synchronous>, transform_indices = @transform_2, window_bounds = array<i64: 32, 192>}, {pipeline_mode = #tpu.pipeline_mode<synchronous>, transform_indices = @transform_3, window_bounds = array<i64: 1, 64>}, {transform_indices = @transform_4, window_bounds = array<i64: 1, 64, 64>}]} {
    %c0 = arith.constant 0 : index
    %c0_0 = arith.constant 0 : index
    %c0_1 = arith.constant 0 : index
    %0 = vector.load %arg2[%c0, %c0_0, %c0_1] : memref<1x128x32xbf16, #tpu.memory_space<vmem>>, vector<1x128x32xbf16>
    %1 = vector.shape_cast %0 : vector<1x128x32xbf16> to vector<128x32xbf16>
    %c0_2 = arith.constant 0 : index
    %c0_3 = arith.constant 0 : index
    %c0_4 = arith.constant 0 : index
    %2 = vector.load %arg3[%c0_2, %c0_3, %c0_4] : memref<1x16x32xbf16, #tpu.memory_space<vmem>>, vector<1x16x32xbf16>
    %3 = vector.shape_cast %2 : vector<1x16x32xbf16> to vector<16x32xbf16>
    %4 = tpu.concatenate %1, %3 in 0 : vector<128x32xbf16>, vector<16x32xbf16> -> vector<144x32xbf16>
    %c0_5 = arith.constant 0 : index
    %c0_6 = arith.constant 0 : index
    %5 = vector.load %arg4[%c0_5, %c0_6] : memref<32x192xbf16, #tpu.memory_space<vmem>>, vector<32x192xbf16>
    %cst = arith.constant dense<0.000000e+00> : vector<144x192xf32>
    %6 = tpu.matmul %4, %5, %cst {dimension_numbers = #tpu.dot_dimension_numbers<[1], [0], [0], [1], [0, 0, 1, 1], [], []>} : vector<144x32xbf16>, vector<32x192xbf16>, vector<144x192xf32> -> vector<144x192xf32>
    %cst_7 = arith.constant 0.000000e+00 : f32
    %7 = vector.broadcast %cst_7 : f32 to vector<128x64xf32>
    %8 = vector.extract_strided_slice %6 {offsets = [0, 0], sizes = [128, 64], strides = [1, 1]} : vector<144x192xf32> to vector<128x64xf32>
    %9 = arith.addf %7, %8 : vector<128x64xf32>
    %10 = vector.extract_strided_slice %6 {offsets = [1, 64], sizes = [128, 64], strides = [1, 1]} : vector<144x192xf32> to vector<128x64xf32>
    %11 = arith.addf %9, %10 : vector<128x64xf32>
    %12 = vector.extract_strided_slice %6 {offsets = [2, 128], sizes = [128, 64], strides = [1, 1]} : vector<144x192xf32> to vector<128x64xf32>
    %13 = arith.addf %11, %12 : vector<128x64xf32>
    %c0_8 = arith.constant 0 : index
    %c0_9 = arith.constant 0 : index
    %14 = vector.load %arg5[%c0_8, %c0_9] : memref<1x64xf32, #tpu.memory_space<vmem>>, vector<1x64xf32>
    %15 = vector.broadcast %14 : vector<1x64xf32> to vector<128x64xf32>
    %16 = arith.addf %13, %15 : vector<128x64xf32>
    %cst_10 = arith.constant 0.000000e+00 : f32
    %17 = vector.broadcast %cst_10 : f32 to vector<128x64xf32>
    %18 = arith.maximumf %16, %17 : vector<128x64xf32>
    %19 = vector.shape_cast %18 : vector<128x64xf32> to vector<64x2x64xf32>
    %cst_11 = arith.constant dense<0xFF800000> : vector<64x64xf32>
    %20 = vector.multi_reduction <maximumf>, %19, %cst_11 [1] : vector<64x2x64xf32> to vector<64x64xf32>
    %21 = arith.truncf %20 : vector<64x64xf32> to vector<64x64xbf16>
    %c0_12 = arith.constant 0 : index
    %c0_13 = arith.constant 0 : index
    %c0_14 = arith.constant 0 : index
    %22 = vector.load %arg6[%c0_12, %c0_13, %c0_14] : memref<1x64x64xbf16, #tpu.memory_space<vmem>>, vector<1x64x64xbf16>
    %23 = vector.shape_cast %22 : vector<1x64x64xbf16> to vector<64x64xbf16>
    %24 = vector.shape_cast %21 : vector<64x64xbf16> to vector<1x64x64xbf16>
    tpu.vector_store %arg6[%c0_12, %c0_13, %c0_14], %24 {strides = array<i32>} : memref<1x64x64xbf16, #tpu.memory_space<vmem>>, vector<1x64x64xbf16>,
    return
  }
  func.func @transform_0(%arg0: i32, %arg1: i32) -> (i32, i32, i32) {
    %c0_i32 = arith.constant 0 : i32
    %c0_i32_0 = arith.constant 0 : i32
    return %arg0, %arg1, %c0_i32 : i32, i32, i32
  }
  func.func @transform_1(%arg0: i32, %arg1: i32) -> (i32, i32, i32) {
    %c1_i32 = arith.constant 1 : i32
    %0 = arith.addi %arg1, %c1_i32 : i32
    %c8_i32 = arith.constant 8 : i32
    %1 = arith.muli %0, %c8_i32 : i32
    %c0_i32 = arith.constant 0 : i32
    %c0_i32_0 = arith.constant 0 : i32
    return %arg0, %1, %c0_i32 : i32, i32, i32
  }
  func.func @transform_2(%arg0: i32, %arg1: i32) -> (i32, i32) {
    %c0_i32 = arith.constant 0 : i32
    %c0_i32_0 = arith.constant 0 : i32
    %c0_i32_1 = arith.constant 0 : i32
    return %c0_i32, %c0_i32_0 : i32, i32
  }
  func.func @transform_3(%arg0: i32, %arg1: i32) -> (i32, i32) {
    %c0_i32 = arith.constant 0 : i32
    %c0_i32_0 = arith.constant 0 : i32
    %c0_i32_1 = arith.constant 0 : i32
    return %c0_i32, %c0_i32_0 : i32, i32
  }
  func.func @transform_4(%arg0: i32, %arg1: i32) -> (i32, i32, i32) {
    %c0_i32 = arith.constant 0 : i32
    %c0_i32_0 = arith.constant 0 : i32
    return %arg0, %arg1, %c0_i32 : i32, i32, i32
  }
}

module attributes {stable_mosaic.version = 11 : i64} {
  func.func @lstm_heads_kernel(%arg0: i32, %arg1: memref<64x8x64xbf16, #tpu.memory_space<vmem>>, %arg2: memref<64x256xbf16, #tpu.memory_space<vmem>>, %arg3: memref<64x256xbf16, #tpu.memory_space<vmem>>, %arg4: memref<1x256xf32, #tpu.memory_space<vmem>>, %arg5: memref<64x256xbf16, #tpu.memory_space<vmem>>, %arg6: memref<1x256xf32, #tpu.memory_space<vmem>>, %arg7: memref<128x64xbf16, #tpu.memory_space<vmem>>, %arg8: memref<1x64xf32, #tpu.memory_space<vmem>>, %arg9: memref<64x1xbf16, #tpu.memory_space<vmem>>, %arg10: memref<1x1xf32, #tpu.memory_space<vmem>>, %arg11: memref<128x128xbf16, #tpu.memory_space<vmem>>, %arg12: memref<1x128xf32, #tpu.memory_space<vmem>>, %arg13: memref<128x2xbf16, #tpu.memory_space<vmem>>, %arg14: memref<1x2xf32, #tpu.memory_space<vmem>>, %arg15: memref<8x1xf32, #tpu.memory_space<vmem>>, %arg16: memref<8x2xf32, #tpu.memory_space<vmem>>, %arg17: memref<64x8x256xbf16, #tpu.memory_space<vmem>>) attributes {dimension_semantics = [#tpu.dimension_semantics<parallel>], iteration_bounds = array<i64: 1>, scalar_prefetch = 0 : i64, scratch_operands = 1 : i64, tpu.core_type = #tpu.core_type<tc>, window_params = [{transform_indices = @transform_0, window_bounds = array<i64: 64, 8, 64>}, {pipeline_mode = #tpu.pipeline_mode<synchronous>, transform_indices = @transform_1, window_bounds = array<i64: 64, 256>}, {pipeline_mode = #tpu.pipeline_mode<synchronous>, transform_indices = @transform_2, window_bounds = array<i64: 64, 256>}, {pipeline_mode = #tpu.pipeline_mode<synchronous>, transform_indices = @transform_3, window_bounds = array<i64: 1, 256>}, {pipeline_mode = #tpu.pipeline_mode<synchronous>, transform_indices = @transform_4, window_bounds = array<i64: 64, 256>}, {pipeline_mode = #tpu.pipeline_mode<synchronous>, transform_indices = @transform_5, window_bounds = array<i64: 1, 256>}, {pipeline_mode = #tpu.pipeline_mode<synchronous>, transform_indices = @transform_6, window_bounds = array<i64: 128, 64>}, {pipeline_mode = #tpu.pipeline_mode<synchronous>, transform_indices = @transform_7, window_bounds = array<i64: 1, 64>}, {pipeline_mode = #tpu.pipeline_mode<synchronous>, transform_indices = @transform_8, window_bounds = array<i64: 64, 1>}, {pipeline_mode = #tpu.pipeline_mode<synchronous>, transform_indices = @transform_9, window_bounds = array<i64: 1, 1>}, {pipeline_mode = #tpu.pipeline_mode<synchronous>, transform_indices = @transform_10, window_bounds = array<i64: 128, 128>}, {pipeline_mode = #tpu.pipeline_mode<synchronous>, transform_indices = @transform_11, window_bounds = array<i64: 1, 128>}, {pipeline_mode = #tpu.pipeline_mode<synchronous>, transform_indices = @transform_12, window_bounds = array<i64: 128, 2>}, {pipeline_mode = #tpu.pipeline_mode<synchronous>, transform_indices = @transform_13, window_bounds = array<i64: 1, 2>}, {transform_indices = @transform_14, window_bounds = array<i64: 8, 1>}, {transform_indices = @transform_15, window_bounds = array<i64: 8, 2>}]} {
    %c0 = arith.constant 0 : index
    %c0_0 = arith.constant 0 : index
    %c0_1 = arith.constant 0 : index
    %0 = vector.load %arg1[%c0, %c0_0, %c0_1] : memref<64x8x64xbf16, #tpu.memory_space<vmem>>, vector<64x8x64xbf16>
    %1 = vector.shape_cast %0 : vector<64x8x64xbf16> to vector<512x64xbf16>
    %c0_2 = arith.constant 0 : index
    %c0_3 = arith.constant 0 : index
    %2 = vector.load %arg2[%c0_2, %c0_3] : memref<64x256xbf16, #tpu.memory_space<vmem>>, vector<64x256xbf16>
    %cst = arith.constant dense<0.000000e+00> : vector<512x256xf32>
    %3 = tpu.matmul %1, %2, %cst {dimension_numbers = #tpu.dot_dimension_numbers<[1], [0], [0], [1], [0, 0, 1, 1], [], []>} : vector<512x64xbf16>, vector<64x256xbf16>, vector<512x256xf32> -> vector<512x256xf32>
    %c0_4 = arith.constant 0 : index
    %c0_5 = arith.constant 0 : index
    %4 = vector.load %arg4[%c0_4, %c0_5] : memref<1x256xf32, #tpu.memory_space<vmem>>, vector<1x256xf32>
    %5 = vector.broadcast %4 : vector<1x256xf32> to vector<512x256xf32>
    %6 = arith.addf %3, %5 : vector<512x256xf32>
    %7 = vector.shape_cast %6 : vector<512x256xf32> to vector<64x8x256xf32>
    %8 = arith.truncf %7 : vector<64x8x256xf32> to vector<64x8x256xbf16>
    %c0_6 = arith.constant 0 : index
    %c0_7 = arith.constant 0 : index
    %c0_8 = arith.constant 0 : index
    %9 = vector.load %arg17[%c0_6, %c0_7, %c0_8] : memref<64x8x256xbf16, #tpu.memory_space<vmem>>, vector<64x8x256xbf16>
    tpu.vector_store %arg17[%c0_6, %c0_7, %c0_8], %8 {strides = array<i32>} : memref<64x8x256xbf16, #tpu.memory_space<vmem>>, vector<64x8x256xbf16>,
    %c0_9 = arith.constant 0 : index
    %c0_10 = arith.constant 0 : index
    %10 = vector.load %arg3[%c0_9, %c0_10] : memref<64x256xbf16, #tpu.memory_space<vmem>>, vector<64x256xbf16>
    %cst_11 = arith.constant 0.000000e+00 : f32
    %11 = vector.broadcast %cst_11 : f32 to vector<8x64xf32>
    %cst_12 = arith.constant 0.000000e+00 : f32
    %12 = vector.broadcast %cst_12 : f32 to vector<8x64xf32>
    %c0_i32 = arith.constant 0 : i32
    %c16_i32 = arith.constant 16 : i32
    %13 = arith.addi %c0_i32, %c16_i32 : i32
    %c1_i32 = arith.constant 1 : i32
    %14:2 = scf.for %arg18 = %c0_i32 to %13 step %c1_i32 iter_args(%arg19 = %11, %arg20 = %12) -> (vector<8x64xf32>, vector<8x64xf32>)  : i32 {
      %c4_i32 = arith.constant 4 : i32
      %69 = arith.muli %arg18, %c4_i32 : i32
      %c0_i32_49 = arith.constant 0 : i32
      %70 = arith.addi %69, %c0_i32_49 : i32
      %71 = arith.index_cast %70 : i32 to index
      %c0_50 = arith.constant 0 : index
      %c0_51 = arith.constant 0 : index
      %72 = vector.load %arg17[%71, %c0_50, %c0_51] : memref<64x8x256xbf16, #tpu.memory_space<vmem>>, vector<1x8x256xbf16>
      %73 = vector.shape_cast %72 : vector<1x8x256xbf16> to vector<8x256xbf16>
      %74 = arith.extf %73 : vector<8x256xbf16> to vector<8x256xf32>
      %75 = arith.truncf %arg19 : vector<8x64xf32> to vector<8x64xbf16>
      %cst_52 = arith.constant dense<0.000000e+00> : vector<8x256xf32>
      %76 = tpu.matmul %75, %10, %cst_52 {dimension_numbers = #tpu.dot_dimension_numbers<[1], [0], [0], [1], [0, 0, 1, 1], [], []>} : vector<8x64xbf16>, vector<64x256xbf16>, vector<8x256xf32> -> vector<8x256xf32>
      %77 = arith.addf %74, %76 : vector<8x256xf32>
      %78 = vector.extract_strided_slice %77 {offsets = [0, 0], sizes = [8, 192], strides = [1, 1]} : vector<8x256xf32> to vector<8x192xf32>
      %79 = arith.negf %78 : vector<8x192xf32>
      %80 = math.exp %79 : vector<8x192xf32>
      %cst_53 = arith.constant 1.000000e+00 : f32
      %81 = vector.broadcast %cst_53 : f32 to vector<8x192xf32>
      %82 = arith.addf %81, %80 : vector<8x192xf32>
      %83 = arith.divf %81, %82 : vector<8x192xf32>
      %84 = vector.extract_strided_slice %77 {offsets = [0, 192], sizes = [8, 64], strides = [1, 1]} : vector<8x256xf32> to vector<8x64xf32>
      %85 = math.tanh %84 : vector<8x64xf32>
      %86 = vector.extract_strided_slice %83 {offsets = [0, 0], sizes = [8, 64], strides = [1, 1]} : vector<8x192xf32> to vector<8x64xf32>
      %87 = vector.extract_strided_slice %83 {offsets = [0, 64], sizes = [8, 64], strides = [1, 1]} : vector<8x192xf32> to vector<8x64xf32>
      %88 = vector.extract_strided_slice %83 {offsets = [0, 128], sizes = [8, 64], strides = [1, 1]} : vector<8x192xf32> to vector<8x64xf32>
      %89 = arith.mulf %87, %arg20 : vector<8x64xf32>
      %90 = arith.mulf %86, %85 : vector<8x64xf32>
      %91 = arith.addf %89, %90 : vector<8x64xf32>
      %92 = math.tanh %91 : vector<8x64xf32>
      %93 = arith.mulf %88, %92 : vector<8x64xf32>
      %c1_i32_54 = arith.constant 1 : i32
      %94 = arith.addi %69, %c1_i32_54 : i32
      %95 = arith.index_cast %94 : i32 to index
      %c0_55 = arith.constant 0 : index
      %c0_56 = arith.constant 0 : index
      %96 = vector.load %arg17[%95, %c0_55, %c0_56] : memref<64x8x256xbf16, #tpu.memory_space<vmem>>, vector<1x8x256xbf16>
      %97 = vector.shape_cast %96 : vector<1x8x256xbf16> to vector<8x256xbf16>
      %98 = arith.extf %97 : vector<8x256xbf16> to vector<8x256xf32>
      %99 = arith.truncf %93 : vector<8x64xf32> to vector<8x64xbf16>
      %cst_57 = arith.constant dense<0.000000e+00> : vector<8x256xf32>
      %100 = tpu.matmul %99, %10, %cst_57 {dimension_numbers = #tpu.dot_dimension_numbers<[1], [0], [0], [1], [0, 0, 1, 1], [], []>} : vector<8x64xbf16>, vector<64x256xbf16>, vector<8x256xf32> -> vector<8x256xf32>
      %101 = arith.addf %98, %100 : vector<8x256xf32>
      %102 = vector.extract_strided_slice %101 {offsets = [0, 0], sizes = [8, 192], strides = [1, 1]} : vector<8x256xf32> to vector<8x192xf32>
      %103 = arith.negf %102 : vector<8x192xf32>
      %104 = math.exp %103 : vector<8x192xf32>
      %cst_58 = arith.constant 1.000000e+00 : f32
      %105 = vector.broadcast %cst_58 : f32 to vector<8x192xf32>
      %106 = arith.addf %105, %104 : vector<8x192xf32>
      %107 = arith.divf %105, %106 : vector<8x192xf32>
      %108 = vector.extract_strided_slice %101 {offsets = [0, 192], sizes = [8, 64], strides = [1, 1]} : vector<8x256xf32> to vector<8x64xf32>
      %109 = math.tanh %108 : vector<8x64xf32>
      %110 = vector.extract_strided_slice %107 {offsets = [0, 0], sizes = [8, 64], strides = [1, 1]} : vector<8x192xf32> to vector<8x64xf32>
      %111 = vector.extract_strided_slice %107 {offsets = [0, 64], sizes = [8, 64], strides = [1, 1]} : vector<8x192xf32> to vector<8x64xf32>
      %112 = vector.extract_strided_slice %107 {offsets = [0, 128], sizes = [8, 64], strides = [1, 1]} : vector<8x192xf32> to vector<8x64xf32>
      %113 = arith.mulf %111, %91 : vector<8x64xf32>
      %114 = arith.mulf %110, %109 : vector<8x64xf32>
      %115 = arith.addf %113, %114 : vector<8x64xf32>
      %116 = math.tanh %115 : vector<8x64xf32>
      %117 = arith.mulf %112, %116 : vector<8x64xf32>
      %c2_i32 = arith.constant 2 : i32
      %118 = arith.addi %69, %c2_i32 : i32
      %119 = arith.index_cast %118 : i32 to index
      %c0_59 = arith.constant 0 : index
      %c0_60 = arith.constant 0 : index
      %120 = vector.load %arg17[%119, %c0_59, %c0_60] : memref<64x8x256xbf16, #tpu.memory_space<vmem>>, vector<1x8x256xbf16>
      %121 = vector.shape_cast %120 : vector<1x8x256xbf16> to vector<8x256xbf16>
      %122 = arith.extf %121 : vector<8x256xbf16> to vector<8x256xf32>
      %123 = arith.truncf %117 : vector<8x64xf32> to vector<8x64xbf16>
      %cst_61 = arith.constant dense<0.000000e+00> : vector<8x256xf32>
      %124 = tpu.matmul %123, %10, %cst_61 {dimension_numbers = #tpu.dot_dimension_numbers<[1], [0], [0], [1], [0, 0, 1, 1], [], []>} : vector<8x64xbf16>, vector<64x256xbf16>, vector<8x256xf32> -> vector<8x256xf32>
      %125 = arith.addf %122, %124 : vector<8x256xf32>
      %126 = vector.extract_strided_slice %125 {offsets = [0, 0], sizes = [8, 192], strides = [1, 1]} : vector<8x256xf32> to vector<8x192xf32>
      %127 = arith.negf %126 : vector<8x192xf32>
      %128 = math.exp %127 : vector<8x192xf32>
      %cst_62 = arith.constant 1.000000e+00 : f32
      %129 = vector.broadcast %cst_62 : f32 to vector<8x192xf32>
      %130 = arith.addf %129, %128 : vector<8x192xf32>
      %131 = arith.divf %129, %130 : vector<8x192xf32>
      %132 = vector.extract_strided_slice %125 {offsets = [0, 192], sizes = [8, 64], strides = [1, 1]} : vector<8x256xf32> to vector<8x64xf32>
      %133 = math.tanh %132 : vector<8x64xf32>
      %134 = vector.extract_strided_slice %131 {offsets = [0, 0], sizes = [8, 64], strides = [1, 1]} : vector<8x192xf32> to vector<8x64xf32>
      %135 = vector.extract_strided_slice %131 {offsets = [0, 64], sizes = [8, 64], strides = [1, 1]} : vector<8x192xf32> to vector<8x64xf32>
      %136 = vector.extract_strided_slice %131 {offsets = [0, 128], sizes = [8, 64], strides = [1, 1]} : vector<8x192xf32> to vector<8x64xf32>
      %137 = arith.mulf %135, %115 : vector<8x64xf32>
      %138 = arith.mulf %134, %133 : vector<8x64xf32>
      %139 = arith.addf %137, %138 : vector<8x64xf32>
      %140 = math.tanh %139 : vector<8x64xf32>
      %141 = arith.mulf %136, %140 : vector<8x64xf32>
      %c3_i32 = arith.constant 3 : i32
      %142 = arith.addi %69, %c3_i32 : i32
      %143 = arith.index_cast %142 : i32 to index
      %c0_63 = arith.constant 0 : index
      %c0_64 = arith.constant 0 : index
      %144 = vector.load %arg17[%143, %c0_63, %c0_64] : memref<64x8x256xbf16, #tpu.memory_space<vmem>>, vector<1x8x256xbf16>
      %145 = vector.shape_cast %144 : vector<1x8x256xbf16> to vector<8x256xbf16>
      %146 = arith.extf %145 : vector<8x256xbf16> to vector<8x256xf32>
      %147 = arith.truncf %141 : vector<8x64xf32> to vector<8x64xbf16>
      %cst_65 = arith.constant dense<0.000000e+00> : vector<8x256xf32>
      %148 = tpu.matmul %147, %10, %cst_65 {dimension_numbers = #tpu.dot_dimension_numbers<[1], [0], [0], [1], [0, 0, 1, 1], [], []>} : vector<8x64xbf16>, vector<64x256xbf16>, vector<8x256xf32> -> vector<8x256xf32>
      %149 = arith.addf %146, %148 : vector<8x256xf32>
      %150 = vector.extract_strided_slice %149 {offsets = [0, 0], sizes = [8, 192], strides = [1, 1]} : vector<8x256xf32> to vector<8x192xf32>
      %151 = arith.negf %150 : vector<8x192xf32>
      %152 = math.exp %151 : vector<8x192xf32>
      %cst_66 = arith.constant 1.000000e+00 : f32
      %153 = vector.broadcast %cst_66 : f32 to vector<8x192xf32>
      %154 = arith.addf %153, %152 : vector<8x192xf32>
      %155 = arith.divf %153, %154 : vector<8x192xf32>
      %156 = vector.extract_strided_slice %149 {offsets = [0, 192], sizes = [8, 64], strides = [1, 1]} : vector<8x256xf32> to vector<8x64xf32>
      %157 = math.tanh %156 : vector<8x64xf32>
      %158 = vector.extract_strided_slice %155 {offsets = [0, 0], sizes = [8, 64], strides = [1, 1]} : vector<8x192xf32> to vector<8x64xf32>
      %159 = vector.extract_strided_slice %155 {offsets = [0, 64], sizes = [8, 64], strides = [1, 1]} : vector<8x192xf32> to vector<8x64xf32>
      %160 = vector.extract_strided_slice %155 {offsets = [0, 128], sizes = [8, 64], strides = [1, 1]} : vector<8x192xf32> to vector<8x64xf32>
      %161 = arith.mulf %159, %139 : vector<8x64xf32>
      %162 = arith.mulf %158, %157 : vector<8x64xf32>
      %163 = arith.addf %161, %162 : vector<8x64xf32>
      %164 = math.tanh %163 : vector<8x64xf32>
      %165 = arith.mulf %160, %164 : vector<8x64xf32>
      scf.yield %165, %163 : vector<8x64xf32>, vector<8x64xf32>
    }
    %c16_i32_13 = arith.constant 16 : i32
    %c63 = arith.constant 63 : index
    %c0_14 = arith.constant 0 : index
    %c0_15 = arith.constant 0 : index
    %15 = vector.load %arg1[%c63, %c0_14, %c0_15] : memref<64x8x64xbf16, #tpu.memory_space<vmem>>, vector<1x8x64xbf16>
    %16 = vector.shape_cast %15 : vector<1x8x64xbf16> to vector<8x64xbf16>
    %c0_16 = arith.constant 0 : index
    %c0_17 = arith.constant 0 : index
    %17 = vector.load %arg5[%c0_16, %c0_17] : memref<64x256xbf16, #tpu.memory_space<vmem>>, vector<64x256xbf16>
    %cst_18 = arith.constant dense<0.000000e+00> : vector<8x256xf32>
    %18 = tpu.matmul %16, %17, %cst_18 {dimension_numbers = #tpu.dot_dimension_numbers<[1], [0], [0], [1], [0, 0, 1, 1], [], []>} : vector<8x64xbf16>, vector<64x256xbf16>, vector<8x256xf32> -> vector<8x256xf32>
    %c0_19 = arith.constant 0 : index
    %c0_20 = arith.constant 0 : index
    %19 = vector.load %arg6[%c0_19, %c0_20] : memref<1x256xf32, #tpu.memory_space<vmem>>, vector<1x256xf32>
    %20 = vector.broadcast %19 : vector<1x256xf32> to vector<8x256xf32>
    %21 = arith.addf %18, %20 : vector<8x256xf32>
    %cst_21 = arith.constant 0.000000e+00 : f32
    %22 = vector.broadcast %cst_21 : f32 to vector<8x64xf32>
    %23 = vector.extract_strided_slice %21 {offsets = [0, 0], sizes = [8, 192], strides = [1, 1]} : vector<8x256xf32> to vector<8x192xf32>
    %24 = arith.negf %23 : vector<8x192xf32>
    %25 = math.exp %24 : vector<8x192xf32>
    %cst_22 = arith.constant 1.000000e+00 : f32
    %26 = vector.broadcast %cst_22 : f32 to vector<8x192xf32>
    %27 = arith.addf %26, %25 : vector<8x192xf32>
    %28 = arith.divf %26, %27 : vector<8x192xf32>
    %29 = vector.extract_strided_slice %21 {offsets = [0, 192], sizes = [8, 64], strides = [1, 1]} : vector<8x256xf32> to vector<8x64xf32>
    %30 = math.tanh %29 : vector<8x64xf32>
    %31 = vector.extract_strided_slice %28 {offsets = [0, 0], sizes = [8, 64], strides = [1, 1]} : vector<8x192xf32> to vector<8x64xf32>
    %32 = vector.extract_strided_slice %28 {offsets = [0, 64], sizes = [8, 64], strides = [1, 1]} : vector<8x192xf32> to vector<8x64xf32>
    %33 = vector.extract_strided_slice %28 {offsets = [0, 128], sizes = [8, 64], strides = [1, 1]} : vector<8x192xf32> to vector<8x64xf32>
    %34 = arith.mulf %32, %22 : vector<8x64xf32>
    %35 = arith.mulf %31, %30 : vector<8x64xf32>
    %36 = arith.addf %34, %35 : vector<8x64xf32>
    %37 = math.tanh %36 : vector<8x64xf32>
    %38 = arith.mulf %33, %37 : vector<8x64xf32>
    %39 = tpu.concatenate %14#0, %38 in 1 : vector<8x64xf32>, vector<8x64xf32> -> vector<8x128xf32>
    %40 = arith.truncf %39 : vector<8x128xf32> to vector<8x128xbf16>
    %c0_23 = arith.constant 0 : index
    %c0_24 = arith.constant 0 : index
    %41 = vector.load %arg7[%c0_23, %c0_24] : memref<128x64xbf16, #tpu.memory_space<vmem>>, vector<128x64xbf16>
    %cst_25 = arith.constant dense<0.000000e+00> : vector<8x64xf32>
    %42 = tpu.matmul %40, %41, %cst_25 {dimension_numbers = #tpu.dot_dimension_numbers<[1], [0], [0], [1], [0, 0, 1, 1], [], []>} : vector<8x128xbf16>, vector<128x64xbf16>, vector<8x64xf32> -> vector<8x64xf32>
    %c0_26 = arith.constant 0 : index
    %c0_27 = arith.constant 0 : index
    %43 = vector.load %arg8[%c0_26, %c0_27] : memref<1x64xf32, #tpu.memory_space<vmem>>, vector<1x64xf32>
    %44 = vector.broadcast %43 : vector<1x64xf32> to vector<8x64xf32>
    %45 = arith.addf %42, %44 : vector<8x64xf32>
    %cst_28 = arith.constant 0.000000e+00 : f32
    %46 = vector.broadcast %cst_28 : f32 to vector<8x64xf32>
    %47 = arith.maximumf %45, %46 : vector<8x64xf32>
    %48 = arith.truncf %47 : vector<8x64xf32> to vector<8x64xbf16>
    %c0_29 = arith.constant 0 : index
    %c0_30 = arith.constant 0 : index
    %49 = vector.load %arg9[%c0_29, %c0_30] : memref<64x1xbf16, #tpu.memory_space<vmem>>, vector<64x1xbf16>
    %cst_31 = arith.constant dense<0.000000e+00> : vector<8x1xf32>
    %50 = tpu.matmul %48, %49, %cst_31 {dimension_numbers = #tpu.dot_dimension_numbers<[1], [0], [0], [1], [0, 0, 1, 1], [], []>} : vector<8x64xbf16>, vector<64x1xbf16>, vector<8x1xf32> -> vector<8x1xf32>
    %c0_32 = arith.constant 0 : index
    %c0_33 = arith.constant 0 : index
    %51 = vector.load %arg10[%c0_32, %c0_33] : memref<1x1xf32, #tpu.memory_space<vmem>>, vector<1x1xf32>
    %52 = vector.broadcast %51 : vector<1x1xf32> to vector<8x1xf32>
    %53 = arith.addf %50, %52 : vector<8x1xf32>
    %c0_34 = arith.constant 0 : index
    %c0_35 = arith.constant 0 : index
    %54 = vector.load %arg11[%c0_34, %c0_35] : memref<128x128xbf16, #tpu.memory_space<vmem>>, vector<128x128xbf16>
    %cst_36 = arith.constant dense<0.000000e+00> : vector<8x128xf32>
    %55 = tpu.matmul %40, %54, %cst_36 {dimension_numbers = #tpu.dot_dimension_numbers<[1], [0], [0], [1], [0, 0, 1, 1], [], []>} : vector<8x128xbf16>, vector<128x128xbf16>, vector<8x128xf32> -> vector<8x128xf32>
    %c0_37 = arith.constant 0 : index
    %c0_38 = arith.constant 0 : index
    %56 = vector.load %arg12[%c0_37, %c0_38] : memref<1x128xf32, #tpu.memory_space<vmem>>, vector<1x128xf32>
    %57 = vector.broadcast %56 : vector<1x128xf32> to vector<8x128xf32>
    %58 = arith.addf %55, %57 : vector<8x128xf32>
    %cst_39 = arith.constant 0.000000e+00 : f32
    %59 = vector.broadcast %cst_39 : f32 to vector<8x128xf32>
    %60 = arith.maximumf %58, %59 : vector<8x128xf32>
    %61 = arith.truncf %60 : vector<8x128xf32> to vector<8x128xbf16>
    %c0_40 = arith.constant 0 : index
    %c0_41 = arith.constant 0 : index
    %62 = vector.load %arg13[%c0_40, %c0_41] : memref<128x2xbf16, #tpu.memory_space<vmem>>, vector<128x2xbf16>
    %cst_42 = arith.constant dense<0.000000e+00> : vector<8x2xf32>
    %63 = tpu.matmul %61, %62, %cst_42 {dimension_numbers = #tpu.dot_dimension_numbers<[1], [0], [0], [1], [0, 0, 1, 1], [], []>} : vector<8x128xbf16>, vector<128x2xbf16>, vector<8x2xf32> -> vector<8x2xf32>
    %c0_43 = arith.constant 0 : index
    %c0_44 = arith.constant 0 : index
    %64 = vector.load %arg14[%c0_43, %c0_44] : memref<1x2xf32, #tpu.memory_space<vmem>>, vector<1x2xf32>
    %65 = vector.broadcast %64 : vector<1x2xf32> to vector<8x2xf32>
    %66 = arith.addf %63, %65 : vector<8x2xf32>
    %c0_45 = arith.constant 0 : index
    %c0_46 = arith.constant 0 : index
    %67 = vector.load %arg15[%c0_45, %c0_46] : memref<8x1xf32, #tpu.memory_space<vmem>>, vector<8x1xf32>
    tpu.vector_store %arg15[%c0_45, %c0_46], %53 {strides = array<i32>} : memref<8x1xf32, #tpu.memory_space<vmem>>, vector<8x1xf32>,
    %c0_47 = arith.constant 0 : index
    %c0_48 = arith.constant 0 : index
    %68 = vector.load %arg16[%c0_47, %c0_48] : memref<8x2xf32, #tpu.memory_space<vmem>>, vector<8x2xf32>
    tpu.vector_store %arg16[%c0_47, %c0_48], %66 {strides = array<i32>} : memref<8x2xf32, #tpu.memory_space<vmem>>, vector<8x2xf32>,
    return
  }
  func.func @transform_0(%arg0: i32) -> (i32, i32, i32) {
    %c0_i32 = arith.constant 0 : i32
    %c0_i32_0 = arith.constant 0 : i32
    %c0_i32_1 = arith.constant 0 : i32
    return %c0_i32, %arg0, %c0_i32_0 : i32, i32, i32
  }
  func.func @transform_1(%arg0: i32) -> (i32, i32) {
    %c0_i32 = arith.constant 0 : i32
    %c0_i32_0 = arith.constant 0 : i32
    %c0_i32_1 = arith.constant 0 : i32
    return %c0_i32, %c0_i32_0 : i32, i32
  }
  func.func @transform_2(%arg0: i32) -> (i32, i32) {
    %c0_i32 = arith.constant 0 : i32
    %c0_i32_0 = arith.constant 0 : i32
    %c0_i32_1 = arith.constant 0 : i32
    return %c0_i32, %c0_i32_0 : i32, i32
  }
  func.func @transform_3(%arg0: i32) -> (i32, i32) {
    %c0_i32 = arith.constant 0 : i32
    %c0_i32_0 = arith.constant 0 : i32
    %c0_i32_1 = arith.constant 0 : i32
    return %c0_i32, %c0_i32_0 : i32, i32
  }
  func.func @transform_4(%arg0: i32) -> (i32, i32) {
    %c0_i32 = arith.constant 0 : i32
    %c0_i32_0 = arith.constant 0 : i32
    %c0_i32_1 = arith.constant 0 : i32
    return %c0_i32, %c0_i32_0 : i32, i32
  }
  func.func @transform_5(%arg0: i32) -> (i32, i32) {
    %c0_i32 = arith.constant 0 : i32
    %c0_i32_0 = arith.constant 0 : i32
    %c0_i32_1 = arith.constant 0 : i32
    return %c0_i32, %c0_i32_0 : i32, i32
  }
  func.func @transform_6(%arg0: i32) -> (i32, i32) {
    %c0_i32 = arith.constant 0 : i32
    %c0_i32_0 = arith.constant 0 : i32
    %c0_i32_1 = arith.constant 0 : i32
    return %c0_i32, %c0_i32_0 : i32, i32
  }
  func.func @transform_7(%arg0: i32) -> (i32, i32) {
    %c0_i32 = arith.constant 0 : i32
    %c0_i32_0 = arith.constant 0 : i32
    %c0_i32_1 = arith.constant 0 : i32
    return %c0_i32, %c0_i32_0 : i32, i32
  }
  func.func @transform_8(%arg0: i32) -> (i32, i32) {
    %c0_i32 = arith.constant 0 : i32
    %c0_i32_0 = arith.constant 0 : i32
    %c0_i32_1 = arith.constant 0 : i32
    return %c0_i32, %c0_i32_0 : i32, i32
  }
  func.func @transform_9(%arg0: i32) -> (i32, i32) {
    %c0_i32 = arith.constant 0 : i32
    %c0_i32_0 = arith.constant 0 : i32
    %c0_i32_1 = arith.constant 0 : i32
    return %c0_i32, %c0_i32_0 : i32, i32
  }
  func.func @transform_10(%arg0: i32) -> (i32, i32) {
    %c0_i32 = arith.constant 0 : i32
    %c0_i32_0 = arith.constant 0 : i32
    %c0_i32_1 = arith.constant 0 : i32
    return %c0_i32, %c0_i32_0 : i32, i32
  }
  func.func @transform_11(%arg0: i32) -> (i32, i32) {
    %c0_i32 = arith.constant 0 : i32
    %c0_i32_0 = arith.constant 0 : i32
    %c0_i32_1 = arith.constant 0 : i32
    return %c0_i32, %c0_i32_0 : i32, i32
  }
  func.func @transform_12(%arg0: i32) -> (i32, i32) {
    %c0_i32 = arith.constant 0 : i32
    %c0_i32_0 = arith.constant 0 : i32
    %c0_i32_1 = arith.constant 0 : i32
    return %c0_i32, %c0_i32_0 : i32, i32
  }
  func.func @transform_13(%arg0: i32) -> (i32, i32) {
    %c0_i32 = arith.constant 0 : i32
    %c0_i32_0 = arith.constant 0 : i32
    %c0_i32_1 = arith.constant 0 : i32
    return %c0_i32, %c0_i32_0 : i32, i32
  }
  func.func @transform_14(%arg0: i32) -> (i32, i32) {
    %c0_i32 = arith.constant 0 : i32
    %c0_i32_0 = arith.constant 0 : i32
    return %arg0, %c0_i32 : i32, i32
  }
  func.func @transform_15(%arg0: i32) -> (i32, i32) {
    %c0_i32 = arith.constant 0 : i32
    %c0_i32_0 = arith.constant 0 : i32
    return %arg0, %c0_i32 : i32, i32
  }
}

</mosaic_0001>

<llo_original>
// kernel: eeg_forward.6
$region0: #{eeg_forward.6}
  #allocation0 [shape = 'u32[]', space=smem, size = 0x4, offset = 0x4, fixed_abs, tag = 'smem constant byte address 0x4 - core index']
  #allocation1 [shape = 'u32[144,128]{1,0:T(1,128)}', space=vmem, size = 0x12000, scoped, tag = 'internal scratch']
  %s0 = inlined_call_operand.vmem [shape: bf16[2,144,32], index: 0, kind: input, shape index: {}, may-alias: {0,1}]
  %s1 = inlined_call_operand.vmem [shape: bf16[2,144,32], index: 1, kind: input, shape index: {}, may-alias: {0,1}]
  %s2 = inlined_call_operand.vmem [shape: bf16[32,192], index: 2, kind: input, shape index: {}]
  %s3 = inlined_call_operand.vmem [shape: f32[1,64], index: 3, kind: input, shape index: {}]
  %s4 = inlined_call_operand.vmem [shape: bf16[2,64,64], index: 4, kind: output, shape index: {}]
  %s5 = sld [smem:[#allocation0]]
  $region49: #{eeg_forward.6} parent=0
    _
  %s7 = ssub.s32 1, %s5
  %s8 = scalar_select 0, %s7, %s5
  loop: start=0, step=1, limit=4
  $region2: #{eeg_forward.6} parent=0 // loop_pre_header
    _
  $region3: #{eeg_forward.6} parent=0 // loop_header
    %s10 = sphi 0, %s14
    %p11 = scmp.ge.s32.totalorder %s10, 4
    %s17 = sphi 0, %s29
    %s18 = sphi 0, %s25
    %s19 = sphi 0, %s17
    %s20 = sphi 0, %s18
    %s21 = sphi 0, %s19
    %s22 = sphi 0, %s20
    %s34 = sphi 0, %s36
    %s37 = sphi 0, %s34
    %s38 = sphi 0, %s37
    %s54 = sphi 0, %s38
    %s66 = sphi 0, %s68
    %s69 = sphi 0, %s66
    %s70 = sphi 0, %s69
    %s86 = sphi 0, %s70
    %s90 = sphi 0, %s90
    %s92 = sphi 0, %s90
    %s93 = sphi 0, %s92
    %s107 = sphi 0, %s93
    %s111 = sphi 0, %s111
    %s113 = sphi 0, %s111
    %s114 = sphi 0, %s113
    %s128 = sphi 0, %s114
    %s136 = sphi 0, %s138
    %s139 = sphi 0, %s136
    %s140 = sphi 0, %s139
    %s156 = sphi 0, %s140
  $region4: #{eeg_forward.6} parent=0 // loop_header_branch
    %13 = sbr.rel (%p11) target = $region8
  $region5: #{eeg_forward.6} parent=0 // loop_body
    %s15 = ssub.s32 %s10, 1
    %s16 = ssub.s32 %s10, 2
    %s23 = sadd.s32 1, %s18
    %p24 = scmp.ge.s32.totalorder %s23, 1
    %s25 = scalar_select %p24, 0, %s23
    %s26 = sadd.s32 1, %s17
    %s27 = scalar_select %p24, %s26, %s17
    %p28 = scmp.ge.s32.totalorder %s27, 2
    %s29 = scalar_select %p28, 0, %s27
    %s30 = ssub.s32 %s17, %s29
    %s31 = ssub.s32 %s18, %s25
    %s32 = sor.u32 %s30, %s31
    %p33 = scmp.eq.s32.totalorder %s32, 0
    %s35 = sadd.s32 %s34, 1
    %s36 = scalar_select %p33, %s34, %s35
    %p39 = pneg %p33
    %p40 = scmp.eq.s32.totalorder %s10, 1
    %p41 = por %p39, %p40
    %p42 = scmp.ne.s32.totalorder %s34, %s37
    %p43 = scmp.eq.s32.totalorder %s10, 0
    %p44 = por %p42, %p43
    %p45 = scmp.ne.s32.totalorder %s34, %s37
    %p46 = scmp.eq.s32.totalorder %s15, 1
    %p47 = por %p45, %p46
    %p48 = scmp.ne.s32.totalorder %s37, %s38
    %p49 = scmp.eq.s32.totalorder %s15, 0
    %p50 = por %p48, %p49
    %p51 = scmp.ne.s32.totalorder %s37, %s38
    %p52 = scmp.eq.s32.totalorder %s16, 1
    %p53 = por %p51, %p52
    %p55 = scmp.ne.s32.totalorder %s38, %s54
    %p56 = scmp.eq.s32.totalorder %s16, 0
    %p57 = por %p55, %p56
    %s58 = sadd.s32 %s18, 1
    %s59 = smul.u32 %s58, 8
    %s60 = sadd.s32 %s25, 1
    %s61 = smul.u32 %s60, 8
    %s62 = ssub.s32 %s17, %s29
    %s63 = ssub.s32 %s59, %s61
    %s64 = sor.u32 %s62, %s63
    %p65 = scmp.eq.s32.totalorder %s64, 0
    %s67 = sadd.s32 %s66, 1
    %s68 = scalar_select %p65, %s66, %s67
    %p71 = pneg %p65
    %p72 = scmp.eq.s32.totalorder %s10, 1
    %p73 = por %p71, %p72
    %p74 = scmp.ne.s32.totalorder %s66, %s69
    %p75 = scmp.eq.s32.totalorder %s10, 0
    %p76 = por %p74, %p75
    %p77 = scmp.ne.s32.totalorder %s66, %s69
    %p78 = scmp.eq.s32.totalorder %s15, 1
    %p79 = por %p77, %p78
    %p80 = scmp.ne.s32.totalorder %s69, %s70
    %p81 = scmp.eq.s32.totalorder %s15, 0
    %p82 = por %p80, %p81
    %p83 = scmp.ne.s32.totalorder %s69, %s70
    %p84 = scmp.eq.s32.totalorder %s16, 1
    %p85 = por %p83, %p84
    %p87 = scmp.ne.s32.totalorder %s70, %s86
    %p88 = scmp.eq.s32.totalorder %s16, 0
    %p89 = por %p87, %p88
    %s91 = sadd.s32 %s90, 1
    %p94 = scmp.eq.s32.totalorder %s10, 1
    %p95 = scmp.ne.s32.totalorder %s90, %s92
    %p96 = scmp.eq.s32.totalorder %s10, 0
    %p97 = por %p95, %p96
    %p98 = scmp.ne.s32.totalorder %s90, %s92
    %p99 = scmp.eq.s32.totalorder %s15, 1
    %p100 = por %p98, %p99
    %p101 = scmp.ne.s32.totalorder %s92, %s93
    %p102 = scmp.eq.s32.totalorder %s15, 0
    %p103 = por %p101, %p102
    %p104 = scmp.ne.s32.totalorder %s92, %s93
    %p105 = scmp.eq.s32.totalorder %s16, 1
    %p106 = por %p104, %p105
    %p108 = scmp.ne.s32.totalorder %s93, %s107
    %p109 = scmp.eq.s32.totalorder %s16, 0
    %p110 = por %p108, %p109
    %s112 = sadd.s32 %s111, 1
    %p115 = scmp.eq.s32.totalorder %s10, 1
    %p116 = scmp.ne.s32.totalorder %s111, %s113
    %p117 = scmp.eq.s32.totalorder %s10, 0
    %p118 = por %p116, %p117
    %p119 = scmp.ne.s32.totalorder %s111, %s113
    %p120 = scmp.eq.s32.totalorder %s15, 1
    %p121 = por %p119, %p120
    %p122 = scmp.ne.s32.totalorder %s113, %s114
    %p123 = scmp.eq.s32.totalorder %s15, 0
    %p124 = por %p122, %p123
    %p125 = scmp.ne.s32.totalorder %s113, %s114
    %p126 = scmp.eq.s32.totalorder %s16, 1
    %p127 = por %p125, %p126
    %p129 = scmp.ne.s32.totalorder %s114, %s128
    %p130 = scmp.eq.s32.totalorder %s16, 0
    %p131 = por %p129, %p130
    %s132 = ssub.s32 %s17, %s29
    %s133 = ssub.s32 %s18, %s25
    %s134 = sor.u32 %s132, %s133
    %p135 = scmp.eq.s32.totalorder %s134, 0
    %s137 = sadd.s32 %s136, 1
    %s138 = scalar_select %p135, %s136, %s137
    %p141 = pneg %p135
    %p142 = scmp.eq.s32.totalorder %s10, 1
    %p143 = por %p141, %p142
    %p144 = scmp.ne.s32.totalorder %s136, %s139
    %p145 = scmp.eq.s32.totalorder %s10, 0
    %p146 = por %p144, %p145
    %p147 = scmp.ne.s32.totalorder %s136, %s139
    %p148 = scmp.eq.s32.totalorder %s15, 1
    %p149 = por %p147, %p148
    %p150 = scmp.ne.s32.totalorder %s139, %s140
    %p151 = scmp.eq.s32.totalorder %s15, 0
    %p152 = por %p150, %p151
    %p153 = scmp.ne.s32.totalorder %s139, %s140
    %p154 = scmp.eq.s32.totalorder %s16, 1
    %p155 = por %p153, %p154
    %p157 = scmp.ne.s32.totalorder %s140, %s156
    %p158 = scmp.eq.s32.totalorder %s16, 0
    %p159 = por %p157, %p158
    %p160 = scmp.le.s32.totalorder 1, %s10
    %p161 = scmp.lt.s32.totalorder %s10, 3
    %p162 = pnand %p160, %p161
    %p163 = pneg %p162
    // Predicated region
    $region9: #{eeg_forward.6} parent=5 // pred_check
      _
    $region10: #{eeg_forward.6} parent=5 // pred_check_branch
      %165 = sbr.rel (%p162) target = $region12
    $region11: #{eeg_forward.6} parent=5 // pred_region
      %s166 = ssub.s32 %s10, 1
      // Predicated region
      $region13: #{eeg_forward.6} parent=11 // pred_check
        %p167 = pneg %p103
      $region14: #{eeg_forward.6} parent=11 // pred_check_branch
        %169 = sbr.rel (%p167) target = $region16
      $region15: #{eeg_forward.6} parent=11 // pred_region
        _
      $region16: #{eeg_forward.6} parent=11 // pred_fallthru
        _
      // Predicated region
      $region17: #{eeg_forward.6} parent=11 // pred_check
        %p170 = pneg %p124
      $region18: #{eeg_forward.6} parent=11 // pred_check_branch
        %172 = sbr.rel (%p170) target = $region20
      $region19: #{eeg_forward.6} parent=11 // pred_region
        _
      $region20: #{eeg_forward.6} parent=11 // pred_fallthru
        _
    $region12: #{eeg_forward.6} parent=5 // pred_fallthru
      _
    %p173 = scmp.lt.s32.totalorder %s10, 2
    // Predicated region
    $region21: #{eeg_forward.6} parent=5 // pred_check
      %p174 = pneg %p173
    $region22: #{eeg_forward.6} parent=5 // pred_check_branch
      %176 = sbr.rel (%p174) target = $region24
    $region23: #{eeg_forward.6} parent=5 // pred_region
      // Predicated region
      $region25: #{eeg_forward.6} parent=23 // pred_check
        %p177 = pneg %p44
      $region26: #{eeg_forward.6} parent=23 // pred_check_branch
        %179 = sbr.rel (%p177) target = $region28
      $region27: #{eeg_forward.6} parent=23 // pred_region
        %s180 = smul.u32 16, %s18
        %s181 = ssub.s32 18, %s180
        %p182 = scmp.lt.s32.totalorder %s181, 16
        %s183 = scalar_select %p182, %s181, 16
        %s184 = smul.u32 64, %s183
        %p185 = scmp.lt.s32.totalorder %s17, 1
        %s186 = scalar_select %p185, %s17, 1
        %p187 = scmp.lt.s32.totalorder %s180, 17
        %s188 = scalar_select %p187, %s180, 17
        %s189 = smul.addr %s186, 18
        %s190 = sadd.s32 %s188, %s189
        %s191 = smul.addr %s190, 4
        %s192 = scalar_lea.vmem %s0, %s191
        %s193 = smul.u32 16, %s18
        %s194 = ssub.s32 18, %s193
        %p195 = scmp.lt.s32.totalorder %s194, 16
        %s196 = scalar_select %p195, %s194, 16
        %s197 = smul.u32 64, %s196
      $region28: #{eeg_forward.6} parent=23 // pred_fallthru
        _
      // Predicated region
      $region29: #{eeg_forward.6} parent=23 // pred_check
        %p198 = pneg %p76
      $region30: #{eeg_forward.6} parent=23 // pred_check_branch
        %200 = sbr.rel (%p198) target = $region32
      $region31: #{eeg_forward.6} parent=23 // pred_region
        %s201 = sadd.s32 %s18, 1
        %s202 = smul.u32 %s201, 8
        %s203 = smul.u32 2, %s202
        %p204 = scmp.lt.s32.totalorder %s17, 1
        %s205 = scalar_select %p204, %s17, 1
        %p206 = scmp.lt.s32.totalorder %s203, 17
        %s207 = scalar_select %p206, %s203, 17
        %s208 = smul.addr %s205, 18
        %s209 = sadd.s32 %s207, %s208
        %s210 = smul.addr %s209, 4
        %s211 = scalar_lea.vmem %s1, %s210
        %s212 = sadd.s32 %s18, 1
        %s213 = smul.u32 %s212, 8
        %s214 = smul.u32 2, %s213
      $region32: #{eeg_forward.6} parent=23 // pred_fallthru
        _
    $region24: #{eeg_forward.6} parent=5 // pred_fallthru
      _
    %p215 = scmp.le.s32.totalorder 1, %s10
    %p216 = scmp.lt.s32.totalorder %s10, 3
    %p217 = pnand %p215, %p216
    %p218 = pneg %p217
    // Predicated region
    $region33: #{eeg_forward.6} parent=5 // pred_check
      _
    $region34: #{eeg_forward.6} parent=5 // pred_check_branch
      %220 = sbr.rel (%p217) target = $region36
    $region35: #{eeg_forward.6} parent=5 // pred_region
      %s221 = ssub.s32 %s10, 1
      %s222 = smul.u32 16, %s20
      %s223 = ssub.s32 18, %s222
      %p224 = scmp.lt.s32.totalorder %s223, 16
      %s225 = scalar_select %p224, %s223, 16
      %s226 = smul.u32 64, %s225
      %p227 = scmp.lt.s32.totalorder %s19, 1
      %s228 = scalar_select %p227, %s19, 1
      %p229 = scmp.lt.s32.totalorder %s222, 17
      %s230 = scalar_select %p229, %s222, 17
      %s231 = smul.addr %s228, 18
      %s232 = sadd.s32 %s230, %s231
      %s233 = smul.addr %s232, 4
      %s234 = scalar_lea.vmem %s0, %s233
      %p235 = pneg %p50
      %p236 = pneg %p47
      %s237 = sadd.s32 %s20, 1
      %s238 = smul.u32 %s237, 8
      %s239 = smul.u32 2, %s238
      %p240 = scmp.lt.s32.totalorder %s19, 1
      %s241 = scalar_select %p240, %s19, 1
      %p242 = scmp.lt.s32.totalorder %s239, 17
      %s243 = scalar_select %p242, %s239, 17
      %s244 = smul.addr %s241, 18
      %s245 = sadd.s32 %s243, %s244
      %s246 = smul.addr %s245, 4
      %s247 = scalar_lea.vmem %s1, %s246
      %p248 = pneg %p82
      %p249 = pneg %p79
      %p250 = pneg %p103
      %p251 = pneg %p100
      %p252 = pneg %p124
      %p253 = pneg %p121
      %p254 = pneg %p152
      %p255 = pneg %p149
      %s256 = smul.u32 8, %s20
      %p257 = scmp.lt.s32.totalorder %s19, 1
      %s258 = scalar_select %p257, %s19, 1
      %p259 = scmp.lt.s32.totalorder %s256, 7
      %s260 = scalar_select %p259, %s256, 7
      %s261 = smul.addr %s258, 8
      %s262 = sadd.s32 %s260, %s261
      %s263 = smul.addr %s262, 4
      %s264 = scalar_lea.vmem %s4, %s263
      %s265 = smul.u32 16, %s20
      %s266 = ssub.s32 18, %s265
      %p267 = scmp.lt.s32.totalorder %s266, 16
      %s268 = scalar_select %p267, %s266, 16
      %s269 = smul.u32 64, %s268
      %p270 = scmp.lt.s32.totalorder %s19, 1
      %s271 = scalar_select %p270, %s19, 1
      %p272 = scmp.lt.s32.totalorder %s265, 17
      %s273 = scalar_select %p272, %s265, 17
      %s274 = smul.addr %s271, 18
      %s275 = sadd.s32 %s273, %s274
      %s276 = smul.addr %s275, 4
      %s277 = scalar_lea.vmem %s0, %s276
      %s278 = smul.u32 16, %s20
      %s279 = ssub.s32 18, %s278
      %p280 = scmp.lt.s32.totalorder %s279, 16
      %s281 = scalar_select %p280, %s279, 16
      %s282 = smul.u32 64, %s281
      %s283 = sadd.s32 %s20, 1
      %s284 = smul.u32 %s283, 8
      %s285 = smul.u32 2, %s284
      %p286 = scmp.lt.s32.totalorder %s19, 1
      %s287 = scalar_select %p286, %s19, 1
      %p288 = scmp.lt.s32.totalorder %s285, 17
      %s289 = scalar_select %p288, %s285, 17
      %s290 = smul.addr %s287, 18
      %s291 = sadd.s32 %s289, %s290
      %s292 = smul.addr %s291, 4
      %s293 = scalar_lea.vmem %s1, %s292
      %s294 = sadd.s32 %s20, 1
      %s295 = smul.u32 %s294, 8
      %s296 = smul.u32 2, %s295
      %s297 = smul.u32 8, %s20
      %p298 = scmp.lt.s32.totalorder %s19, 1
      %s299 = scalar_select %p298, %s19, 1
      %p300 = scmp.lt.s32.totalorder %s297, 7
      %s301 = scalar_select %p300, %s297, 7
      %s302 = smul.addr %s299, 8
      %s303 = sadd.s32 %s301, %s302
      %s304 = smul.addr %s303, 4
      %s305 = scalar_lea.vmem %s4, %s304
      %s306 = smul.u32 8, %s20
      %v308 = vld [vmem:[%s277] sm:$0xf]
      %v309 = vld [vmem:[%s277 + $0x4] sm:$0xf]
      %v310 = vld [vmem:[%s277 + $0x8] sm:$0xf]
      %v311 = vld [vmem:[%s277 + $0xc] sm:$0xf]
      %v312 = vld [vmem:[%s277 + $0x10] sm:$0xf]
      %v313 = vld [vmem:[%s277 + $0x14] sm:$0xf]
      %v314 = vld [vmem:[%s277 + $0x18] sm:$0xf]
      %v315 = vld [vmem:[%s277 + $0x1c] sm:$0xf]
      %v316 = vld [vmem:[%s277 + $0x20] sm:$0xf]
      %v317 = vld [vmem:[%s277 + $0x24] sm:$0xf]
      %v318 = vld [vmem:[%s277 + $0x28] sm:$0xf]
      %v319 = vld [vmem:[%s277 + $0x2c] sm:$0xf]
      %v320 = vld [vmem:[%s277 + $0x30] sm:$0xf]
      %v321 = vld [vmem:[%s277 + $0x34] sm:$0xf]
      %v322 = vld [vmem:[%s277 + $0x38] sm:$0xf]
      %v323 = vld [vmem:[%s277 + $0x3c] sm:$0xf]
      %v324 = vld [vmem:[%s293] sm:$0xf]
      %v325 = vld [vmem:[%s293 + $0x4] sm:$0xf]
      %v342 = vunpack.c.l.b16 %v308
      %v343 = vunpack.c.l.b16 %v309
      %v344 = vunpack.c.l.b16 %v310
      %v345 = vunpack.c.l.b16 %v311
      %v346 = vunpack.c.l.b16 %v312
      %v347 = vunpack.c.l.b16 %v313
      %v348 = vunpack.c.l.b16 %v314
      %v349 = vunpack.c.l.b16 %v315
      %v350 = vunpack.c.l.b16 %v316
      %v351 = vunpack.c.l.b16 %v317
      %v352 = vunpack.c.l.b16 %v318
      %v353 = vunpack.c.l.b16 %v319
      %v354 = vunpack.c.l.b16 %v320
      %v355 = vunpack.c.l.b16 %v321
      %v356 = vunpack.c.l.b16 %v322
      %v357 = vunpack.c.l.b16 %v323
      %v358 = vpack.c.b16 %v343, %v342
      %v359 = vpack.c.b16 %v345, %v344
      %v360 = vpack.c.b16 %v347, %v346
      %v361 = vpack.c.b16 %v349, %v348
      %v362 = vpack.c.b16 %v351, %v350
      %v363 = vpack.c.b16 %v353, %v352
      %v364 = vpack.c.b16 %v355, %v354
      %v365 = vpack.c.b16 %v357, %v356
      %v368 = vunpack.c.l.b16 %v324
      %v369 = vunpack.c.l.b16 %v325
      %v370 = vpack.c.b16 %v369, %v368
      %v371 = vld [vmem:[%s2] sm:$0xff]
      %v372 = vld [vmem:[%s2 + $0x8] sm:$0xff]
      %v373 = vld [vmem:[%s2 + $0x10] sm:$0xff]
      %v374 = vld [vmem:[%s2 + $0x18] sm:$0xff]
      %v379 = vunpack.c.l.b16 %v371
      %v380 = vunpack.c.h.b16 %v371
      %v381 = vunpack.c.l.b16 %v372
      %v382 = vunpack.c.h.b16 %v372
      %v383 = vunpack.c.l.b16 %v373
      %v384 = vunpack.c.h.b16 %v373
      %v385 = vunpack.c.l.b16 %v374
      %v386 = vunpack.c.h.b16 %v374
      %v387 = vpack.c.b16 %v381, %v379
      %v388 = vpack.c.b16 %v382, %v380
      %v389 = vpack.c.b16 %v385, %v383
      %v390 = vpack.c.b16 %v386, %v384
      %vm395 = vcmask 261120
      %v397 = vsel %vm395, %v358, 0
      %v400 = vsel %vm395, %v359, 0
      %v403 = vsel %vm395, %v360, 0
      %v406 = vsel %vm395, %v361, 0
      %v409 = vsel %vm395, %v362, 0
      %v412 = vsel %vm395, %v363, 0
      %v415 = vsel %vm395, %v364, 0
      %v418 = vsel %vm395, %v365, 0
      %v421 = vsel %vm395, %v370, 0
      %423 = vmatprep.subr.bf16.mxu0 %v388
      %424 = vmatpush1.bf16.msra.mxu0 %v387
      %425 = vmatprep.subr.bf16.mxu0 %v390
      %426 = vmatpush1.bf16.msra.mxu0 %v389
      %427 = vmatprep.subr.bf16.mxu0 0
      %428 = vmatpush1.bf16.msra.mxu0 0
      %429 = vmatprep.subr.bf16.mxu0 0
      %430 = vmatpush1.bf16.msra.mxu0 0
      %431 = vmatprep.subr.bf16.mxu0 0
      %432 = vmatpush1.bf16.msra.mxu0 0
      %433 = vmatprep.subr.bf16.mxu0 0
      %434 = vmatpush1.bf16.msra.mxu0 0
      %435 = vmatprep.subr.bf16.mxu0 0
      %436 = vmatpush1.bf16.msra.mxu0 0
      %437 = vmatprep.subr.bf16.mxu0 0
      %438 = vmatpush1.bf16.msra.mxu0 0
      %439 = vmatprep.subr.bf16.mxu0 0
      %440 = vmatpush1.bf16.msra.mxu0 0
      %441 = vmatprep.subr.bf16.mxu0 0
      %442 = vmatpush1.bf16.msra.mxu0 0
      %443 = vmatprep.subr.bf16.mxu0 0
      %444 = vmatpush1.bf16.msra.mxu0 0
      %445 = vmatprep.subr.bf16.mxu0 0
      %446 = vmatpush1.bf16.msra.mxu0 0
      %447 = vmatprep.subr.bf16.mxu0 0
      %448 = vmatpush1.bf16.msra.mxu0 0
      %449 = vmatprep.subr.bf16.mxu0 0
      %450 = vmatpush1.bf16.msra.mxu0 0
      %451 = vmatprep.subr.bf16.mxu0 0
      %452 = vmatpush1.bf16.msra.mxu0 0
      %453 = vmatprep.subr.bf16.mxu0 0
      %454 = vmatpush1.bf16.msra.mxu0 0
      %455 = vmatprep.mubr.bf16.mxu0 0
      %456 = vmatmul.mubr.bf16.gmra.mrb[0].mxu0 %v397
      %v457 = vpop.f32.mrb[0].mxu0
      %v458 = vadd.f32 0.0, %v457
      %v459 = vpop.f32.mrb[0].mxu0
      %v460 = vadd.f32 0.0, %v459
      %v461 = vpop.f32.mrb[0].mxu0
      %v462 = vadd.f32 0.0, %v461
      %v463 = vpop.f32.mrb[0].mxu0
      %v464 = vadd.f32 0.0, %v463
      %465 = vmatprep.mubr.bf16.mxu0 0
      %466 = vmatmul.mubr.bf16.gmra.mrb[0].mxu0 %v400
      %v467 = vpop.f32.mrb[0].mxu0
      %v468 = vadd.f32 0.0, %v467
      %v469 = vpop.f32.mrb[0].mxu0
      %v470 = vadd.f32 0.0, %v469
      %v471 = vpop.f32.mrb[0].mxu0
      %v472 = vadd.f32 0.0, %v471
      %v473 = vpop.f32.mrb[0].mxu0
      %v474 = vadd.f32 0.0, %v473
      %475 = vmatprep.mubr.bf16.mxu0 0
      %476 = vmatmul.mubr.bf16.gmra.mrb[0].mxu0 %v403
      %v477 = vpop.f32.mrb[0].mxu0
      %v478 = vadd.f32 0.0, %v477
      %v479 = vpop.f32.mrb[0].mxu0
      %v480 = vadd.f32 0.0, %v479
      %v481 = vpop.f32.mrb[0].mxu0
      %v482 = vadd.f32 0.0, %v481
      %v483 = vpop.f32.mrb[0].mxu0
      %v484 = vadd.f32 0.0, %v483
      %485 = vmatprep.mubr.bf16.mxu0 0
      %486 = vmatmul.mubr.bf16.gmra.mrb[0].mxu0 %v406
      %v487 = vpop.f32.mrb[0].mxu0
      %v488 = vadd.f32 0.0, %v487
      %v489 = vpop.f32.mrb[0].mxu0
      %v490 = vadd.f32 0.0, %v489
      %v491 = vpop.f32.mrb[0].mxu0
      %v492 = vadd.f32 0.0, %v491
      %v493 = vpop.f32.mrb[0].mxu0
      %v494 = vadd.f32 0.0, %v493
      %495 = vmatprep.mubr.bf16.mxu0 0
      %496 = vmatmul.mubr.bf16.gmra.mrb[0].mxu0 %v409
      %v497 = vpop.f32.mrb[0].mxu0
      %v498 = vadd.f32 0.0, %v497
      %v499 = vpop.f32.mrb[0].mxu0
      %v500 = vadd.f32 0.0, %v499
      %v501 = vpop.f32.mrb[0].mxu0
      %v502 = vadd.f32 0.0, %v501
      %v503 = vpop.f32.mrb[0].mxu0
      %v504 = vadd.f32 0.0, %v503
      %505 = vmatprep.mubr.bf16.mxu0 0
      %506 = vmatmul.mubr.bf16.gmra.mrb[0].mxu0 %v412
      %v507 = vpop.f32.mrb[0].mxu0
      %v508 = vadd.f32 0.0, %v507
      %v509 = vpop.f32.mrb[0].mxu0
      %v510 = vadd.f32 0.0, %v509
      %v511 = vpop.f32.mrb[0].mxu0
      %v512 = vadd.f32 0.0, %v511
      %v513 = vpop.f32.mrb[0].mxu0
      %v514 = vadd.f32 0.0, %v513
      %515 = vmatprep.mubr.bf16.mxu0 0
      %516 = vmatmul.mubr.bf16.gmra.mrb[0].mxu0 %v415
      %v517 = vpop.f32.mrb[0].mxu0
      %v518 = vadd.f32 0.0, %v517
      %v519 = vpop.f32.mrb[0].mxu0
      %v520 = vadd.f32 0.0, %v519
      %v521 = vpop.f32.mrb[0].mxu0
      %v522 = vadd.f32 0.0, %v521
      %v523 = vpop.f32.mrb[0].mxu0
      %v524 = vadd.f32 0.0, %v523
      %525 = vmatprep.mubr.bf16.mxu0 0
      %526 = vmatmul.mubr.bf16.gmra.mrb[0].mxu0 %v418
      %v527 = vpop.f32.mrb[0].mxu0
      %v528 = vadd.f32 0.0, %v527
      %v529 = vpop.f32.mrb[0].mxu0
      %v530 = vadd.f32 0.0, %v529
      %v531 = vpop.f32.mrb[0].mxu0
      %v532 = vadd.f32 0.0, %v531
      %v533 = vpop.f32.mrb[0].mxu0
      %v534 = vadd.f32 0.0, %v533
      %535 = vmatprep.mubr.bf16.mxu0 0
      %536 = vmatmul.mubr.bf16.gmra.mrb[0].mxu0 %v421
      %v537 = vpop.f32.mrb[0].mxu0
      %v538 = vadd.f32 0.0, %v537
      %v539 = vpop.f32.mrb[0].mxu0
      %v540 = vadd.f32 0.0, %v539
      %v541 = vpop.f32.mrb[0].mxu0
      %v542 = vpop.f32.mrb[0].mxu0
      %543 = vdwg.mxu0
      %v544 = vadd.f32 %v458, 0.0
      %v545 = vadd.f32 %v462, 0.0
      %v546 = vadd.f32 %v468, 0.0
      %v547 = vadd.f32 %v472, 0.0
      %v548 = vadd.f32 %v478, 0.0
      %v549 = vadd.f32 %v482, 0.0
      %v550 = vadd.f32 %v488, 0.0
      %v551 = vadd.f32 %v492, 0.0
      %v552 = vadd.f32 %v498, 0.0
      %v553 = vadd.f32 %v502, 0.0
      %v554 = vadd.f32 %v508, 0.0
      %v555 = vadd.f32 %v512, 0.0
      %v556 = vadd.f32 %v518, 0.0
      %v557 = vadd.f32 %v522, 0.0
      %v558 = vadd.f32 %v528, 0.0
      %v559 = vadd.f32 %v532, 0.0
      %vm577 = vcmask 1046528
      %v578 = vrot.slane %v458, 1
      %v579 = vrot.slane %v462, 1
      %v580 = vsel %vm577, %v578, %v579
      %v581 = vrot.slane %v468, 1
      %v582 = vsel %vm577, %v579, %v581
      %v583 = vrot.slane %v472, 1
      %v584 = vsel %vm577, %v581, %v583
      %v585 = vrot.slane %v478, 1
      %v586 = vsel %vm577, %v583, %v585
      %v587 = vrot.slane %v482, 1
      %v588 = vsel %vm577, %v585, %v587
      %v589 = vrot.slane %v488, 1
      %v590 = vsel %vm577, %v587, %v589
      %v591 = vrot.slane %v492, 1
      %v592 = vsel %vm577, %v589, %v591
      %v593 = vrot.slane %v498, 1
      %v594 = vsel %vm577, %v591, %v593
      %v595 = vrot.slane %v502, 1
      %v596 = vsel %vm577, %v593, %v595
      %v597 = vrot.slane %v508, 1
      %v598 = vsel %vm577, %v595, %v597
      %v599 = vrot.slane %v512, 1
      %v600 = vsel %vm577, %v597, %v599
      %v601 = vrot.slane %v518, 1
      %v602 = vsel %vm577, %v599, %v601
      %v603 = vrot.slane %v522, 1
      %v604 = vsel %vm577, %v601, %v603
      %v605 = vrot.slane %v528, 1
      %v606 = vsel %vm577, %v603, %v605
      %v607 = vrot.slane %v532, 1
      %v608 = vsel %vm577, %v605, %v607
      %v609 = vrot.slane %v538, 1
      %v610 = vsel %vm577, %v607, %v609
      %611 = vrot.lane.b32.xlu0 %v580, 64
      %v612 = vpop.permute.xlu0 %611
      %613 = vrot.lane.b32.xlu0 %v582, 64
      %v614 = vpop.permute.xlu0 %613
      %615 = vrot.lane.b32.xlu0 %v584, 64
      %v616 = vpop.permute.xlu0 %615
      %617 = vrot.lane.b32.xlu0 %v586, 64
      %v618 = vpop.permute.xlu0 %617
      %619 = vrot.lane.b32.xlu0 %v588, 64
      %v620 = vpop.permute.xlu0 %619
      %621 = vrot.lane.b32.xlu0 %v590, 64
      %v622 = vpop.permute.xlu0 %621
      %623 = vrot.lane.b32.xlu0 %v592, 64
      %v624 = vpop.permute.xlu0 %623
      %625 = vrot.lane.b32.xlu0 %v594, 64
      %v626 = vpop.permute.xlu0 %625
      %627 = vrot.lane.b32.xlu0 %v596, 64
      %v628 = vpop.permute.xlu0 %627
      %629 = vrot.lane.b32.xlu0 %v598, 64
      %v630 = vpop.permute.xlu0 %629
      %631 = vrot.lane.b32.xlu0 %v600, 64
      %v632 = vpop.permute.xlu0 %631
      %633 = vrot.lane.b32.xlu0 %v602, 64
      %v634 = vpop.permute.xlu0 %633
      %635 = vrot.lane.b32.xlu0 %v604, 64
      %v636 = vpop.permute.xlu0 %635
      %637 = vrot.lane.b32.xlu0 %v606, 64
      %v638 = vpop.permute.xlu0 %637
      %639 = vrot.lane.b32.xlu0 %v608, 64
      %v640 = vpop.permute.xlu0 %639
      %641 = vrot.lane.b32.xlu0 %v610, 64
      %v642 = vpop.permute.xlu0 %641
      %v659 = vadd.f32 %v544, %v612
      %v660 = vadd.f32 %v545, %v614
      %v661 = vadd.f32 %v546, %v616
      %v662 = vadd.f32 %v547, %v618
      %v663 = vadd.f32 %v548, %v620
      %v664 = vadd.f32 %v549, %v622
      %v665 = vadd.f32 %v550, %v624
      %v666 = vadd.f32 %v551, %v626
      %v667 = vadd.f32 %v552, %v628
      %v668 = vadd.f32 %v553, %v630
      %v669 = vadd.f32 %v554, %v632
      %v670 = vadd.f32 %v555, %v634
      %v671 = vadd.f32 %v556, %v636
      %v672 = vadd.f32 %v557, %v638
      %v673 = vadd.f32 %v558, %v640
      %v674 = vadd.f32 %v559, %v642
      %vm692 = vcmask 1045504
      %v693 = vrot.slane %v460, 2
      %v694 = vrot.slane %v464, 2
      %v695 = vsel %vm692, %v693, %v694
      %v696 = vrot.slane %v470, 2
      %v697 = vsel %vm692, %v694, %v696
      %v698 = vrot.slane %v474, 2
      %v699 = vsel %vm692, %v696, %v698
      %v700 = vrot.slane %v480, 2
      %v701 = vsel %vm692, %v698, %v700
      %v702 = vrot.slane %v484, 2
      %v703 = vsel %vm692, %v700, %v702
      %v704 = vrot.slane %v490, 2
      %v705 = vsel %vm692, %v702, %v704
      %v706 = vrot.slane %v494, 2
      %v707 = vsel %vm692, %v704, %v706
      %v708 = vrot.slane %v500, 2
      %v709 = vsel %vm692, %v706, %v708
      %v710 = vrot.slane %v504, 2
      %v711 = vsel %vm692, %v708, %v710
      %v712 = vrot.slane %v510, 2
      %v713 = vsel %vm692, %v710, %v712
      %v714 = vrot.slane %v514, 2
      %v715 = vsel %vm692, %v712, %v714
      %v716 = vrot.slane %v520, 2
      %v717 = vsel %vm692, %v714, %v716
      %v718 = vrot.slane %v524, 2
      %v719 = vsel %vm692, %v716, %v718
      %v720 = vrot.slane %v530, 2
      %v721 = vsel %vm692, %v718, %v720
      %v722 = vrot.slane %v534, 2
      %v723 = vsel %vm692, %v720, %v722
      %v724 = vrot.slane %v540, 2
      %v725 = vsel %vm692, %v722, %v724
      %v742 = vadd.f32 %v659, %v695
      %v743 = vadd.f32 %v660, %v697
      %v744 = vadd.f32 %v661, %v699
      %v745 = vadd.f32 %v662, %v701
      %v746 = vadd.f32 %v663, %v703
      %v747 = vadd.f32 %v664, %v705
      %v748 = vadd.f32 %v665, %v707
      %v749 = vadd.f32 %v666, %v709
      %v750 = vadd.f32 %v667, %v711
      %v751 = vadd.f32 %v668, %v713
      %v752 = vadd.f32 %v669, %v715
      %v753 = vadd.f32 %v670, %v717
      %v754 = vadd.f32 %v671, %v719
      %v755 = vadd.f32 %v672, %v721
      %v756 = vadd.f32 %v673, %v723
      %v757 = vadd.f32 %v674, %v725
      %v758 = vld [vmem:[%s3] sm:$0x1]
      %v760 = vlaneseq
      %v761 = vshrl.u32 %v760, 7
      %v762 = vsub.s32 0, %v761
      %v763 = vrot.slane %v758, %v762
      %v765 = vadd.f32 %v742, %v763
      %v766 = vadd.f32 %v743, %v763
      %v767 = vadd.f32 %v744, %v763
      %v768 = vadd.f32 %v745, %v763
      %v769 = vadd.f32 %v746, %v763
      %v770 = vadd.f32 %v747, %v763
      %v771 = vadd.f32 %v748, %v763
      %v772 = vadd.f32 %v749, %v763
      %v773 = vadd.f32 %v750, %v763
      %v774 = vadd.f32 %v751, %v763
      %v775 = vadd.f32 %v752, %v763
      %v776 = vadd.f32 %v753, %v763
      %v777 = vadd.f32 %v754, %v763
      %v778 = vadd.f32 %v755, %v763
      %v779 = vadd.f32 %v756, %v763
      %v780 = vadd.f32 %v757, %v763
      %v781 = vmax.f32 %v765, 0.0
      %v782 = vmax.f32 %v766, 0.0
      %v783 = vmax.f32 %v767, 0.0
      %v784 = vmax.f32 %v768, 0.0
      %v785 = vmax.f32 %v769, 0.0
      %v786 = vmax.f32 %v770, 0.0
      %v787 = vmax.f32 %v771, 0.0
      %v788 = vmax.f32 %v772, 0.0
      %v789 = vmax.f32 %v773, 0.0
      %v790 = vmax.f32 %v774, 0.0
      %v791 = vmax.f32 %v775, 0.0
      %v792 = vmax.f32 %v776, 0.0
      %v793 = vmax.f32 %v777, 0.0
      %v794 = vmax.f32 %v778, 0.0
      %v795 = vmax.f32 %v779, 0.0
      %v796 = vmax.f32 %v780, 0.0
      %v813 = vcombine.high %v781, %v781
      %v815 = vunpack.c.l.s4 1983009808
      %v816 = vunpack.c.0.s8 %v815
      %v817 = vlaneseq
      %v818 = vshrl.u32 %v817, 7
      %v819 = vsub.s32 %v816, %v818
      %v820 = vrot.slane %v781, %v819
      %v822 = vunpack.c.l.s4 1983009808
      %v823 = vunpack.c.0.s8 %v822
      %v824 = vlaneseq
      %v825 = vshrl.u32 %v824, 7
      %v826 = vsub.s32 %v823, %v825
      %v827 = vrot.slane %v813, %v826
      %v828 = vcombine.high %v820, %v820
      %v829 = vcombine.high %v827, %v827
      %v830 = vcombine.high %v782, %v782
      %v832 = vunpack.c.l.s4 1983009808
      %v833 = vunpack.c.0.s8 %v832
      %v834 = vlaneseq
      %v835 = vshrl.u32 %v834, 7
      %v836 = vsub.s32 %v833, %v835
      %v837 = vrot.slane %v782, %v836
      %v839 = vunpack.c.l.s4 1983009808
      %v840 = vunpack.c.0.s8 %v839
      %v841 = vlaneseq
      %v842 = vshrl.u32 %v841, 7
      %v843 = vsub.s32 %v840, %v842
      %v844 = vrot.slane %v830, %v843
      %v845 = vcombine.high %v837, %v837
      %v846 = vcombine.high %v844, %v844
      %v847 = vcombine.high %v783, %v783
      %v849 = vunpack.c.l.s4 1983009808
      %v850 = vunpack.c.0.s8 %v849
      %v851 = vlaneseq
      %v852 = vshrl.u32 %v851, 7
      %v853 = vsub.s32 %v850, %v852
      %v854 = vrot.slane %v783, %v853
      %v856 = vunpack.c.l.s4 1983009808
      %v857 = vunpack.c.0.s8 %v856
      %v858 = vlaneseq
      %v859 = vshrl.u32 %v858, 7
      %v860 = vsub.s32 %v857, %v859
      %v861 = vrot.slane %v847, %v860
      %v862 = vcombine.high %v854, %v854
      %v863 = vcombine.high %v861, %v861
      %v864 = vcombine.high %v784, %v784
      %v866 = vunpack.c.l.s4 1983009808
      %v867 = vunpack.c.0.s8 %v866
      %v868 = vlaneseq
      %v869 = vshrl.u32 %v868, 7
      %v870 = vsub.s32 %v867, %v869
      %v871 = vrot.slane %v784, %v870
      %v873 = vunpack.c.l.s4 1983009808
      %v874 = vunpack.c.0.s8 %v873
      %v875 = vlaneseq
      %v876 = vshrl.u32 %v875, 7
      %v877 = vsub.s32 %v874, %v876
      %v878 = vrot.slane %v864, %v877
      %v879 = vcombine.high %v871, %v871
      %v880 = vcombine.high %v878, %v878
      %v881 = vcombine.high %v785, %v785
      %v883 = vunpack.c.l.s4 1983009808
      %v884 = vunpack.c.0.s8 %v883
      %v885 = vlaneseq
      %v886 = vshrl.u32 %v885, 7
      %v887 = vsub.s32 %v884, %v886
      %v888 = vrot.slane %v785, %v887
      %v890 = vunpack.c.l.s4 1983009808
      %v891 = vunpack.c.0.s8 %v890
      %v892 = vlaneseq
      %v893 = vshrl.u32 %v892, 7
      %v894 = vsub.s32 %v891, %v893
      %v895 = vrot.slane %v881, %v894
      %v896 = vcombine.high %v888, %v888
      %v897 = vcombine.high %v895, %v895
      %v898 = vcombine.high %v786, %v786
      %v900 = vunpack.c.l.s4 1983009808
      %v901 = vunpack.c.0.s8 %v900
      %v902 = vlaneseq
      %v903 = vshrl.u32 %v902, 7
      %v904 = vsub.s32 %v901, %v903
      %v905 = vrot.slane %v786, %v904
      %v907 = vunpack.c.l.s4 1983009808
      %v908 = vunpack.c.0.s8 %v907
      %v909 = vlaneseq
      %v910 = vshrl.u32 %v909, 7
      %v911 = vsub.s32 %v908, %v910
      %v912 = vrot.slane %v898, %v911
      %v913 = vcombine.high %v905, %v905
      %v914 = vcombine.high %v912, %v912
      %v915 = vcombine.high %v787, %v787
      %v917 = vunpack.c.l.s4 1983009808
      %v918 = vunpack.c.0.s8 %v917
      %v919 = vlaneseq
      %v920 = vshrl.u32 %v919, 7
      %v921 = vsub.s32 %v918, %v920
      %v922 = vrot.slane %v787, %v921
      %v924 = vunpack.c.l.s4 1983009808
      %v925 = vunpack.c.0.s8 %v924
      %v926 = vlaneseq
      %v927 = vshrl.u32 %v926, 7
      %v928 = vsub.s32 %v925, %v927
      %v929 = vrot.slane %v915, %v928
      %v930 = vcombine.high %v922, %v922
      %v931 = vcombine.high %v929, %v929
      %v932 = vcombine.high %v788, %v788
      %v934 = vunpack.c.l.s4 1983009808
      %v935 = vunpack.c.0.s8 %v934
      %v936 = vlaneseq
      %v937 = vshrl.u32 %v936, 7
      %v938 = vsub.s32 %v935, %v937
      %v939 = vrot.slane %v788, %v938
      %v941 = vunpack.c.l.s4 1983009808
      %v942 = vunpack.c.0.s8 %v941
      %v943 = vlaneseq
      %v944 = vshrl.u32 %v943, 7
      %v945 = vsub.s32 %v942, %v944
      %v946 = vrot.slane %v932, %v945
      %v947 = vcombine.high %v939, %v939
      %v948 = vcombine.high %v946, %v946
      %v949 = vcombine.high %v789, %v789
      %v951 = vunpack.c.l.s4 1983009808
      %v952 = vunpack.c.0.s8 %v951
      %v953 = vlaneseq
      %v954 = vshrl.u32 %v953, 7
      %v955 = vsub.s32 %v952, %v954
      %v956 = vrot.slane %v789, %v955
      %v958 = vunpack.c.l.s4 1983009808
      %v959 = vunpack.c.0.s8 %v958
      %v960 = vlaneseq
      %v961 = vshrl.u32 %v960, 7
      %v962 = vsub.s32 %v959, %v961
      %v963 = vrot.slane %v949, %v962
      %v964 = vcombine.high %v956, %v956
      %v965 = vcombine.high %v963, %v963
      %v966 = vcombine.high %v790, %v790
      %v968 = vunpack.c.l.s4 1983009808
      %v969 = vunpack.c.0.s8 %v968
      %v970 = vlaneseq
      %v971 = vshrl.u32 %v970, 7
      %v972 = vsub.s32 %v969, %v971
      %v973 = vrot.slane %v790, %v972
      %v975 = vunpack.c.l.s4 1983009808
      %v976 = vunpack.c.0.s8 %v975
      %v977 = vlaneseq
      %v978 = vshrl.u32 %v977, 7
      %v979 = vsub.s32 %v976, %v978
      %v980 = vrot.slane %v966, %v979
      %v981 = vcombine.high %v973, %v973
      %v982 = vcombine.high %v980, %v980
      %v983 = vcombine.high %v791, %v791
      %v985 = vunpack.c.l.s4 1983009808
      %v986 = vunpack.c.0.s8 %v985
      %v987 = vlaneseq
      %v988 = vshrl.u32 %v987, 7
      %v989 = vsub.s32 %v986, %v988
      %v990 = vrot.slane %v791, %v989
      %v992 = vunpack.c.l.s4 1983009808
      %v993 = vunpack.c.0.s8 %v992
      %v994 = vlaneseq
      %v995 = vshrl.u32 %v994, 7
      %v996 = vsub.s32 %v993, %v995
      %v997 = vrot.slane %v983, %v996
      %v998 = vcombine.high %v990, %v990
      %v999 = vcombine.high %v997, %v997
      %v1000 = vcombine.high %v792, %v792
      %v1002 = vunpack.c.l.s4 1983009808
      %v1003 = vunpack.c.0.s8 %v1002
      %v1004 = vlaneseq
      %v1005 = vshrl.u32 %v1004, 7
      %v1006 = vsub.s32 %v1003, %v1005
      %v1007 = vrot.slane %v792, %v1006
      %v1009 = vunpack.c.l.s4 1983009808
      %v1010 = vunpack.c.0.s8 %v1009
      %v1011 = vlaneseq
      %v1012 = vshrl.u32 %v1011, 7
      %v1013 = vsub.s32 %v1010, %v1012
      %v1014 = vrot.slane %v1000, %v1013
      %v1015 = vcombine.high %v1007, %v1007
      %v1016 = vcombine.high %v1014, %v1014
      %v1017 = vcombine.high %v793, %v793
      %v1019 = vunpack.c.l.s4 1983009808
      %v1020 = vunpack.c.0.s8 %v1019
      %v1021 = vlaneseq
      %v1022 = vshrl.u32 %v1021, 7
      %v1023 = vsub.s32 %v1020, %v1022
      %v1024 = vrot.slane %v793, %v1023
      %v1026 = vunpack.c.l.s4 1983009808
      %v1027 = vunpack.c.0.s8 %v1026
      %v1028 = vlaneseq
      %v1029 = vshrl.u32 %v1028, 7
      %v1030 = vsub.s32 %v1027, %v1029
      %v1031 = vrot.slane %v1017, %v1030
      %v1032 = vcombine.high %v1024, %v1024
      %v1033 = vcombine.high %v1031, %v1031
      %v1034 = vcombine.high %v794, %v794
      %v1036 = vunpack.c.l.s4 1983009808
      %v1037 = vunpack.c.0.s8 %v1036
      %v1038 = vlaneseq
      %v1039 = vshrl.u32 %v1038, 7
      %v1040 = vsub.s32 %v1037, %v1039
      %v1041 = vrot.slane %v794, %v1040
      %v1043 = vunpack.c.l.s4 1983009808
      %v1044 = vunpack.c.0.s8 %v1043
      %v1045 = vlaneseq
      %v1046 = vshrl.u32 %v1045, 7
      %v1047 = vsub.s32 %v1044, %v1046
      %v1048 = vrot.slane %v1034, %v1047
      %v1049 = vcombine.high %v1041, %v1041
      %v1050 = vcombine.high %v1048, %v1048
      %v1051 = vcombine.high %v795, %v795
      %v1053 = vunpack.c.l.s4 1983009808
      %v1054 = vunpack.c.0.s8 %v1053
      %v1055 = vlaneseq
      %v1056 = vshrl.u32 %v1055, 7
      %v1057 = vsub.s32 %v1054, %v1056
      %v1058 = vrot.slane %v795, %v1057
      %v1060 = vunpack.c.l.s4 1983009808
      %v1061 = vunpack.c.0.s8 %v1060
      %v1062 = vlaneseq
      %v1063 = vshrl.u32 %v1062, 7
      %v1064 = vsub.s32 %v1061, %v1063
      %v1065 = vrot.slane %v1051, %v1064
      %v1066 = vcombine.high %v1058, %v1058
      %v1067 = vcombine.high %v1065, %v1065
      %v1068 = vcombine.high %v796, %v796
      %v1070 = vunpack.c.l.s4 1983009808
      %v1071 = vunpack.c.0.s8 %v1070
      %v1072 = vlaneseq
      %v1073 = vshrl.u32 %v1072, 7
      %v1074 = vsub.s32 %v1071, %v1073
      %v1075 = vrot.slane %v796, %v1074
      %v1077 = vunpack.c.l.s4 1983009808
      %v1078 = vunpack.c.0.s8 %v1077
      %v1079 = vlaneseq
      %v1080 = vshrl.u32 %v1079, 7
      %v1081 = vsub.s32 %v1078, %v1080
      %v1082 = vrot.slane %v1068, %v1081
      %v1083 = vcombine.high %v1075, %v1075
      %v1084 = vcombine.high %v1082, %v1082
      %vm1149 = vcmask 517120
      %v1150 = vsel %vm1149, %v820, -inf
      %v1151 = vrot.slane %v1150, 4
      %v1152 = vmax.f32 %v1150, %v1151
      %v1153 = vrot.slane %v1152, 2
      %v1154 = vmax.f32 %v1152, %v1153
      %v1155 = vrot.slane %v1154, 1
      %v1156 = vmax.f32 %v1154, %v1155
      %v1157 = vsel %vm1149, %v828, -inf
      %v1158 = vrot.slane %v1157, 4
      %v1159 = vmax.f32 %v1157, %v1158
      %v1160 = vrot.slane %v1159, 2
      %v1161 = vmax.f32 %v1159, %v1160
      %v1162 = vrot.slane %v1161, 1
      %v1163 = vmax.f32 %v1161, %v1162
      %v1164 = vsel %vm1149, %v827, -inf
      %v1165 = vrot.slane %v1164, 4
      %v1166 = vmax.f32 %v1164, %v1165
      %v1167 = vrot.slane %v1166, 2
      %v1168 = vmax.f32 %v1166, %v1167
      %v1169 = vrot.slane %v1168, 1
      %v1170 = vmax.f32 %v1168, %v1169
      %v1171 = vsel %vm1149, %v829, -inf
      %v1172 = vrot.slane %v1171, 4
      %v1173 = vmax.f32 %v1171, %v1172
      %v1174 = vrot.slane %v1173, 2
      %v1175 = vmax.f32 %v1173, %v1174
      %v1176 = vrot.slane %v1175, 1
      %v1177 = vmax.f32 %v1175, %v1176
      %v1178 = vsel %vm1149, %v837, -inf
      %v1179 = vrot.slane %v1178, 4
      %v1180 = vmax.f32 %v1178, %v1179
      %v1181 = vrot.slane %v1180, 2
      %v1182 = vmax.f32 %v1180, %v1181
      %v1183 = vrot.slane %v1182, 1
      %v1184 = vmax.f32 %v1182, %v1183
      %v1185 = vsel %vm1149, %v845, -inf
      %v1186 = vrot.slane %v1185, 4
      %v1187 = vmax.f32 %v1185, %v1186
      %v1188 = vrot.slane %v1187, 2
      %v1189 = vmax.f32 %v1187, %v1188
      %v1190 = vrot.slane %v1189, 1
      %v1191 = vmax.f32 %v1189, %v1190
      %v1192 = vsel %vm1149, %v844, -inf
      %v1193 = vrot.slane %v1192, 4
      %v1194 = vmax.f32 %v1192, %v1193
      %v1195 = vrot.slane %v1194, 2
      %v1196 = vmax.f32 %v1194, %v1195
      %v1197 = vrot.slane %v1196, 1
      %v1198 = vmax.f32 %v1196, %v1197
      %v1199 = vsel %vm1149, %v846, -inf
      %v1200 = vrot.slane %v1199, 4
      %v1201 = vmax.f32 %v1199, %v1200
      %v1202 = vrot.slane %v1201, 2
      %v1203 = vmax.f32 %v1201, %v1202
      %v1204 = vrot.slane %v1203, 1
      %v1205 = vmax.f32 %v1203, %v1204
      %v1206 = vsel %vm1149, %v854, -inf
      %v1207 = vrot.slane %v1206, 4
      %v1208 = vmax.f32 %v1206, %v1207
      %v1209 = vrot.slane %v1208, 2
      %v1210 = vmax.f32 %v1208, %v1209
      %v1211 = vrot.slane %v1210, 1
      %v1212 = vmax.f32 %v1210, %v1211
      %v1213 = vsel %vm1149, %v862, -inf
      %v1214 = vrot.slane %v1213, 4
      %v1215 = vmax.f32 %v1213, %v1214
      %v1216 = vrot.slane %v1215, 2
      %v1217 = vmax.f32 %v1215, %v1216
      %v1218 = vrot.slane %v1217, 1
      %v1219 = vmax.f32 %v1217, %v1218
      %v1220 = vsel %vm1149, %v861, -inf
      %v1221 = vrot.slane %v1220, 4
      %v1222 = vmax.f32 %v1220, %v1221
      %v1223 = vrot.slane %v1222, 2
      %v1224 = vmax.f32 %v1222, %v1223
      %v1225 = vrot.slane %v1224, 1
      %v1226 = vmax.f32 %v1224, %v1225
      %v1227 = vsel %vm1149, %v863, -inf
      %v1228 = vrot.slane %v1227, 4
      %v1229 = vmax.f32 %v1227, %v1228
      %v1230 = vrot.slane %v1229, 2
      %v1231 = vmax.f32 %v1229, %v1230
      %v1232 = vrot.slane %v1231, 1
      %v1233 = vmax.f32 %v1231, %v1232
      %v1234 = vsel %vm1149, %v871, -inf
      %v1235 = vrot.slane %v1234, 4
      %v1236 = vmax.f32 %v1234, %v1235
      %v1237 = vrot.slane %v1236, 2
      %v1238 = vmax.f32 %v1236, %v1237
      %v1239 = vrot.slane %v1238, 1
      %v1240 = vmax.f32 %v1238, %v1239
      %v1241 = vsel %vm1149, %v879, -inf
      %v1242 = vrot.slane %v1241, 4
      %v1243 = vmax.f32 %v1241, %v1242
      %v1244 = vrot.slane %v1243, 2
      %v1245 = vmax.f32 %v1243, %v1244
      %v1246 = vrot.slane %v1245, 1
      %v1247 = vmax.f32 %v1245, %v1246
      %v1248 = vsel %vm1149, %v878, -inf
      %v1249 = vrot.slane %v1248, 4
      %v1250 = vmax.f32 %v1248, %v1249
      %v1251 = vrot.slane %v1250, 2
      %v1252 = vmax.f32 %v1250, %v1251
      %v1253 = vrot.slane %v1252, 1
      %v1254 = vmax.f32 %v1252, %v1253
      %v1255 = vsel %vm1149, %v880, -inf
      %v1256 = vrot.slane %v1255, 4
      %v1257 = vmax.f32 %v1255, %v1256
      %v1258 = vrot.slane %v1257, 2
      %v1259 = vmax.f32 %v1257, %v1258
      %v1260 = vrot.slane %v1259, 1
      %v1261 = vmax.f32 %v1259, %v1260
      %v1262 = vsel %vm1149, %v888, -inf
      %v1263 = vrot.slane %v1262, 4
      %v1264 = vmax.f32 %v1262, %v1263
      %v1265 = vrot.slane %v1264, 2
      %v1266 = vmax.f32 %v1264, %v1265
      %v1267 = vrot.slane %v1266, 1
      %v1268 = vmax.f32 %v1266, %v1267
      %v1269 = vsel %vm1149, %v896, -inf
      %v1270 = vrot.slane %v1269, 4
      %v1271 = vmax.f32 %v1269, %v1270
      %v1272 = vrot.slane %v1271, 2
      %v1273 = vmax.f32 %v1271, %v1272
      %v1274 = vrot.slane %v1273, 1
      %v1275 = vmax.f32 %v1273, %v1274
      %v1276 = vsel %vm1149, %v895, -inf
      %v1277 = vrot.slane %v1276, 4
      %v1278 = vmax.f32 %v1276, %v1277
      %v1279 = vrot.slane %v1278, 2
      %v1280 = vmax.f32 %v1278, %v1279
      %v1281 = vrot.slane %v1280, 1
      %v1282 = vmax.f32 %v1280, %v1281
      %v1283 = vsel %vm1149, %v897, -inf
      %v1284 = vrot.slane %v1283, 4
      %v1285 = vmax.f32 %v1283, %v1284
      %v1286 = vrot.slane %v1285, 2
      %v1287 = vmax.f32 %v1285, %v1286
      %v1288 = vrot.slane %v1287, 1
      %v1289 = vmax.f32 %v1287, %v1288
      %v1290 = vsel %vm1149, %v905, -inf
      %v1291 = vrot.slane %v1290, 4
      %v1292 = vmax.f32 %v1290, %v1291
      %v1293 = vrot.slane %v1292, 2
      %v1294 = vmax.f32 %v1292, %v1293
      %v1295 = vrot.slane %v1294, 1
      %v1296 = vmax.f32 %v1294, %v1295
      %v1297 = vsel %vm1149, %v913, -inf
      %v1298 = vrot.slane %v1297, 4
      %v1299 = vmax.f32 %v1297, %v1298
      %v1300 = vrot.slane %v1299, 2
      %v1301 = vmax.f32 %v1299, %v1300
      %v1302 = vrot.slane %v1301, 1
      %v1303 = vmax.f32 %v1301, %v1302
      %v1304 = vsel %vm1149, %v912, -inf
      %v1305 = vrot.slane %v1304, 4
      %v1306 = vmax.f32 %v1304, %v1305
      %v1307 = vrot.slane %v1306, 2
      %v1308 = vmax.f32 %v1306, %v1307
      %v1309 = vrot.slane %v1308, 1
      %v1310 = vmax.f32 %v1308, %v1309
      %v1311 = vsel %vm1149, %v914, -inf
      %v1312 = vrot.slane %v1311, 4
      %v1313 = vmax.f32 %v1311, %v1312
      %v1314 = vrot.slane %v1313, 2
      %v1315 = vmax.f32 %v1313, %v1314
      %v1316 = vrot.slane %v1315, 1
      %v1317 = vmax.f32 %v1315, %v1316
      %v1318 = vsel %vm1149, %v922, -inf
      %v1319 = vrot.slane %v1318, 4
      %v1320 = vmax.f32 %v1318, %v1319
      %v1321 = vrot.slane %v1320, 2
      %v1322 = vmax.f32 %v1320, %v1321
      %v1323 = vrot.slane %v1322, 1
      %v1324 = vmax.f32 %v1322, %v1323
      %v1325 = vsel %vm1149, %v930, -inf
      %v1326 = vrot.slane %v1325, 4
      %v1327 = vmax.f32 %v1325, %v1326
      %v1328 = vrot.slane %v1327, 2
      %v1329 = vmax.f32 %v1327, %v1328
      %v1330 = vrot.slane %v1329, 1
      %v1331 = vmax.f32 %v1329, %v1330
      %v1332 = vsel %vm1149, %v929, -inf
      %v1333 = vrot.slane %v1332, 4
      %v1334 = vmax.f32 %v1332, %v1333
      %v1335 = vrot.slane %v1334, 2
      %v1336 = vmax.f32 %v1334, %v1335
      %v1337 = vrot.slane %v1336, 1
      %v1338 = vmax.f32 %v1336, %v1337
      %v1339 = vsel %vm1149, %v931, -inf
      %v1340 = vrot.slane %v1339, 4
      %v1341 = vmax.f32 %v1339, %v1340
      %v1342 = vrot.slane %v1341, 2
      %v1343 = vmax.f32 %v1341, %v1342
      %v1344 = vrot.slane %v1343, 1
      %v1345 = vmax.f32 %v1343, %v1344
      %v1346 = vsel %vm1149, %v939, -inf
      %v1347 = vrot.slane %v1346, 4
      %v1348 = vmax.f32 %v1346, %v1347
      %v1349 = vrot.slane %v1348, 2
      %v1350 = vmax.f32 %v1348, %v1349
      %v1351 = vrot.slane %v1350, 1
      %v1352 = vmax.f32 %v1350, %v1351
      %v1353 = vsel %vm1149, %v947, -inf
      %v1354 = vrot.slane %v1353, 4
      %v1355 = vmax.f32 %v1353, %v1354
      %v1356 = vrot.slane %v1355, 2
      %v1357 = vmax.f32 %v1355, %v1356
      %v1358 = vrot.slane %v1357, 1
      %v1359 = vmax.f32 %v1357, %v1358
      %v1360 = vsel %vm1149, %v946, -inf
      %v1361 = vrot.slane %v1360, 4
      %v1362 = vmax.f32 %v1360, %v1361
      %v1363 = vrot.slane %v1362, 2
      %v1364 = vmax.f32 %v1362, %v1363
      %v1365 = vrot.slane %v1364, 1
      %v1366 = vmax.f32 %v1364, %v1365
      %v1367 = vsel %vm1149, %v948, -inf
      %v1368 = vrot.slane %v1367, 4
      %v1369 = vmax.f32 %v1367, %v1368
      %v1370 = vrot.slane %v1369, 2
      %v1371 = vmax.f32 %v1369, %v1370
      %v1372 = vrot.slane %v1371, 1
      %v1373 = vmax.f32 %v1371, %v1372
      %v1374 = vsel %vm1149, %v956, -inf
      %v1375 = vrot.slane %v1374, 4
      %v1376 = vmax.f32 %v1374, %v1375
      %v1377 = vrot.slane %v1376, 2
      %v1378 = vmax.f32 %v1376, %v1377
      %v1379 = vrot.slane %v1378, 1
      %v1380 = vmax.f32 %v1378, %v1379
      %v1381 = vsel %vm1149, %v964, -inf
      %v1382 = vrot.slane %v1381, 4
      %v1383 = vmax.f32 %v1381, %v1382
      %v1384 = vrot.slane %v1383, 2
      %v1385 = vmax.f32 %v1383, %v1384
      %v1386 = vrot.slane %v1385, 1
      %v1387 = vmax.f32 %v1385, %v1386
      %v1388 = vsel %vm1149, %v963, -inf
      %v1389 = vrot.slane %v1388, 4
      %v1390 = vmax.f32 %v1388, %v1389
      %v1391 = vrot.slane %v1390, 2
      %v1392 = vmax.f32 %v1390, %v1391
      %v1393 = vrot.slane %v1392, 1
      %v1394 = vmax.f32 %v1392, %v1393
      %v1395 = vsel %vm1149, %v965, -inf
      %v1396 = vrot.slane %v1395, 4
      %v1397 = vmax.f32 %v1395, %v1396
      %v1398 = vrot.slane %v1397, 2
      %v1399 = vmax.f32 %v1397, %v1398
      %v1400 = vrot.slane %v1399, 1
      %v1401 = vmax.f32 %v1399, %v1400
      %v1402 = vsel %vm1149, %v973, -inf
      %v1403 = vrot.slane %v1402, 4
      %v1404 = vmax.f32 %v1402, %v1403
      %v1405 = vrot.slane %v1404, 2
      %v1406 = vmax.f32 %v1404, %v1405
      %v1407 = vrot.slane %v1406, 1
      %v1408 = vmax.f32 %v1406, %v1407
      %v1409 = vsel %vm1149, %v981, -inf
      %v1410 = vrot.slane %v1409, 4
      %v1411 = vmax.f32 %v1409, %v1410
      %v1412 = vrot.slane %v1411, 2
      %v1413 = vmax.f32 %v1411, %v1412
      %v1414 = vrot.slane %v1413, 1
      %v1415 = vmax.f32 %v1413, %v1414
      %v1416 = vsel %vm1149, %v980, -inf
      %v1417 = vrot.slane %v1416, 4
      %v1418 = vmax.f32 %v1416, %v1417
      %v1419 = vrot.slane %v1418, 2
      %v1420 = vmax.f32 %v1418, %v1419
      %v1421 = vrot.slane %v1420, 1
      %v1422 = vmax.f32 %v1420, %v1421
      %v1423 = vsel %vm1149, %v982, -inf
      %v1424 = vrot.slane %v1423, 4
      %v1425 = vmax.f32 %v1423, %v1424
      %v1426 = vrot.slane %v1425, 2
      %v1427 = vmax.f32 %v1425, %v1426
      %v1428 = vrot.slane %v1427, 1
      %v1429 = vmax.f32 %v1427, %v1428
      %v1430 = vsel %vm1149, %v990, -inf
      %v1431 = vrot.slane %v1430, 4
      %v1432 = vmax.f32 %v1430, %v1431
      %v1433 = vrot.slane %v1432, 2
      %v1434 = vmax.f32 %v1432, %v1433
      %v1435 = vrot.slane %v1434, 1
      %v1436 = vmax.f32 %v1434, %v1435
      %v1437 = vsel %vm1149, %v998, -inf
      %v1438 = vrot.slane %v1437, 4
      %v1439 = vmax.f32 %v1437, %v1438
      %v1440 = vrot.slane %v1439, 2
      %v1441 = vmax.f32 %v1439, %v1440
      %v1442 = vrot.slane %v1441, 1
      %v1443 = vmax.f32 %v1441, %v1442
      %v1444 = vsel %vm1149, %v997, -inf
      %v1445 = vrot.slane %v1444, 4
      %v1446 = vmax.f32 %v1444, %v1445
      %v1447 = vrot.slane %v1446, 2
      %v1448 = vmax.f32 %v1446, %v1447
      %v1449 = vrot.slane %v1448, 1
      %v1450 = vmax.f32 %v1448, %v1449
      %v1451 = vsel %vm1149, %v999, -inf
      %v1452 = vrot.slane %v1451, 4
      %v1453 = vmax.f32 %v1451, %v1452
      %v1454 = vrot.slane %v1453, 2
      %v1455 = vmax.f32 %v1453, %v1454
      %v1456 = vrot.slane %v1455, 1
      %v1457 = vmax.f32 %v1455, %v1456
      %v1458 = vsel %vm1149, %v1007, -inf
      %v1459 = vrot.slane %v1458, 4
      %v1460 = vmax.f32 %v1458, %v1459
      %v1461 = vrot.slane %v1460, 2
      %v1462 = vmax.f32 %v1460, %v1461
      %v1463 = vrot.slane %v1462, 1
      %v1464 = vmax.f32 %v1462, %v1463
      %v1465 = vsel %vm1149, %v1015, -inf
      %v1466 = vrot.slane %v1465, 4
      %v1467 = vmax.f32 %v1465, %v1466
      %v1468 = vrot.slane %v1467, 2
      %v1469 = vmax.f32 %v1467, %v1468
      %v1470 = vrot.slane %v1469, 1
      %v1471 = vmax.f32 %v1469, %v1470
      %v1472 = vsel %vm1149, %v1014, -inf
      %v1473 = vrot.slane %v1472, 4
      %v1474 = vmax.f32 %v1472, %v1473
      %v1475 = vrot.slane %v1474, 2
      %v1476 = vmax.f32 %v1474, %v1475
      %v1477 = vrot.slane %v1476, 1
      %v1478 = vmax.f32 %v1476, %v1477
      %v1479 = vsel %vm1149, %v1016, -inf
      %v1480 = vrot.slane %v1479, 4
      %v1481 = vmax.f32 %v1479, %v1480
      %v1482 = vrot.slane %v1481, 2
      %v1483 = vmax.f32 %v1481, %v1482
      %v1484 = vrot.slane %v1483, 1
      %v1485 = vmax.f32 %v1483, %v1484
      %v1486 = vsel %vm1149, %v1024, -inf
      %v1487 = vrot.slane %v1486, 4
      %v1488 = vmax.f32 %v1486, %v1487
      %v1489 = vrot.slane %v1488, 2
      %v1490 = vmax.f32 %v1488, %v1489
      %v1491 = vrot.slane %v1490, 1
      %v1492 = vmax.f32 %v1490, %v1491
      %v1493 = vsel %vm1149, %v1032, -inf
      %v1494 = vrot.slane %v1493, 4
      %v1495 = vmax.f32 %v1493, %v1494
      %v1496 = vrot.slane %v1495, 2
      %v1497 = vmax.f32 %v1495, %v1496
      %v1498 = vrot.slane %v1497, 1
      %v1499 = vmax.f32 %v1497, %v1498
      %v1500 = vsel %vm1149, %v1031, -inf
      %v1501 = vrot.slane %v1500, 4
      %v1502 = vmax.f32 %v1500, %v1501
      %v1503 = vrot.slane %v1502, 2
      %v1504 = vmax.f32 %v1502, %v1503
      %v1505 = vrot.slane %v1504, 1
      %v1506 = vmax.f32 %v1504, %v1505
      %v1507 = vsel %vm1149, %v1033, -inf
      %v1508 = vrot.slane %v1507, 4
      %v1509 = vmax.f32 %v1507, %v1508
      %v1510 = vrot.slane %v1509, 2
      %v1511 = vmax.f32 %v1509, %v1510
      %v1512 = vrot.slane %v1511, 1
      %v1513 = vmax.f32 %v1511, %v1512
      %v1514 = vsel %vm1149, %v1041, -inf
      %v1515 = vrot.slane %v1514, 4
      %v1516 = vmax.f32 %v1514, %v1515
      %v1517 = vrot.slane %v1516, 2
      %v1518 = vmax.f32 %v1516, %v1517
      %v1519 = vrot.slane %v1518, 1
      %v1520 = vmax.f32 %v1518, %v1519
      %v1521 = vsel %vm1149, %v1049, -inf
      %v1522 = vrot.slane %v1521, 4
      %v1523 = vmax.f32 %v1521, %v1522
      %v1524 = vrot.slane %v1523, 2
      %v1525 = vmax.f32 %v1523, %v1524
      %v1526 = vrot.slane %v1525, 1
      %v1527 = vmax.f32 %v1525, %v1526
      %v1528 = vsel %vm1149, %v1048, -inf
      %v1529 = vrot.slane %v1528, 4
      %v1530 = vmax.f32 %v1528, %v1529
      %v1531 = vrot.slane %v1530, 2
      %v1532 = vmax.f32 %v1530, %v1531
      %v1533 = vrot.slane %v1532, 1
      %v1534 = vmax.f32 %v1532, %v1533
      %v1535 = vsel %vm1149, %v1050, -inf
      %v1536 = vrot.slane %v1535, 4
      %v1537 = vmax.f32 %v1535, %v1536
      %v1538 = vrot.slane %v1537, 2
      %v1539 = vmax.f32 %v1537, %v1538
      %v1540 = vrot.slane %v1539, 1
      %v1541 = vmax.f32 %v1539, %v1540
      %v1542 = vsel %vm1149, %v1058, -inf
      %v1543 = vrot.slane %v1542, 4
      %v1544 = vmax.f32 %v1542, %v1543
      %v1545 = vrot.slane %v1544, 2
      %v1546 = vmax.f32 %v1544, %v1545
      %v1547 = vrot.slane %v1546, 1
      %v1548 = vmax.f32 %v1546, %v1547
      %v1549 = vsel %vm1149, %v1066, -inf
      %v1550 = vrot.slane %v1549, 4
      %v1551 = vmax.f32 %v1549, %v1550
      %v1552 = vrot.slane %v1551, 2
      %v1553 = vmax.f32 %v1551, %v1552
      %v1554 = vrot.slane %v1553, 1
      %v1555 = vmax.f32 %v1553, %v1554
      %v1556 = vsel %vm1149, %v1065, -inf
      %v1557 = vrot.slane %v1556, 4
      %v1558 = vmax.f32 %v1556, %v1557
      %v1559 = vrot.slane %v1558, 2
      %v1560 = vmax.f32 %v1558, %v1559
      %v1561 = vrot.slane %v1560, 1
      %v1562 = vmax.f32 %v1560, %v1561
      %v1563 = vsel %vm1149, %v1067, -inf
      %v1564 = vrot.slane %v1563, 4
      %v1565 = vmax.f32 %v1563, %v1564
      %v1566 = vrot.slane %v1565, 2
      %v1567 = vmax.f32 %v1565, %v1566
      %v1568 = vrot.slane %v1567, 1
      %v1569 = vmax.f32 %v1567, %v1568
      %v1570 = vsel %vm1149, %v1075, -inf
      %v1571 = vrot.slane %v1570, 4
      %v1572 = vmax.f32 %v1570, %v1571
      %v1573 = vrot.slane %v1572, 2
      %v1574 = vmax.f32 %v1572, %v1573
      %v1575 = vrot.slane %v1574, 1
      %v1576 = vmax.f32 %v1574, %v1575
      %v1577 = vsel %vm1149, %v1083, -inf
      %v1578 = vrot.slane %v1577, 4
      %v1579 = vmax.f32 %v1577, %v1578
      %v1580 = vrot.slane %v1579, 2
      %v1581 = vmax.f32 %v1579, %v1580
      %v1582 = vrot.slane %v1581, 1
      %v1583 = vmax.f32 %v1581, %v1582
      %v1584 = vsel %vm1149, %v1082, -inf
      %v1585 = vrot.slane %v1584, 4
      %v1586 = vmax.f32 %v1584, %v1585
      %v1587 = vrot.slane %v1586, 2
      %v1588 = vmax.f32 %v1586, %v1587
      %v1589 = vrot.slane %v1588, 1
      %v1590 = vmax.f32 %v1588, %v1589
      %v1591 = vsel %vm1149, %v1084, -inf
      %v1592 = vrot.slane %v1591, 4
      %v1593 = vmax.f32 %v1591, %v1592
      %v1594 = vrot.slane %v1593, 2
      %v1595 = vmax.f32 %v1593, %v1594
      %v1596 = vrot.slane %v1595, 1
      %v1597 = vmax.f32 %v1595, %v1596
      %v1598 = vpack.c.bf16 %v1156, %v1156
      %v1599 = vpack.c.bf16 %v1163, %v1163
      %v1600 = vpack.c.bf16 %v1170, %v1170
      %v1601 = vpack.c.bf16 %v1177, %v1177
      %v1602 = vpack.c.bf16 %v1184, %v1184
      %v1603 = vpack.c.bf16 %v1191, %v1191
      %v1604 = vpack.c.bf16 %v1198, %v1198
      %v1605 = vpack.c.bf16 %v1205, %v1205
      %v1606 = vpack.c.bf16 %v1212, %v1212
      %v1607 = vpack.c.bf16 %v1219, %v1219
      %v1608 = vpack.c.bf16 %v1226, %v1226
      %v1609 = vpack.c.bf16 %v1233, %v1233
      %v1610 = vpack.c.bf16 %v1240, %v1240
      %v1611 = vpack.c.bf16 %v1247, %v1247
      %v1612 = vpack.c.bf16 %v1254, %v1254
      %v1613 = vpack.c.bf16 %v1261, %v1261
      %v1614 = vpack.c.bf16 %v1268, %v1268
      %v1615 = vpack.c.bf16 %v1275, %v1275
      %v1616 = vpack.c.bf16 %v1282, %v1282
      %v1617 = vpack.c.bf16 %v1289, %v1289
      %v1618 = vpack.c.bf16 %v1296, %v1296
      %v1619 = vpack.c.bf16 %v1303, %v1303
      %v1620 = vpack.c.bf16 %v1310, %v1310
      %v1621 = vpack.c.bf16 %v1317, %v1317
      %v1622 = vpack.c.bf16 %v1324, %v1324
      %v1623 = vpack.c.bf16 %v1331, %v1331
      %v1624 = vpack.c.bf16 %v1338, %v1338
      %v1625 = vpack.c.bf16 %v1345, %v1345
      %v1626 = vpack.c.bf16 %v1352, %v1352
      %v1627 = vpack.c.bf16 %v1359, %v1359
      %v1628 = vpack.c.bf16 %v1366, %v1366
      %v1629 = vpack.c.bf16 %v1373, %v1373
      %v1630 = vpack.c.bf16 %v1380, %v1380
      %v1631 = vpack.c.bf16 %v1387, %v1387
      %v1632 = vpack.c.bf16 %v1394, %v1394
      %v1633 = vpack.c.bf16 %v1401, %v1401
      %v1634 = vpack.c.bf16 %v1408, %v1408
      %v1635 = vpack.c.bf16 %v1415, %v1415
      %v1636 = vpack.c.bf16 %v1422, %v1422
      %v1637 = vpack.c.bf16 %v1429, %v1429
      %v1638 = vpack.c.bf16 %v1436, %v1436
      %v1639 = vpack.c.bf16 %v1443, %v1443
      %v1640 = vpack.c.bf16 %v1450, %v1450
      %v1641 = vpack.c.bf16 %v1457, %v1457
      %v1642 = vpack.c.bf16 %v1464, %v1464
      %v1643 = vpack.c.bf16 %v1471, %v1471
      %v1644 = vpack.c.bf16 %v1478, %v1478
      %v1645 = vpack.c.bf16 %v1485, %v1485
      %v1646 = vpack.c.bf16 %v1492, %v1492
      %v1647 = vpack.c.bf16 %v1499, %v1499
      %v1648 = vpack.c.bf16 %v1506, %v1506
      %v1649 = vpack.c.bf16 %v1513, %v1513
      %v1650 = vpack.c.bf16 %v1520, %v1520
      %v1651 = vpack.c.bf16 %v1527, %v1527
      %v1652 = vpack.c.bf16 %v1534, %v1534
      %v1653 = vpack.c.bf16 %v1541, %v1541
      %v1654 = vpack.c.bf16 %v1548, %v1548
      %v1655 = vpack.c.bf16 %v1555, %v1555
      %v1656 = vpack.c.bf16 %v1562, %v1562
      %v1657 = vpack.c.bf16 %v1569, %v1569
      %v1658 = vpack.c.bf16 %v1576, %v1576
      %v1659 = vpack.c.bf16 %v1583, %v1583
      %v1660 = vpack.c.bf16 %v1590, %v1590
      %v1661 = vpack.c.bf16 %v1597, %v1597
      %v1726 = vunpack.c.l.b16 %v1598
      %v1727 = vunpack.c.l.b16 %v1599
      %v1728 = vunpack.c.l.b16 %v1600
      %v1729 = vunpack.c.l.b16 %v1601
      %v1730 = vunpack.c.l.b16 %v1602
      %v1731 = vunpack.c.l.b16 %v1603
      %v1732 = vunpack.c.l.b16 %v1604
      %v1733 = vunpack.c.l.b16 %v1605
      %v1734 = vunpack.c.l.b16 %v1606
      %v1735 = vunpack.c.l.b16 %v1607
      %v1736 = vunpack.c.l.b16 %v1608
      %v1737 = vunpack.c.l.b16 %v1609
      %v1738 = vunpack.c.l.b16 %v1610
      %v1739 = vunpack.c.l.b16 %v1611
      %v1740 = vunpack.c.l.b16 %v1612
      %v1741 = vunpack.c.l.b16 %v1613
      %v1742 = vunpack.c.l.b16 %v1614
      %v1743 = vunpack.c.l.b16 %v1615
      %v1744 = vunpack.c.l.b16 %v1616
      %v1745 = vunpack.c.l.b16 %v1617
      %v1746 = vunpack.c.l.b16 %v1618
      %v1747 = vunpack.c.l.b16 %v1619
      %v1748 = vunpack.c.l.b16 %v1620
      %v1749 = vunpack.c.l.b16 %v1621
      %v1750 = vunpack.c.l.b16 %v1622
      %v1751 = vunpack.c.l.b16 %v1623
      %v1752 = vunpack.c.l.b16 %v1624
      %v1753 = vunpack.c.l.b16 %v1625
      %v1754 = vunpack.c.l.b16 %v1626
      %v1755 = vunpack.c.l.b16 %v1627
      %v1756 = vunpack.c.l.b16 %v1628
      %v1757 = vunpack.c.l.b16 %v1629
      %v1758 = vunpack.c.l.b16 %v1630
      %v1759 = vunpack.c.l.b16 %v1631
      %v1760 = vunpack.c.l.b16 %v1632
      %v1761 = vunpack.c.l.b16 %v1633
      %v1762 = vunpack.c.l.b16 %v1634
      %v1763 = vunpack.c.l.b16 %v1635
      %v1764 = vunpack.c.l.b16 %v1636
      %v1765 = vunpack.c.l.b16 %v1637
      %v1766 = vunpack.c.l.b16 %v1638
      %v1767 = vunpack.c.l.b16 %v1639
      %v1768 = vunpack.c.l.b16 %v1640
      %v1769 = vunpack.c.l.b16 %v1641
      %v1770 = vunpack.c.l.b16 %v1642
      %v1771 = vunpack.c.l.b16 %v1643
      %v1772 = vunpack.c.l.b16 %v1644
      %v1773 = vunpack.c.l.b16 %v1645
      %v1774 = vunpack.c.l.b16 %v1646
      %v1775 = vunpack.c.l.b16 %v1647
      %v1776 = vunpack.c.l.b16 %v1648
      %v1777 = vunpack.c.l.b16 %v1649
      %v1778 = vunpack.c.l.b16 %v1650
      %v1779 = vunpack.c.l.b16 %v1651
      %v1780 = vunpack.c.l.b16 %v1652
      %v1781 = vunpack.c.l.b16 %v1653
      %v1782 = vunpack.c.l.b16 %v1654
      %v1783 = vunpack.c.l.b16 %v1655
      %v1784 = vunpack.c.l.b16 %v1656
      %v1785 = vunpack.c.l.b16 %v1657
      %v1786 = vunpack.c.l.b16 %v1658
      %v1787 = vunpack.c.l.b16 %v1659
      %v1788 = vunpack.c.l.b16 %v1660
      %v1789 = vunpack.c.l.b16 %v1661
      %v1790 = vpack.c.b16 %v1726, %v1726
      %v1791 = vpack.c.b16 %v1727, %v1727
      %v1792 = vpack.c.b16 %v1728, %v1728
      %v1793 = vpack.c.b16 %v1729, %v1729
      %v1794 = vpack.c.b16 %v1730, %v1730
      %v1795 = vpack.c.b16 %v1731, %v1731
      %v1796 = vpack.c.b16 %v1732, %v1732
      %v1797 = vpack.c.b16 %v1733, %v1733
      %v1798 = vpack.c.b16 %v1734, %v1734
      %v1799 = vpack.c.b16 %v1735, %v1735
      %v1800 = vpack.c.b16 %v1736, %v1736
      %v1801 = vpack.c.b16 %v1737, %v1737
      %v1802 = vpack.c.b16 %v1738, %v1738
      %v1803 = vpack.c.b16 %v1739, %v1739
      %v1804 = vpack.c.b16 %v1740, %v1740
      %v1805 = vpack.c.b16 %v1741, %v1741
      %v1806 = vpack.c.b16 %v1742, %v1742
      %v1807 = vpack.c.b16 %v1743, %v1743
      %v1808 = vpack.c.b16 %v1744, %v1744
      %v1809 = vpack.c.b16 %v1745, %v1745
      %v1810 = vpack.c.b16 %v1746, %v1746
      %v1811 = vpack.c.b16 %v1747, %v1747
      %v1812 = vpack.c.b16 %v1748, %v1748
      %v1813 = vpack.c.b16 %v1749, %v1749
      %v1814 = vpack.c.b16 %v1750, %v1750
      %v1815 = vpack.c.b16 %v1751, %v1751
      %v1816 = vpack.c.b16 %v1752, %v1752
      %v1817 = vpack.c.b16 %v1753, %v1753
      %v1818 = vpack.c.b16 %v1754, %v1754
      %v1819 = vpack.c.b16 %v1755, %v1755
      %v1820 = vpack.c.b16 %v1756, %v1756
      %v1821 = vpack.c.b16 %v1757, %v1757
      %v1822 = vpack.c.b16 %v1758, %v1758
      %v1823 = vpack.c.b16 %v1759, %v1759
      %v1824 = vpack.c.b16 %v1760, %v1760
      %v1825 = vpack.c.b16 %v1761, %v1761
      %v1826 = vpack.c.b16 %v1762, %v1762
      %v1827 = vpack.c.b16 %v1763, %v1763
      %v1828 = vpack.c.b16 %v1764, %v1764
      %v1829 = vpack.c.b16 %v1765, %v1765
      %v1830 = vpack.c.b16 %v1766, %v1766
      %v1831 = vpack.c.b16 %v1767, %v1767
      %v1832 = vpack.c.b16 %v1768, %v1768
      %v1833 = vpack.c.b16 %v1769, %v1769
      %v1834 = vpack.c.b16 %v1770, %v1770
      %v1835 = vpack.c.b16 %v1771, %v1771
      %v1836 = vpack.c.b16 %v1772, %v1772
      %v1837 = vpack.c.b16 %v1773, %v1773
      %v1838 = vpack.c.b16 %v1774, %v1774
      %v1839 = vpack.c.b16 %v1775, %v1775
      %v1840 = vpack.c.b16 %v1776, %v1776
      %v1841 = vpack.c.b16 %v1777, %v1777
      %v1842 = vpack.c.b16 %v1778, %v1778
      %v1843 = vpack.c.b16 %v1779, %v1779
      %v1844 = vpack.c.b16 %v1780, %v1780
      %v1845 = vpack.c.b16 %v1781, %v1781
      %v1846 = vpack.c.b16 %v1782, %v1782
      %v1847 = vpack.c.b16 %v1783, %v1783
      %v1848 = vpack.c.b16 %v1784, %v1784
      %v1849 = vpack.c.b16 %v1785, %v1785
      %v1850 = vpack.c.b16 %v1786, %v1786
      %v1851 = vpack.c.b16 %v1787, %v1787
      %v1852 = vpack.c.b16 %v1788, %v1788
      %v1853 = vpack.c.b16 %v1789, %v1789
      %v1854 = vunpack.c.l.b16 %v1790
      %v1855 = vunpack.c.l.b16 %v1791
      %v1856 = vunpack.c.l.b16 %v1792
      %v1857 = vunpack.c.l.b16 %v1793
      %v1858 = vunpack.c.l.b16 %v1794
      %v1859 = vunpack.c.l.b16 %v1795
      %v1860 = vunpack.c.l.b16 %v1796
      %v1861 = vunpack.c.l.b16 %v1797
      %v1862 = vunpack.c.l.b16 %v1798
      %v1863 = vunpack.c.l.b16 %v1799
      %v1864 = vunpack.c.l.b16 %v1800
      %v1865 = vunpack.c.l.b16 %v1801
      %v1866 = vunpack.c.l.b16 %v1802
      %v1867 = vunpack.c.l.b16 %v1803
      %v1868 = vunpack.c.l.b16 %v1804
      %v1869 = vunpack.c.l.b16 %v1805
      %v1870 = vunpack.c.l.b16 %v1806
      %v1871 = vunpack.c.l.b16 %v1807
      %v1872 = vunpack.c.l.b16 %v1808
      %v1873 = vunpack.c.l.b16 %v1809
      %v1874 = vunpack.c.l.b16 %v1810
      %v1875 = vunpack.c.l.b16 %v1811
      %v1876 = vunpack.c.l.b16 %v1812
      %v1877 = vunpack.c.l.b16 %v1813
      %v1878 = vunpack.c.l.b16 %v1814
      %v1879 = vunpack.c.l.b16 %v1815
      %v1880 = vunpack.c.l.b16 %v1816
      %v1881 = vunpack.c.l.b16 %v1817
      %v1882 = vunpack.c.l.b16 %v1818
      %v1883 = vunpack.c.l.b16 %v1819
      %v1884 = vunpack.c.l.b16 %v1820
      %v1885 = vunpack.c.l.b16 %v1821
      %v1886 = vunpack.c.l.b16 %v1822
      %v1887 = vunpack.c.l.b16 %v1823
      %v1888 = vunpack.c.l.b16 %v1824
      %v1889 = vunpack.c.l.b16 %v1825
      %v1890 = vunpack.c.l.b16 %v1826
      %v1891 = vunpack.c.l.b16 %v1827
      %v1892 = vunpack.c.l.b16 %v1828
      %v1893 = vunpack.c.l.b16 %v1829
      %v1894 = vunpack.c.l.b16 %v1830
      %v1895 = vunpack.c.l.b16 %v1831
      %v1896 = vunpack.c.l.b16 %v1832
      %v1897 = vunpack.c.l.b16 %v1833
      %v1898 = vunpack.c.l.b16 %v1834
      %v1899 = vunpack.c.l.b16 %v1835
      %v1900 = vunpack.c.l.b16 %v1836
      %v1901 = vunpack.c.l.b16 %v1837
      %v1902 = vunpack.c.l.b16 %v1838
      %v1903 = vunpack.c.l.b16 %v1839
      %v1904 = vunpack.c.l.b16 %v1840
      %v1905 = vunpack.c.l.b16 %v1841
      %v1906 = vunpack.c.l.b16 %v1842
      %v1907 = vunpack.c.l.b16 %v1843
      %v1908 = vunpack.c.l.b16 %v1844
      %v1909 = vunpack.c.l.b16 %v1845
      %v1910 = vunpack.c.l.b16 %v1846
      %v1911 = vunpack.c.l.b16 %v1847
      %v1912 = vunpack.c.l.b16 %v1848
      %v1913 = vunpack.c.l.b16 %v1849
      %v1914 = vunpack.c.l.b16 %v1850
      %v1915 = vunpack.c.l.b16 %v1851
      %v1916 = vunpack.c.l.b16 %v1852
      %v1917 = vunpack.c.l.b16 %v1853
      %vm1918 = vcmask 1041409
      %v1919 = vsel %vm1918, %v1855, %v1854
      %vm1920 = vcmask 1042434
      %v1921 = vsel %vm1920, %v1856, %v1919
      %vm1922 = vcmask 1043459
      %v1923 = vsel %vm1922, %v1857, %v1921
      %vm1924 = vcmask 1044484
      %v1925 = vsel %vm1924, %v1858, %v1923
      %vm1926 = vcmask 1045509
      %v1927 = vsel %vm1926, %v1859, %v1925
      %vm1928 = vcmask 1046534
      %v1929 = vsel %vm1928, %v1860, %v1927
      %vm1930 = vcmask 1047559
      %v1931 = vsel %vm1930, %v1861, %v1929
      %v1932 = vsel %vm1918, %v1863, %v1862
      %v1933 = vsel %vm1920, %v1864, %v1932
      %v1934 = vsel %vm1922, %v1865, %v1933
      %v1935 = vsel %vm1924, %v1866, %v1934
      %v1936 = vsel %vm1926, %v1867, %v1935
      %v1937 = vsel %vm1928, %v1868, %v1936
      %v1938 = vsel %vm1930, %v1869, %v1937
      %v1939 = vsel %vm1918, %v1871, %v1870
      %v1940 = vsel %vm1920, %v1872, %v1939
      %v1941 = vsel %vm1922, %v1873, %v1940
      %v1942 = vsel %vm1924, %v1874, %v1941
      %v1943 = vsel %vm1926, %v1875, %v1942
      %v1944 = vsel %vm1928, %v1876, %v1943
      %v1945 = vsel %vm1930, %v1877, %v1944
      %v1946 = vsel %vm1918, %v1879, %v1878
      %v1947 = vsel %vm1920, %v1880, %v1946
      %v1948 = vsel %vm1922, %v1881, %v1947
      %v1949 = vsel %vm1924, %v1882, %v1948
      %v1950 = vsel %vm1926, %v1883, %v1949
      %v1951 = vsel %vm1928, %v1884, %v1950
      %v1952 = vsel %vm1930, %v1885, %v1951
      %v1953 = vsel %vm1918, %v1887, %v1886
      %v1954 = vsel %vm1920, %v1888, %v1953
      %v1955 = vsel %vm1922, %v1889, %v1954
      %v1956 = vsel %vm1924, %v1890, %v1955
      %v1957 = vsel %vm1926, %v1891, %v1956
      %v1958 = vsel %vm1928, %v1892, %v1957
      %v1959 = vsel %vm1930, %v1893, %v1958
      %v1960 = vsel %vm1918, %v1895, %v1894
      %v1961 = vsel %vm1920, %v1896, %v1960
      %v1962 = vsel %vm1922, %v1897, %v1961
      %v1963 = vsel %vm1924, %v1898, %v1962
      %v1964 = vsel %vm1926, %v1899, %v1963
      %v1965 = vsel %vm1928, %v1900, %v1964
      %v1966 = vsel %vm1930, %v1901, %v1965
      %v1967 = vsel %vm1918, %v1903, %v1902
      %v1968 = vsel %vm1920, %v1904, %v1967
      %v1969 = vsel %vm1922, %v1905, %v1968
      %v1970 = vsel %vm1924, %v1906, %v1969
      %v1971 = vsel %vm1926, %v1907, %v1970
      %v1972 = vsel %vm1928, %v1908, %v1971
      %v1973 = vsel %vm1930, %v1909, %v1972
      %v1974 = vsel %vm1918, %v1911, %v1910
      %v1975 = vsel %vm1920, %v1912, %v1974
      %v1976 = vsel %vm1922, %v1913, %v1975
      %v1977 = vsel %vm1924, %v1914, %v1976
      %v1978 = vsel %vm1926, %v1915, %v1977
      %v1979 = vsel %vm1928, %v1916, %v1978
      %v1980 = vsel %vm1930, %v1917, %v1979
      %v1981 = vpack.c.b16 %v1931, %v1931
      %v1982 = vpack.c.b16 %v1938, %v1938
      %v1983 = vpack.c.b16 %v1945, %v1945
      %v1984 = vpack.c.b16 %v1952, %v1952
      %v1985 = vpack.c.b16 %v1959, %v1959
      %v1986 = vpack.c.b16 %v1966, %v1966
      %v1987 = vpack.c.b16 %v1973, %v1973
      %v1988 = vpack.c.b16 %v1980, %v1980
      %vm1997 = vcmask 519168
      %1998 = vst.msk [vmem:[%s305] sm:$0xf] %vm1997, %v1981
      %1999 = vst.msk [vmem:[%s305 + $0x4] sm:$0xf] %vm1997, %v1982
      %2000 = vst.msk [vmem:[%s305 + $0x8] sm:$0xf] %vm1997, %v1983
      %2001 = vst.msk [vmem:[%s305 + $0xc] sm:$0xf] %vm1997, %v1984
      %2002 = vst.msk [vmem:[%s305 + $0x10] sm:$0xf] %vm1997, %v1985
      %2003 = vst.msk [vmem:[%s305 + $0x14] sm:$0xf] %vm1997, %v1986
      %2004 = vst.msk [vmem:[%s305 + $0x18] sm:$0xf] %vm1997, %v1987
      %2005 = vst.msk [vmem:[%s305 + $0x1c] sm:$0xf] %vm1997, %v1988
      %s2006 = smul.u32 8, %s20
      %p2007 = scmp.lt.s32.totalorder %s19, 1
      %s2008 = scalar_select %p2007, %s19, 1
      %p2009 = scmp.lt.s32.totalorder %s2006, 7
      %s2010 = scalar_select %p2009, %s2006, 7
      %s2011 = smul.addr %s2008, 8
      %s2012 = sadd.s32 %s2010, %s2011
      %s2013 = smul.addr %s2012, 4
      %s2014 = scalar_lea.vmem %s4, %s2013
      // Predicated region
      $region37: #{eeg_forward.6} parent=35 // pred_check
        %p2015 = pneg %p149
      $region38: #{eeg_forward.6} parent=35 // pred_check_branch
        %2017 = sbr.rel (%p2015) target = $region40
      $region39: #{eeg_forward.6} parent=35 // pred_region
        %s2018 = smul.u32 8, %s20
      $region40: #{eeg_forward.6} parent=35 // pred_fallthru
        _
    $region36: #{eeg_forward.6} parent=5 // pred_fallthru
      _
    %p2019 = scmp.le.s32.totalorder 2, %s10
    // Predicated region
    $region41: #{eeg_forward.6} parent=5 // pred_check
      %p2020 = pneg %p2019
    $region42: #{eeg_forward.6} parent=5 // pred_check_branch
      %2022 = sbr.rel (%p2020) target = $region44
    $region43: #{eeg_forward.6} parent=5 // pred_region
      %s2023 = ssub.s32 %s10, 2
      // Predicated region
      $region45: #{eeg_forward.6} parent=43 // pred_check
        %p2024 = pneg %p155
      $region46: #{eeg_forward.6} parent=43 // pred_check_branch
        %2026 = sbr.rel (%p2024) target = $region48
      $region47: #{eeg_forward.6} parent=43 // pred_region
        %s2027 = smul.u32 8, %s22
        %p2028 = scmp.lt.s32.totalorder %s21, 1
        %s2029 = scalar_select %p2028, %s21, 1
        %p2030 = scmp.lt.s32.totalorder %s2027, 7
        %s2031 = scalar_select %p2030, %s2027, 7
        %s2032 = smul.addr %s2029, 8
        %s2033 = sadd.s32 %s2031, %s2032
        %s2034 = smul.addr %s2033, 4
        %s2035 = scalar_lea.vmem %s4, %s2034
      $region48: #{eeg_forward.6} parent=43 // pred_fallthru
        _
    $region44: #{eeg_forward.6} parent=5 // pred_fallthru
      _
  $region6: #{eeg_forward.6} parent=0 // loop_footer
    %s14 = sadd.s32 1, %s10
  $region7: #{eeg_forward.6} parent=0 // loop_footer_branch
    %9 = sbr.rel target = $region3
  $region8: #{eeg_forward.6} parent=0 // loop_exit
    _

// kernel: eeg_forward.4
$region0: #{eeg_forward.4}
  #allocation0 [shape = 'u32[]', space=smem, size = 0x4, offset = 0x4, fixed_abs, tag = 'smem constant byte address 0x4 - core index']
  #allocation1 [shape = 'u32[144,128]{1,0:T(1,128)}', space=vmem, size = 0x12000, scoped, tag = 'internal scratch']
  %s0 = inlined_call_operand.vmem [shape: bf16[2,528,3], index: 0, kind: input, shape index: {}, may-alias: {0,1}]
  %s1 = inlined_call_operand.vmem [shape: bf16[2,528,3], index: 1, kind: input, shape index: {}, may-alias: {0,1}]
  %s2 = inlined_call_operand.vmem [shape: bf16[3,112], index: 2, kind: input, shape index: {}]
  %s3 = inlined_call_operand.vmem [shape: f32[1,16], index: 3, kind: input, shape index: {}]
  %s4 = inlined_call_operand.vmem [shape: bf16[2,256,16], index: 4, kind: output, shape index: {}]
  %s5 = sld [smem:[#allocation0]]
  $region49: #{eeg_forward.4} parent=0
    _
  %s7 = ssub.s32 1, %s5
  %s8 = scalar_select 0, %s7, %s5
  loop: start=0, step=1, limit=6
  $region2: #{eeg_forward.4} parent=0 // loop_pre_header
    _
  $region3: #{eeg_forward.4} parent=0 // loop_header
    %s10 = sphi 0, %s14
    %p11 = scmp.ge.s32.totalorder %s10, 6
    %s17 = sphi 0, %s29
    %s18 = sphi 0, %s25
    %s19 = sphi 0, %s17
    %s20 = sphi 0, %s18
    %s21 = sphi 0, %s19
    %s22 = sphi 0, %s20
    %s34 = sphi 0, %s36
    %s37 = sphi 0, %s34
    %s38 = sphi 0, %s37
    %s54 = sphi 0, %s38
    %s66 = sphi 0, %s68
    %s69 = sphi 0, %s66
    %s70 = sphi 0, %s69
    %s86 = sphi 0, %s70
    %s90 = sphi 0, %s90
    %s92 = sphi 0, %s90
    %s93 = sphi 0, %s92
    %s107 = sphi 0, %s93
    %s111 = sphi 0, %s111
    %s113 = sphi 0, %s111
    %s114 = sphi 0, %s113
    %s128 = sphi 0, %s114
    %s136 = sphi 0, %s138
    %s139 = sphi 0, %s136
    %s140 = sphi 0, %s139
    %s156 = sphi 0, %s140
  $region4: #{eeg_forward.4} parent=0 // loop_header_branch
    %13 = sbr.rel (%p11) target = $region8
  $region5: #{eeg_forward.4} parent=0 // loop_body
    %s15 = ssub.s32 %s10, 1
    %s16 = ssub.s32 %s10, 2
    %s23 = sadd.s32 1, %s18
    %p24 = scmp.ge.s32.totalorder %s23, 2
    %s25 = scalar_select %p24, 0, %s23
    %s26 = sadd.s32 1, %s17
    %s27 = scalar_select %p24, %s26, %s17
    %p28 = scmp.ge.s32.totalorder %s27, 2
    %s29 = scalar_select %p28, 0, %s27
    %s30 = ssub.s32 %s17, %s29
    %s31 = ssub.s32 %s18, %s25
    %s32 = sor.u32 %s30, %s31
    %p33 = scmp.eq.s32.totalorder %s32, 0
    %s35 = sadd.s32 %s34, 1
    %s36 = scalar_select %p33, %s34, %s35
    %p39 = pneg %p33
    %p40 = scmp.eq.s32.totalorder %s10, 3
    %p41 = por %p39, %p40
    %p42 = scmp.ne.s32.totalorder %s34, %s37
    %p43 = scmp.eq.s32.totalorder %s10, 0
    %p44 = por %p42, %p43
    %p45 = scmp.ne.s32.totalorder %s34, %s37
    %p46 = scmp.eq.s32.totalorder %s15, 3
    %p47 = por %p45, %p46
    %p48 = scmp.ne.s32.totalorder %s37, %s38
    %p49 = scmp.eq.s32.totalorder %s15, 0
    %p50 = por %p48, %p49
    %p51 = scmp.ne.s32.totalorder %s37, %s38
    %p52 = scmp.eq.s32.totalorder %s16, 3
    %p53 = por %p51, %p52
    %p55 = scmp.ne.s32.totalorder %s38, %s54
    %p56 = scmp.eq.s32.totalorder %s16, 0
    %p57 = por %p55, %p56
    %s58 = sadd.s32 %s18, 1
    %s59 = smul.u32 %s58, 16
    %s60 = sadd.s32 %s25, 1
    %s61 = smul.u32 %s60, 16
    %s62 = ssub.s32 %s17, %s29
    %s63 = ssub.s32 %s59, %s61
    %s64 = sor.u32 %s62, %s63
    %p65 = scmp.eq.s32.totalorder %s64, 0
    %s67 = sadd.s32 %s66, 1
    %s68 = scalar_select %p65, %s66, %s67
    %p71 = pneg %p65
    %p72 = scmp.eq.s32.totalorder %s10, 3
    %p73 = por %p71, %p72
    %p74 = scmp.ne.s32.totalorder %s66, %s69
    %p75 = scmp.eq.s32.totalorder %s10, 0
    %p76 = por %p74, %p75
    %p77 = scmp.ne.s32.totalorder %s66, %s69
    %p78 = scmp.eq.s32.totalorder %s15, 3
    %p79 = por %p77, %p78
    %p80 = scmp.ne.s32.totalorder %s69, %s70
    %p81 = scmp.eq.s32.totalorder %s15, 0
    %p82 = por %p80, %p81
    %p83 = scmp.ne.s32.totalorder %s69, %s70
    %p84 = scmp.eq.s32.totalorder %s16, 3
    %p85 = por %p83, %p84
    %p87 = scmp.ne.s32.totalorder %s70, %s86
    %p88 = scmp.eq.s32.totalorder %s16, 0
    %p89 = por %p87, %p88
    %s91 = sadd.s32 %s90, 1
    %p94 = scmp.eq.s32.totalorder %s10, 3
    %p95 = scmp.ne.s32.totalorder %s90, %s92
    %p96 = scmp.eq.s32.totalorder %s10, 0
    %p97 = por %p95, %p96
    %p98 = scmp.ne.s32.totalorder %s90, %s92
    %p99 = scmp.eq.s32.totalorder %s15, 3
    %p100 = por %p98, %p99
    %p101 = scmp.ne.s32.totalorder %s92, %s93
    %p102 = scmp.eq.s32.totalorder %s15, 0
    %p103 = por %p101, %p102
    %p104 = scmp.ne.s32.totalorder %s92, %s93
    %p105 = scmp.eq.s32.totalorder %s16, 3
    %p106 = por %p104, %p105
    %p108 = scmp.ne.s32.totalorder %s93, %s107
    %p109 = scmp.eq.s32.totalorder %s16, 0
    %p110 = por %p108, %p109
    %s112 = sadd.s32 %s111, 1
    %p115 = scmp.eq.s32.totalorder %s10, 3
    %p116 = scmp.ne.s32.totalorder %s111, %s113
    %p117 = scmp.eq.s32.totalorder %s10, 0
    %p118 = por %p116, %p117
    %p119 = scmp.ne.s32.totalorder %s111, %s113
    %p120 = scmp.eq.s32.totalorder %s15, 3
    %p121 = por %p119, %p120
    %p122 = scmp.ne.s32.totalorder %s113, %s114
    %p123 = scmp.eq.s32.totalorder %s15, 0
    %p124 = por %p122, %p123
    %p125 = scmp.ne.s32.totalorder %s113, %s114
    %p126 = scmp.eq.s32.totalorder %s16, 3
    %p127 = por %p125, %p126
    %p129 = scmp.ne.s32.totalorder %s114, %s128
    %p130 = scmp.eq.s32.totalorder %s16, 0
    %p131 = por %p129, %p130
    %s132 = ssub.s32 %s17, %s29
    %s133 = ssub.s32 %s18, %s25
    %s134 = sor.u32 %s132, %s133
    %p135 = scmp.eq.s32.totalorder %s134, 0
    %s137 = sadd.s32 %s136, 1
    %s138 = scalar_select %p135, %s136, %s137
    %p141 = pneg %p135
    %p142 = scmp.eq.s32.totalorder %s10, 3
    %p143 = por %p141, %p142
    %p144 = scmp.ne.s32.totalorder %s136, %s139
    %p145 = scmp.eq.s32.totalorder %s10, 0
    %p146 = por %p144, %p145
    %p147 = scmp.ne.s32.totalorder %s136, %s139
    %p148 = scmp.eq.s32.totalorder %s15, 3
    %p149 = por %p147, %p148
    %p150 = scmp.ne.s32.totalorder %s139, %s140
    %p151 = scmp.eq.s32.totalorder %s15, 0
    %p152 = por %p150, %p151
    %p153 = scmp.ne.s32.totalorder %s139, %s140
    %p154 = scmp.eq.s32.totalorder %s16, 3
    %p155 = por %p153, %p154
    %p157 = scmp.ne.s32.totalorder %s140, %s156
    %p158 = scmp.eq.s32.totalorder %s16, 0
    %p159 = por %p157, %p158
    %p160 = scmp.le.s32.totalorder 1, %s10
    %p161 = scmp.lt.s32.totalorder %s10, 5
    %p162 = pnand %p160, %p161
    %p163 = pneg %p162
    // Predicated region
    $region9: #{eeg_forward.4} parent=5 // pred_check
      _
    $region10: #{eeg_forward.4} parent=5 // pred_check_branch
      %165 = sbr.rel (%p162) target = $region12
    $region11: #{eeg_forward.4} parent=5 // pred_region
      %s166 = ssub.s32 %s10, 1
      // Predicated region
      $region13: #{eeg_forward.4} parent=11 // pred_check
        %p167 = pneg %p103
      $region14: #{eeg_forward.4} parent=11 // pred_check_branch
        %169 = sbr.rel (%p167) target = $region16
      $region15: #{eeg_forward.4} parent=11 // pred_region
        _
      $region16: #{eeg_forward.4} parent=11 // pred_fallthru
        _
      // Predicated region
      $region17: #{eeg_forward.4} parent=11 // pred_check
        %p170 = pneg %p124
      $region18: #{eeg_forward.4} parent=11 // pred_check_branch
        %172 = sbr.rel (%p170) target = $region20
      $region19: #{eeg_forward.4} parent=11 // pred_region
        _
      $region20: #{eeg_forward.4} parent=11 // pred_fallthru
        _
    $region12: #{eeg_forward.4} parent=5 // pred_fallthru
      _
    %p173 = scmp.lt.s32.totalorder %s10, 4
    // Predicated region
    $region21: #{eeg_forward.4} parent=5 // pred_check
      %p174 = pneg %p173
    $region22: #{eeg_forward.4} parent=5 // pred_check_branch
      %176 = sbr.rel (%p174) target = $region24
    $region23: #{eeg_forward.4} parent=5 // pred_region
      // Predicated region
      $region25: #{eeg_forward.4} parent=23 // pred_check
        %p177 = pneg %p44
      $region26: #{eeg_forward.4} parent=23 // pred_check_branch
        %179 = sbr.rel (%p177) target = $region28
      $region27: #{eeg_forward.4} parent=23 // pred_region
        %s180 = smul.u32 32, %s18
        %s181 = ssub.s32 66, %s180
        %p182 = scmp.lt.s32.totalorder %s181, 32
        %s183 = scalar_select %p182, %s181, 32
        %s184 = smul.u32 64, %s183
        %p185 = scmp.lt.s32.totalorder %s17, 1
        %s186 = scalar_select %p185, %s17, 1
        %p187 = scmp.lt.s32.totalorder %s180, 65
        %s188 = scalar_select %p187, %s180, 65
        %s189 = smul.addr %s186, 66
        %s190 = sadd.s32 %s188, %s189
        %s191 = smul.addr %s190, 4
        %s192 = scalar_lea.vmem %s0, %s191
        %s193 = smul.u32 32, %s18
        %s194 = ssub.s32 66, %s193
        %p195 = scmp.lt.s32.totalorder %s194, 32
        %s196 = scalar_select %p195, %s194, 32
        %s197 = smul.u32 64, %s196
      $region28: #{eeg_forward.4} parent=23 // pred_fallthru
        _
      // Predicated region
      $region29: #{eeg_forward.4} parent=23 // pred_check
        %p198 = pneg %p76
      $region30: #{eeg_forward.4} parent=23 // pred_check_branch
        %200 = sbr.rel (%p198) target = $region32
      $region31: #{eeg_forward.4} parent=23 // pred_region
        %s201 = sadd.s32 %s18, 1
        %s202 = smul.u32 %s201, 16
        %s203 = smul.u32 2, %s202
        %p204 = scmp.lt.s32.totalorder %s17, 1
        %s205 = scalar_select %p204, %s17, 1
        %p206 = scmp.lt.s32.totalorder %s203, 65
        %s207 = scalar_select %p206, %s203, 65
        %s208 = smul.addr %s205, 66
        %s209 = sadd.s32 %s207, %s208
        %s210 = smul.addr %s209, 4
        %s211 = scalar_lea.vmem %s1, %s210
        %s212 = sadd.s32 %s18, 1
        %s213 = smul.u32 %s212, 16
        %s214 = smul.u32 2, %s213
      $region32: #{eeg_forward.4} parent=23 // pred_fallthru
        _
    $region24: #{eeg_forward.4} parent=5 // pred_fallthru
      _
    %p215 = scmp.le.s32.totalorder 1, %s10
    %p216 = scmp.lt.s32.totalorder %s10, 5
    %p217 = pnand %p215, %p216
    %p218 = pneg %p217
    // Predicated region
    $region33: #{eeg_forward.4} parent=5 // pred_check
      _
    $region34: #{eeg_forward.4} parent=5 // pred_check_branch
      %220 = sbr.rel (%p217) target = $region36
    $region35: #{eeg_forward.4} parent=5 // pred_region
      %s221 = ssub.s32 %s10, 1
      %s222 = smul.u32 32, %s20
      %s223 = ssub.s32 66, %s222
      %p224 = scmp.lt.s32.totalorder %s223, 32
      %s225 = scalar_select %p224, %s223, 32
      %s226 = smul.u32 64, %s225
      %p227 = scmp.lt.s32.totalorder %s19, 1
      %s228 = scalar_select %p227, %s19, 1
      %p229 = scmp.lt.s32.totalorder %s222, 65
      %s230 = scalar_select %p229, %s222, 65
      %s231 = smul.addr %s228, 66
      %s232 = sadd.s32 %s230, %s231
      %s233 = smul.addr %s232, 4
      %s234 = scalar_lea.vmem %s0, %s233
      %p235 = pneg %p50
      %p236 = pneg %p47
      %s237 = sadd.s32 %s20, 1
      %s238 = smul.u32 %s237, 16
      %s239 = smul.u32 2, %s238
      %p240 = scmp.lt.s32.totalorder %s19, 1
      %s241 = scalar_select %p240, %s19, 1
      %p242 = scmp.lt.s32.totalorder %s239, 65
      %s243 = scalar_select %p242, %s239, 65
      %s244 = smul.addr %s241, 66
      %s245 = sadd.s32 %s243, %s244
      %s246 = smul.addr %s245, 4
      %s247 = scalar_lea.vmem %s1, %s246
      %p248 = pneg %p82
      %p249 = pneg %p79
      %p250 = pneg %p103
      %p251 = pneg %p100
      %p252 = pneg %p124
      %p253 = pneg %p121
      %p254 = pneg %p152
      %p255 = pneg %p149
      %s256 = smul.u32 16, %s20
      %p257 = scmp.lt.s32.totalorder %s19, 1
      %s258 = scalar_select %p257, %s19, 1
      %p259 = scmp.lt.s32.totalorder %s256, 31
      %s260 = scalar_select %p259, %s256, 31
      %s261 = smul.addr %s258, 32
      %s262 = sadd.s32 %s260, %s261
      %s263 = smul.addr %s262, 4
      %s264 = scalar_lea.vmem %s4, %s263
      %s265 = smul.u32 32, %s20
      %s266 = ssub.s32 66, %s265
      %p267 = scmp.lt.s32.totalorder %s266, 32
      %s268 = scalar_select %p267, %s266, 32
      %s269 = smul.u32 64, %s268
      %p270 = scmp.lt.s32.totalorder %s19, 1
      %s271 = scalar_select %p270, %s19, 1
      %p272 = scmp.lt.s32.totalorder %s265, 65
      %s273 = scalar_select %p272, %s265, 65
      %s274 = smul.addr %s271, 66
      %s275 = sadd.s32 %s273, %s274
      %s276 = smul.addr %s275, 4
      %s277 = scalar_lea.vmem %s0, %s276
      %s278 = smul.u32 32, %s20
      %s279 = ssub.s32 66, %s278
      %p280 = scmp.lt.s32.totalorder %s279, 32
      %s281 = scalar_select %p280, %s279, 32
      %s282 = smul.u32 64, %s281
      %s283 = sadd.s32 %s20, 1
      %s284 = smul.u32 %s283, 16
      %s285 = smul.u32 2, %s284
      %p286 = scmp.lt.s32.totalorder %s19, 1
      %s287 = scalar_select %p286, %s19, 1
      %p288 = scmp.lt.s32.totalorder %s285, 65
      %s289 = scalar_select %p288, %s285, 65
      %s290 = smul.addr %s287, 66
      %s291 = sadd.s32 %s289, %s290
      %s292 = smul.addr %s291, 4
      %s293 = scalar_lea.vmem %s1, %s292
      %s294 = sadd.s32 %s20, 1
      %s295 = smul.u32 %s294, 16
      %s296 = smul.u32 2, %s295
      %s297 = smul.u32 16, %s20
      %p298 = scmp.lt.s32.totalorder %s19, 1
      %s299 = scalar_select %p298, %s19, 1
      %p300 = scmp.lt.s32.totalorder %s297, 31
      %s301 = scalar_select %p300, %s297, 31
      %s302 = smul.addr %s299, 32
      %s303 = sadd.s32 %s301, %s302
      %s304 = smul.addr %s303, 4
      %s305 = scalar_lea.vmem %s4, %s304
      %s306 = smul.u32 16, %s20
      %v308 = vld [vmem:[%s277] sm:$0xf]
      %v309 = vld [vmem:[%s277 + $0x4] sm:$0xf]
      %v310 = vld [vmem:[%s277 + $0x8] sm:$0xf]
      %v311 = vld [vmem:[%s277 + $0xc] sm:$0xf]
      %v312 = vld [vmem:[%s277 + $0x10] sm:$0xf]
      %v313 = vld [vmem:[%s277 + $0x14] sm:$0xf]
      %v314 = vld [vmem:[%s277 + $0x18] sm:$0xf]
      %v315 = vld [vmem:[%s277 + $0x1c] sm:$0xf]
      %v316 = vld [vmem:[%s277 + $0x20] sm:$0xf]
      %v317 = vld [vmem:[%s277 + $0x24] sm:$0xf]
      %v318 = vld [vmem:[%s277 + $0x28] sm:$0xf]
      %v319 = vld [vmem:[%s277 + $0x2c] sm:$0xf]
      %v320 = vld [vmem:[%s277 + $0x30] sm:$0xf]
      %v321 = vld [vmem:[%s277 + $0x34] sm:$0xf]
      %v322 = vld [vmem:[%s277 + $0x38] sm:$0xf]
      %v323 = vld [vmem:[%s277 + $0x3c] sm:$0xf]
      %v324 = vld [vmem:[%s277 + $0x40] sm:$0xf]
      %v325 = vld [vmem:[%s277 + $0x44] sm:$0xf]
      %v326 = vld [vmem:[%s277 + $0x48] sm:$0xf]
      %v327 = vld [vmem:[%s277 + $0x4c] sm:$0xf]
      %v328 = vld [vmem:[%s277 + $0x50] sm:$0xf]
      %v329 = vld [vmem:[%s277 + $0x54] sm:$0xf]
      %v330 = vld [vmem:[%s277 + $0x58] sm:$0xf]
      %v331 = vld [vmem:[%s277 + $0x5c] sm:$0xf]
      %v332 = vld [vmem:[%s277 + $0x60] sm:$0xf]
      %v333 = vld [vmem:[%s277 + $0x64] sm:$0xf]
      %v334 = vld [vmem:[%s277 + $0x68] sm:$0xf]
      %v335 = vld [vmem:[%s277 + $0x6c] sm:$0xf]
      %v336 = vld [vmem:[%s277 + $0x70] sm:$0xf]
      %v337 = vld [vmem:[%s277 + $0x74] sm:$0xf]
      %v338 = vld [vmem:[%s277 + $0x78] sm:$0xf]
      %v339 = vld [vmem:[%s277 + $0x7c] sm:$0xf]
      %v340 = vld [vmem:[%s293] sm:$0xf]
      %v341 = vld [vmem:[%s293 + $0x4] sm:$0xf]
      %v374 = vunpack.c.l.b16 %v308
      %v375 = vunpack.c.l.b16 %v309
      %v376 = vunpack.c.l.b16 %v310
      %v377 = vunpack.c.l.b16 %v311
      %v378 = vunpack.c.l.b16 %v312
      %v379 = vunpack.c.l.b16 %v313
      %v380 = vunpack.c.l.b16 %v314
      %v381 = vunpack.c.l.b16 %v315
      %v382 = vunpack.c.l.b16 %v316
      %v383 = vunpack.c.l.b16 %v317
      %v384 = vunpack.c.l.b16 %v318
      %v385 = vunpack.c.l.b16 %v319
      %v386 = vunpack.c.l.b16 %v320
      %v387 = vunpack.c.l.b16 %v321
      %v388 = vunpack.c.l.b16 %v322
      %v389 = vunpack.c.l.b16 %v323
      %v390 = vunpack.c.l.b16 %v324
      %v391 = vunpack.c.l.b16 %v325
      %v392 = vunpack.c.l.b16 %v326
      %v393 = vunpack.c.l.b16 %v327
      %v394 = vunpack.c.l.b16 %v328
      %v395 = vunpack.c.l.b16 %v329
      %v396 = vunpack.c.l.b16 %v330
      %v397 = vunpack.c.l.b16 %v331
      %v398 = vunpack.c.l.b16 %v332
      %v399 = vunpack.c.l.b16 %v333
      %v400 = vunpack.c.l.b16 %v334
      %v401 = vunpack.c.l.b16 %v335
      %v402 = vunpack.c.l.b16 %v336
      %v403 = vunpack.c.l.b16 %v337
      %v404 = vunpack.c.l.b16 %v338
      %v405 = vunpack.c.l.b16 %v339
      %v406 = vpack.c.b16 %v375, %v374
      %v407 = vpack.c.b16 %v377, %v376
      %v408 = vpack.c.b16 %v379, %v378
      %v409 = vpack.c.b16 %v381, %v380
      %v410 = vpack.c.b16 %v383, %v382
      %v411 = vpack.c.b16 %v385, %v384
      %v412 = vpack.c.b16 %v387, %v386
      %v413 = vpack.c.b16 %v389, %v388
      %v414 = vpack.c.b16 %v391, %v390
      %v415 = vpack.c.b16 %v393, %v392
      %v416 = vpack.c.b16 %v395, %v394
      %v417 = vpack.c.b16 %v397, %v396
      %v418 = vpack.c.b16 %v399, %v398
      %v419 = vpack.c.b16 %v401, %v400
      %v420 = vpack.c.b16 %v403, %v402
      %v421 = vpack.c.b16 %v405, %v404
      %v424 = vunpack.c.l.b16 %v340
      %v425 = vunpack.c.l.b16 %v341
      %v426 = vpack.c.b16 %v425, %v424
      %v427 = vld [vmem:[%s2] sm:$0x3]
      %vm428 = vcmask 23552
      %v430 = vsel %vm428, %v406, 0
      %v433 = vsel %vm428, %v407, 0
      %v436 = vsel %vm428, %v408, 0
      %v439 = vsel %vm428, %v409, 0
      %v442 = vsel %vm428, %v410, 0
      %v445 = vsel %vm428, %v411, 0
      %v448 = vsel %vm428, %v412, 0
      %v451 = vsel %vm428, %v413, 0
      %v454 = vsel %vm428, %v414, 0
      %v457 = vsel %vm428, %v415, 0
      %v460 = vsel %vm428, %v416, 0
      %v463 = vsel %vm428, %v417, 0
      %v466 = vsel %vm428, %v418, 0
      %v469 = vsel %vm428, %v419, 0
      %v472 = vsel %vm428, %v420, 0
      %v475 = vsel %vm428, %v421, 0
      %v478 = vsel %vm428, %v426, 0
      %vm480 = vcmask 1040384
      %vm481 = vcmask 1041408
      %v482 = vsel %vm480, 4294967295, 65535
      %v483 = vsel %vm481, %v482, 0
      %v485 = vand.u32 %v427, %v483
      %487 = vmatprep.subr.bf16.mxu0 0
      %488 = vmatpush1.bf16.msra.mxu0 %v485
      %489 = vmatprep.subr.bf16.mxu0 0
      %490 = vmatpush1.bf16.msra.mxu0 0
      %491 = vmatprep.subr.bf16.mxu0 0
      %492 = vmatpush1.bf16.msra.mxu0 0
      %493 = vmatprep.subr.bf16.mxu0 0
      %494 = vmatpush1.bf16.msra.mxu0 0
      %495 = vmatprep.subr.bf16.mxu0 0
      %496 = vmatpush1.bf16.msra.mxu0 0
      %497 = vmatprep.subr.bf16.mxu0 0
      %498 = vmatpush1.bf16.msra.mxu0 0
      %499 = vmatprep.subr.bf16.mxu0 0
      %500 = vmatpush1.bf16.msra.mxu0 0
      %501 = vmatprep.subr.bf16.mxu0 0
      %502 = vmatpush1.bf16.msra.mxu0 0
      %503 = vmatprep.subr.bf16.mxu0 0
      %504 = vmatpush1.bf16.msra.mxu0 0
      %505 = vmatprep.subr.bf16.mxu0 0
      %506 = vmatpush1.bf16.msra.mxu0 0
      %507 = vmatprep.subr.bf16.mxu0 0
      %508 = vmatpush1.bf16.msra.mxu0 0
      %509 = vmatprep.subr.bf16.mxu0 0
      %510 = vmatpush1.bf16.msra.mxu0 0
      %511 = vmatprep.subr.bf16.mxu0 0
      %512 = vmatpush1.bf16.msra.mxu0 0
      %513 = vmatprep.subr.bf16.mxu0 0
      %514 = vmatpush1.bf16.msra.mxu0 0
      %515 = vmatprep.subr.bf16.mxu0 0
      %516 = vmatpush1.bf16.msra.mxu0 0
      %517 = vmatprep.subr.bf16.mxu0 0
      %518 = vmatpush1.bf16.msra.mxu0 0
      %519 = vmatprep.mubr.bf16.mxu0 0
      %520 = vmatmul.mubr.bf16.gmra.mrb[0].mxu0 %v430
      %v521 = vpop.f32.mrb[0].mxu0
      %v522 = vadd.f32 0.0, %v521
      %v523 = vpop.f32.mrb[0].mxu0
      %v524 = vpop.f32.mrb[0].mxu0
      %v525 = vadd.f32 0.0, %v524
      %v526 = vpop.f32.mrb[0].mxu0
      %527 = vmatprep.mubr.bf16.mxu0 0
      %528 = vmatmul.mubr.bf16.gmra.mrb[0].mxu0 %v433
      %v529 = vpop.f32.mrb[0].mxu0
      %v530 = vadd.f32 0.0, %v529
      %v531 = vpop.f32.mrb[0].mxu0
      %v532 = vpop.f32.mrb[0].mxu0
      %v533 = vadd.f32 0.0, %v532
      %v534 = vpop.f32.mrb[0].mxu0
      %535 = vmatprep.mubr.bf16.mxu0 0
      %536 = vmatmul.mubr.bf16.gmra.mrb[0].mxu0 %v436
      %v537 = vpop.f32.mrb[0].mxu0
      %v538 = vadd.f32 0.0, %v537
      %v539 = vpop.f32.mrb[0].mxu0
      %v540 = vpop.f32.mrb[0].mxu0
      %v541 = vadd.f32 0.0, %v540
      %v542 = vpop.f32.mrb[0].mxu0
      %543 = vmatprep.mubr.bf16.mxu0 0
      %544 = vmatmul.mubr.bf16.gmra.mrb[0].mxu0 %v439
      %v545 = vpop.f32.mrb[0].mxu0
      %v546 = vadd.f32 0.0, %v545
      %v547 = vpop.f32.mrb[0].mxu0
      %v548 = vpop.f32.mrb[0].mxu0
      %v549 = vadd.f32 0.0, %v548
      %v550 = vpop.f32.mrb[0].mxu0
      %551 = vmatprep.mubr.bf16.mxu0 0
      %552 = vmatmul.mubr.bf16.gmra.mrb[0].mxu0 %v442
      %v553 = vpop.f32.mrb[0].mxu0
      %v554 = vadd.f32 0.0, %v553
      %v555 = vpop.f32.mrb[0].mxu0
      %v556 = vpop.f32.mrb[0].mxu0
      %v557 = vadd.f32 0.0, %v556
      %v558 = vpop.f32.mrb[0].mxu0
      %559 = vmatprep.mubr.bf16.mxu0 0
      %560 = vmatmul.mubr.bf16.gmra.mrb[0].mxu0 %v445
      %v561 = vpop.f32.mrb[0].mxu0
      %v562 = vadd.f32 0.0, %v561
      %v563 = vpop.f32.mrb[0].mxu0
      %v564 = vpop.f32.mrb[0].mxu0
      %v565 = vadd.f32 0.0, %v564
      %v566 = vpop.f32.mrb[0].mxu0
      %567 = vmatprep.mubr.bf16.mxu0 0
      %568 = vmatmul.mubr.bf16.gmra.mrb[0].mxu0 %v448
      %v569 = vpop.f32.mrb[0].mxu0
      %v570 = vadd.f32 0.0, %v569
      %v571 = vpop.f32.mrb[0].mxu0
      %v572 = vpop.f32.mrb[0].mxu0
      %v573 = vadd.f32 0.0, %v572
      %v574 = vpop.f32.mrb[0].mxu0
      %575 = vmatprep.mubr.bf16.mxu0 0
      %576 = vmatmul.mubr.bf16.gmra.mrb[0].mxu0 %v451
      %v577 = vpop.f32.mrb[0].mxu0
      %v578 = vadd.f32 0.0, %v577
      %v579 = vpop.f32.mrb[0].mxu0
      %v580 = vpop.f32.mrb[0].mxu0
      %v581 = vadd.f32 0.0, %v580
      %v582 = vpop.f32.mrb[0].mxu0
      %583 = vmatprep.mubr.bf16.mxu0 0
      %584 = vmatmul.mubr.bf16.gmra.mrb[0].mxu0 %v454
      %v585 = vpop.f32.mrb[0].mxu0
      %v586 = vadd.f32 0.0, %v585
      %v587 = vpop.f32.mrb[0].mxu0
      %v588 = vpop.f32.mrb[0].mxu0
      %v589 = vadd.f32 0.0, %v588
      %v590 = vpop.f32.mrb[0].mxu0
      %591 = vmatprep.mubr.bf16.mxu0 0
      %592 = vmatmul.mubr.bf16.gmra.mrb[0].mxu0 %v457
      %v593 = vpop.f32.mrb[0].mxu0
      %v594 = vadd.f32 0.0, %v593
      %v595 = vpop.f32.mrb[0].mxu0
      %v596 = vpop.f32.mrb[0].mxu0
      %v597 = vadd.f32 0.0, %v596
      %v598 = vpop.f32.mrb[0].mxu0
      %599 = vmatprep.mubr.bf16.mxu0 0
      %600 = vmatmul.mubr.bf16.gmra.mrb[0].mxu0 %v460
      %v601 = vpop.f32.mrb[0].mxu0
      %v602 = vadd.f32 0.0, %v601
      %v603 = vpop.f32.mrb[0].mxu0
      %v604 = vpop.f32.mrb[0].mxu0
      %v605 = vadd.f32 0.0, %v604
      %v606 = vpop.f32.mrb[0].mxu0
      %607 = vmatprep.mubr.bf16.mxu0 0
      %608 = vmatmul.mubr.bf16.gmra.mrb[0].mxu0 %v463
      %v609 = vpop.f32.mrb[0].mxu0
      %v610 = vadd.f32 0.0, %v609
      %v611 = vpop.f32.mrb[0].mxu0
      %v612 = vpop.f32.mrb[0].mxu0
      %v613 = vadd.f32 0.0, %v612
      %v614 = vpop.f32.mrb[0].mxu0
      %615 = vmatprep.mubr.bf16.mxu0 0
      %616 = vmatmul.mubr.bf16.gmra.mrb[0].mxu0 %v466
      %v617 = vpop.f32.mrb[0].mxu0
      %v618 = vadd.f32 0.0, %v617
      %v619 = vpop.f32.mrb[0].mxu0
      %v620 = vpop.f32.mrb[0].mxu0
      %v621 = vadd.f32 0.0, %v620
      %v622 = vpop.f32.mrb[0].mxu0
      %623 = vmatprep.mubr.bf16.mxu0 0
      %624 = vmatmul.mubr.bf16.gmra.mrb[0].mxu0 %v469
      %v625 = vpop.f32.mrb[0].mxu0
      %v626 = vadd.f32 0.0, %v625
      %v627 = vpop.f32.mrb[0].mxu0
      %v628 = vpop.f32.mrb[0].mxu0
      %v629 = vadd.f32 0.0, %v628
      %v630 = vpop.f32.mrb[0].mxu0
      %631 = vmatprep.mubr.bf16.mxu0 0
      %632 = vmatmul.mubr.bf16.gmra.mrb[0].mxu0 %v472
      %v633 = vpop.f32.mrb[0].mxu0
      %v634 = vadd.f32 0.0, %v633
      %v635 = vpop.f32.mrb[0].mxu0
      %v636 = vpop.f32.mrb[0].mxu0
      %v637 = vadd.f32 0.0, %v636
      %v638 = vpop.f32.mrb[0].mxu0
      %639 = vmatprep.mubr.bf16.mxu0 0
      %640 = vmatmul.mubr.bf16.gmra.mrb[0].mxu0 %v475
      %v641 = vpop.f32.mrb[0].mxu0
      %v642 = vadd.f32 0.0, %v641
      %v643 = vpop.f32.mrb[0].mxu0
      %v644 = vpop.f32.mrb[0].mxu0
      %v645 = vadd.f32 0.0, %v644
      %v646 = vpop.f32.mrb[0].mxu0
      %647 = vmatprep.mubr.bf16.mxu0 0
      %648 = vmatmul.mubr.bf16.gmra.mrb[0].mxu0 %v478
      %v649 = vpop.f32.mrb[0].mxu0
      %v650 = vadd.f32 0.0, %v649
      %v651 = vpop.f32.mrb[0].mxu0
      %v652 = vpop.f32.mrb[0].mxu0
      %v653 = vpop.f32.mrb[0].mxu0
      %654 = vdwg.mxu0
      %v655 = vadd.f32 %v522, 0.0
      %v656 = vadd.f32 %v525, 0.0
      %v657 = vadd.f32 %v530, 0.0
      %v658 = vadd.f32 %v533, 0.0
      %v659 = vadd.f32 %v538, 0.0
      %v660 = vadd.f32 %v541, 0.0
      %v661 = vadd.f32 %v546, 0.0
      %v662 = vadd.f32 %v549, 0.0
      %v663 = vadd.f32 %v554, 0.0
      %v664 = vadd.f32 %v557, 0.0
      %v665 = vadd.f32 %v562, 0.0
      %v666 = vadd.f32 %v565, 0.0
      %v667 = vadd.f32 %v570, 0.0
      %v668 = vadd.f32 %v573, 0.0
      %v669 = vadd.f32 %v578, 0.0
      %v670 = vadd.f32 %v581, 0.0
      %v671 = vadd.f32 %v586, 0.0
      %v672 = vadd.f32 %v589, 0.0
      %v673 = vadd.f32 %v594, 0.0
      %v674 = vadd.f32 %v597, 0.0
      %v675 = vadd.f32 %v602, 0.0
      %v676 = vadd.f32 %v605, 0.0
      %v677 = vadd.f32 %v610, 0.0
      %v678 = vadd.f32 %v613, 0.0
      %v679 = vadd.f32 %v618, 0.0
      %v680 = vadd.f32 %v621, 0.0
      %v681 = vadd.f32 %v626, 0.0
      %v682 = vadd.f32 %v629, 0.0
      %v683 = vadd.f32 %v634, 0.0
      %v684 = vadd.f32 %v637, 0.0
      %v685 = vadd.f32 %v642, 0.0
      %v686 = vadd.f32 %v645, 0.0
      %vm720 = vcmask 1046528
      %v721 = vrot.slane %v522, 1
      %v722 = vrot.slane %v525, 1
      %v723 = vsel %vm720, %v721, %v722
      %v724 = vrot.slane %v530, 1
      %v725 = vsel %vm720, %v722, %v724
      %v726 = vrot.slane %v533, 1
      %v727 = vsel %vm720, %v724, %v726
      %v728 = vrot.slane %v538, 1
      %v729 = vsel %vm720, %v726, %v728
      %v730 = vrot.slane %v541, 1
      %v731 = vsel %vm720, %v728, %v730
      %v732 = vrot.slane %v546, 1
      %v733 = vsel %vm720, %v730, %v732
      %v734 = vrot.slane %v549, 1
      %v735 = vsel %vm720, %v732, %v734
      %v736 = vrot.slane %v554, 1
      %v737 = vsel %vm720, %v734, %v736
      %v738 = vrot.slane %v557, 1
      %v739 = vsel %vm720, %v736, %v738
      %v740 = vrot.slane %v562, 1
      %v741 = vsel %vm720, %v738, %v740
      %v742 = vrot.slane %v565, 1
      %v743 = vsel %vm720, %v740, %v742
      %v744 = vrot.slane %v570, 1
      %v745 = vsel %vm720, %v742, %v744
      %v746 = vrot.slane %v573, 1
      %v747 = vsel %vm720, %v744, %v746
      %v748 = vrot.slane %v578, 1
      %v749 = vsel %vm720, %v746, %v748
      %v750 = vrot.slane %v581, 1
      %v751 = vsel %vm720, %v748, %v750
      %v752 = vrot.slane %v586, 1
      %v753 = vsel %vm720, %v750, %v752
      %v754 = vrot.slane %v589, 1
      %v755 = vsel %vm720, %v752, %v754
      %v756 = vrot.slane %v594, 1
      %v757 = vsel %vm720, %v754, %v756
      %v758 = vrot.slane %v597, 1
      %v759 = vsel %vm720, %v756, %v758
      %v760 = vrot.slane %v602, 1
      %v761 = vsel %vm720, %v758, %v760
      %v762 = vrot.slane %v605, 1
      %v763 = vsel %vm720, %v760, %v762
      %v764 = vrot.slane %v610, 1
      %v765 = vsel %vm720, %v762, %v764
      %v766 = vrot.slane %v613, 1
      %v767 = vsel %vm720, %v764, %v766
      %v768 = vrot.slane %v618, 1
      %v769 = vsel %vm720, %v766, %v768
      %v770 = vrot.slane %v621, 1
      %v771 = vsel %vm720, %v768, %v770
      %v772 = vrot.slane %v626, 1
      %v773 = vsel %vm720, %v770, %v772
      %v774 = vrot.slane %v629, 1
      %v775 = vsel %vm720, %v772, %v774
      %v776 = vrot.slane %v634, 1
      %v777 = vsel %vm720, %v774, %v776
      %v778 = vrot.slane %v637, 1
      %v779 = vsel %vm720, %v776, %v778
      %v780 = vrot.slane %v642, 1
      %v781 = vsel %vm720, %v778, %v780
      %v782 = vrot.slane %v645, 1
      %v783 = vsel %vm720, %v780, %v782
      %v784 = vrot.slane %v650, 1
      %v785 = vsel %vm720, %v782, %v784
      %786 = vrot.lane.b32.xlu0 %v723, 112
      %v787 = vpop.permute.xlu0 %786
      %788 = vrot.lane.b32.xlu0 %v725, 112
      %v789 = vpop.permute.xlu0 %788
      %790 = vrot.lane.b32.xlu0 %v727, 112
      %v791 = vpop.permute.xlu0 %790
      %792 = vrot.lane.b32.xlu0 %v729, 112
      %v793 = vpop.permute.xlu0 %792
      %794 = vrot.lane.b32.xlu0 %v731, 112
      %v795 = vpop.permute.xlu0 %794
      %796 = vrot.lane.b32.xlu0 %v733, 112
      %v797 = vpop.permute.xlu0 %796
      %798 = vrot.lane.b32.xlu0 %v735, 112
      %v799 = vpop.permute.xlu0 %798
      %800 = vrot.lane.b32.xlu0 %v737, 112
      %v801 = vpop.permute.xlu0 %800
      %802 = vrot.lane.b32.xlu0 %v739, 112
      %v803 = vpop.permute.xlu0 %802
      %804 = vrot.lane.b32.xlu0 %v741, 112
      %v805 = vpop.permute.xlu0 %804
      %806 = vrot.lane.b32.xlu0 %v743, 112
      %v807 = vpop.permute.xlu0 %806
      %808 = vrot.lane.b32.xlu0 %v745, 112
      %v809 = vpop.permute.xlu0 %808
      %810 = vrot.lane.b32.xlu0 %v747, 112
      %v811 = vpop.permute.xlu0 %810
      %812 = vrot.lane.b32.xlu0 %v749, 112
      %v813 = vpop.permute.xlu0 %812
      %814 = vrot.lane.b32.xlu0 %v751, 112
      %v815 = vpop.permute.xlu0 %814
      %816 = vrot.lane.b32.xlu0 %v753, 112
      %v817 = vpop.permute.xlu0 %816
      %818 = vrot.lane.b32.xlu0 %v755, 112
      %v819 = vpop.permute.xlu0 %818
      %820 = vrot.lane.b32.xlu0 %v757, 112
      %v821 = vpop.permute.xlu0 %820
      %822 = vrot.lane.b32.xlu0 %v759, 112
      %v823 = vpop.permute.xlu0 %822
      %824 = vrot.lane.b32.xlu0 %v761, 112
      %v825 = vpop.permute.xlu0 %824
      %826 = vrot.lane.b32.xlu0 %v763, 112
      %v827 = vpop.permute.xlu0 %826
      %828 = vrot.lane.b32.xlu0 %v765, 112
      %v829 = vpop.permute.xlu0 %828
      %830 = vrot.lane.b32.xlu0 %v767, 112
      %v831 = vpop.permute.xlu0 %830
      %832 = vrot.lane.b32.xlu0 %v769, 112
      %v833 = vpop.permute.xlu0 %832
      %834 = vrot.lane.b32.xlu0 %v771, 112
      %v835 = vpop.permute.xlu0 %834
      %836 = vrot.lane.b32.xlu0 %v773, 112
      %v837 = vpop.permute.xlu0 %836
      %838 = vrot.lane.b32.xlu0 %v775, 112
      %v839 = vpop.permute.xlu0 %838
      %840 = vrot.lane.b32.xlu0 %v777, 112
      %v841 = vpop.permute.xlu0 %840
      %842 = vrot.lane.b32.xlu0 %v779, 112
      %v843 = vpop.permute.xlu0 %842
      %844 = vrot.lane.b32.xlu0 %v781, 112
      %v845 = vpop.permute.xlu0 %844
      %846 = vrot.lane.b32.xlu0 %v783, 112
      %v847 = vpop.permute.xlu0 %846
      %848 = vrot.lane.b32.xlu0 %v785, 112
      %v849 = vpop.permute.xlu0 %848
      %v882 = vadd.f32 %v655, %v787
      %v883 = vadd.f32 %v656, %v789
      %v884 = vadd.f32 %v657, %v791
      %v885 = vadd.f32 %v658, %v793
      %v886 = vadd.f32 %v659, %v795
      %v887 = vadd.f32 %v660, %v797
      %v888 = vadd.f32 %v661, %v799
      %v889 = vadd.f32 %v662, %v801
      %v890 = vadd.f32 %v663, %v803
      %v891 = vadd.f32 %v664, %v805
      %v892 = vadd.f32 %v665, %v807
      %v893 = vadd.f32 %v666, %v809
      %v894 = vadd.f32 %v667, %v811
      %v895 = vadd.f32 %v668, %v813
      %v896 = vadd.f32 %v669, %v815
      %v897 = vadd.f32 %v670, %v817
      %v898 = vadd.f32 %v671, %v819
      %v899 = vadd.f32 %v672, %v821
      %v900 = vadd.f32 %v673, %v823
      %v901 = vadd.f32 %v674, %v825
      %v902 = vadd.f32 %v675, %v827
      %v903 = vadd.f32 %v676, %v829
      %v904 = vadd.f32 %v677, %v831
      %v905 = vadd.f32 %v678, %v833
      %v906 = vadd.f32 %v679, %v835
      %v907 = vadd.f32 %v680, %v837
      %v908 = vadd.f32 %v681, %v839
      %v909 = vadd.f32 %v682, %v841
      %v910 = vadd.f32 %v683, %v843
      %v911 = vadd.f32 %v684, %v845
      %v912 = vadd.f32 %v685, %v847
      %v913 = vadd.f32 %v686, %v849
      %vm914 = vcmask 1045504
      %v915 = vrot.slane %v522, 2
      %v916 = vrot.slane %v525, 2
      %v917 = vsel %vm914, %v915, %v916
      %v918 = vrot.slane %v530, 2
      %v919 = vsel %vm914, %v916, %v918
      %v920 = vrot.slane %v533, 2
      %v921 = vsel %vm914, %v918, %v920
      %v922 = vrot.slane %v538, 2
      %v923 = vsel %vm914, %v920, %v922
      %v924 = vrot.slane %v541, 2
      %v925 = vsel %vm914, %v922, %v924
      %v926 = vrot.slane %v546, 2
      %v927 = vsel %vm914, %v924, %v926
      %v928 = vrot.slane %v549, 2
      %v929 = vsel %vm914, %v926, %v928
      %v930 = vrot.slane %v554, 2
      %v931 = vsel %vm914, %v928, %v930
      %v932 = vrot.slane %v557, 2
      %v933 = vsel %vm914, %v930, %v932
      %v934 = vrot.slane %v562, 2
      %v935 = vsel %vm914, %v932, %v934
      %v936 = vrot.slane %v565, 2
      %v937 = vsel %vm914, %v934, %v936
      %v938 = vrot.slane %v570, 2
      %v939 = vsel %vm914, %v936, %v938
      %v940 = vrot.slane %v573, 2
      %v941 = vsel %vm914, %v938, %v940
      %v942 = vrot.slane %v578, 2
      %v943 = vsel %vm914, %v940, %v942
      %v944 = vrot.slane %v581, 2
      %v945 = vsel %vm914, %v942, %v944
      %v946 = vrot.slane %v586, 2
      %v947 = vsel %vm914, %v944, %v946
      %v948 = vrot.slane %v589, 2
      %v949 = vsel %vm914, %v946, %v948
      %v950 = vrot.slane %v594, 2
      %v951 = vsel %vm914, %v948, %v950
      %v952 = vrot.slane %v597, 2
      %v953 = vsel %vm914, %v950, %v952
      %v954 = vrot.slane %v602, 2
      %v955 = vsel %vm914, %v952, %v954
      %v956 = vrot.slane %v605, 2
      %v957 = vsel %vm914, %v954, %v956
      %v958 = vrot.slane %v610, 2
      %v959 = vsel %vm914, %v956, %v958
      %v960 = vrot.slane %v613, 2
      %v961 = vsel %vm914, %v958, %v960
      %v962 = vrot.slane %v618, 2
      %v963 = vsel %vm914, %v960, %v962
      %v964 = vrot.slane %v621, 2
      %v965 = vsel %vm914, %v962, %v964
      %v966 = vrot.slane %v626, 2
      %v967 = vsel %vm914, %v964, %v966
      %v968 = vrot.slane %v629, 2
      %v969 = vsel %vm914, %v966, %v968
      %v970 = vrot.slane %v634, 2
      %v971 = vsel %vm914, %v968, %v970
      %v972 = vrot.slane %v637, 2
      %v973 = vsel %vm914, %v970, %v972
      %v974 = vrot.slane %v642, 2
      %v975 = vsel %vm914, %v972, %v974
      %v976 = vrot.slane %v645, 2
      %v977 = vsel %vm914, %v974, %v976
      %v978 = vrot.slane %v650, 2
      %v979 = vsel %vm914, %v976, %v978
      %980 = vrot.lane.b32.xlu0 %v917, 96
      %v981 = vpop.permute.xlu0 %980
      %982 = vrot.lane.b32.xlu0 %v919, 96
      %v983 = vpop.permute.xlu0 %982
      %984 = vrot.lane.b32.xlu0 %v921, 96
      %v985 = vpop.permute.xlu0 %984
      %986 = vrot.lane.b32.xlu0 %v923, 96
      %v987 = vpop.permute.xlu0 %986
      %988 = vrot.lane.b32.xlu0 %v925, 96
      %v989 = vpop.permute.xlu0 %988
      %990 = vrot.lane.b32.xlu0 %v927, 96
      %v991 = vpop.permute.xlu0 %990
      %992 = vrot.lane.b32.xlu0 %v929, 96
      %v993 = vpop.permute.xlu0 %992
      %994 = vrot.lane.b32.xlu0 %v931, 96
      %v995 = vpop.permute.xlu0 %994
      %996 = vrot.lane.b32.xlu0 %v933, 96
      %v997 = vpop.permute.xlu0 %996
      %998 = vrot.lane.b32.xlu0 %v935, 96
      %v999 = vpop.permute.xlu0 %998
      %1000 = vrot.lane.b32.xlu0 %v937, 96
      %v1001 = vpop.permute.xlu0 %1000
      %1002 = vrot.lane.b32.xlu0 %v939, 96
      %v1003 = vpop.permute.xlu0 %1002
      %1004 = vrot.lane.b32.xlu0 %v941, 96
      %v1005 = vpop.permute.xlu0 %1004
      %1006 = vrot.lane.b32.xlu0 %v943, 96
      %v1007 = vpop.permute.xlu0 %1006
      %1008 = vrot.lane.b32.xlu0 %v945, 96
      %v1009 = vpop.permute.xlu0 %1008
      %1010 = vrot.lane.b32.xlu0 %v947, 96
      %v1011 = vpop.permute.xlu0 %1010
      %1012 = vrot.lane.b32.xlu0 %v949, 96
      %v1013 = vpop.permute.xlu0 %1012
      %1014 = vrot.lane.b32.xlu0 %v951, 96
      %v1015 = vpop.permute.xlu0 %1014
      %1016 = vrot.lane.b32.xlu0 %v953, 96
      %v1017 = vpop.permute.xlu0 %1016
      %1018 = vrot.lane.b32.xlu0 %v955, 96
      %v1019 = vpop.permute.xlu0 %1018
      %1020 = vrot.lane.b32.xlu0 %v957, 96
      %v1021 = vpop.permute.xlu0 %1020
      %1022 = vrot.lane.b32.xlu0 %v959, 96
      %v1023 = vpop.permute.xlu0 %1022
      %1024 = vrot.lane.b32.xlu0 %v961, 96
      %v1025 = vpop.permute.xlu0 %1024
      %1026 = vrot.lane.b32.xlu0 %v963, 96
      %v1027 = vpop.permute.xlu0 %1026
      %1028 = vrot.lane.b32.xlu0 %v965, 96
      %v1029 = vpop.permute.xlu0 %1028
      %1030 = vrot.lane.b32.xlu0 %v967, 96
      %v1031 = vpop.permute.xlu0 %1030
      %1032 = vrot.lane.b32.xlu0 %v969, 96
      %v1033 = vpop.permute.xlu0 %1032
      %1034 = vrot.lane.b32.xlu0 %v971, 96
      %v1035 = vpop.permute.xlu0 %1034
      %1036 = vrot.lane.b32.xlu0 %v973, 96
      %v1037 = vpop.permute.xlu0 %1036
      %1038 = vrot.lane.b32.xlu0 %v975, 96
      %v1039 = vpop.permute.xlu0 %1038
      %1040 = vrot.lane.b32.xlu0 %v977, 96
      %v1041 = vpop.permute.xlu0 %1040
      %1042 = vrot.lane.b32.xlu0 %v979, 96
      %v1043 = vpop.permute.xlu0 %1042
      %v1076 = vadd.f32 %v882, %v981
      %v1077 = vadd.f32 %v883, %v983
      %v1078 = vadd.f32 %v884, %v985
      %v1079 = vadd.f32 %v885, %v987
      %v1080 = vadd.f32 %v886, %v989
      %v1081 = vadd.f32 %v887, %v991
      %v1082 = vadd.f32 %v888, %v993
      %v1083 = vadd.f32 %v889, %v995
      %v1084 = vadd.f32 %v890, %v997
      %v1085 = vadd.f32 %v891, %v999
      %v1086 = vadd.f32 %v892, %v1001
      %v1087 = vadd.f32 %v893, %v1003
      %v1088 = vadd.f32 %v894, %v1005
      %v1089 = vadd.f32 %v895, %v1007
      %v1090 = vadd.f32 %v896, %v1009
      %v1091 = vadd.f32 %v897, %v1011
      %v1092 = vadd.f32 %v898, %v1013
      %v1093 = vadd.f32 %v899, %v1015
      %v1094 = vadd.f32 %v900, %v1017
      %v1095 = vadd.f32 %v901, %v1019
      %v1096 = vadd.f32 %v902, %v1021
      %v1097 = vadd.f32 %v903, %v1023
      %v1098 = vadd.f32 %v904, %v1025
      %v1099 = vadd.f32 %v905, %v1027
      %v1100 = vadd.f32 %v906, %v1029
      %v1101 = vadd.f32 %v907, %v1031
      %v1102 = vadd.f32 %v908, %v1033
      %v1103 = vadd.f32 %v909, %v1035
      %v1104 = vadd.f32 %v910, %v1037
      %v1105 = vadd.f32 %v911, %v1039
      %v1106 = vadd.f32 %v912, %v1041
      %v1107 = vadd.f32 %v913, %v1043
      %vm1108 = vcmask 1044480
      %v1109 = vrot.slane %v522, 3
      %v1110 = vrot.slane %v525, 3
      %v1111 = vsel %vm1108, %v1109, %v1110
      %v1112 = vrot.slane %v530, 3
      %v1113 = vsel %vm1108, %v1110, %v1112
      %v1114 = vrot.slane %v533, 3
      %v1115 = vsel %vm1108, %v1112, %v1114
      %v1116 = vrot.slane %v538, 3
      %v1117 = vsel %vm1108, %v1114, %v1116
      %v1118 = vrot.slane %v541, 3
      %v1119 = vsel %vm1108, %v1116, %v1118
      %v1120 = vrot.slane %v546, 3
      %v1121 = vsel %vm1108, %v1118, %v1120
      %v1122 = vrot.slane %v549, 3
      %v1123 = vsel %vm1108, %v1120, %v1122
      %v1124 = vrot.slane %v554, 3
      %v1125 = vsel %vm1108, %v1122, %v1124
      %v1126 = vrot.slane %v557, 3
      %v1127 = vsel %vm1108, %v1124, %v1126
      %v1128 = vrot.slane %v562, 3
      %v1129 = vsel %vm1108, %v1126, %v1128
      %v1130 = vrot.slane %v565, 3
      %v1131 = vsel %vm1108, %v1128, %v1130
      %v1132 = vrot.slane %v570, 3
      %v1133 = vsel %vm1108, %v1130, %v1132
      %v1134 = vrot.slane %v573, 3
      %v1135 = vsel %vm1108, %v1132, %v1134
      %v1136 = vrot.slane %v578, 3
      %v1137 = vsel %vm1108, %v1134, %v1136
      %v1138 = vrot.slane %v581, 3
      %v1139 = vsel %vm1108, %v1136, %v1138
      %v1140 = vrot.slane %v586, 3
      %v1141 = vsel %vm1108, %v1138, %v1140
      %v1142 = vrot.slane %v589, 3
      %v1143 = vsel %vm1108, %v1140, %v1142
      %v1144 = vrot.slane %v594, 3
      %v1145 = vsel %vm1108, %v1142, %v1144
      %v1146 = vrot.slane %v597, 3
      %v1147 = vsel %vm1108, %v1144, %v1146
      %v1148 = vrot.slane %v602, 3
      %v1149 = vsel %vm1108, %v1146, %v1148
      %v1150 = vrot.slane %v605, 3
      %v1151 = vsel %vm1108, %v1148, %v1150
      %v1152 = vrot.slane %v610, 3
      %v1153 = vsel %vm1108, %v1150, %v1152
      %v1154 = vrot.slane %v613, 3
      %v1155 = vsel %vm1108, %v1152, %v1154
      %v1156 = vrot.slane %v618, 3
      %v1157 = vsel %vm1108, %v1154, %v1156
      %v1158 = vrot.slane %v621, 3
      %v1159 = vsel %vm1108, %v1156, %v1158
      %v1160 = vrot.slane %v626, 3
      %v1161 = vsel %vm1108, %v1158, %v1160
      %v1162 = vrot.slane %v629, 3
      %v1163 = vsel %vm1108, %v1160, %v1162
      %v1164 = vrot.slane %v634, 3
      %v1165 = vsel %vm1108, %v1162, %v1164
      %v1166 = vrot.slane %v637, 3
      %v1167 = vsel %vm1108, %v1164, %v1166
      %v1168 = vrot.slane %v642, 3
      %v1169 = vsel %vm1108, %v1166, %v1168
      %v1170 = vrot.slane %v645, 3
      %v1171 = vsel %vm1108, %v1168, %v1170
      %v1172 = vrot.slane %v650, 3
      %v1173 = vsel %vm1108, %v1170, %v1172
      %1174 = vrot.lane.b32.xlu0 %v1111, 80
      %v1175 = vpop.permute.xlu0 %1174
      %1176 = vrot.lane.b32.xlu0 %v1113, 80
      %v1177 = vpop.permute.xlu0 %1176
      %1178 = vrot.lane.b32.xlu0 %v1115, 80
      %v1179 = vpop.permute.xlu0 %1178
      %1180 = vrot.lane.b32.xlu0 %v1117, 80
      %v1181 = vpop.permute.xlu0 %1180
      %1182 = vrot.lane.b32.xlu0 %v1119, 80
      %v1183 = vpop.permute.xlu0 %1182
      %1184 = vrot.lane.b32.xlu0 %v1121, 80
      %v1185 = vpop.permute.xlu0 %1184
      %1186 = vrot.lane.b32.xlu0 %v1123, 80
      %v1187 = vpop.permute.xlu0 %1186
      %1188 = vrot.lane.b32.xlu0 %v1125, 80
      %v1189 = vpop.permute.xlu0 %1188
      %1190 = vrot.lane.b32.xlu0 %v1127, 80
      %v1191 = vpop.permute.xlu0 %1190
      %1192 = vrot.lane.b32.xlu0 %v1129, 80
      %v1193 = vpop.permute.xlu0 %1192
      %1194 = vrot.lane.b32.xlu0 %v1131, 80
      %v1195 = vpop.permute.xlu0 %1194
      %1196 = vrot.lane.b32.xlu0 %v1133, 80
      %v1197 = vpop.permute.xlu0 %1196
      %1198 = vrot.lane.b32.xlu0 %v1135, 80
      %v1199 = vpop.permute.xlu0 %1198
      %1200 = vrot.lane.b32.xlu0 %v1137, 80
      %v1201 = vpop.permute.xlu0 %1200
      %1202 = vrot.lane.b32.xlu0 %v1139, 80
      %v1203 = vpop.permute.xlu0 %1202
      %1204 = vrot.lane.b32.xlu0 %v1141, 80
      %v1205 = vpop.permute.xlu0 %1204
      %1206 = vrot.lane.b32.xlu0 %v1143, 80
      %v1207 = vpop.permute.xlu0 %1206
      %1208 = vrot.lane.b32.xlu0 %v1145, 80
      %v1209 = vpop.permute.xlu0 %1208
      %1210 = vrot.lane.b32.xlu0 %v1147, 80
      %v1211 = vpop.permute.xlu0 %1210
      %1212 = vrot.lane.b32.xlu0 %v1149, 80
      %v1213 = vpop.permute.xlu0 %1212
      %1214 = vrot.lane.b32.xlu0 %v1151, 80
      %v1215 = vpop.permute.xlu0 %1214
      %1216 = vrot.lane.b32.xlu0 %v1153, 80
      %v1217 = vpop.permute.xlu0 %1216
      %1218 = vrot.lane.b32.xlu0 %v1155, 80
      %v1219 = vpop.permute.xlu0 %1218
      %1220 = vrot.lane.b32.xlu0 %v1157, 80
      %v1221 = vpop.permute.xlu0 %1220
      %1222 = vrot.lane.b32.xlu0 %v1159, 80
      %v1223 = vpop.permute.xlu0 %1222
      %1224 = vrot.lane.b32.xlu0 %v1161, 80
      %v1225 = vpop.permute.xlu0 %1224
      %1226 = vrot.lane.b32.xlu0 %v1163, 80
      %v1227 = vpop.permute.xlu0 %1226
      %1228 = vrot.lane.b32.xlu0 %v1165, 80
      %v1229 = vpop.permute.xlu0 %1228
      %1230 = vrot.lane.b32.xlu0 %v1167, 80
      %v1231 = vpop.permute.xlu0 %1230
      %1232 = vrot.lane.b32.xlu0 %v1169, 80
      %v1233 = vpop.permute.xlu0 %1232
      %1234 = vrot.lane.b32.xlu0 %v1171, 80
      %v1235 = vpop.permute.xlu0 %1234
      %1236 = vrot.lane.b32.xlu0 %v1173, 80
      %v1237 = vpop.permute.xlu0 %1236
      %v1270 = vadd.f32 %v1076, %v1175
      %v1271 = vadd.f32 %v1077, %v1177
      %v1272 = vadd.f32 %v1078, %v1179
      %v1273 = vadd.f32 %v1079, %v1181
      %v1274 = vadd.f32 %v1080, %v1183
      %v1275 = vadd.f32 %v1081, %v1185
      %v1276 = vadd.f32 %v1082, %v1187
      %v1277 = vadd.f32 %v1083, %v1189
      %v1278 = vadd.f32 %v1084, %v1191
      %v1279 = vadd.f32 %v1085, %v1193
      %v1280 = vadd.f32 %v1086, %v1195
      %v1281 = vadd.f32 %v1087, %v1197
      %v1282 = vadd.f32 %v1088, %v1199
      %v1283 = vadd.f32 %v1089, %v1201
      %v1284 = vadd.f32 %v1090, %v1203
      %v1285 = vadd.f32 %v1091, %v1205
      %v1286 = vadd.f32 %v1092, %v1207
      %v1287 = vadd.f32 %v1093, %v1209
      %v1288 = vadd.f32 %v1094, %v1211
      %v1289 = vadd.f32 %v1095, %v1213
      %v1290 = vadd.f32 %v1096, %v1215
      %v1291 = vadd.f32 %v1097, %v1217
      %v1292 = vadd.f32 %v1098, %v1219
      %v1293 = vadd.f32 %v1099, %v1221
      %v1294 = vadd.f32 %v1100, %v1223
      %v1295 = vadd.f32 %v1101, %v1225
      %v1296 = vadd.f32 %v1102, %v1227
      %v1297 = vadd.f32 %v1103, %v1229
      %v1298 = vadd.f32 %v1104, %v1231
      %v1299 = vadd.f32 %v1105, %v1233
      %v1300 = vadd.f32 %v1106, %v1235
      %v1301 = vadd.f32 %v1107, %v1237
      %vm1302 = vcmask 1043456
      %v1303 = vrot.slane %v522, 4
      %v1304 = vrot.slane %v525, 4
      %v1305 = vsel %vm1302, %v1303, %v1304
      %v1306 = vrot.slane %v530, 4
      %v1307 = vsel %vm1302, %v1304, %v1306
      %v1308 = vrot.slane %v533, 4
      %v1309 = vsel %vm1302, %v1306, %v1308
      %v1310 = vrot.slane %v538, 4
      %v1311 = vsel %vm1302, %v1308, %v1310
      %v1312 = vrot.slane %v541, 4
      %v1313 = vsel %vm1302, %v1310, %v1312
      %v1314 = vrot.slane %v546, 4
      %v1315 = vsel %vm1302, %v1312, %v1314
      %v1316 = vrot.slane %v549, 4
      %v1317 = vsel %vm1302, %v1314, %v1316
      %v1318 = vrot.slane %v554, 4
      %v1319 = vsel %vm1302, %v1316, %v1318
      %v1320 = vrot.slane %v557, 4
      %v1321 = vsel %vm1302, %v1318, %v1320
      %v1322 = vrot.slane %v562, 4
      %v1323 = vsel %vm1302, %v1320, %v1322
      %v1324 = vrot.slane %v565, 4
      %v1325 = vsel %vm1302, %v1322, %v1324
      %v1326 = vrot.slane %v570, 4
      %v1327 = vsel %vm1302, %v1324, %v1326
      %v1328 = vrot.slane %v573, 4
      %v1329 = vsel %vm1302, %v1326, %v1328
      %v1330 = vrot.slane %v578, 4
      %v1331 = vsel %vm1302, %v1328, %v1330
      %v1332 = vrot.slane %v581, 4
      %v1333 = vsel %vm1302, %v1330, %v1332
      %v1334 = vrot.slane %v586, 4
      %v1335 = vsel %vm1302, %v1332, %v1334
      %v1336 = vrot.slane %v589, 4
      %v1337 = vsel %vm1302, %v1334, %v1336
      %v1338 = vrot.slane %v594, 4
      %v1339 = vsel %vm1302, %v1336, %v1338
      %v1340 = vrot.slane %v597, 4
      %v1341 = vsel %vm1302, %v1338, %v1340
      %v1342 = vrot.slane %v602, 4
      %v1343 = vsel %vm1302, %v1340, %v1342
      %v1344 = vrot.slane %v605, 4
      %v1345 = vsel %vm1302, %v1342, %v1344
      %v1346 = vrot.slane %v610, 4
      %v1347 = vsel %vm1302, %v1344, %v1346
      %v1348 = vrot.slane %v613, 4
      %v1349 = vsel %vm1302, %v1346, %v1348
      %v1350 = vrot.slane %v618, 4
      %v1351 = vsel %vm1302, %v1348, %v1350
      %v1352 = vrot.slane %v621, 4
      %v1353 = vsel %vm1302, %v1350, %v1352
      %v1354 = vrot.slane %v626, 4
      %v1355 = vsel %vm1302, %v1352, %v1354
      %v1356 = vrot.slane %v629, 4
      %v1357 = vsel %vm1302, %v1354, %v1356
      %v1358 = vrot.slane %v634, 4
      %v1359 = vsel %vm1302, %v1356, %v1358
      %v1360 = vrot.slane %v637, 4
      %v1361 = vsel %vm1302, %v1358, %v1360
      %v1362 = vrot.slane %v642, 4
      %v1363 = vsel %vm1302, %v1360, %v1362
      %v1364 = vrot.slane %v645, 4
      %v1365 = vsel %vm1302, %v1362, %v1364
      %v1366 = vrot.slane %v650, 4
      %v1367 = vsel %vm1302, %v1364, %v1366
      %1368 = vrot.lane.b32.xlu0 %v1305, 64
      %v1369 = vpop.permute.xlu0 %1368
      %1370 = vrot.lane.b32.xlu0 %v1307, 64
      %v1371 = vpop.permute.xlu0 %1370
      %1372 = vrot.lane.b32.xlu0 %v1309, 64
      %v1373 = vpop.permute.xlu0 %1372
      %1374 = vrot.lane.b32.xlu0 %v1311, 64
      %v1375 = vpop.permute.xlu0 %1374
      %1376 = vrot.lane.b32.xlu0 %v1313, 64
      %v1377 = vpop.permute.xlu0 %1376
      %1378 = vrot.lane.b32.xlu0 %v1315, 64
      %v1379 = vpop.permute.xlu0 %1378
      %1380 = vrot.lane.b32.xlu0 %v1317, 64
      %v1381 = vpop.permute.xlu0 %1380
      %1382 = vrot.lane.b32.xlu0 %v1319, 64
      %v1383 = vpop.permute.xlu0 %1382
      %1384 = vrot.lane.b32.xlu0 %v1321, 64
      %v1385 = vpop.permute.xlu0 %1384
      %1386 = vrot.lane.b32.xlu0 %v1323, 64
      %v1387 = vpop.permute.xlu0 %1386
      %1388 = vrot.lane.b32.xlu0 %v1325, 64
      %v1389 = vpop.permute.xlu0 %1388
      %1390 = vrot.lane.b32.xlu0 %v1327, 64
      %v1391 = vpop.permute.xlu0 %1390
      %1392 = vrot.lane.b32.xlu0 %v1329, 64
      %v1393 = vpop.permute.xlu0 %1392
      %1394 = vrot.lane.b32.xlu0 %v1331, 64
      %v1395 = vpop.permute.xlu0 %1394
      %1396 = vrot.lane.b32.xlu0 %v1333, 64
      %v1397 = vpop.permute.xlu0 %1396
      %1398 = vrot.lane.b32.xlu0 %v1335, 64
      %v1399 = vpop.permute.xlu0 %1398
      %1400 = vrot.lane.b32.xlu0 %v1337, 64
      %v1401 = vpop.permute.xlu0 %1400
      %1402 = vrot.lane.b32.xlu0 %v1339, 64
      %v1403 = vpop.permute.xlu0 %1402
      %1404 = vrot.lane.b32.xlu0 %v1341, 64
      %v1405 = vpop.permute.xlu0 %1404
      %1406 = vrot.lane.b32.xlu0 %v1343, 64
      %v1407 = vpop.permute.xlu0 %1406
      %1408 = vrot.lane.b32.xlu0 %v1345, 64
      %v1409 = vpop.permute.xlu0 %1408
      %1410 = vrot.lane.b32.xlu0 %v1347, 64
      %v1411 = vpop.permute.xlu0 %1410
      %1412 = vrot.lane.b32.xlu0 %v1349, 64
      %v1413 = vpop.permute.xlu0 %1412
      %1414 = vrot.lane.b32.xlu0 %v1351, 64
      %v1415 = vpop.permute.xlu0 %1414
      %1416 = vrot.lane.b32.xlu0 %v1353, 64
      %v1417 = vpop.permute.xlu0 %1416
      %1418 = vrot.lane.b32.xlu0 %v1355, 64
      %v1419 = vpop.permute.xlu0 %1418
      %1420 = vrot.lane.b32.xlu0 %v1357, 64
      %v1421 = vpop.permute.xlu0 %1420
      %1422 = vrot.lane.b32.xlu0 %v1359, 64
      %v1423 = vpop.permute.xlu0 %1422
      %1424 = vrot.lane.b32.xlu0 %v1361, 64
      %v1425 = vpop.permute.xlu0 %1424
      %1426 = vrot.lane.b32.xlu0 %v1363, 64
      %v1427 = vpop.permute.xlu0 %1426
      %1428 = vrot.lane.b32.xlu0 %v1365, 64
      %v1429 = vpop.permute.xlu0 %1428
      %1430 = vrot.lane.b32.xlu0 %v1367, 64
      %v1431 = vpop.permute.xlu0 %1430
      %v1464 = vadd.f32 %v1270, %v1369
      %v1465 = vadd.f32 %v1271, %v1371
      %v1466 = vadd.f32 %v1272, %v1373
      %v1467 = vadd.f32 %v1273, %v1375
      %v1468 = vadd.f32 %v1274, %v1377
      %v1469 = vadd.f32 %v1275, %v1379
      %v1470 = vadd.f32 %v1276, %v1381
      %v1471 = vadd.f32 %v1277, %v1383
      %v1472 = vadd.f32 %v1278, %v1385
      %v1473 = vadd.f32 %v1279, %v1387
      %v1474 = vadd.f32 %v1280, %v1389
      %v1475 = vadd.f32 %v1281, %v1391
      %v1476 = vadd.f32 %v1282, %v1393
      %v1477 = vadd.f32 %v1283, %v1395
      %v1478 = vadd.f32 %v1284, %v1397
      %v1479 = vadd.f32 %v1285, %v1399
      %v1480 = vadd.f32 %v1286, %v1401
      %v1481 = vadd.f32 %v1287, %v1403
      %v1482 = vadd.f32 %v1288, %v1405
      %v1483 = vadd.f32 %v1289, %v1407
      %v1484 = vadd.f32 %v1290, %v1409
      %v1485 = vadd.f32 %v1291, %v1411
      %v1486 = vadd.f32 %v1292, %v1413
      %v1487 = vadd.f32 %v1293, %v1415
      %v1488 = vadd.f32 %v1294, %v1417
      %v1489 = vadd.f32 %v1295, %v1419
      %v1490 = vadd.f32 %v1296, %v1421
      %v1491 = vadd.f32 %v1297, %v1423
      %v1492 = vadd.f32 %v1298, %v1425
      %v1493 = vadd.f32 %v1299, %v1427
      %v1494 = vadd.f32 %v1300, %v1429
      %v1495 = vadd.f32 %v1301, %v1431
      %vm1496 = vcmask 1042432
      %v1497 = vrot.slane %v522, 5
      %v1498 = vrot.slane %v525, 5
      %v1499 = vsel %vm1496, %v1497, %v1498
      %v1500 = vrot.slane %v530, 5
      %v1501 = vsel %vm1496, %v1498, %v1500
      %v1502 = vrot.slane %v533, 5
      %v1503 = vsel %vm1496, %v1500, %v1502
      %v1504 = vrot.slane %v538, 5
      %v1505 = vsel %vm1496, %v1502, %v1504
      %v1506 = vrot.slane %v541, 5
      %v1507 = vsel %vm1496, %v1504, %v1506
      %v1508 = vrot.slane %v546, 5
      %v1509 = vsel %vm1496, %v1506, %v1508
      %v1510 = vrot.slane %v549, 5
      %v1511 = vsel %vm1496, %v1508, %v1510
      %v1512 = vrot.slane %v554, 5
      %v1513 = vsel %vm1496, %v1510, %v1512
      %v1514 = vrot.slane %v557, 5
      %v1515 = vsel %vm1496, %v1512, %v1514
      %v1516 = vrot.slane %v562, 5
      %v1517 = vsel %vm1496, %v1514, %v1516
      %v1518 = vrot.slane %v565, 5
      %v1519 = vsel %vm1496, %v1516, %v1518
      %v1520 = vrot.slane %v570, 5
      %v1521 = vsel %vm1496, %v1518, %v1520
      %v1522 = vrot.slane %v573, 5
      %v1523 = vsel %vm1496, %v1520, %v1522
      %v1524 = vrot.slane %v578, 5
      %v1525 = vsel %vm1496, %v1522, %v1524
      %v1526 = vrot.slane %v581, 5
      %v1527 = vsel %vm1496, %v1524, %v1526
      %v1528 = vrot.slane %v586, 5
      %v1529 = vsel %vm1496, %v1526, %v1528
      %v1530 = vrot.slane %v589, 5
      %v1531 = vsel %vm1496, %v1528, %v1530
      %v1532 = vrot.slane %v594, 5
      %v1533 = vsel %vm1496, %v1530, %v1532
      %v1534 = vrot.slane %v597, 5
      %v1535 = vsel %vm1496, %v1532, %v1534
      %v1536 = vrot.slane %v602, 5
      %v1537 = vsel %vm1496, %v1534, %v1536
      %v1538 = vrot.slane %v605, 5
      %v1539 = vsel %vm1496, %v1536, %v1538
      %v1540 = vrot.slane %v610, 5
      %v1541 = vsel %vm1496, %v1538, %v1540
      %v1542 = vrot.slane %v613, 5
      %v1543 = vsel %vm1496, %v1540, %v1542
      %v1544 = vrot.slane %v618, 5
      %v1545 = vsel %vm1496, %v1542, %v1544
      %v1546 = vrot.slane %v621, 5
      %v1547 = vsel %vm1496, %v1544, %v1546
      %v1548 = vrot.slane %v626, 5
      %v1549 = vsel %vm1496, %v1546, %v1548
      %v1550 = vrot.slane %v629, 5
      %v1551 = vsel %vm1496, %v1548, %v1550
      %v1552 = vrot.slane %v634, 5
      %v1553 = vsel %vm1496, %v1550, %v1552
      %v1554 = vrot.slane %v637, 5
      %v1555 = vsel %vm1496, %v1552, %v1554
      %v1556 = vrot.slane %v642, 5
      %v1557 = vsel %vm1496, %v1554, %v1556
      %v1558 = vrot.slane %v645, 5
      %v1559 = vsel %vm1496, %v1556, %v1558
      %v1560 = vrot.slane %v650, 5
      %v1561 = vsel %vm1496, %v1558, %v1560
      %1562 = vrot.lane.b32.xlu0 %v1499, 48
      %v1563 = vpop.permute.xlu0 %1562
      %1564 = vrot.lane.b32.xlu0 %v1501, 48
      %v1565 = vpop.permute.xlu0 %1564
      %1566 = vrot.lane.b32.xlu0 %v1503, 48
      %v1567 = vpop.permute.xlu0 %1566
      %1568 = vrot.lane.b32.xlu0 %v1505, 48
      %v1569 = vpop.permute.xlu0 %1568
      %1570 = vrot.lane.b32.xlu0 %v1507, 48
      %v1571 = vpop.permute.xlu0 %1570
      %1572 = vrot.lane.b32.xlu0 %v1509, 48
      %v1573 = vpop.permute.xlu0 %1572
      %1574 = vrot.lane.b32.xlu0 %v1511, 48
      %v1575 = vpop.permute.xlu0 %1574
      %1576 = vrot.lane.b32.xlu0 %v1513, 48
      %v1577 = vpop.permute.xlu0 %1576
      %1578 = vrot.lane.b32.xlu0 %v1515, 48
      %v1579 = vpop.permute.xlu0 %1578
      %1580 = vrot.lane.b32.xlu0 %v1517, 48
      %v1581 = vpop.permute.xlu0 %1580
      %1582 = vrot.lane.b32.xlu0 %v1519, 48
      %v1583 = vpop.permute.xlu0 %1582
      %1584 = vrot.lane.b32.xlu0 %v1521, 48
      %v1585 = vpop.permute.xlu0 %1584
      %1586 = vrot.lane.b32.xlu0 %v1523, 48
      %v1587 = vpop.permute.xlu0 %1586
      %1588 = vrot.lane.b32.xlu0 %v1525, 48
      %v1589 = vpop.permute.xlu0 %1588
      %1590 = vrot.lane.b32.xlu0 %v1527, 48
      %v1591 = vpop.permute.xlu0 %1590
      %1592 = vrot.lane.b32.xlu0 %v1529, 48
      %v1593 = vpop.permute.xlu0 %1592
      %1594 = vrot.lane.b32.xlu0 %v1531, 48
      %v1595 = vpop.permute.xlu0 %1594
      %1596 = vrot.lane.b32.xlu0 %v1533, 48
      %v1597 = vpop.permute.xlu0 %1596
      %1598 = vrot.lane.b32.xlu0 %v1535, 48
      %v1599 = vpop.permute.xlu0 %1598
      %1600 = vrot.lane.b32.xlu0 %v1537, 48
      %v1601 = vpop.permute.xlu0 %1600
      %1602 = vrot.lane.b32.xlu0 %v1539, 48
      %v1603 = vpop.permute.xlu0 %1602
      %1604 = vrot.lane.b32.xlu0 %v1541, 48
      %v1605 = vpop.permute.xlu0 %1604
      %1606 = vrot.lane.b32.xlu0 %v1543, 48
      %v1607 = vpop.permute.xlu0 %1606
      %1608 = vrot.lane.b32.xlu0 %v1545, 48
      %v1609 = vpop.permute.xlu0 %1608
      %1610 = vrot.lane.b32.xlu0 %v1547, 48
      %v1611 = vpop.permute.xlu0 %1610
      %1612 = vrot.lane.b32.xlu0 %v1549, 48
      %v1613 = vpop.permute.xlu0 %1612
      %1614 = vrot.lane.b32.xlu0 %v1551, 48
      %v1615 = vpop.permute.xlu0 %1614
      %1616 = vrot.lane.b32.xlu0 %v1553, 48
      %v1617 = vpop.permute.xlu0 %1616
      %1618 = vrot.lane.b32.xlu0 %v1555, 48
      %v1619 = vpop.permute.xlu0 %1618
      %1620 = vrot.lane.b32.xlu0 %v1557, 48
      %v1621 = vpop.permute.xlu0 %1620
      %1622 = vrot.lane.b32.xlu0 %v1559, 48
      %v1623 = vpop.permute.xlu0 %1622
      %1624 = vrot.lane.b32.xlu0 %v1561, 48
      %v1625 = vpop.permute.xlu0 %1624
      %v1658 = vadd.f32 %v1464, %v1563
      %v1659 = vadd.f32 %v1465, %v1565
      %v1660 = vadd.f32 %v1466, %v1567
      %v1661 = vadd.f32 %v1467, %v1569
      %v1662 = vadd.f32 %v1468, %v1571
      %v1663 = vadd.f32 %v1469, %v1573
      %v1664 = vadd.f32 %v1470, %v1575
      %v1665 = vadd.f32 %v1471, %v1577
      %v1666 = vadd.f32 %v1472, %v1579
      %v1667 = vadd.f32 %v1473, %v1581
      %v1668 = vadd.f32 %v1474, %v1583
      %v1669 = vadd.f32 %v1475, %v1585
      %v1670 = vadd.f32 %v1476, %v1587
      %v1671 = vadd.f32 %v1477, %v1589
      %v1672 = vadd.f32 %v1478, %v1591
      %v1673 = vadd.f32 %v1479, %v1593
      %v1674 = vadd.f32 %v1480, %v1595
      %v1675 = vadd.f32 %v1481, %v1597
      %v1676 = vadd.f32 %v1482, %v1599
      %v1677 = vadd.f32 %v1483, %v1601
      %v1678 = vadd.f32 %v1484, %v1603
      %v1679 = vadd.f32 %v1485, %v1605
      %v1680 = vadd.f32 %v1486, %v1607
      %v1681 = vadd.f32 %v1487, %v1609
      %v1682 = vadd.f32 %v1488, %v1611
      %v1683 = vadd.f32 %v1489, %v1613
      %v1684 = vadd.f32 %v1490, %v1615
      %v1685 = vadd.f32 %v1491, %v1617
      %v1686 = vadd.f32 %v1492, %v1619
      %v1687 = vadd.f32 %v1493, %v1621
      %v1688 = vadd.f32 %v1494, %v1623
      %v1689 = vadd.f32 %v1495, %v1625
      %v1690 = vrot.slane %v522, 6
      %v1691 = vrot.slane %v525, 6
      %v1692 = vsel %vm481, %v1690, %v1691
      %v1693 = vrot.slane %v530, 6
      %v1694 = vsel %vm481, %v1691, %v1693
      %v1695 = vrot.slane %v533, 6
      %v1696 = vsel %vm481, %v1693, %v1695
      %v1697 = vrot.slane %v538, 6
      %v1698 = vsel %vm481, %v1695, %v1697
      %v1699 = vrot.slane %v541, 6
      %v1700 = vsel %vm481, %v1697, %v1699
      %v1701 = vrot.slane %v546, 6
      %v1702 = vsel %vm481, %v1699, %v1701
      %v1703 = vrot.slane %v549, 6
      %v1704 = vsel %vm481, %v1701, %v1703
      %v1705 = vrot.slane %v554, 6
      %v1706 = vsel %vm481, %v1703, %v1705
      %v1707 = vrot.slane %v557, 6
      %v1708 = vsel %vm481, %v1705, %v1707
      %v1709 = vrot.slane %v562, 6
      %v1710 = vsel %vm481, %v1707, %v1709
      %v1711 = vrot.slane %v565, 6
      %v1712 = vsel %vm481, %v1709, %v1711
      %v1713 = vrot.slane %v570, 6
      %v1714 = vsel %vm481, %v1711, %v1713
      %v1715 = vrot.slane %v573, 6
      %v1716 = vsel %vm481, %v1713, %v1715
      %v1717 = vrot.slane %v578, 6
      %v1718 = vsel %vm481, %v1715, %v1717
      %v1719 = vrot.slane %v581, 6
      %v1720 = vsel %vm481, %v1717, %v1719
      %v1721 = vrot.slane %v586, 6
      %v1722 = vsel %vm481, %v1719, %v1721
      %v1723 = vrot.slane %v589, 6
      %v1724 = vsel %vm481, %v1721, %v1723
      %v1725 = vrot.slane %v594, 6
      %v1726 = vsel %vm481, %v1723, %v1725
      %v1727 = vrot.slane %v597, 6
      %v1728 = vsel %vm481, %v1725, %v1727
      %v1729 = vrot.slane %v602, 6
      %v1730 = vsel %vm481, %v1727, %v1729
      %v1731 = vrot.slane %v605, 6
      %v1732 = vsel %vm481, %v1729, %v1731
      %v1733 = vrot.slane %v610, 6
      %v1734 = vsel %vm481, %v1731, %v1733
      %v1735 = vrot.slane %v613, 6
      %v1736 = vsel %vm481, %v1733, %v1735
      %v1737 = vrot.slane %v618, 6
      %v1738 = vsel %vm481, %v1735, %v1737
      %v1739 = vrot.slane %v621, 6
      %v1740 = vsel %vm481, %v1737, %v1739
      %v1741 = vrot.slane %v626, 6
      %v1742 = vsel %vm481, %v1739, %v1741
      %v1743 = vrot.slane %v629, 6
      %v1744 = vsel %vm481, %v1741, %v1743
      %v1745 = vrot.slane %v634, 6
      %v1746 = vsel %vm481, %v1743, %v1745
      %v1747 = vrot.slane %v637, 6
      %v1748 = vsel %vm481, %v1745, %v1747
      %v1749 = vrot.slane %v642, 6
      %v1750 = vsel %vm481, %v1747, %v1749
      %v1751 = vrot.slane %v645, 6
      %v1752 = vsel %vm481, %v1749, %v1751
      %v1753 = vrot.slane %v650, 6
      %v1754 = vsel %vm481, %v1751, %v1753
      %1755 = vrot.lane.b32.xlu0 %v1692, 32
      %v1756 = vpop.permute.xlu0 %1755
      %1757 = vrot.lane.b32.xlu0 %v1694, 32
      %v1758 = vpop.permute.xlu0 %1757
      %1759 = vrot.lane.b32.xlu0 %v1696, 32
      %v1760 = vpop.permute.xlu0 %1759
      %1761 = vrot.lane.b32.xlu0 %v1698, 32
      %v1762 = vpop.permute.xlu0 %1761
      %1763 = vrot.lane.b32.xlu0 %v1700, 32
      %v1764 = vpop.permute.xlu0 %1763
      %1765 = vrot.lane.b32.xlu0 %v1702, 32
      %v1766 = vpop.permute.xlu0 %1765
      %1767 = vrot.lane.b32.xlu0 %v1704, 32
      %v1768 = vpop.permute.xlu0 %1767
      %1769 = vrot.lane.b32.xlu0 %v1706, 32
      %v1770 = vpop.permute.xlu0 %1769
      %1771 = vrot.lane.b32.xlu0 %v1708, 32
      %v1772 = vpop.permute.xlu0 %1771
      %1773 = vrot.lane.b32.xlu0 %v1710, 32
      %v1774 = vpop.permute.xlu0 %1773
      %1775 = vrot.lane.b32.xlu0 %v1712, 32
      %v1776 = vpop.permute.xlu0 %1775
      %1777 = vrot.lane.b32.xlu0 %v1714, 32
      %v1778 = vpop.permute.xlu0 %1777
      %1779 = vrot.lane.b32.xlu0 %v1716, 32
      %v1780 = vpop.permute.xlu0 %1779
      %1781 = vrot.lane.b32.xlu0 %v1718, 32
      %v1782 = vpop.permute.xlu0 %1781
      %1783 = vrot.lane.b32.xlu0 %v1720, 32
      %v1784 = vpop.permute.xlu0 %1783
      %1785 = vrot.lane.b32.xlu0 %v1722, 32
      %v1786 = vpop.permute.xlu0 %1785
      %1787 = vrot.lane.b32.xlu0 %v1724, 32
      %v1788 = vpop.permute.xlu0 %1787
      %1789 = vrot.lane.b32.xlu0 %v1726, 32
      %v1790 = vpop.permute.xlu0 %1789
      %1791 = vrot.lane.b32.xlu0 %v1728, 32
      %v1792 = vpop.permute.xlu0 %1791
      %1793 = vrot.lane.b32.xlu0 %v1730, 32
      %v1794 = vpop.permute.xlu0 %1793
      %1795 = vrot.lane.b32.xlu0 %v1732, 32
      %v1796 = vpop.permute.xlu0 %1795
      %1797 = vrot.lane.b32.xlu0 %v1734, 32
      %v1798 = vpop.permute.xlu0 %1797
      %1799 = vrot.lane.b32.xlu0 %v1736, 32
      %v1800 = vpop.permute.xlu0 %1799
      %1801 = vrot.lane.b32.xlu0 %v1738, 32
      %v1802 = vpop.permute.xlu0 %1801
      %1803 = vrot.lane.b32.xlu0 %v1740, 32
      %v1804 = vpop.permute.xlu0 %1803
      %1805 = vrot.lane.b32.xlu0 %v1742, 32
      %v1806 = vpop.permute.xlu0 %1805
      %1807 = vrot.lane.b32.xlu0 %v1744, 32
      %v1808 = vpop.permute.xlu0 %1807
      %1809 = vrot.lane.b32.xlu0 %v1746, 32
      %v1810 = vpop.permute.xlu0 %1809
      %1811 = vrot.lane.b32.xlu0 %v1748, 32
      %v1812 = vpop.permute.xlu0 %1811
      %1813 = vrot.lane.b32.xlu0 %v1750, 32
      %v1814 = vpop.permute.xlu0 %1813
      %1815 = vrot.lane.b32.xlu0 %v1752, 32
      %v1816 = vpop.permute.xlu0 %1815
      %1817 = vrot.lane.b32.xlu0 %v1754, 32
      %v1818 = vpop.permute.xlu0 %1817
      %v1851 = vadd.f32 %v1658, %v1756
      %v1852 = vadd.f32 %v1659, %v1758
      %v1853 = vadd.f32 %v1660, %v1760
      %v1854 = vadd.f32 %v1661, %v1762
      %v1855 = vadd.f32 %v1662, %v1764
      %v1856 = vadd.f32 %v1663, %v1766
      %v1857 = vadd.f32 %v1664, %v1768
      %v1858 = vadd.f32 %v1665, %v1770
      %v1859 = vadd.f32 %v1666, %v1772
      %v1860 = vadd.f32 %v1667, %v1774
      %v1861 = vadd.f32 %v1668, %v1776
      %v1862 = vadd.f32 %v1669, %v1778
      %v1863 = vadd.f32 %v1670, %v1780
      %v1864 = vadd.f32 %v1671, %v1782
      %v1865 = vadd.f32 %v1672, %v1784
      %v1866 = vadd.f32 %v1673, %v1786
      %v1867 = vadd.f32 %v1674, %v1788
      %v1868 = vadd.f32 %v1675, %v1790
      %v1869 = vadd.f32 %v1676, %v1792
      %v1870 = vadd.f32 %v1677, %v1794
      %v1871 = vadd.f32 %v1678, %v1796
      %v1872 = vadd.f32 %v1679, %v1798
      %v1873 = vadd.f32 %v1680, %v1800
      %v1874 = vadd.f32 %v1681, %v1802
      %v1875 = vadd.f32 %v1682, %v1804
      %v1876 = vadd.f32 %v1683, %v1806
      %v1877 = vadd.f32 %v1684, %v1808
      %v1878 = vadd.f32 %v1685, %v1810
      %v1879 = vadd.f32 %v1686, %v1812
      %v1880 = vadd.f32 %v1687, %v1814
      %v1881 = vadd.f32 %v1688, %v1816
      %v1882 = vadd.f32 %v1689, %v1818
      %v1883 = vld [vmem:[%s3] sm:$0x1]
      %v1885 = vlaneseq
      %v1886 = vshrl.u32 %v1885, 7
      %v1887 = vsub.s32 0, %v1886
      %v1888 = vrot.slane %v1883, %v1887
      %v1890 = vadd.f32 %v1851, %v1888
      %v1891 = vadd.f32 %v1852, %v1888
      %v1892 = vadd.f32 %v1853, %v1888
      %v1893 = vadd.f32 %v1854, %v1888
      %v1894 = vadd.f32 %v1855, %v1888
      %v1895 = vadd.f32 %v1856, %v1888
      %v1896 = vadd.f32 %v1857, %v1888
      %v1897 = vadd.f32 %v1858, %v1888
      %v1898 = vadd.f32 %v1859, %v1888
      %v1899 = vadd.f32 %v1860, %v1888
      %v1900 = vadd.f32 %v1861, %v1888
      %v1901 = vadd.f32 %v1862, %v1888
      %v1902 = vadd.f32 %v1863, %v1888
      %v1903 = vadd.f32 %v1864, %v1888
      %v1904 = vadd.f32 %v1865, %v1888
      %v1905 = vadd.f32 %v1866, %v1888
      %v1906 = vadd.f32 %v1867, %v1888
      %v1907 = vadd.f32 %v1868, %v1888
      %v1908 = vadd.f32 %v1869, %v1888
      %v1909 = vadd.f32 %v1870, %v1888
      %v1910 = vadd.f32 %v1871, %v1888
      %v1911 = vadd.f32 %v1872, %v1888
      %v1912 = vadd.f32 %v1873, %v1888
      %v1913 = vadd.f32 %v1874, %v1888
      %v1914 = vadd.f32 %v1875, %v1888
      %v1915 = vadd.f32 %v1876, %v1888
      %v1916 = vadd.f32 %v1877, %v1888
      %v1917 = vadd.f32 %v1878, %v1888
      %v1918 = vadd.f32 %v1879, %v1888
      %v1919 = vadd.f32 %v1880, %v1888
      %v1920 = vadd.f32 %v1881, %v1888
      %v1921 = vadd.f32 %v1882, %v1888
      %v1922 = vmax.f32 %v1890, 0.0
      %v1923 = vmax.f32 %v1891, 0.0
      %v1924 = vmax.f32 %v1892, 0.0
      %v1925 = vmax.f32 %v1893, 0.0
      %v1926 = vmax.f32 %v1894, 0.0
      %v1927 = vmax.f32 %v1895, 0.0
      %v1928 = vmax.f32 %v1896, 0.0
      %v1929 = vmax.f32 %v1897, 0.0
      %v1930 = vmax.f32 %v1898, 0.0
      %v1931 = vmax.f32 %v1899, 0.0
      %v1932 = vmax.f32 %v1900, 0.0
      %v1933 = vmax.f32 %v1901, 0.0
      %v1934 = vmax.f32 %v1902, 0.0
      %v1935 = vmax.f32 %v1903, 0.0
      %v1936 = vmax.f32 %v1904, 0.0
      %v1937 = vmax.f32 %v1905, 0.0
      %v1938 = vmax.f32 %v1906, 0.0
      %v1939 = vmax.f32 %v1907, 0.0
      %v1940 = vmax.f32 %v1908, 0.0
      %v1941 = vmax.f32 %v1909, 0.0
      %v1942 = vmax.f32 %v1910, 0.0
      %v1943 = vmax.f32 %v1911, 0.0
      %v1944 = vmax.f32 %v1912, 0.0
      %v1945 = vmax.f32 %v1913, 0.0
      %v1946 = vmax.f32 %v1914, 0.0
      %v1947 = vmax.f32 %v1915, 0.0
      %v1948 = vmax.f32 %v1916, 0.0
      %v1949 = vmax.f32 %v1917, 0.0
      %v1950 = vmax.f32 %v1918, 0.0
      %v1951 = vmax.f32 %v1919, 0.0
      %v1952 = vmax.f32 %v1920, 0.0
      %v1953 = vmax.f32 %v1921, 0.0
      %v1986 = vcombine.high %v1922, %v1922
      %v1988 = vunpack.c.l.s4 1983009808
      %v1989 = vunpack.c.0.s8 %v1988
      %v1990 = vlaneseq
      %v1991 = vshrl.u32 %v1990, 7
      %v1992 = vsub.s32 %v1989, %v1991
      %v1993 = vrot.slane %v1922, %v1992
      %v1995 = vunpack.c.l.s4 1983009808
      %v1996 = vunpack.c.0.s8 %v1995
      %v1997 = vlaneseq
      %v1998 = vshrl.u32 %v1997, 7
      %v1999 = vsub.s32 %v1996, %v1998
      %v2000 = vrot.slane %v1986, %v1999
      %v2001 = vcombine.high %v1993, %v1993
      %v2002 = vcombine.high %v2000, %v2000
      %v2003 = vcombine.high %v1923, %v1923
      %v2005 = vunpack.c.l.s4 1983009808
      %v2006 = vunpack.c.0.s8 %v2005
      %v2007 = vlaneseq
      %v2008 = vshrl.u32 %v2007, 7
      %v2009 = vsub.s32 %v2006, %v2008
      %v2010 = vrot.slane %v1923, %v2009
      %v2012 = vunpack.c.l.s4 1983009808
      %v2013 = vunpack.c.0.s8 %v2012
      %v2014 = vlaneseq
      %v2015 = vshrl.u32 %v2014, 7
      %v2016 = vsub.s32 %v2013, %v2015
      %v2017 = vrot.slane %v2003, %v2016
      %v2018 = vcombine.high %v2010, %v2010
      %v2019 = vcombine.high %v2017, %v2017
      %v2020 = vcombine.high %v1924, %v1924
      %v2022 = vunpack.c.l.s4 1983009808
      %v2023 = vunpack.c.0.s8 %v2022
      %v2024 = vlaneseq
      %v2025 = vshrl.u32 %v2024, 7
      %v2026 = vsub.s32 %v2023, %v2025
      %v2027 = vrot.slane %v1924, %v2026
      %v2029 = vunpack.c.l.s4 1983009808
      %v2030 = vunpack.c.0.s8 %v2029
      %v2031 = vlaneseq
      %v2032 = vshrl.u32 %v2031, 7
      %v2033 = vsub.s32 %v2030, %v2032
      %v2034 = vrot.slane %v2020, %v2033
      %v2035 = vcombine.high %v2027, %v2027
      %v2036 = vcombine.high %v2034, %v2034
      %v2037 = vcombine.high %v1925, %v1925
      %v2039 = vunpack.c.l.s4 1983009808
      %v2040 = vunpack.c.0.s8 %v2039
      %v2041 = vlaneseq
      %v2042 = vshrl.u32 %v2041, 7
      %v2043 = vsub.s32 %v2040, %v2042
      %v2044 = vrot.slane %v1925, %v2043
      %v2046 = vunpack.c.l.s4 1983009808
      %v2047 = vunpack.c.0.s8 %v2046
      %v2048 = vlaneseq
      %v2049 = vshrl.u32 %v2048, 7
      %v2050 = vsub.s32 %v2047, %v2049
      %v2051 = vrot.slane %v2037, %v2050
      %v2052 = vcombine.high %v2044, %v2044
      %v2053 = vcombine.high %v2051, %v2051
      %v2054 = vcombine.high %v1926, %v1926
      %v2056 = vunpack.c.l.s4 1983009808
      %v2057 = vunpack.c.0.s8 %v2056
      %v2058 = vlaneseq
      %v2059 = vshrl.u32 %v2058, 7
      %v2060 = vsub.s32 %v2057, %v2059
      %v2061 = vrot.slane %v1926, %v2060
      %v2063 = vunpack.c.l.s4 1983009808
      %v2064 = vunpack.c.0.s8 %v2063
      %v2065 = vlaneseq
      %v2066 = vshrl.u32 %v2065, 7
      %v2067 = vsub.s32 %v2064, %v2066
      %v2068 = vrot.slane %v2054, %v2067
      %v2069 = vcombine.high %v2061, %v2061
      %v2070 = vcombine.high %v2068, %v2068
      %v2071 = vcombine.high %v1927, %v1927
      %v2073 = vunpack.c.l.s4 1983009808
      %v2074 = vunpack.c.0.s8 %v2073
      %v2075 = vlaneseq
      %v2076 = vshrl.u32 %v2075, 7
      %v2077 = vsub.s32 %v2074, %v2076
      %v2078 = vrot.slane %v1927, %v2077
      %v2080 = vunpack.c.l.s4 1983009808
      %v2081 = vunpack.c.0.s8 %v2080
      %v2082 = vlaneseq
      %v2083 = vshrl.u32 %v2082, 7
      %v2084 = vsub.s32 %v2081, %v2083
      %v2085 = vrot.slane %v2071, %v2084
      %v2086 = vcombine.high %v2078, %v2078
      %v2087 = vcombine.high %v2085, %v2085
      %v2088 = vcombine.high %v1928, %v1928
      %v2090 = vunpack.c.l.s4 1983009808
      %v2091 = vunpack.c.0.s8 %v2090
      %v2092 = vlaneseq
      %v2093 = vshrl.u32 %v2092, 7
      %v2094 = vsub.s32 %v2091, %v2093
      %v2095 = vrot.slane %v1928, %v2094
      %v2097 = vunpack.c.l.s4 1983009808
      %v2098 = vunpack.c.0.s8 %v2097
      %v2099 = vlaneseq
      %v2100 = vshrl.u32 %v2099, 7
      %v2101 = vsub.s32 %v2098, %v2100
      %v2102 = vrot.slane %v2088, %v2101
      %v2103 = vcombine.high %v2095, %v2095
      %v2104 = vcombine.high %v2102, %v2102
      %v2105 = vcombine.high %v1929, %v1929
      %v2107 = vunpack.c.l.s4 1983009808
      %v2108 = vunpack.c.0.s8 %v2107
      %v2109 = vlaneseq
      %v2110 = vshrl.u32 %v2109, 7
      %v2111 = vsub.s32 %v2108, %v2110
      %v2112 = vrot.slane %v1929, %v2111
      %v2114 = vunpack.c.l.s4 1983009808
      %v2115 = vunpack.c.0.s8 %v2114
      %v2116 = vlaneseq
      %v2117 = vshrl.u32 %v2116, 7
      %v2118 = vsub.s32 %v2115, %v2117
      %v2119 = vrot.slane %v2105, %v2118
      %v2120 = vcombine.high %v2112, %v2112
      %v2121 = vcombine.high %v2119, %v2119
      %v2122 = vcombine.high %v1930, %v1930
      %v2124 = vunpack.c.l.s4 1983009808
      %v2125 = vunpack.c.0.s8 %v2124
      %v2126 = vlaneseq
      %v2127 = vshrl.u32 %v2126, 7
      %v2128 = vsub.s32 %v2125, %v2127
      %v2129 = vrot.slane %v1930, %v2128
      %v2131 = vunpack.c.l.s4 1983009808
      %v2132 = vunpack.c.0.s8 %v2131
      %v2133 = vlaneseq
      %v2134 = vshrl.u32 %v2133, 7
      %v2135 = vsub.s32 %v2132, %v2134
      %v2136 = vrot.slane %v2122, %v2135
      %v2137 = vcombine.high %v2129, %v2129
      %v2138 = vcombine.high %v2136, %v2136
      %v2139 = vcombine.high %v1931, %v1931
      %v2141 = vunpack.c.l.s4 1983009808
      %v2142 = vunpack.c.0.s8 %v2141
      %v2143 = vlaneseq
      %v2144 = vshrl.u32 %v2143, 7
      %v2145 = vsub.s32 %v2142, %v2144
      %v2146 = vrot.slane %v1931, %v2145
      %v2148 = vunpack.c.l.s4 1983009808
      %v2149 = vunpack.c.0.s8 %v2148
      %v2150 = vlaneseq
      %v2151 = vshrl.u32 %v2150, 7
      %v2152 = vsub.s32 %v2149, %v2151
      %v2153 = vrot.slane %v2139, %v2152
      %v2154 = vcombine.high %v2146, %v2146
      %v2155 = vcombine.high %v2153, %v2153
      %v2156 = vcombine.high %v1932, %v1932
      %v2158 = vunpack.c.l.s4 1983009808
      %v2159 = vunpack.c.0.s8 %v2158
      %v2160 = vlaneseq
      %v2161 = vshrl.u32 %v2160, 7
      %v2162 = vsub.s32 %v2159, %v2161
      %v2163 = vrot.slane %v1932, %v2162
      %v2165 = vunpack.c.l.s4 1983009808
      %v2166 = vunpack.c.0.s8 %v2165
      %v2167 = vlaneseq
      %v2168 = vshrl.u32 %v2167, 7
      %v2169 = vsub.s32 %v2166, %v2168
      %v2170 = vrot.slane %v2156, %v2169
      %v2171 = vcombine.high %v2163, %v2163
      %v2172 = vcombine.high %v2170, %v2170
      %v2173 = vcombine.high %v1933, %v1933
      %v2175 = vunpack.c.l.s4 1983009808
      %v2176 = vunpack.c.0.s8 %v2175
      %v2177 = vlaneseq
      %v2178 = vshrl.u32 %v2177, 7
      %v2179 = vsub.s32 %v2176, %v2178
      %v2180 = vrot.slane %v1933, %v2179
      %v2182 = vunpack.c.l.s4 1983009808
      %v2183 = vunpack.c.0.s8 %v2182
      %v2184 = vlaneseq
      %v2185 = vshrl.u32 %v2184, 7
      %v2186 = vsub.s32 %v2183, %v2185
      %v2187 = vrot.slane %v2173, %v2186
      %v2188 = vcombine.high %v2180, %v2180
      %v2189 = vcombine.high %v2187, %v2187
      %v2190 = vcombine.high %v1934, %v1934
      %v2192 = vunpack.c.l.s4 1983009808
      %v2193 = vunpack.c.0.s8 %v2192
      %v2194 = vlaneseq
      %v2195 = vshrl.u32 %v2194, 7
      %v2196 = vsub.s32 %v2193, %v2195
      %v2197 = vrot.slane %v1934, %v2196
      %v2199 = vunpack.c.l.s4 1983009808
      %v2200 = vunpack.c.0.s8 %v2199
      %v2201 = vlaneseq
      %v2202 = vshrl.u32 %v2201, 7
      %v2203 = vsub.s32 %v2200, %v2202
      %v2204 = vrot.slane %v2190, %v2203
      %v2205 = vcombine.high %v2197, %v2197
      %v2206 = vcombine.high %v2204, %v2204
      %v2207 = vcombine.high %v1935, %v1935
      %v2209 = vunpack.c.l.s4 1983009808
      %v2210 = vunpack.c.0.s8 %v2209
      %v2211 = vlaneseq
      %v2212 = vshrl.u32 %v2211, 7
      %v2213 = vsub.s32 %v2210, %v2212
      %v2214 = vrot.slane %v1935, %v2213
      %v2216 = vunpack.c.l.s4 1983009808
      %v2217 = vunpack.c.0.s8 %v2216
      %v2218 = vlaneseq
      %v2219 = vshrl.u32 %v2218, 7
      %v2220 = vsub.s32 %v2217, %v2219
      %v2221 = vrot.slane %v2207, %v2220
      %v2222 = vcombine.high %v2214, %v2214
      %v2223 = vcombine.high %v2221, %v2221
      %v2224 = vcombine.high %v1936, %v1936
      %v2226 = vunpack.c.l.s4 1983009808
      %v2227 = vunpack.c.0.s8 %v2226
      %v2228 = vlaneseq
      %v2229 = vshrl.u32 %v2228, 7
      %v2230 = vsub.s32 %v2227, %v2229
      %v2231 = vrot.slane %v1936, %v2230
      %v2233 = vunpack.c.l.s4 1983009808
      %v2234 = vunpack.c.0.s8 %v2233
      %v2235 = vlaneseq
      %v2236 = vshrl.u32 %v2235, 7
      %v2237 = vsub.s32 %v2234, %v2236
      %v2238 = vrot.slane %v2224, %v2237
      %v2239 = vcombine.high %v2231, %v2231
      %v2240 = vcombine.high %v2238, %v2238
      %v2241 = vcombine.high %v1937, %v1937
      %v2243 = vunpack.c.l.s4 1983009808
      %v2244 = vunpack.c.0.s8 %v2243
      %v2245 = vlaneseq
      %v2246 = vshrl.u32 %v2245, 7
      %v2247 = vsub.s32 %v2244, %v2246
      %v2248 = vrot.slane %v1937, %v2247
      %v2250 = vunpack.c.l.s4 1983009808
      %v2251 = vunpack.c.0.s8 %v2250
      %v2252 = vlaneseq
      %v2253 = vshrl.u32 %v2252, 7
      %v2254 = vsub.s32 %v2251, %v2253
      %v2255 = vrot.slane %v2241, %v2254
      %v2256 = vcombine.high %v2248, %v2248
      %v2257 = vcombine.high %v2255, %v2255
      %v2258 = vcombine.high %v1938, %v1938
      %v2260 = vunpack.c.l.s4 1983009808
      %v2261 = vunpack.c.0.s8 %v2260
      %v2262 = vlaneseq
      %v2263 = vshrl.u32 %v2262, 7
      %v2264 = vsub.s32 %v2261, %v2263
      %v2265 = vrot.slane %v1938, %v2264
      %v2267 = vunpack.c.l.s4 1983009808
      %v2268 = vunpack.c.0.s8 %v2267
      %v2269 = vlaneseq
      %v2270 = vshrl.u32 %v2269, 7
      %v2271 = vsub.s32 %v2268, %v2270
      %v2272 = vrot.slane %v2258, %v2271
      %v2273 = vcombine.high %v2265, %v2265
      %v2274 = vcombine.high %v2272, %v2272
      %v2275 = vcombine.high %v1939, %v1939
      %v2277 = vunpack.c.l.s4 1983009808
      %v2278 = vunpack.c.0.s8 %v2277
      %v2279 = vlaneseq
      %v2280 = vshrl.u32 %v2279, 7
      %v2281 = vsub.s32 %v2278, %v2280
      %v2282 = vrot.slane %v1939, %v2281
      %v2284 = vunpack.c.l.s4 1983009808
      %v2285 = vunpack.c.0.s8 %v2284
      %v2286 = vlaneseq
      %v2287 = vshrl.u32 %v2286, 7
      %v2288 = vsub.s32 %v2285, %v2287
      %v2289 = vrot.slane %v2275, %v2288
      %v2290 = vcombine.high %v2282, %v2282
      %v2291 = vcombine.high %v2289, %v2289
      %v2292 = vcombine.high %v1940, %v1940
      %v2294 = vunpack.c.l.s4 1983009808
      %v2295 = vunpack.c.0.s8 %v2294
      %v2296 = vlaneseq
      %v2297 = vshrl.u32 %v2296, 7
      %v2298 = vsub.s32 %v2295, %v2297
      %v2299 = vrot.slane %v1940, %v2298
      %v2301 = vunpack.c.l.s4 1983009808
      %v2302 = vunpack.c.0.s8 %v2301
      %v2303 = vlaneseq
      %v2304 = vshrl.u32 %v2303, 7
      %v2305 = vsub.s32 %v2302, %v2304
      %v2306 = vrot.slane %v2292, %v2305
      %v2307 = vcombine.high %v2299, %v2299
      %v2308 = vcombine.high %v2306, %v2306
      %v2309 = vcombine.high %v1941, %v1941
      %v2311 = vunpack.c.l.s4 1983009808
      %v2312 = vunpack.c.0.s8 %v2311
      %v2313 = vlaneseq
      %v2314 = vshrl.u32 %v2313, 7
      %v2315 = vsub.s32 %v2312, %v2314
      %v2316 = vrot.slane %v1941, %v2315
      %v2318 = vunpack.c.l.s4 1983009808
      %v2319 = vunpack.c.0.s8 %v2318
      %v2320 = vlaneseq
      %v2321 = vshrl.u32 %v2320, 7
      %v2322 = vsub.s32 %v2319, %v2321
      %v2323 = vrot.slane %v2309, %v2322
      %v2324 = vcombine.high %v2316, %v2316
      %v2325 = vcombine.high %v2323, %v2323
      %v2326 = vcombine.high %v1942, %v1942
      %v2328 = vunpack.c.l.s4 1983009808
      %v2329 = vunpack.c.0.s8 %v2328
      %v2330 = vlaneseq
      %v2331 = vshrl.u32 %v2330, 7
      %v2332 = vsub.s32 %v2329, %v2331
      %v2333 = vrot.slane %v1942, %v2332
      %v2335 = vunpack.c.l.s4 1983009808
      %v2336 = vunpack.c.0.s8 %v2335
      %v2337 = vlaneseq
      %v2338 = vshrl.u32 %v2337, 7
      %v2339 = vsub.s32 %v2336, %v2338
      %v2340 = vrot.slane %v2326, %v2339
      %v2341 = vcombine.high %v2333, %v2333
      %v2342 = vcombine.high %v2340, %v2340
      %v2343 = vcombine.high %v1943, %v1943
      %v2345 = vunpack.c.l.s4 1983009808
      %v2346 = vunpack.c.0.s8 %v2345
      %v2347 = vlaneseq
      %v2348 = vshrl.u32 %v2347, 7
      %v2349 = vsub.s32 %v2346, %v2348
      %v2350 = vrot.slane %v1943, %v2349
      %v2352 = vunpack.c.l.s4 1983009808
      %v2353 = vunpack.c.0.s8 %v2352
      %v2354 = vlaneseq
      %v2355 = vshrl.u32 %v2354, 7
      %v2356 = vsub.s32 %v2353, %v2355
      %v2357 = vrot.slane %v2343, %v2356
      %v2358 = vcombine.high %v2350, %v2350
      %v2359 = vcombine.high %v2357, %v2357
      %v2360 = vcombine.high %v1944, %v1944
      %v2362 = vunpack.c.l.s4 1983009808
      %v2363 = vunpack.c.0.s8 %v2362
      %v2364 = vlaneseq
      %v2365 = vshrl.u32 %v2364, 7
      %v2366 = vsub.s32 %v2363, %v2365
      %v2367 = vrot.slane %v1944, %v2366
      %v2369 = vunpack.c.l.s4 1983009808
      %v2370 = vunpack.c.0.s8 %v2369
      %v2371 = vlaneseq
      %v2372 = vshrl.u32 %v2371, 7
      %v2373 = vsub.s32 %v2370, %v2372
      %v2374 = vrot.slane %v2360, %v2373
      %v2375 = vcombine.high %v2367, %v2367
      %v2376 = vcombine.high %v2374, %v2374
      %v2377 = vcombine.high %v1945, %v1945
      %v2379 = vunpack.c.l.s4 1983009808
      %v2380 = vunpack.c.0.s8 %v2379
      %v2381 = vlaneseq
      %v2382 = vshrl.u32 %v2381, 7
      %v2383 = vsub.s32 %v2380, %v2382
      %v2384 = vrot.slane %v1945, %v2383
      %v2386 = vunpack.c.l.s4 1983009808
      %v2387 = vunpack.c.0.s8 %v2386
      %v2388 = vlaneseq
      %v2389 = vshrl.u32 %v2388, 7
      %v2390 = vsub.s32 %v2387, %v2389
      %v2391 = vrot.slane %v2377, %v2390
      %v2392 = vcombine.high %v2384, %v2384
      %v2393 = vcombine.high %v2391, %v2391
      %v2394 = vcombine.high %v1946, %v1946
      %v2396 = vunpack.c.l.s4 1983009808
      %v2397 = vunpack.c.0.s8 %v2396
      %v2398 = vlaneseq
      %v2399 = vshrl.u32 %v2398, 7
      %v2400 = vsub.s32 %v2397, %v2399
      %v2401 = vrot.slane %v1946, %v2400
      %v2403 = vunpack.c.l.s4 1983009808
      %v2404 = vunpack.c.0.s8 %v2403
      %v2405 = vlaneseq
      %v2406 = vshrl.u32 %v2405, 7
      %v2407 = vsub.s32 %v2404, %v2406
      %v2408 = vrot.slane %v2394, %v2407
      %v2409 = vcombine.high %v2401, %v2401
      %v2410 = vcombine.high %v2408, %v2408
      %v2411 = vcombine.high %v1947, %v1947
      %v2413 = vunpack.c.l.s4 1983009808
      %v2414 = vunpack.c.0.s8 %v2413
      %v2415 = vlaneseq
      %v2416 = vshrl.u32 %v2415, 7
      %v2417 = vsub.s32 %v2414, %v2416
      %v2418 = vrot.slane %v1947, %v2417
      %v2420 = vunpack.c.l.s4 1983009808
      %v2421 = vunpack.c.0.s8 %v2420
      %v2422 = vlaneseq
      %v2423 = vshrl.u32 %v2422, 7
      %v2424 = vsub.s32 %v2421, %v2423
      %v2425 = vrot.slane %v2411, %v2424
      %v2426 = vcombine.high %v2418, %v2418
      %v2427 = vcombine.high %v2425, %v2425
      %v2428 = vcombine.high %v1948, %v1948
      %v2430 = vunpack.c.l.s4 1983009808
      %v2431 = vunpack.c.0.s8 %v2430
      %v2432 = vlaneseq
      %v2433 = vshrl.u32 %v2432, 7
      %v2434 = vsub.s32 %v2431, %v2433
      %v2435 = vrot.slane %v1948, %v2434
      %v2437 = vunpack.c.l.s4 1983009808
      %v2438 = vunpack.c.0.s8 %v2437
      %v2439 = vlaneseq
      %v2440 = vshrl.u32 %v2439, 7
      %v2441 = vsub.s32 %v2438, %v2440
      %v2442 = vrot.slane %v2428, %v2441
      %v2443 = vcombine.high %v2435, %v2435
      %v2444 = vcombine.high %v2442, %v2442
      %v2445 = vcombine.high %v1949, %v1949
      %v2447 = vunpack.c.l.s4 1983009808
      %v2448 = vunpack.c.0.s8 %v2447
      %v2449 = vlaneseq
      %v2450 = vshrl.u32 %v2449, 7
      %v2451 = vsub.s32 %v2448, %v2450
      %v2452 = vrot.slane %v1949, %v2451
      %v2454 = vunpack.c.l.s4 1983009808
      %v2455 = vunpack.c.0.s8 %v2454
      %v2456 = vlaneseq
      %v2457 = vshrl.u32 %v2456, 7
      %v2458 = vsub.s32 %v2455, %v2457
      %v2459 = vrot.slane %v2445, %v2458
      %v2460 = vcombine.high %v2452, %v2452
      %v2461 = vcombine.high %v2459, %v2459
      %v2462 = vcombine.high %v1950, %v1950
      %v2464 = vunpack.c.l.s4 1983009808
      %v2465 = vunpack.c.0.s8 %v2464
      %v2466 = vlaneseq
      %v2467 = vshrl.u32 %v2466, 7
      %v2468 = vsub.s32 %v2465, %v2467
      %v2469 = vrot.slane %v1950, %v2468
      %v2471 = vunpack.c.l.s4 1983009808
      %v2472 = vunpack.c.0.s8 %v2471
      %v2473 = vlaneseq
      %v2474 = vshrl.u32 %v2473, 7
      %v2475 = vsub.s32 %v2472, %v2474
      %v2476 = vrot.slane %v2462, %v2475
      %v2477 = vcombine.high %v2469, %v2469
      %v2478 = vcombine.high %v2476, %v2476
      %v2479 = vcombine.high %v1951, %v1951
      %v2481 = vunpack.c.l.s4 1983009808
      %v2482 = vunpack.c.0.s8 %v2481
      %v2483 = vlaneseq
      %v2484 = vshrl.u32 %v2483, 7
      %v2485 = vsub.s32 %v2482, %v2484
      %v2486 = vrot.slane %v1951, %v2485
      %v2488 = vunpack.c.l.s4 1983009808
      %v2489 = vunpack.c.0.s8 %v2488
      %v2490 = vlaneseq
      %v2491 = vshrl.u32 %v2490, 7
      %v2492 = vsub.s32 %v2489, %v2491
      %v2493 = vrot.slane %v2479, %v2492
      %v2494 = vcombine.high %v2486, %v2486
      %v2495 = vcombine.high %v2493, %v2493
      %v2496 = vcombine.high %v1952, %v1952
      %v2498 = vunpack.c.l.s4 1983009808
      %v2499 = vunpack.c.0.s8 %v2498
      %v2500 = vlaneseq
      %v2501 = vshrl.u32 %v2500, 7
      %v2502 = vsub.s32 %v2499, %v2501
      %v2503 = vrot.slane %v1952, %v2502
      %v2505 = vunpack.c.l.s4 1983009808
      %v2506 = vunpack.c.0.s8 %v2505
      %v2507 = vlaneseq
      %v2508 = vshrl.u32 %v2507, 7
      %v2509 = vsub.s32 %v2506, %v2508
      %v2510 = vrot.slane %v2496, %v2509
      %v2511 = vcombine.high %v2503, %v2503
      %v2512 = vcombine.high %v2510, %v2510
      %v2513 = vcombine.high %v1953, %v1953
      %v2515 = vunpack.c.l.s4 1983009808
      %v2516 = vunpack.c.0.s8 %v2515
      %v2517 = vlaneseq
      %v2518 = vshrl.u32 %v2517, 7
      %v2519 = vsub.s32 %v2516, %v2518
      %v2520 = vrot.slane %v1953, %v2519
      %v2522 = vunpack.c.l.s4 1983009808
      %v2523 = vunpack.c.0.s8 %v2522
      %v2524 = vlaneseq
      %v2525 = vshrl.u32 %v2524, 7
      %v2526 = vsub.s32 %v2523, %v2525
      %v2527 = vrot.slane %v2513, %v2526
      %v2528 = vcombine.high %v2520, %v2520
      %v2529 = vcombine.high %v2527, %v2527
      %vm2658 = vcmask 123904
      %v2659 = vsel %vm2658, %v1993, -inf
      %v2660 = vrot.slane %v2659, 4
      %v2661 = vmax.f32 %v2659, %v2660
      %v2662 = vrot.slane %v2661, 2
      %v2663 = vmax.f32 %v2661, %v2662
      %v2664 = vrot.slane %v2663, 1
      %v2665 = vmax.f32 %v2663, %v2664
      %v2666 = vsel %vm2658, %v2001, -inf
      %v2667 = vrot.slane %v2666, 4
      %v2668 = vmax.f32 %v2666, %v2667
      %v2669 = vrot.slane %v2668, 2
      %v2670 = vmax.f32 %v2668, %v2669
      %v2671 = vrot.slane %v2670, 1
      %v2672 = vmax.f32 %v2670, %v2671
      %v2673 = vsel %vm2658, %v2000, -inf
      %v2674 = vrot.slane %v2673, 4
      %v2675 = vmax.f32 %v2673, %v2674
      %v2676 = vrot.slane %v2675, 2
      %v2677 = vmax.f32 %v2675, %v2676
      %v2678 = vrot.slane %v2677, 1
      %v2679 = vmax.f32 %v2677, %v2678
      %v2680 = vsel %vm2658, %v2002, -inf
      %v2681 = vrot.slane %v2680, 4
      %v2682 = vmax.f32 %v2680, %v2681
      %v2683 = vrot.slane %v2682, 2
      %v2684 = vmax.f32 %v2682, %v2683
      %v2685 = vrot.slane %v2684, 1
      %v2686 = vmax.f32 %v2684, %v2685
      %v2687 = vsel %vm2658, %v2010, -inf
      %v2688 = vrot.slane %v2687, 4
      %v2689 = vmax.f32 %v2687, %v2688
      %v2690 = vrot.slane %v2689, 2
      %v2691 = vmax.f32 %v2689, %v2690
      %v2692 = vrot.slane %v2691, 1
      %v2693 = vmax.f32 %v2691, %v2692
      %v2694 = vsel %vm2658, %v2018, -inf
      %v2695 = vrot.slane %v2694, 4
      %v2696 = vmax.f32 %v2694, %v2695
      %v2697 = vrot.slane %v2696, 2
      %v2698 = vmax.f32 %v2696, %v2697
      %v2699 = vrot.slane %v2698, 1
      %v2700 = vmax.f32 %v2698, %v2699
      %v2701 = vsel %vm2658, %v2017, -inf
      %v2702 = vrot.slane %v2701, 4
      %v2703 = vmax.f32 %v2701, %v2702
      %v2704 = vrot.slane %v2703, 2
      %v2705 = vmax.f32 %v2703, %v2704
      %v2706 = vrot.slane %v2705, 1
      %v2707 = vmax.f32 %v2705, %v2706
      %v2708 = vsel %vm2658, %v2019, -inf
      %v2709 = vrot.slane %v2708, 4
      %v2710 = vmax.f32 %v2708, %v2709
      %v2711 = vrot.slane %v2710, 2
      %v2712 = vmax.f32 %v2710, %v2711
      %v2713 = vrot.slane %v2712, 1
      %v2714 = vmax.f32 %v2712, %v2713
      %v2715 = vsel %vm2658, %v2027, -inf
      %v2716 = vrot.slane %v2715, 4
      %v2717 = vmax.f32 %v2715, %v2716
      %v2718 = vrot.slane %v2717, 2
      %v2719 = vmax.f32 %v2717, %v2718
      %v2720 = vrot.slane %v2719, 1
      %v2721 = vmax.f32 %v2719, %v2720
      %v2722 = vsel %vm2658, %v2035, -inf
      %v2723 = vrot.slane %v2722, 4
      %v2724 = vmax.f32 %v2722, %v2723
      %v2725 = vrot.slane %v2724, 2
      %v2726 = vmax.f32 %v2724, %v2725
      %v2727 = vrot.slane %v2726, 1
      %v2728 = vmax.f32 %v2726, %v2727
      %v2729 = vsel %vm2658, %v2034, -inf
      %v2730 = vrot.slane %v2729, 4
      %v2731 = vmax.f32 %v2729, %v2730
      %v2732 = vrot.slane %v2731, 2
      %v2733 = vmax.f32 %v2731, %v2732
      %v2734 = vrot.slane %v2733, 1
      %v2735 = vmax.f32 %v2733, %v2734
      %v2736 = vsel %vm2658, %v2036, -inf
      %v2737 = vrot.slane %v2736, 4
      %v2738 = vmax.f32 %v2736, %v2737
      %v2739 = vrot.slane %v2738, 2
      %v2740 = vmax.f32 %v2738, %v2739
      %v2741 = vrot.slane %v2740, 1
      %v2742 = vmax.f32 %v2740, %v2741
      %v2743 = vsel %vm2658, %v2044, -inf
      %v2744 = vrot.slane %v2743, 4
      %v2745 = vmax.f32 %v2743, %v2744
      %v2746 = vrot.slane %v2745, 2
      %v2747 = vmax.f32 %v2745, %v2746
      %v2748 = vrot.slane %v2747, 1
      %v2749 = vmax.f32 %v2747, %v2748
      %v2750 = vsel %vm2658, %v2052, -inf
      %v2751 = vrot.slane %v2750, 4
      %v2752 = vmax.f32 %v2750, %v2751
      %v2753 = vrot.slane %v2752, 2
      %v2754 = vmax.f32 %v2752, %v2753
      %v2755 = vrot.slane %v2754, 1
      %v2756 = vmax.f32 %v2754, %v2755
      %v2757 = vsel %vm2658, %v2051, -inf
      %v2758 = vrot.slane %v2757, 4
      %v2759 = vmax.f32 %v2757, %v2758
      %v2760 = vrot.slane %v2759, 2
      %v2761 = vmax.f32 %v2759, %v2760
      %v2762 = vrot.slane %v2761, 1
      %v2763 = vmax.f32 %v2761, %v2762
      %v2764 = vsel %vm2658, %v2053, -inf
      %v2765 = vrot.slane %v2764, 4
      %v2766 = vmax.f32 %v2764, %v2765
      %v2767 = vrot.slane %v2766, 2
      %v2768 = vmax.f32 %v2766, %v2767
      %v2769 = vrot.slane %v2768, 1
      %v2770 = vmax.f32 %v2768, %v2769
      %v2771 = vsel %vm2658, %v2061, -inf
      %v2772 = vrot.slane %v2771, 4
      %v2773 = vmax.f32 %v2771, %v2772
      %v2774 = vrot.slane %v2773, 2
      %v2775 = vmax.f32 %v2773, %v2774
      %v2776 = vrot.slane %v2775, 1
      %v2777 = vmax.f32 %v2775, %v2776
      %v2778 = vsel %vm2658, %v2069, -inf
      %v2779 = vrot.slane %v2778, 4
      %v2780 = vmax.f32 %v2778, %v2779
      %v2781 = vrot.slane %v2780, 2
      %v2782 = vmax.f32 %v2780, %v2781
      %v2783 = vrot.slane %v2782, 1
      %v2784 = vmax.f32 %v2782, %v2783
      %v2785 = vsel %vm2658, %v2068, -inf
      %v2786 = vrot.slane %v2785, 4
      %v2787 = vmax.f32 %v2785, %v2786
      %v2788 = vrot.slane %v2787, 2
      %v2789 = vmax.f32 %v2787, %v2788
      %v2790 = vrot.slane %v2789, 1
      %v2791 = vmax.f32 %v2789, %v2790
      %v2792 = vsel %vm2658, %v2070, -inf
      %v2793 = vrot.slane %v2792, 4
      %v2794 = vmax.f32 %v2792, %v2793
      %v2795 = vrot.slane %v2794, 2
      %v2796 = vmax.f32 %v2794, %v2795
      %v2797 = vrot.slane %v2796, 1
      %v2798 = vmax.f32 %v2796, %v2797
      %v2799 = vsel %vm2658, %v2078, -inf
      %v2800 = vrot.slane %v2799, 4
      %v2801 = vmax.f32 %v2799, %v2800
      %v2802 = vrot.slane %v2801, 2
      %v2803 = vmax.f32 %v2801, %v2802
      %v2804 = vrot.slane %v2803, 1
      %v2805 = vmax.f32 %v2803, %v2804
      %v2806 = vsel %vm2658, %v2086, -inf
      %v2807 = vrot.slane %v2806, 4
      %v2808 = vmax.f32 %v2806, %v2807
      %v2809 = vrot.slane %v2808, 2
      %v2810 = vmax.f32 %v2808, %v2809
      %v2811 = vrot.slane %v2810, 1
      %v2812 = vmax.f32 %v2810, %v2811
      %v2813 = vsel %vm2658, %v2085, -inf
      %v2814 = vrot.slane %v2813, 4
      %v2815 = vmax.f32 %v2813, %v2814
      %v2816 = vrot.slane %v2815, 2
      %v2817 = vmax.f32 %v2815, %v2816
      %v2818 = vrot.slane %v2817, 1
      %v2819 = vmax.f32 %v2817, %v2818
      %v2820 = vsel %vm2658, %v2087, -inf
      %v2821 = vrot.slane %v2820, 4
      %v2822 = vmax.f32 %v2820, %v2821
      %v2823 = vrot.slane %v2822, 2
      %v2824 = vmax.f32 %v2822, %v2823
      %v2825 = vrot.slane %v2824, 1
      %v2826 = vmax.f32 %v2824, %v2825
      %v2827 = vsel %vm2658, %v2095, -inf
      %v2828 = vrot.slane %v2827, 4
      %v2829 = vmax.f32 %v2827, %v2828
      %v2830 = vrot.slane %v2829, 2
      %v2831 = vmax.f32 %v2829, %v2830
      %v2832 = vrot.slane %v2831, 1
      %v2833 = vmax.f32 %v2831, %v2832
      %v2834 = vsel %vm2658, %v2103, -inf
      %v2835 = vrot.slane %v2834, 4
      %v2836 = vmax.f32 %v2834, %v2835
      %v2837 = vrot.slane %v2836, 2
      %v2838 = vmax.f32 %v2836, %v2837
      %v2839 = vrot.slane %v2838, 1
      %v2840 = vmax.f32 %v2838, %v2839
      %v2841 = vsel %vm2658, %v2102, -inf
      %v2842 = vrot.slane %v2841, 4
      %v2843 = vmax.f32 %v2841, %v2842
      %v2844 = vrot.slane %v2843, 2
      %v2845 = vmax.f32 %v2843, %v2844
      %v2846 = vrot.slane %v2845, 1
      %v2847 = vmax.f32 %v2845, %v2846
      %v2848 = vsel %vm2658, %v2104, -inf
      %v2849 = vrot.slane %v2848, 4
      %v2850 = vmax.f32 %v2848, %v2849
      %v2851 = vrot.slane %v2850, 2
      %v2852 = vmax.f32 %v2850, %v2851
      %v2853 = vrot.slane %v2852, 1
      %v2854 = vmax.f32 %v2852, %v2853
      %v2855 = vsel %vm2658, %v2112, -inf
      %v2856 = vrot.slane %v2855, 4
      %v2857 = vmax.f32 %v2855, %v2856
      %v2858 = vrot.slane %v2857, 2
      %v2859 = vmax.f32 %v2857, %v2858
      %v2860 = vrot.slane %v2859, 1
      %v2861 = vmax.f32 %v2859, %v2860
      %v2862 = vsel %vm2658, %v2120, -inf
      %v2863 = vrot.slane %v2862, 4
      %v2864 = vmax.f32 %v2862, %v2863
      %v2865 = vrot.slane %v2864, 2
      %v2866 = vmax.f32 %v2864, %v2865
      %v2867 = vrot.slane %v2866, 1
      %v2868 = vmax.f32 %v2866, %v2867
      %v2869 = vsel %vm2658, %v2119, -inf
      %v2870 = vrot.slane %v2869, 4
      %v2871 = vmax.f32 %v2869, %v2870
      %v2872 = vrot.slane %v2871, 2
      %v2873 = vmax.f32 %v2871, %v2872
      %v2874 = vrot.slane %v2873, 1
      %v2875 = vmax.f32 %v2873, %v2874
      %v2876 = vsel %vm2658, %v2121, -inf
      %v2877 = vrot.slane %v2876, 4
      %v2878 = vmax.f32 %v2876, %v2877
      %v2879 = vrot.slane %v2878, 2
      %v2880 = vmax.f32 %v2878, %v2879
      %v2881 = vrot.slane %v2880, 1
      %v2882 = vmax.f32 %v2880, %v2881
      %v2883 = vsel %vm2658, %v2129, -inf
      %v2884 = vrot.slane %v2883, 4
      %v2885 = vmax.f32 %v2883, %v2884
      %v2886 = vrot.slane %v2885, 2
      %v2887 = vmax.f32 %v2885, %v2886
      %v2888 = vrot.slane %v2887, 1
      %v2889 = vmax.f32 %v2887, %v2888
      %v2890 = vsel %vm2658, %v2137, -inf
      %v2891 = vrot.slane %v2890, 4
      %v2892 = vmax.f32 %v2890, %v2891
      %v2893 = vrot.slane %v2892, 2
      %v2894 = vmax.f32 %v2892, %v2893
      %v2895 = vrot.slane %v2894, 1
      %v2896 = vmax.f32 %v2894, %v2895
      %v2897 = vsel %vm2658, %v2136, -inf
      %v2898 = vrot.slane %v2897, 4
      %v2899 = vmax.f32 %v2897, %v2898
      %v2900 = vrot.slane %v2899, 2
      %v2901 = vmax.f32 %v2899, %v2900
      %v2902 = vrot.slane %v2901, 1
      %v2903 = vmax.f32 %v2901, %v2902
      %v2904 = vsel %vm2658, %v2138, -inf
      %v2905 = vrot.slane %v2904, 4
      %v2906 = vmax.f32 %v2904, %v2905
      %v2907 = vrot.slane %v2906, 2
      %v2908 = vmax.f32 %v2906, %v2907
      %v2909 = vrot.slane %v2908, 1
      %v2910 = vmax.f32 %v2908, %v2909
      %v2911 = vsel %vm2658, %v2146, -inf
      %v2912 = vrot.slane %v2911, 4
      %v2913 = vmax.f32 %v2911, %v2912
      %v2914 = vrot.slane %v2913, 2
      %v2915 = vmax.f32 %v2913, %v2914
      %v2916 = vrot.slane %v2915, 1
      %v2917 = vmax.f32 %v2915, %v2916
      %v2918 = vsel %vm2658, %v2154, -inf
      %v2919 = vrot.slane %v2918, 4
      %v2920 = vmax.f32 %v2918, %v2919
      %v2921 = vrot.slane %v2920, 2
      %v2922 = vmax.f32 %v2920, %v2921
      %v2923 = vrot.slane %v2922, 1
      %v2924 = vmax.f32 %v2922, %v2923
      %v2925 = vsel %vm2658, %v2153, -inf
      %v2926 = vrot.slane %v2925, 4
      %v2927 = vmax.f32 %v2925, %v2926
      %v2928 = vrot.slane %v2927, 2
      %v2929 = vmax.f32 %v2927, %v2928
      %v2930 = vrot.slane %v2929, 1
      %v2931 = vmax.f32 %v2929, %v2930
      %v2932 = vsel %vm2658, %v2155, -inf
      %v2933 = vrot.slane %v2932, 4
      %v2934 = vmax.f32 %v2932, %v2933
      %v2935 = vrot.slane %v2934, 2
      %v2936 = vmax.f32 %v2934, %v2935
      %v2937 = vrot.slane %v2936, 1
      %v2938 = vmax.f32 %v2936, %v2937
      %v2939 = vsel %vm2658, %v2163, -inf
      %v2940 = vrot.slane %v2939, 4
      %v2941 = vmax.f32 %v2939, %v2940
      %v2942 = vrot.slane %v2941, 2
      %v2943 = vmax.f32 %v2941, %v2942
      %v2944 = vrot.slane %v2943, 1
      %v2945 = vmax.f32 %v2943, %v2944
      %v2946 = vsel %vm2658, %v2171, -inf
      %v2947 = vrot.slane %v2946, 4
      %v2948 = vmax.f32 %v2946, %v2947
      %v2949 = vrot.slane %v2948, 2
      %v2950 = vmax.f32 %v2948, %v2949
      %v2951 = vrot.slane %v2950, 1
      %v2952 = vmax.f32 %v2950, %v2951
      %v2953 = vsel %vm2658, %v2170, -inf
      %v2954 = vrot.slane %v2953, 4
      %v2955 = vmax.f32 %v2953, %v2954
      %v2956 = vrot.slane %v2955, 2
      %v2957 = vmax.f32 %v2955, %v2956
      %v2958 = vrot.slane %v2957, 1
      %v2959 = vmax.f32 %v2957, %v2958
      %v2960 = vsel %vm2658, %v2172, -inf
      %v2961 = vrot.slane %v2960, 4
      %v2962 = vmax.f32 %v2960, %v2961
      %v2963 = vrot.slane %v2962, 2
      %v2964 = vmax.f32 %v2962, %v2963
      %v2965 = vrot.slane %v2964, 1
      %v2966 = vmax.f32 %v2964, %v2965
      %v2967 = vsel %vm2658, %v2180, -inf
      %v2968 = vrot.slane %v2967, 4
      %v2969 = vmax.f32 %v2967, %v2968
      %v2970 = vrot.slane %v2969, 2
      %v2971 = vmax.f32 %v2969, %v2970
      %v2972 = vrot.slane %v2971, 1
      %v2973 = vmax.f32 %v2971, %v2972
      %v2974 = vsel %vm2658, %v2188, -inf
      %v2975 = vrot.slane %v2974, 4
      %v2976 = vmax.f32 %v2974, %v2975
      %v2977 = vrot.slane %v2976, 2
      %v2978 = vmax.f32 %v2976, %v2977
      %v2979 = vrot.slane %v2978, 1
      %v2980 = vmax.f32 %v2978, %v2979
      %v2981 = vsel %vm2658, %v2187, -inf
      %v2982 = vrot.slane %v2981, 4
      %v2983 = vmax.f32 %v2981, %v2982
      %v2984 = vrot.slane %v2983, 2
      %v2985 = vmax.f32 %v2983, %v2984
      %v2986 = vrot.slane %v2985, 1
      %v2987 = vmax.f32 %v2985, %v2986
      %v2988 = vsel %vm2658, %v2189, -inf
      %v2989 = vrot.slane %v2988, 4
      %v2990 = vmax.f32 %v2988, %v2989
      %v2991 = vrot.slane %v2990, 2
      %v2992 = vmax.f32 %v2990, %v2991
      %v2993 = vrot.slane %v2992, 1
      %v2994 = vmax.f32 %v2992, %v2993
      %v2995 = vsel %vm2658, %v2197, -inf
      %v2996 = vrot.slane %v2995, 4
      %v2997 = vmax.f32 %v2995, %v2996
      %v2998 = vrot.slane %v2997, 2
      %v2999 = vmax.f32 %v2997, %v2998
      %v3000 = vrot.slane %v2999, 1
      %v3001 = vmax.f32 %v2999, %v3000
      %v3002 = vsel %vm2658, %v2205, -inf
      %v3003 = vrot.slane %v3002, 4
      %v3004 = vmax.f32 %v3002, %v3003
      %v3005 = vrot.slane %v3004, 2
      %v3006 = vmax.f32 %v3004, %v3005
      %v3007 = vrot.slane %v3006, 1
      %v3008 = vmax.f32 %v3006, %v3007
      %v3009 = vsel %vm2658, %v2204, -inf
      %v3010 = vrot.slane %v3009, 4
      %v3011 = vmax.f32 %v3009, %v3010
      %v3012 = vrot.slane %v3011, 2
      %v3013 = vmax.f32 %v3011, %v3012
      %v3014 = vrot.slane %v3013, 1
      %v3015 = vmax.f32 %v3013, %v3014
      %v3016 = vsel %vm2658, %v2206, -inf
      %v3017 = vrot.slane %v3016, 4
      %v3018 = vmax.f32 %v3016, %v3017
      %v3019 = vrot.slane %v3018, 2
      %v3020 = vmax.f32 %v3018, %v3019
      %v3021 = vrot.slane %v3020, 1
      %v3022 = vmax.f32 %v3020, %v3021
      %v3023 = vsel %vm2658, %v2214, -inf
      %v3024 = vrot.slane %v3023, 4
      %v3025 = vmax.f32 %v3023, %v3024
      %v3026 = vrot.slane %v3025, 2
      %v3027 = vmax.f32 %v3025, %v3026
      %v3028 = vrot.slane %v3027, 1
      %v3029 = vmax.f32 %v3027, %v3028
      %v3030 = vsel %vm2658, %v2222, -inf
      %v3031 = vrot.slane %v3030, 4
      %v3032 = vmax.f32 %v3030, %v3031
      %v3033 = vrot.slane %v3032, 2
      %v3034 = vmax.f32 %v3032, %v3033
      %v3035 = vrot.slane %v3034, 1
      %v3036 = vmax.f32 %v3034, %v3035
      %v3037 = vsel %vm2658, %v2221, -inf
      %v3038 = vrot.slane %v3037, 4
      %v3039 = vmax.f32 %v3037, %v3038
      %v3040 = vrot.slane %v3039, 2
      %v3041 = vmax.f32 %v3039, %v3040
      %v3042 = vrot.slane %v3041, 1
      %v3043 = vmax.f32 %v3041, %v3042
      %v3044 = vsel %vm2658, %v2223, -inf
      %v3045 = vrot.slane %v3044, 4
      %v3046 = vmax.f32 %v3044, %v3045
      %v3047 = vrot.slane %v3046, 2
      %v3048 = vmax.f32 %v3046, %v3047
      %v3049 = vrot.slane %v3048, 1
      %v3050 = vmax.f32 %v3048, %v3049
      %v3051 = vsel %vm2658, %v2231, -inf
      %v3052 = vrot.slane %v3051, 4
      %v3053 = vmax.f32 %v3051, %v3052
      %v3054 = vrot.slane %v3053, 2
      %v3055 = vmax.f32 %v3053, %v3054
      %v3056 = vrot.slane %v3055, 1
      %v3057 = vmax.f32 %v3055, %v3056
      %v3058 = vsel %vm2658, %v2239, -inf
      %v3059 = vrot.slane %v3058, 4
      %v3060 = vmax.f32 %v3058, %v3059
      %v3061 = vrot.slane %v3060, 2
      %v3062 = vmax.f32 %v3060, %v3061
      %v3063 = vrot.slane %v3062, 1
      %v3064 = vmax.f32 %v3062, %v3063
      %v3065 = vsel %vm2658, %v2238, -inf
      %v3066 = vrot.slane %v3065, 4
      %v3067 = vmax.f32 %v3065, %v3066
      %v3068 = vrot.slane %v3067, 2
      %v3069 = vmax.f32 %v3067, %v3068
      %v3070 = vrot.slane %v3069, 1
      %v3071 = vmax.f32 %v3069, %v3070
      %v3072 = vsel %vm2658, %v2240, -inf
      %v3073 = vrot.slane %v3072, 4
      %v3074 = vmax.f32 %v3072, %v3073
      %v3075 = vrot.slane %v3074, 2
      %v3076 = vmax.f32 %v3074, %v3075
      %v3077 = vrot.slane %v3076, 1
      %v3078 = vmax.f32 %v3076, %v3077
      %v3079 = vsel %vm2658, %v2248, -inf
      %v3080 = vrot.slane %v3079, 4
      %v3081 = vmax.f32 %v3079, %v3080
      %v3082 = vrot.slane %v3081, 2
      %v3083 = vmax.f32 %v3081, %v3082
      %v3084 = vrot.slane %v3083, 1
      %v3085 = vmax.f32 %v3083, %v3084
      %v3086 = vsel %vm2658, %v2256, -inf
      %v3087 = vrot.slane %v3086, 4
      %v3088 = vmax.f32 %v3086, %v3087
      %v3089 = vrot.slane %v3088, 2
      %v3090 = vmax.f32 %v3088, %v3089
      %v3091 = vrot.slane %v3090, 1
      %v3092 = vmax.f32 %v3090, %v3091
      %v3093 = vsel %vm2658, %v2255, -inf
      %v3094 = vrot.slane %v3093, 4
      %v3095 = vmax.f32 %v3093, %v3094
      %v3096 = vrot.slane %v3095, 2
      %v3097 = vmax.f32 %v3095, %v3096
      %v3098 = vrot.slane %v3097, 1
      %v3099 = vmax.f32 %v3097, %v3098
      %v3100 = vsel %vm2658, %v2257, -inf
      %v3101 = vrot.slane %v3100, 4
      %v3102 = vmax.f32 %v3100, %v3101
      %v3103 = vrot.slane %v3102, 2
      %v3104 = vmax.f32 %v3102, %v3103
      %v3105 = vrot.slane %v3104, 1
      %v3106 = vmax.f32 %v3104, %v3105
      %v3107 = vsel %vm2658, %v2265, -inf
      %v3108 = vrot.slane %v3107, 4
      %v3109 = vmax.f32 %v3107, %v3108
      %v3110 = vrot.slane %v3109, 2
      %v3111 = vmax.f32 %v3109, %v3110
      %v3112 = vrot.slane %v3111, 1
      %v3113 = vmax.f32 %v3111, %v3112
      %v3114 = vsel %vm2658, %v2273, -inf
      %v3115 = vrot.slane %v3114, 4
      %v3116 = vmax.f32 %v3114, %v3115
      %v3117 = vrot.slane %v3116, 2
      %v3118 = vmax.f32 %v3116, %v3117
      %v3119 = vrot.slane %v3118, 1
      %v3120 = vmax.f32 %v3118, %v3119
      %v3121 = vsel %vm2658, %v2272, -inf
      %v3122 = vrot.slane %v3121, 4
      %v3123 = vmax.f32 %v3121, %v3122
      %v3124 = vrot.slane %v3123, 2
      %v3125 = vmax.f32 %v3123, %v3124
      %v3126 = vrot.slane %v3125, 1
      %v3127 = vmax.f32 %v3125, %v3126
      %v3128 = vsel %vm2658, %v2274, -inf
      %v3129 = vrot.slane %v3128, 4
      %v3130 = vmax.f32 %v3128, %v3129
      %v3131 = vrot.slane %v3130, 2
      %v3132 = vmax.f32 %v3130, %v3131
      %v3133 = vrot.slane %v3132, 1
      %v3134 = vmax.f32 %v3132, %v3133
      %v3135 = vsel %vm2658, %v2282, -inf
      %v3136 = vrot.slane %v3135, 4
      %v3137 = vmax.f32 %v3135, %v3136
      %v3138 = vrot.slane %v3137, 2
      %v3139 = vmax.f32 %v3137, %v3138
      %v3140 = vrot.slane %v3139, 1
      %v3141 = vmax.f32 %v3139, %v3140
      %v3142 = vsel %vm2658, %v2290, -inf
      %v3143 = vrot.slane %v3142, 4
      %v3144 = vmax.f32 %v3142, %v3143
      %v3145 = vrot.slane %v3144, 2
      %v3146 = vmax.f32 %v3144, %v3145
      %v3147 = vrot.slane %v3146, 1
      %v3148 = vmax.f32 %v3146, %v3147
      %v3149 = vsel %vm2658, %v2289, -inf
      %v3150 = vrot.slane %v3149, 4
      %v3151 = vmax.f32 %v3149, %v3150
      %v3152 = vrot.slane %v3151, 2
      %v3153 = vmax.f32 %v3151, %v3152
      %v3154 = vrot.slane %v3153, 1
      %v3155 = vmax.f32 %v3153, %v3154
      %v3156 = vsel %vm2658, %v2291, -inf
      %v3157 = vrot.slane %v3156, 4
      %v3158 = vmax.f32 %v3156, %v3157
      %v3159 = vrot.slane %v3158, 2
      %v3160 = vmax.f32 %v3158, %v3159
      %v3161 = vrot.slane %v3160, 1
      %v3162 = vmax.f32 %v3160, %v3161
      %v3163 = vsel %vm2658, %v2299, -inf
      %v3164 = vrot.slane %v3163, 4
      %v3165 = vmax.f32 %v3163, %v3164
      %v3166 = vrot.slane %v3165, 2
      %v3167 = vmax.f32 %v3165, %v3166
      %v3168 = vrot.slane %v3167, 1
      %v3169 = vmax.f32 %v3167, %v3168
      %v3170 = vsel %vm2658, %v2307, -inf
      %v3171 = vrot.slane %v3170, 4
      %v3172 = vmax.f32 %v3170, %v3171
      %v3173 = vrot.slane %v3172, 2
      %v3174 = vmax.f32 %v3172, %v3173
      %v3175 = vrot.slane %v3174, 1
      %v3176 = vmax.f32 %v3174, %v3175
      %v3177 = vsel %vm2658, %v2306, -inf
      %v3178 = vrot.slane %v3177, 4
      %v3179 = vmax.f32 %v3177, %v3178
      %v3180 = vrot.slane %v3179, 2
      %v3181 = vmax.f32 %v3179, %v3180
      %v3182 = vrot.slane %v3181, 1
      %v3183 = vmax.f32 %v3181, %v3182
      %v3184 = vsel %vm2658, %v2308, -inf
      %v3185 = vrot.slane %v3184, 4
      %v3186 = vmax.f32 %v3184, %v3185
      %v3187 = vrot.slane %v3186, 2
      %v3188 = vmax.f32 %v3186, %v3187
      %v3189 = vrot.slane %v3188, 1
      %v3190 = vmax.f32 %v3188, %v3189
      %v3191 = vsel %vm2658, %v2316, -inf
      %v3192 = vrot.slane %v3191, 4
      %v3193 = vmax.f32 %v3191, %v3192
      %v3194 = vrot.slane %v3193, 2
      %v3195 = vmax.f32 %v3193, %v3194
      %v3196 = vrot.slane %v3195, 1
      %v3197 = vmax.f32 %v3195, %v3196
      %v3198 = vsel %vm2658, %v2324, -inf
      %v3199 = vrot.slane %v3198, 4
      %v3200 = vmax.f32 %v3198, %v3199
      %v3201 = vrot.slane %v3200, 2
      %v3202 = vmax.f32 %v3200, %v3201
      %v3203 = vrot.slane %v3202, 1
      %v3204 = vmax.f32 %v3202, %v3203
      %v3205 = vsel %vm2658, %v2323, -inf
      %v3206 = vrot.slane %v3205, 4
      %v3207 = vmax.f32 %v3205, %v3206
      %v3208 = vrot.slane %v3207, 2
      %v3209 = vmax.f32 %v3207, %v3208
      %v3210 = vrot.slane %v3209, 1
      %v3211 = vmax.f32 %v3209, %v3210
      %v3212 = vsel %vm2658, %v2325, -inf
      %v3213 = vrot.slane %v3212, 4
      %v3214 = vmax.f32 %v3212, %v3213
      %v3215 = vrot.slane %v3214, 2
      %v3216 = vmax.f32 %v3214, %v3215
      %v3217 = vrot.slane %v3216, 1
      %v3218 = vmax.f32 %v3216, %v3217
      %v3219 = vsel %vm2658, %v2333, -inf
      %v3220 = vrot.slane %v3219, 4
      %v3221 = vmax.f32 %v3219, %v3220
      %v3222 = vrot.slane %v3221, 2
      %v3223 = vmax.f32 %v3221, %v3222
      %v3224 = vrot.slane %v3223, 1
      %v3225 = vmax.f32 %v3223, %v3224
      %v3226 = vsel %vm2658, %v2341, -inf
      %v3227 = vrot.slane %v3226, 4
      %v3228 = vmax.f32 %v3226, %v3227
      %v3229 = vrot.slane %v3228, 2
      %v3230 = vmax.f32 %v3228, %v3229
      %v3231 = vrot.slane %v3230, 1
      %v3232 = vmax.f32 %v3230, %v3231
      %v3233 = vsel %vm2658, %v2340, -inf
      %v3234 = vrot.slane %v3233, 4
      %v3235 = vmax.f32 %v3233, %v3234
      %v3236 = vrot.slane %v3235, 2
      %v3237 = vmax.f32 %v3235, %v3236
      %v3238 = vrot.slane %v3237, 1
      %v3239 = vmax.f32 %v3237, %v3238
      %v3240 = vsel %vm2658, %v2342, -inf
      %v3241 = vrot.slane %v3240, 4
      %v3242 = vmax.f32 %v3240, %v3241
      %v3243 = vrot.slane %v3242, 2
      %v3244 = vmax.f32 %v3242, %v3243
      %v3245 = vrot.slane %v3244, 1
      %v3246 = vmax.f32 %v3244, %v3245
      %v3247 = vsel %vm2658, %v2350, -inf
      %v3248 = vrot.slane %v3247, 4
      %v3249 = vmax.f32 %v3247, %v3248
      %v3250 = vrot.slane %v3249, 2
      %v3251 = vmax.f32 %v3249, %v3250
      %v3252 = vrot.slane %v3251, 1
      %v3253 = vmax.f32 %v3251, %v3252
      %v3254 = vsel %vm2658, %v2358, -inf
      %v3255 = vrot.slane %v3254, 4
      %v3256 = vmax.f32 %v3254, %v3255
      %v3257 = vrot.slane %v3256, 2
      %v3258 = vmax.f32 %v3256, %v3257
      %v3259 = vrot.slane %v3258, 1
      %v3260 = vmax.f32 %v3258, %v3259
      %v3261 = vsel %vm2658, %v2357, -inf
      %v3262 = vrot.slane %v3261, 4
      %v3263 = vmax.f32 %v3261, %v3262
      %v3264 = vrot.slane %v3263, 2
      %v3265 = vmax.f32 %v3263, %v3264
      %v3266 = vrot.slane %v3265, 1
      %v3267 = vmax.f32 %v3265, %v3266
      %v3268 = vsel %vm2658, %v2359, -inf
      %v3269 = vrot.slane %v3268, 4
      %v3270 = vmax.f32 %v3268, %v3269
      %v3271 = vrot.slane %v3270, 2
      %v3272 = vmax.f32 %v3270, %v3271
      %v3273 = vrot.slane %v3272, 1
      %v3274 = vmax.f32 %v3272, %v3273
      %v3275 = vsel %vm2658, %v2367, -inf
      %v3276 = vrot.slane %v3275, 4
      %v3277 = vmax.f32 %v3275, %v3276
      %v3278 = vrot.slane %v3277, 2
      %v3279 = vmax.f32 %v3277, %v3278
      %v3280 = vrot.slane %v3279, 1
      %v3281 = vmax.f32 %v3279, %v3280
      %v3282 = vsel %vm2658, %v2375, -inf
      %v3283 = vrot.slane %v3282, 4
      %v3284 = vmax.f32 %v3282, %v3283
      %v3285 = vrot.slane %v3284, 2
      %v3286 = vmax.f32 %v3284, %v3285
      %v3287 = vrot.slane %v3286, 1
      %v3288 = vmax.f32 %v3286, %v3287
      %v3289 = vsel %vm2658, %v2374, -inf
      %v3290 = vrot.slane %v3289, 4
      %v3291 = vmax.f32 %v3289, %v3290
      %v3292 = vrot.slane %v3291, 2
      %v3293 = vmax.f32 %v3291, %v3292
      %v3294 = vrot.slane %v3293, 1
      %v3295 = vmax.f32 %v3293, %v3294
      %v3296 = vsel %vm2658, %v2376, -inf
      %v3297 = vrot.slane %v3296, 4
      %v3298 = vmax.f32 %v3296, %v3297
      %v3299 = vrot.slane %v3298, 2
      %v3300 = vmax.f32 %v3298, %v3299
      %v3301 = vrot.slane %v3300, 1
      %v3302 = vmax.f32 %v3300, %v3301
      %v3303 = vsel %vm2658, %v2384, -inf
      %v3304 = vrot.slane %v3303, 4
      %v3305 = vmax.f32 %v3303, %v3304
      %v3306 = vrot.slane %v3305, 2
      %v3307 = vmax.f32 %v3305, %v3306
      %v3308 = vrot.slane %v3307, 1
      %v3309 = vmax.f32 %v3307, %v3308
      %v3310 = vsel %vm2658, %v2392, -inf
      %v3311 = vrot.slane %v3310, 4
      %v3312 = vmax.f32 %v3310, %v3311
      %v3313 = vrot.slane %v3312, 2
      %v3314 = vmax.f32 %v3312, %v3313
      %v3315 = vrot.slane %v3314, 1
      %v3316 = vmax.f32 %v3314, %v3315
      %v3317 = vsel %vm2658, %v2391, -inf
      %v3318 = vrot.slane %v3317, 4
      %v3319 = vmax.f32 %v3317, %v3318
      %v3320 = vrot.slane %v3319, 2
      %v3321 = vmax.f32 %v3319, %v3320
      %v3322 = vrot.slane %v3321, 1
      %v3323 = vmax.f32 %v3321, %v3322
      %v3324 = vsel %vm2658, %v2393, -inf
      %v3325 = vrot.slane %v3324, 4
      %v3326 = vmax.f32 %v3324, %v3325
      %v3327 = vrot.slane %v3326, 2
      %v3328 = vmax.f32 %v3326, %v3327
      %v3329 = vrot.slane %v3328, 1
      %v3330 = vmax.f32 %v3328, %v3329
      %v3331 = vsel %vm2658, %v2401, -inf
      %v3332 = vrot.slane %v3331, 4
      %v3333 = vmax.f32 %v3331, %v3332
      %v3334 = vrot.slane %v3333, 2
      %v3335 = vmax.f32 %v3333, %v3334
      %v3336 = vrot.slane %v3335, 1
      %v3337 = vmax.f32 %v3335, %v3336
      %v3338 = vsel %vm2658, %v2409, -inf
      %v3339 = vrot.slane %v3338, 4
      %v3340 = vmax.f32 %v3338, %v3339
      %v3341 = vrot.slane %v3340, 2
      %v3342 = vmax.f32 %v3340, %v3341
      %v3343 = vrot.slane %v3342, 1
      %v3344 = vmax.f32 %v3342, %v3343
      %v3345 = vsel %vm2658, %v2408, -inf
      %v3346 = vrot.slane %v3345, 4
      %v3347 = vmax.f32 %v3345, %v3346
      %v3348 = vrot.slane %v3347, 2
      %v3349 = vmax.f32 %v3347, %v3348
      %v3350 = vrot.slane %v3349, 1
      %v3351 = vmax.f32 %v3349, %v3350
      %v3352 = vsel %vm2658, %v2410, -inf
      %v3353 = vrot.slane %v3352, 4
      %v3354 = vmax.f32 %v3352, %v3353
      %v3355 = vrot.slane %v3354, 2
      %v3356 = vmax.f32 %v3354, %v3355
      %v3357 = vrot.slane %v3356, 1
      %v3358 = vmax.f32 %v3356, %v3357
      %v3359 = vsel %vm2658, %v2418, -inf
      %v3360 = vrot.slane %v3359, 4
      %v3361 = vmax.f32 %v3359, %v3360
      %v3362 = vrot.slane %v3361, 2
      %v3363 = vmax.f32 %v3361, %v3362
      %v3364 = vrot.slane %v3363, 1
      %v3365 = vmax.f32 %v3363, %v3364
      %v3366 = vsel %vm2658, %v2426, -inf
      %v3367 = vrot.slane %v3366, 4
      %v3368 = vmax.f32 %v3366, %v3367
      %v3369 = vrot.slane %v3368, 2
      %v3370 = vmax.f32 %v3368, %v3369
      %v3371 = vrot.slane %v3370, 1
      %v3372 = vmax.f32 %v3370, %v3371
      %v3373 = vsel %vm2658, %v2425, -inf
      %v3374 = vrot.slane %v3373, 4
      %v3375 = vmax.f32 %v3373, %v3374
      %v3376 = vrot.slane %v3375, 2
      %v3377 = vmax.f32 %v3375, %v3376
      %v3378 = vrot.slane %v3377, 1
      %v3379 = vmax.f32 %v3377, %v3378
      %v3380 = vsel %vm2658, %v2427, -inf
      %v3381 = vrot.slane %v3380, 4
      %v3382 = vmax.f32 %v3380, %v3381
      %v3383 = vrot.slane %v3382, 2
      %v3384 = vmax.f32 %v3382, %v3383
      %v3385 = vrot.slane %v3384, 1
      %v3386 = vmax.f32 %v3384, %v3385
      %v3387 = vsel %vm2658, %v2435, -inf
      %v3388 = vrot.slane %v3387, 4
      %v3389 = vmax.f32 %v3387, %v3388
      %v3390 = vrot.slane %v3389, 2
      %v3391 = vmax.f32 %v3389, %v3390
      %v3392 = vrot.slane %v3391, 1
      %v3393 = vmax.f32 %v3391, %v3392
      %v3394 = vsel %vm2658, %v2443, -inf
      %v3395 = vrot.slane %v3394, 4
      %v3396 = vmax.f32 %v3394, %v3395
      %v3397 = vrot.slane %v3396, 2
      %v3398 = vmax.f32 %v3396, %v3397
      %v3399 = vrot.slane %v3398, 1
      %v3400 = vmax.f32 %v3398, %v3399
      %v3401 = vsel %vm2658, %v2442, -inf
      %v3402 = vrot.slane %v3401, 4
      %v3403 = vmax.f32 %v3401, %v3402
      %v3404 = vrot.slane %v3403, 2
      %v3405 = vmax.f32 %v3403, %v3404
      %v3406 = vrot.slane %v3405, 1
      %v3407 = vmax.f32 %v3405, %v3406
      %v3408 = vsel %vm2658, %v2444, -inf
      %v3409 = vrot.slane %v3408, 4
      %v3410 = vmax.f32 %v3408, %v3409
      %v3411 = vrot.slane %v3410, 2
      %v3412 = vmax.f32 %v3410, %v3411
      %v3413 = vrot.slane %v3412, 1
      %v3414 = vmax.f32 %v3412, %v3413
      %v3415 = vsel %vm2658, %v2452, -inf
      %v3416 = vrot.slane %v3415, 4
      %v3417 = vmax.f32 %v3415, %v3416
      %v3418 = vrot.slane %v3417, 2
      %v3419 = vmax.f32 %v3417, %v3418
      %v3420 = vrot.slane %v3419, 1
      %v3421 = vmax.f32 %v3419, %v3420
      %v3422 = vsel %vm2658, %v2460, -inf
      %v3423 = vrot.slane %v3422, 4
      %v3424 = vmax.f32 %v3422, %v3423
      %v3425 = vrot.slane %v3424, 2
      %v3426 = vmax.f32 %v3424, %v3425
      %v3427 = vrot.slane %v3426, 1
      %v3428 = vmax.f32 %v3426, %v3427
      %v3429 = vsel %vm2658, %v2459, -inf
      %v3430 = vrot.slane %v3429, 4
      %v3431 = vmax.f32 %v3429, %v3430
      %v3432 = vrot.slane %v3431, 2
      %v3433 = vmax.f32 %v3431, %v3432
      %v3434 = vrot.slane %v3433, 1
      %v3435 = vmax.f32 %v3433, %v3434
      %v3436 = vsel %vm2658, %v2461, -inf
      %v3437 = vrot.slane %v3436, 4
      %v3438 = vmax.f32 %v3436, %v3437
      %v3439 = vrot.slane %v3438, 2
      %v3440 = vmax.f32 %v3438, %v3439
      %v3441 = vrot.slane %v3440, 1
      %v3442 = vmax.f32 %v3440, %v3441
      %v3443 = vsel %vm2658, %v2469, -inf
      %v3444 = vrot.slane %v3443, 4
      %v3445 = vmax.f32 %v3443, %v3444
      %v3446 = vrot.slane %v3445, 2
      %v3447 = vmax.f32 %v3445, %v3446
      %v3448 = vrot.slane %v3447, 1
      %v3449 = vmax.f32 %v3447, %v3448
      %v3450 = vsel %vm2658, %v2477, -inf
      %v3451 = vrot.slane %v3450, 4
      %v3452 = vmax.f32 %v3450, %v3451
      %v3453 = vrot.slane %v3452, 2
      %v3454 = vmax.f32 %v3452, %v3453
      %v3455 = vrot.slane %v3454, 1
      %v3456 = vmax.f32 %v3454, %v3455
      %v3457 = vsel %vm2658, %v2476, -inf
      %v3458 = vrot.slane %v3457, 4
      %v3459 = vmax.f32 %v3457, %v3458
      %v3460 = vrot.slane %v3459, 2
      %v3461 = vmax.f32 %v3459, %v3460
      %v3462 = vrot.slane %v3461, 1
      %v3463 = vmax.f32 %v3461, %v3462
      %v3464 = vsel %vm2658, %v2478, -inf
      %v3465 = vrot.slane %v3464, 4
      %v3466 = vmax.f32 %v3464, %v3465
      %v3467 = vrot.slane %v3466, 2
      %v3468 = vmax.f32 %v3466, %v3467
      %v3469 = vrot.slane %v3468, 1
      %v3470 = vmax.f32 %v3468, %v3469
      %v3471 = vsel %vm2658, %v2486, -inf
      %v3472 = vrot.slane %v3471, 4
      %v3473 = vmax.f32 %v3471, %v3472
      %v3474 = vrot.slane %v3473, 2
      %v3475 = vmax.f32 %v3473, %v3474
      %v3476 = vrot.slane %v3475, 1
      %v3477 = vmax.f32 %v3475, %v3476
      %v3478 = vsel %vm2658, %v2494, -inf
      %v3479 = vrot.slane %v3478, 4
      %v3480 = vmax.f32 %v3478, %v3479
      %v3481 = vrot.slane %v3480, 2
      %v3482 = vmax.f32 %v3480, %v3481
      %v3483 = vrot.slane %v3482, 1
      %v3484 = vmax.f32 %v3482, %v3483
      %v3485 = vsel %vm2658, %v2493, -inf
      %v3486 = vrot.slane %v3485, 4
      %v3487 = vmax.f32 %v3485, %v3486
      %v3488 = vrot.slane %v3487, 2
      %v3489 = vmax.f32 %v3487, %v3488
      %v3490 = vrot.slane %v3489, 1
      %v3491 = vmax.f32 %v3489, %v3490
      %v3492 = vsel %vm2658, %v2495, -inf
      %v3493 = vrot.slane %v3492, 4
      %v3494 = vmax.f32 %v3492, %v3493
      %v3495 = vrot.slane %v3494, 2
      %v3496 = vmax.f32 %v3494, %v3495
      %v3497 = vrot.slane %v3496, 1
      %v3498 = vmax.f32 %v3496, %v3497
      %v3499 = vsel %vm2658, %v2503, -inf
      %v3500 = vrot.slane %v3499, 4
      %v3501 = vmax.f32 %v3499, %v3500
      %v3502 = vrot.slane %v3501, 2
      %v3503 = vmax.f32 %v3501, %v3502
      %v3504 = vrot.slane %v3503, 1
      %v3505 = vmax.f32 %v3503, %v3504
      %v3506 = vsel %vm2658, %v2511, -inf
      %v3507 = vrot.slane %v3506, 4
      %v3508 = vmax.f32 %v3506, %v3507
      %v3509 = vrot.slane %v3508, 2
      %v3510 = vmax.f32 %v3508, %v3509
      %v3511 = vrot.slane %v3510, 1
      %v3512 = vmax.f32 %v3510, %v3511
      %v3513 = vsel %vm2658, %v2510, -inf
      %v3514 = vrot.slane %v3513, 4
      %v3515 = vmax.f32 %v3513, %v3514
      %v3516 = vrot.slane %v3515, 2
      %v3517 = vmax.f32 %v3515, %v3516
      %v3518 = vrot.slane %v3517, 1
      %v3519 = vmax.f32 %v3517, %v3518
      %v3520 = vsel %vm2658, %v2512, -inf
      %v3521 = vrot.slane %v3520, 4
      %v3522 = vmax.f32 %v3520, %v3521
      %v3523 = vrot.slane %v3522, 2
      %v3524 = vmax.f32 %v3522, %v3523
      %v3525 = vrot.slane %v3524, 1
      %v3526 = vmax.f32 %v3524, %v3525
      %v3527 = vsel %vm2658, %v2520, -inf
      %v3528 = vrot.slane %v3527, 4
      %v3529 = vmax.f32 %v3527, %v3528
      %v3530 = vrot.slane %v3529, 2
      %v3531 = vmax.f32 %v3529, %v3530
      %v3532 = vrot.slane %v3531, 1
      %v3533 = vmax.f32 %v3531, %v3532
      %v3534 = vsel %vm2658, %v2528, -inf
      %v3535 = vrot.slane %v3534, 4
      %v3536 = vmax.f32 %v3534, %v3535
      %v3537 = vrot.slane %v3536, 2
      %v3538 = vmax.f32 %v3536, %v3537
      %v3539 = vrot.slane %v3538, 1
      %v3540 = vmax.f32 %v3538, %v3539
      %v3541 = vsel %vm2658, %v2527, -inf
      %v3542 = vrot.slane %v3541, 4
      %v3543 = vmax.f32 %v3541, %v3542
      %v3544 = vrot.slane %v3543, 2
      %v3545 = vmax.f32 %v3543, %v3544
      %v3546 = vrot.slane %v3545, 1
      %v3547 = vmax.f32 %v3545, %v3546
      %v3548 = vsel %vm2658, %v2529, -inf
      %v3549 = vrot.slane %v3548, 4
      %v3550 = vmax.f32 %v3548, %v3549
      %v3551 = vrot.slane %v3550, 2
      %v3552 = vmax.f32 %v3550, %v3551
      %v3553 = vrot.slane %v3552, 1
      %v3554 = vmax.f32 %v3552, %v3553
      %v3555 = vpack.c.bf16 %v2665, %v2665
      %v3556 = vpack.c.bf16 %v2672, %v2672
      %v3557 = vpack.c.bf16 %v2679, %v2679
      %v3558 = vpack.c.bf16 %v2686, %v2686
      %v3559 = vpack.c.bf16 %v2693, %v2693
      %v3560 = vpack.c.bf16 %v2700, %v2700
      %v3561 = vpack.c.bf16 %v2707, %v2707
      %v3562 = vpack.c.bf16 %v2714, %v2714
      %v3563 = vpack.c.bf16 %v2721, %v2721
      %v3564 = vpack.c.bf16 %v2728, %v2728
      %v3565 = vpack.c.bf16 %v2735, %v2735
      %v3566 = vpack.c.bf16 %v2742, %v2742
      %v3567 = vpack.c.bf16 %v2749, %v2749
      %v3568 = vpack.c.bf16 %v2756, %v2756
      %v3569 = vpack.c.bf16 %v2763, %v2763
      %v3570 = vpack.c.bf16 %v2770, %v2770
      %v3571 = vpack.c.bf16 %v2777, %v2777
      %v3572 = vpack.c.bf16 %v2784, %v2784
      %v3573 = vpack.c.bf16 %v2791, %v2791
      %v3574 = vpack.c.bf16 %v2798, %v2798
      %v3575 = vpack.c.bf16 %v2805, %v2805
      %v3576 = vpack.c.bf16 %v2812, %v2812
      %v3577 = vpack.c.bf16 %v2819, %v2819
      %v3578 = vpack.c.bf16 %v2826, %v2826
      %v3579 = vpack.c.bf16 %v2833, %v2833
      %v3580 = vpack.c.bf16 %v2840, %v2840
      %v3581 = vpack.c.bf16 %v2847, %v2847
      %v3582 = vpack.c.bf16 %v2854, %v2854
      %v3583 = vpack.c.bf16 %v2861, %v2861
      %v3584 = vpack.c.bf16 %v2868, %v2868
      %v3585 = vpack.c.bf16 %v2875, %v2875
      %v3586 = vpack.c.bf16 %v2882, %v2882
      %v3587 = vpack.c.bf16 %v2889, %v2889
      %v3588 = vpack.c.bf16 %v2896, %v2896
      %v3589 = vpack.c.bf16 %v2903, %v2903
      %v3590 = vpack.c.bf16 %v2910, %v2910
      %v3591 = vpack.c.bf16 %v2917, %v2917
      %v3592 = vpack.c.bf16 %v2924, %v2924
      %v3593 = vpack.c.bf16 %v2931, %v2931
      %v3594 = vpack.c.bf16 %v2938, %v2938
      %v3595 = vpack.c.bf16 %v2945, %v2945
      %v3596 = vpack.c.bf16 %v2952, %v2952
      %v3597 = vpack.c.bf16 %v2959, %v2959
      %v3598 = vpack.c.bf16 %v2966, %v2966
      %v3599 = vpack.c.bf16 %v2973, %v2973
      %v3600 = vpack.c.bf16 %v2980, %v2980
      %v3601 = vpack.c.bf16 %v2987, %v2987
      %v3602 = vpack.c.bf16 %v2994, %v2994
      %v3603 = vpack.c.bf16 %v3001, %v3001
      %v3604 = vpack.c.bf16 %v3008, %v3008
      %v3605 = vpack.c.bf16 %v3015, %v3015
      %v3606 = vpack.c.bf16 %v3022, %v3022
      %v3607 = vpack.c.bf16 %v3029, %v3029
      %v3608 = vpack.c.bf16 %v3036, %v3036
      %v3609 = vpack.c.bf16 %v3043, %v3043
      %v3610 = vpack.c.bf16 %v3050, %v3050
      %v3611 = vpack.c.bf16 %v3057, %v3057
      %v3612 = vpack.c.bf16 %v3064, %v3064
      %v3613 = vpack.c.bf16 %v3071, %v3071
      %v3614 = vpack.c.bf16 %v3078, %v3078
      %v3615 = vpack.c.bf16 %v3085, %v3085
      %v3616 = vpack.c.bf16 %v3092, %v3092
      %v3617 = vpack.c.bf16 %v3099, %v3099
      %v3618 = vpack.c.bf16 %v3106, %v3106
      %v3619 = vpack.c.bf16 %v3113, %v3113
      %v3620 = vpack.c.bf16 %v3120, %v3120
      %v3621 = vpack.c.bf16 %v3127, %v3127
      %v3622 = vpack.c.bf16 %v3134, %v3134
      %v3623 = vpack.c.bf16 %v3141, %v3141
      %v3624 = vpack.c.bf16 %v3148, %v3148
      %v3625 = vpack.c.bf16 %v3155, %v3155
      %v3626 = vpack.c.bf16 %v3162, %v3162
      %v3627 = vpack.c.bf16 %v3169, %v3169
      %v3628 = vpack.c.bf16 %v3176, %v3176
      %v3629 = vpack.c.bf16 %v3183, %v3183
      %v3630 = vpack.c.bf16 %v3190, %v3190
      %v3631 = vpack.c.bf16 %v3197, %v3197
      %v3632 = vpack.c.bf16 %v3204, %v3204
      %v3633 = vpack.c.bf16 %v3211, %v3211
      %v3634 = vpack.c.bf16 %v3218, %v3218
      %v3635 = vpack.c.bf16 %v3225, %v3225
      %v3636 = vpack.c.bf16 %v3232, %v3232
      %v3637 = vpack.c.bf16 %v3239, %v3239
      %v3638 = vpack.c.bf16 %v3246, %v3246
      %v3639 = vpack.c.bf16 %v3253, %v3253
      %v3640 = vpack.c.bf16 %v3260, %v3260
      %v3641 = vpack.c.bf16 %v3267, %v3267
      %v3642 = vpack.c.bf16 %v3274, %v3274
      %v3643 = vpack.c.bf16 %v3281, %v3281
      %v3644 = vpack.c.bf16 %v3288, %v3288
      %v3645 = vpack.c.bf16 %v3295, %v3295
      %v3646 = vpack.c.bf16 %v3302, %v3302
      %v3647 = vpack.c.bf16 %v3309, %v3309
      %v3648 = vpack.c.bf16 %v3316, %v3316
      %v3649 = vpack.c.bf16 %v3323, %v3323
      %v3650 = vpack.c.bf16 %v3330, %v3330
      %v3651 = vpack.c.bf16 %v3337, %v3337
      %v3652 = vpack.c.bf16 %v3344, %v3344
      %v3653 = vpack.c.bf16 %v3351, %v3351
      %v3654 = vpack.c.bf16 %v3358, %v3358
      %v3655 = vpack.c.bf16 %v3365, %v3365
      %v3656 = vpack.c.bf16 %v3372, %v3372
      %v3657 = vpack.c.bf16 %v3379, %v3379
      %v3658 = vpack.c.bf16 %v3386, %v3386
      %v3659 = vpack.c.bf16 %v3393, %v3393
      %v3660 = vpack.c.bf16 %v3400, %v3400
      %v3661 = vpack.c.bf16 %v3407, %v3407
      %v3662 = vpack.c.bf16 %v3414, %v3414
      %v3663 = vpack.c.bf16 %v3421, %v3421
      %v3664 = vpack.c.bf16 %v3428, %v3428
      %v3665 = vpack.c.bf16 %v3435, %v3435
      %v3666 = vpack.c.bf16 %v3442, %v3442
      %v3667 = vpack.c.bf16 %v3449, %v3449
      %v3668 = vpack.c.bf16 %v3456, %v3456
      %v3669 = vpack.c.bf16 %v3463, %v3463
      %v3670 = vpack.c.bf16 %v3470, %v3470
      %v3671 = vpack.c.bf16 %v3477, %v3477
      %v3672 = vpack.c.bf16 %v3484, %v3484
      %v3673 = vpack.c.bf16 %v3491, %v3491
      %v3674 = vpack.c.bf16 %v3498, %v3498
      %v3675 = vpack.c.bf16 %v3505, %v3505
      %v3676 = vpack.c.bf16 %v3512, %v3512
      %v3677 = vpack.c.bf16 %v3519, %v3519
      %v3678 = vpack.c.bf16 %v3526, %v3526
      %v3679 = vpack.c.bf16 %v3533, %v3533
      %v3680 = vpack.c.bf16 %v3540, %v3540
      %v3681 = vpack.c.bf16 %v3547, %v3547
      %v3682 = vpack.c.bf16 %v3554, %v3554
      %v3811 = vunpack.c.l.b16 %v3555
      %v3812 = vunpack.c.l.b16 %v3556
      %v3813 = vunpack.c.l.b16 %v3557
      %v3814 = vunpack.c.l.b16 %v3558
      %v3815 = vunpack.c.l.b16 %v3559
      %v3816 = vunpack.c.l.b16 %v3560
      %v3817 = vunpack.c.l.b16 %v3561
      %v3818 = vunpack.c.l.b16 %v3562
      %v3819 = vunpack.c.l.b16 %v3563
      %v3820 = vunpack.c.l.b16 %v3564
      %v3821 = vunpack.c.l.b16 %v3565
      %v3822 = vunpack.c.l.b16 %v3566
      %v3823 = vunpack.c.l.b16 %v3567
      %v3824 = vunpack.c.l.b16 %v3568
      %v3825 = vunpack.c.l.b16 %v3569
      %v3826 = vunpack.c.l.b16 %v3570
      %v3827 = vunpack.c.l.b16 %v3571
      %v3828 = vunpack.c.l.b16 %v3572
      %v3829 = vunpack.c.l.b16 %v3573
      %v3830 = vunpack.c.l.b16 %v3574
      %v3831 = vunpack.c.l.b16 %v3575
      %v3832 = vunpack.c.l.b16 %v3576
      %v3833 = vunpack.c.l.b16 %v3577
      %v3834 = vunpack.c.l.b16 %v3578
      %v3835 = vunpack.c.l.b16 %v3579
      %v3836 = vunpack.c.l.b16 %v3580
      %v3837 = vunpack.c.l.b16 %v3581
      %v3838 = vunpack.c.l.b16 %v3582
      %v3839 = vunpack.c.l.b16 %v3583
      %v3840 = vunpack.c.l.b16 %v3584
      %v3841 = vunpack.c.l.b16 %v3585
      %v3842 = vunpack.c.l.b16 %v3586
      %v3843 = vunpack.c.l.b16 %v3587
      %v3844 = vunpack.c.l.b16 %v3588
      %v3845 = vunpack.c.l.b16 %v3589
      %v3846 = vunpack.c.l.b16 %v3590
      %v3847 = vunpack.c.l.b16 %v3591
      %v3848 = vunpack.c.l.b16 %v3592
      %v3849 = vunpack.c.l.b16 %v3593
      %v3850 = vunpack.c.l.b16 %v3594
      %v3851 = vunpack.c.l.b16 %v3595
      %v3852 = vunpack.c.l.b16 %v3596
      %v3853 = vunpack.c.l.b16 %v3597
      %v3854 = vunpack.c.l.b16 %v3598
      %v3855 = vunpack.c.l.b16 %v3599
      %v3856 = vunpack.c.l.b16 %v3600
      %v3857 = vunpack.c.l.b16 %v3601
      %v3858 = vunpack.c.l.b16 %v3602
      %v3859 = vunpack.c.l.b16 %v3603
      %v3860 = vunpack.c.l.b16 %v3604
      %v3861 = vunpack.c.l.b16 %v3605
      %v3862 = vunpack.c.l.b16 %v3606
      %v3863 = vunpack.c.l.b16 %v3607
      %v3864 = vunpack.c.l.b16 %v3608
      %v3865 = vunpack.c.l.b16 %v3609
      %v3866 = vunpack.c.l.b16 %v3610
      %v3867 = vunpack.c.l.b16 %v3611
      %v3868 = vunpack.c.l.b16 %v3612
      %v3869 = vunpack.c.l.b16 %v3613
      %v3870 = vunpack.c.l.b16 %v3614
      %v3871 = vunpack.c.l.b16 %v3615
      %v3872 = vunpack.c.l.b16 %v3616
      %v3873 = vunpack.c.l.b16 %v3617
      %v3874 = vunpack.c.l.b16 %v3618
      %v3875 = vunpack.c.l.b16 %v3619
      %v3876 = vunpack.c.l.b16 %v3620
      %v3877 = vunpack.c.l.b16 %v3621
      %v3878 = vunpack.c.l.b16 %v3622
      %v3879 = vunpack.c.l.b16 %v3623
      %v3880 = vunpack.c.l.b16 %v3624
      %v3881 = vunpack.c.l.b16 %v3625
      %v3882 = vunpack.c.l.b16 %v3626
      %v3883 = vunpack.c.l.b16 %v3627
      %v3884 = vunpack.c.l.b16 %v3628
      %v3885 = vunpack.c.l.b16 %v3629
      %v3886 = vunpack.c.l.b16 %v3630
      %v3887 = vunpack.c.l.b16 %v3631
      %v3888 = vunpack.c.l.b16 %v3632
      %v3889 = vunpack.c.l.b16 %v3633
      %v3890 = vunpack.c.l.b16 %v3634
      %v3891 = vunpack.c.l.b16 %v3635
      %v3892 = vunpack.c.l.b16 %v3636
      %v3893 = vunpack.c.l.b16 %v3637
      %v3894 = vunpack.c.l.b16 %v3638
      %v3895 = vunpack.c.l.b16 %v3639
      %v3896 = vunpack.c.l.b16 %v3640
      %v3897 = vunpack.c.l.b16 %v3641
      %v3898 = vunpack.c.l.b16 %v3642
      %v3899 = vunpack.c.l.b16 %v3643
      %v3900 = vunpack.c.l.b16 %v3644
      %v3901 = vunpack.c.l.b16 %v3645
      %v3902 = vunpack.c.l.b16 %v3646
      %v3903 = vunpack.c.l.b16 %v3647
      %v3904 = vunpack.c.l.b16 %v3648
      %v3905 = vunpack.c.l.b16 %v3649
      %v3906 = vunpack.c.l.b16 %v3650
      %v3907 = vunpack.c.l.b16 %v3651
      %v3908 = vunpack.c.l.b16 %v3652
      %v3909 = vunpack.c.l.b16 %v3653
      %v3910 = vunpack.c.l.b16 %v3654
      %v3911 = vunpack.c.l.b16 %v3655
      %v3912 = vunpack.c.l.b16 %v3656
      %v3913 = vunpack.c.l.b16 %v3657
      %v3914 = vunpack.c.l.b16 %v3658
      %v3915 = vunpack.c.l.b16 %v3659
      %v3916 = vunpack.c.l.b16 %v3660
      %v3917 = vunpack.c.l.b16 %v3661
      %v3918 = vunpack.c.l.b16 %v3662
      %v3919 = vunpack.c.l.b16 %v3663
      %v3920 = vunpack.c.l.b16 %v3664
      %v3921 = vunpack.c.l.b16 %v3665
      %v3922 = vunpack.c.l.b16 %v3666
      %v3923 = vunpack.c.l.b16 %v3667
      %v3924 = vunpack.c.l.b16 %v3668
      %v3925 = vunpack.c.l.b16 %v3669
      %v3926 = vunpack.c.l.b16 %v3670
      %v3927 = vunpack.c.l.b16 %v3671
      %v3928 = vunpack.c.l.b16 %v3672
      %v3929 = vunpack.c.l.b16 %v3673
      %v3930 = vunpack.c.l.b16 %v3674
      %v3931 = vunpack.c.l.b16 %v3675
      %v3932 = vunpack.c.l.b16 %v3676
      %v3933 = vunpack.c.l.b16 %v3677
      %v3934 = vunpack.c.l.b16 %v3678
      %v3935 = vunpack.c.l.b16 %v3679
      %v3936 = vunpack.c.l.b16 %v3680
      %v3937 = vunpack.c.l.b16 %v3681
      %v3938 = vunpack.c.l.b16 %v3682
      %v3939 = vpack.c.b16 %v3811, %v3811
      %v3940 = vpack.c.b16 %v3812, %v3812
      %v3941 = vpack.c.b16 %v3813, %v3813
      %v3942 = vpack.c.b16 %v3814, %v3814
      %v3943 = vpack.c.b16 %v3815, %v3815
      %v3944 = vpack.c.b16 %v3816, %v3816
      %v3945 = vpack.c.b16 %v3817, %v3817
      %v3946 = vpack.c.b16 %v3818, %v3818
      %v3947 = vpack.c.b16 %v3819, %v3819
      %v3948 = vpack.c.b16 %v3820, %v3820
      %v3949 = vpack.c.b16 %v3821, %v3821
      %v3950 = vpack.c.b16 %v3822, %v3822
      %v3951 = vpack.c.b16 %v3823, %v3823
      %v3952 = vpack.c.b16 %v3824, %v3824
      %v3953 = vpack.c.b16 %v3825, %v3825
      %v3954 = vpack.c.b16 %v3826, %v3826
      %v3955 = vpack.c.b16 %v3827, %v3827
      %v3956 = vpack.c.b16 %v3828, %v3828
      %v3957 = vpack.c.b16 %v3829, %v3829
      %v3958 = vpack.c.b16 %v3830, %v3830
      %v3959 = vpack.c.b16 %v3831, %v3831
      %v3960 = vpack.c.b16 %v3832, %v3832
      %v3961 = vpack.c.b16 %v3833, %v3833
      %v3962 = vpack.c.b16 %v3834, %v3834
      %v3963 = vpack.c.b16 %v3835, %v3835
      %v3964 = vpack.c.b16 %v3836, %v3836
      %v3965 = vpack.c.b16 %v3837, %v3837
      %v3966 = vpack.c.b16 %v3838, %v3838
      %v3967 = vpack.c.b16 %v3839, %v3839
      %v3968 = vpack.c.b16 %v3840, %v3840
      %v3969 = vpack.c.b16 %v3841, %v3841
      %v3970 = vpack.c.b16 %v3842, %v3842
      %v3971 = vpack.c.b16 %v3843, %v3843
      %v3972 = vpack.c.b16 %v3844, %v3844
      %v3973 = vpack.c.b16 %v3845, %v3845
      %v3974 = vpack.c.b16 %v3846, %v3846
      %v3975 = vpack.c.b16 %v3847, %v3847
      %v3976 = vpack.c.b16 %v3848, %v3848
      %v3977 = vpack.c.b16 %v3849, %v3849
      %v3978 = vpack.c.b16 %v3850, %v3850
      %v3979 = vpack.c.b16 %v3851, %v3851
      %v3980 = vpack.c.b16 %v3852, %v3852
      %v3981 = vpack.c.b16 %v3853, %v3853
      %v3982 = vpack.c.b16 %v3854, %v3854
      %v3983 = vpack.c.b16 %v3855, %v3855
      %v3984 = vpack.c.b16 %v3856, %v3856
      %v3985 = vpack.c.b16 %v3857, %v3857
      %v3986 = vpack.c.b16 %v3858, %v3858
      %v3987 = vpack.c.b16 %v3859, %v3859
      %v3988 = vpack.c.b16 %v3860, %v3860
      %v3989 = vpack.c.b16 %v3861, %v3861
      %v3990 = vpack.c.b16 %v3862, %v3862
      %v3991 = vpack.c.b16 %v3863, %v3863
      %v3992 = vpack.c.b16 %v3864, %v3864
      %v3993 = vpack.c.b16 %v3865, %v3865
      %v3994 = vpack.c.b16 %v3866, %v3866
      %v3995 = vpack.c.b16 %v3867, %v3867
      %v3996 = vpack.c.b16 %v3868, %v3868
      %v3997 = vpack.c.b16 %v3869, %v3869
      %v3998 = vpack.c.b16 %v3870, %v3870
      %v3999 = vpack.c.b16 %v3871, %v3871
      %v4000 = vpack.c.b16 %v3872, %v3872
      %v4001 = vpack.c.b16 %v3873, %v3873
      %v4002 = vpack.c.b16 %v3874, %v3874
      %v4003 = vpack.c.b16 %v3875, %v3875
      %v4004 = vpack.c.b16 %v3876, %v3876
      %v4005 = vpack.c.b16 %v3877, %v3877
      %v4006 = vpack.c.b16 %v3878, %v3878
      %v4007 = vpack.c.b16 %v3879, %v3879
      %v4008 = vpack.c.b16 %v3880, %v3880
      %v4009 = vpack.c.b16 %v3881, %v3881
      %v4010 = vpack.c.b16 %v3882, %v3882
      %v4011 = vpack.c.b16 %v3883, %v3883
      %v4012 = vpack.c.b16 %v3884, %v3884
      %v4013 = vpack.c.b16 %v3885, %v3885
      %v4014 = vpack.c.b16 %v3886, %v3886
      %v4015 = vpack.c.b16 %v3887, %v3887
      %v4016 = vpack.c.b16 %v3888, %v3888
      %v4017 = vpack.c.b16 %v3889, %v3889
      %v4018 = vpack.c.b16 %v3890, %v3890
      %v4019 = vpack.c.b16 %v3891, %v3891
      %v4020 = vpack.c.b16 %v3892, %v3892
      %v4021 = vpack.c.b16 %v3893, %v3893
      %v4022 = vpack.c.b16 %v3894, %v3894
      %v4023 = vpack.c.b16 %v3895, %v3895
      %v4024 = vpack.c.b16 %v3896, %v3896
      %v4025 = vpack.c.b16 %v3897, %v3897
      %v4026 = vpack.c.b16 %v3898, %v3898
      %v4027 = vpack.c.b16 %v3899, %v3899
      %v4028 = vpack.c.b16 %v3900, %v3900
      %v4029 = vpack.c.b16 %v3901, %v3901
      %v4030 = vpack.c.b16 %v3902, %v3902
      %v4031 = vpack.c.b16 %v3903, %v3903
      %v4032 = vpack.c.b16 %v3904, %v3904
      %v4033 = vpack.c.b16 %v3905, %v3905
      %v4034 = vpack.c.b16 %v3906, %v3906
      %v4035 = vpack.c.b16 %v3907, %v3907
      %v4036 = vpack.c.b16 %v3908, %v3908
      %v4037 = vpack.c.b16 %v3909, %v3909
      %v4038 = vpack.c.b16 %v3910, %v3910
      %v4039 = vpack.c.b16 %v3911, %v3911
      %v4040 = vpack.c.b16 %v3912, %v3912
      %v4041 = vpack.c.b16 %v3913, %v3913
      %v4042 = vpack.c.b16 %v3914, %v3914
      %v4043 = vpack.c.b16 %v3915, %v3915
      %v4044 = vpack.c.b16 %v3916, %v3916
      %v4045 = vpack.c.b16 %v3917, %v3917
      %v4046 = vpack.c.b16 %v3918, %v3918
      %v4047 = vpack.c.b16 %v3919, %v3919
      %v4048 = vpack.c.b16 %v3920, %v3920
      %v4049 = vpack.c.b16 %v3921, %v3921
      %v4050 = vpack.c.b16 %v3922, %v3922
      %v4051 = vpack.c.b16 %v3923, %v3923
      %v4052 = vpack.c.b16 %v3924, %v3924
      %v4053 = vpack.c.b16 %v3925, %v3925
      %v4054 = vpack.c.b16 %v3926, %v3926
      %v4055 = vpack.c.b16 %v3927, %v3927
      %v4056 = vpack.c.b16 %v3928, %v3928
      %v4057 = vpack.c.b16 %v3929, %v3929
      %v4058 = vpack.c.b16 %v3930, %v3930
      %v4059 = vpack.c.b16 %v3931, %v3931
      %v4060 = vpack.c.b16 %v3932, %v3932
      %v4061 = vpack.c.b16 %v3933, %v3933
      %v4062 = vpack.c.b16 %v3934, %v3934
      %v4063 = vpack.c.b16 %v3935, %v3935
      %v4064 = vpack.c.b16 %v3936, %v3936
      %v4065 = vpack.c.b16 %v3937, %v3937
      %v4066 = vpack.c.b16 %v3938, %v3938
      %v4067 = vunpack.c.l.b16 %v3939
      %v4068 = vunpack.c.l.b16 %v3940
      %v4069 = vunpack.c.l.b16 %v3941
      %v4070 = vunpack.c.l.b16 %v3942
      %v4071 = vunpack.c.l.b16 %v3943
      %v4072 = vunpack.c.l.b16 %v3944
      %v4073 = vunpack.c.l.b16 %v3945
      %v4074 = vunpack.c.l.b16 %v3946
      %v4075 = vunpack.c.l.b16 %v3947
      %v4076 = vunpack.c.l.b16 %v3948
      %v4077 = vunpack.c.l.b16 %v3949
      %v4078 = vunpack.c.l.b16 %v3950
      %v4079 = vunpack.c.l.b16 %v3951
      %v4080 = vunpack.c.l.b16 %v3952
      %v4081 = vunpack.c.l.b16 %v3953
      %v4082 = vunpack.c.l.b16 %v3954
      %v4083 = vunpack.c.l.b16 %v3955
      %v4084 = vunpack.c.l.b16 %v3956
      %v4085 = vunpack.c.l.b16 %v3957
      %v4086 = vunpack.c.l.b16 %v3958
      %v4087 = vunpack.c.l.b16 %v3959
      %v4088 = vunpack.c.l.b16 %v3960
      %v4089 = vunpack.c.l.b16 %v3961
      %v4090 = vunpack.c.l.b16 %v3962
      %v4091 = vunpack.c.l.b16 %v3963
      %v4092 = vunpack.c.l.b16 %v3964
      %v4093 = vunpack.c.l.b16 %v3965
      %v4094 = vunpack.c.l.b16 %v3966
      %v4095 = vunpack.c.l.b16 %v3967
      %v4096 = vunpack.c.l.b16 %v3968
      %v4097 = vunpack.c.l.b16 %v3969
      %v4098 = vunpack.c.l.b16 %v3970
      %v4099 = vunpack.c.l.b16 %v3971
      %v4100 = vunpack.c.l.b16 %v3972
      %v4101 = vunpack.c.l.b16 %v3973
      %v4102 = vunpack.c.l.b16 %v3974
      %v4103 = vunpack.c.l.b16 %v3975
      %v4104 = vunpack.c.l.b16 %v3976
      %v4105 = vunpack.c.l.b16 %v3977
      %v4106 = vunpack.c.l.b16 %v3978
      %v4107 = vunpack.c.l.b16 %v3979
      %v4108 = vunpack.c.l.b16 %v3980
      %v4109 = vunpack.c.l.b16 %v3981
      %v4110 = vunpack.c.l.b16 %v3982
      %v4111 = vunpack.c.l.b16 %v3983
      %v4112 = vunpack.c.l.b16 %v3984
      %v4113 = vunpack.c.l.b16 %v3985
      %v4114 = vunpack.c.l.b16 %v3986
      %v4115 = vunpack.c.l.b16 %v3987
      %v4116 = vunpack.c.l.b16 %v3988
      %v4117 = vunpack.c.l.b16 %v3989
      %v4118 = vunpack.c.l.b16 %v3990
      %v4119 = vunpack.c.l.b16 %v3991
      %v4120 = vunpack.c.l.b16 %v3992
      %v4121 = vunpack.c.l.b16 %v3993
      %v4122 = vunpack.c.l.b16 %v3994
      %v4123 = vunpack.c.l.b16 %v3995
      %v4124 = vunpack.c.l.b16 %v3996
      %v4125 = vunpack.c.l.b16 %v3997
      %v4126 = vunpack.c.l.b16 %v3998
      %v4127 = vunpack.c.l.b16 %v3999
      %v4128 = vunpack.c.l.b16 %v4000
      %v4129 = vunpack.c.l.b16 %v4001
      %v4130 = vunpack.c.l.b16 %v4002
      %v4131 = vunpack.c.l.b16 %v4003
      %v4132 = vunpack.c.l.b16 %v4004
      %v4133 = vunpack.c.l.b16 %v4005
      %v4134 = vunpack.c.l.b16 %v4006
      %v4135 = vunpack.c.l.b16 %v4007
      %v4136 = vunpack.c.l.b16 %v4008
      %v4137 = vunpack.c.l.b16 %v4009
      %v4138 = vunpack.c.l.b16 %v4010
      %v4139 = vunpack.c.l.b16 %v4011
      %v4140 = vunpack.c.l.b16 %v4012
      %v4141 = vunpack.c.l.b16 %v4013
      %v4142 = vunpack.c.l.b16 %v4014
      %v4143 = vunpack.c.l.b16 %v4015
      %v4144 = vunpack.c.l.b16 %v4016
      %v4145 = vunpack.c.l.b16 %v4017
      %v4146 = vunpack.c.l.b16 %v4018
      %v4147 = vunpack.c.l.b16 %v4019
      %v4148 = vunpack.c.l.b16 %v4020
      %v4149 = vunpack.c.l.b16 %v4021
      %v4150 = vunpack.c.l.b16 %v4022
      %v4151 = vunpack.c.l.b16 %v4023
      %v4152 = vunpack.c.l.b16 %v4024
      %v4153 = vunpack.c.l.b16 %v4025
      %v4154 = vunpack.c.l.b16 %v4026
      %v4155 = vunpack.c.l.b16 %v4027
      %v4156 = vunpack.c.l.b16 %v4028
      %v4157 = vunpack.c.l.b16 %v4029
      %v4158 = vunpack.c.l.b16 %v4030
      %v4159 = vunpack.c.l.b16 %v4031
      %v4160 = vunpack.c.l.b16 %v4032
      %v4161 = vunpack.c.l.b16 %v4033
      %v4162 = vunpack.c.l.b16 %v4034
      %v4163 = vunpack.c.l.b16 %v4035
      %v4164 = vunpack.c.l.b16 %v4036
      %v4165 = vunpack.c.l.b16 %v4037
      %v4166 = vunpack.c.l.b16 %v4038
      %v4167 = vunpack.c.l.b16 %v4039
      %v4168 = vunpack.c.l.b16 %v4040
      %v4169 = vunpack.c.l.b16 %v4041
      %v4170 = vunpack.c.l.b16 %v4042
      %v4171 = vunpack.c.l.b16 %v4043
      %v4172 = vunpack.c.l.b16 %v4044
      %v4173 = vunpack.c.l.b16 %v4045
      %v4174 = vunpack.c.l.b16 %v4046
      %v4175 = vunpack.c.l.b16 %v4047
      %v4176 = vunpack.c.l.b16 %v4048
      %v4177 = vunpack.c.l.b16 %v4049
      %v4178 = vunpack.c.l.b16 %v4050
      %v4179 = vunpack.c.l.b16 %v4051
      %v4180 = vunpack.c.l.b16 %v4052
      %v4181 = vunpack.c.l.b16 %v4053
      %v4182 = vunpack.c.l.b16 %v4054
      %v4183 = vunpack.c.l.b16 %v4055
      %v4184 = vunpack.c.l.b16 %v4056
      %v4185 = vunpack.c.l.b16 %v4057
      %v4186 = vunpack.c.l.b16 %v4058
      %v4187 = vunpack.c.l.b16 %v4059
      %v4188 = vunpack.c.l.b16 %v4060
      %v4189 = vunpack.c.l.b16 %v4061
      %v4190 = vunpack.c.l.b16 %v4062
      %v4191 = vunpack.c.l.b16 %v4063
      %v4192 = vunpack.c.l.b16 %v4064
      %v4193 = vunpack.c.l.b16 %v4065
      %v4194 = vunpack.c.l.b16 %v4066
      %vm4195 = vcmask 1041409
      %v4196 = vsel %vm4195, %v4068, %v4067
      %vm4197 = vcmask 1042434
      %v4198 = vsel %vm4197, %v4069, %v4196
      %vm4199 = vcmask 1043459
      %v4200 = vsel %vm4199, %v4070, %v4198
      %vm4201 = vcmask 1044484
      %v4202 = vsel %vm4201, %v4071, %v4200
      %vm4203 = vcmask 1045509
      %v4204 = vsel %vm4203, %v4072, %v4202
      %vm4205 = vcmask 1046534
      %v4206 = vsel %vm4205, %v4073, %v4204
      %vm4207 = vcmask 1047559
      %v4208 = vsel %vm4207, %v4074, %v4206
      %v4209 = vsel %vm4195, %v4076, %v4075
      %v4210 = vsel %vm4197, %v4077, %v4209
      %v4211 = vsel %vm4199, %v4078, %v4210
      %v4212 = vsel %vm4201, %v4079, %v4211
      %v4213 = vsel %vm4203, %v4080, %v4212
      %v4214 = vsel %vm4205, %v4081, %v4213
      %v4215 = vsel %vm4207, %v4082, %v4214
      %v4216 = vsel %vm4195, %v4084, %v4083
      %v4217 = vsel %vm4197, %v4085, %v4216
      %v4218 = vsel %vm4199, %v4086, %v4217
      %v4219 = vsel %vm4201, %v4087, %v4218
      %v4220 = vsel %vm4203, %v4088, %v4219
      %v4221 = vsel %vm4205, %v4089, %v4220
      %v4222 = vsel %vm4207, %v4090, %v4221
      %v4223 = vsel %vm4195, %v4092, %v4091
      %v4224 = vsel %vm4197, %v4093, %v4223
      %v4225 = vsel %vm4199, %v4094, %v4224
      %v4226 = vsel %vm4201, %v4095, %v4225
      %v4227 = vsel %vm4203, %v4096, %v4226
      %v4228 = vsel %vm4205, %v4097, %v4227
      %v4229 = vsel %vm4207, %v4098, %v4228
      %v4230 = vsel %vm4195, %v4100, %v4099
      %v4231 = vsel %vm4197, %v4101, %v4230
      %v4232 = vsel %vm4199, %v4102, %v4231
      %v4233 = vsel %vm4201, %v4103, %v4232
      %v4234 = vsel %vm4203, %v4104, %v4233
      %v4235 = vsel %vm4205, %v4105, %v4234
      %v4236 = vsel %vm4207, %v4106, %v4235
      %v4237 = vsel %vm4195, %v4108, %v4107
      %v4238 = vsel %vm4197, %v4109, %v4237
      %v4239 = vsel %vm4199, %v4110, %v4238
      %v4240 = vsel %vm4201, %v4111, %v4239
      %v4241 = vsel %vm4203, %v4112, %v4240
      %v4242 = vsel %vm4205, %v4113, %v4241
      %v4243 = vsel %vm4207, %v4114, %v4242
      %v4244 = vsel %vm4195, %v4116, %v4115
      %v4245 = vsel %vm4197, %v4117, %v4244
      %v4246 = vsel %vm4199, %v4118, %v4245
      %v4247 = vsel %vm4201, %v4119, %v4246
      %v4248 = vsel %vm4203, %v4120, %v4247
      %v4249 = vsel %vm4205, %v4121, %v4248
      %v4250 = vsel %vm4207, %v4122, %v4249
      %v4251 = vsel %vm4195, %v4124, %v4123
      %v4252 = vsel %vm4197, %v4125, %v4251
      %v4253 = vsel %vm4199, %v4126, %v4252
      %v4254 = vsel %vm4201, %v4127, %v4253
      %v4255 = vsel %vm4203, %v4128, %v4254
      %v4256 = vsel %vm4205, %v4129, %v4255
      %v4257 = vsel %vm4207, %v4130, %v4256
      %v4258 = vsel %vm4195, %v4132, %v4131
      %v4259 = vsel %vm4197, %v4133, %v4258
      %v4260 = vsel %vm4199, %v4134, %v4259
      %v4261 = vsel %vm4201, %v4135, %v4260
      %v4262 = vsel %vm4203, %v4136, %v4261
      %v4263 = vsel %vm4205, %v4137, %v4262
      %v4264 = vsel %vm4207, %v4138, %v4263
      %v4265 = vsel %vm4195, %v4140, %v4139
      %v4266 = vsel %vm4197, %v4141, %v4265
      %v4267 = vsel %vm4199, %v4142, %v4266
      %v4268 = vsel %vm4201, %v4143, %v4267
      %v4269 = vsel %vm4203, %v4144, %v4268
      %v4270 = vsel %vm4205, %v4145, %v4269
      %v4271 = vsel %vm4207, %v4146, %v4270
      %v4272 = vsel %vm4195, %v4148, %v4147
      %v4273 = vsel %vm4197, %v4149, %v4272
      %v4274 = vsel %vm4199, %v4150, %v4273
      %v4275 = vsel %vm4201, %v4151, %v4274
      %v4276 = vsel %vm4203, %v4152, %v4275
      %v4277 = vsel %vm4205, %v4153, %v4276
      %v4278 = vsel %vm4207, %v4154, %v4277
      %v4279 = vsel %vm4195, %v4156, %v4155
      %v4280 = vsel %vm4197, %v4157, %v4279
      %v4281 = vsel %vm4199, %v4158, %v4280
      %v4282 = vsel %vm4201, %v4159, %v4281
      %v4283 = vsel %vm4203, %v4160, %v4282
      %v4284 = vsel %vm4205, %v4161, %v4283
      %v4285 = vsel %vm4207, %v4162, %v4284
      %v4286 = vsel %vm4195, %v4164, %v4163
      %v4287 = vsel %vm4197, %v4165, %v4286
      %v4288 = vsel %vm4199, %v4166, %v4287
      %v4289 = vsel %vm4201, %v4167, %v4288
      %v4290 = vsel %vm4203, %v4168, %v4289
      %v4291 = vsel %vm4205, %v4169, %v4290
      %v4292 = vsel %vm4207, %v4170, %v4291
      %v4293 = vsel %vm4195, %v4172, %v4171
      %v4294 = vsel %vm4197, %v4173, %v4293
      %v4295 = vsel %vm4199, %v4174, %v4294
      %v4296 = vsel %vm4201, %v4175, %v4295
      %v4297 = vsel %vm4203, %v4176, %v4296
      %v4298 = vsel %vm4205, %v4177, %v4297
      %v4299 = vsel %vm4207, %v4178, %v4298
      %v4300 = vsel %vm4195, %v4180, %v4179
      %v4301 = vsel %vm4197, %v4181, %v4300
      %v4302 = vsel %vm4199, %v4182, %v4301
      %v4303 = vsel %vm4201, %v4183, %v4302
      %v4304 = vsel %vm4203, %v4184, %v4303
      %v4305 = vsel %vm4205, %v4185, %v4304
      %v4306 = vsel %vm4207, %v4186, %v4305
      %v4307 = vsel %vm4195, %v4188, %v4187
      %v4308 = vsel %vm4197, %v4189, %v4307
      %v4309 = vsel %vm4199, %v4190, %v4308
      %v4310 = vsel %vm4201, %v4191, %v4309
      %v4311 = vsel %vm4203, %v4192, %v4310
      %v4312 = vsel %vm4205, %v4193, %v4311
      %v4313 = vsel %vm4207, %v4194, %v4312
      %v4314 = vpack.c.b16 %v4208, %v4208
      %v4315 = vpack.c.b16 %v4215, %v4215
      %v4316 = vpack.c.b16 %v4222, %v4222
      %v4317 = vpack.c.b16 %v4229, %v4229
      %v4318 = vpack.c.b16 %v4236, %v4236
      %v4319 = vpack.c.b16 %v4243, %v4243
      %v4320 = vpack.c.b16 %v4250, %v4250
      %v4321 = vpack.c.b16 %v4257, %v4257
      %v4322 = vpack.c.b16 %v4264, %v4264
      %v4323 = vpack.c.b16 %v4271, %v4271
      %v4324 = vpack.c.b16 %v4278, %v4278
      %v4325 = vpack.c.b16 %v4285, %v4285
      %v4326 = vpack.c.b16 %v4292, %v4292
      %v4327 = vpack.c.b16 %v4299, %v4299
      %v4328 = vpack.c.b16 %v4306, %v4306
      %v4329 = vpack.c.b16 %v4313, %v4313
      %vm4346 = vcmask 125952
      %4347 = vst.msk [vmem:[%s305] sm:$0xf] %vm4346, %v4314
      %4348 = vst.msk [vmem:[%s305 + $0x4] sm:$0xf] %vm4346, %v4315
      %4349 = vst.msk [vmem:[%s305 + $0x8] sm:$0xf] %vm4346, %v4316
      %4350 = vst.msk [vmem:[%s305 + $0xc] sm:$0xf] %vm4346, %v4317
      %4351 = vst.msk [vmem:[%s305 + $0x10] sm:$0xf] %vm4346, %v4318
      %4352 = vst.msk [vmem:[%s305 + $0x14] sm:$0xf] %vm4346, %v4319
      %4353 = vst.msk [vmem:[%s305 + $0x18] sm:$0xf] %vm4346, %v4320
      %4354 = vst.msk [vmem:[%s305 + $0x1c] sm:$0xf] %vm4346, %v4321
      %4355 = vst.msk [vmem:[%s305 + $0x20] sm:$0xf] %vm4346, %v4322
      %4356 = vst.msk [vmem:[%s305 + $0x24] sm:$0xf] %vm4346, %v4323
      %4357 = vst.msk [vmem:[%s305 + $0x28] sm:$0xf] %vm4346, %v4324
      %4358 = vst.msk [vmem:[%s305 + $0x2c] sm:$0xf] %vm4346, %v4325
      %4359 = vst.msk [vmem:[%s305 + $0x30] sm:$0xf] %vm4346, %v4326
      %4360 = vst.msk [vmem:[%s305 + $0x34] sm:$0xf] %vm4346, %v4327
      %4361 = vst.msk [vmem:[%s305 + $0x38] sm:$0xf] %vm4346, %v4328
      %4362 = vst.msk [vmem:[%s305 + $0x3c] sm:$0xf] %vm4346, %v4329
      %s4363 = smul.u32 16, %s20
      %p4364 = scmp.lt.s32.totalorder %s19, 1
      %s4365 = scalar_select %p4364, %s19, 1
      %p4366 = scmp.lt.s32.totalorder %s4363, 31
      %s4367 = scalar_select %p4366, %s4363, 31
      %s4368 = smul.addr %s4365, 32
      %s4369 = sadd.s32 %s4367, %s4368
      %s4370 = smul.addr %s4369, 4
      %s4371 = scalar_lea.vmem %s4, %s4370
      // Predicated region
      $region37: #{eeg_forward.4} parent=35 // pred_check
        %p4372 = pneg %p149
      $region38: #{eeg_forward.4} parent=35 // pred_check_branch
        %4374 = sbr.rel (%p4372) target = $region40
      $region39: #{eeg_forward.4} parent=35 // pred_region
        %s4375 = smul.u32 16, %s20
      $region40: #{eeg_forward.4} parent=35 // pred_fallthru
        _
    $region36: #{eeg_forward.4} parent=5 // pred_fallthru
      _
    %p4376 = scmp.le.s32.totalorder 2, %s10
    // Predicated region
    $region41: #{eeg_forward.4} parent=5 // pred_check
      %p4377 = pneg %p4376
    $region42: #{eeg_forward.4} parent=5 // pred_check_branch
      %4379 = sbr.rel (%p4377) target = $region44
    $region43: #{eeg_forward.4} parent=5 // pred_region
      %s4380 = ssub.s32 %s10, 2
      // Predicated region
      $region45: #{eeg_forward.4} parent=43 // pred_check
        %p4381 = pneg %p155
      $region46: #{eeg_forward.4} parent=43 // pred_check_branch
        %4383 = sbr.rel (%p4381) target = $region48
      $region47: #{eeg_forward.4} parent=43 // pred_region
        %s4384 = smul.u32 16, %s22
        %p4385 = scmp.lt.s32.totalorder %s21, 1
        %s4386 = scalar_select %p4385, %s21, 1
        %p4387 = scmp.lt.s32.totalorder %s4384, 31
        %s4388 = scalar_select %p4387, %s4384, 31
        %s4389 = smul.addr %s4386, 32
        %s4390 = sadd.s32 %s4388, %s4389
        %s4391 = smul.addr %s4390, 4
        %s4392 = scalar_lea.vmem %s4, %s4391
      $region48: #{eeg_forward.4} parent=43 // pred_fallthru
        _
    $region44: #{eeg_forward.4} parent=5 // pred_fallthru
      _
  $region6: #{eeg_forward.4} parent=0 // loop_footer
    %s14 = sadd.s32 1, %s10
  $region7: #{eeg_forward.4} parent=0 // loop_footer_branch
    %9 = sbr.rel target = $region3
  $region8: #{eeg_forward.4} parent=0 // loop_exit
    _

// kernel: eeg_forward.5
$region0: #{eeg_forward.5}
  #allocation0 [shape = 'u32[]', space=smem, size = 0x4, offset = 0x4, fixed_abs, tag = 'smem constant byte address 0x4 - core index']
  #allocation1 [shape = 'u32[144,128]{1,0:T(1,128)}', space=vmem, size = 0x12000, scoped, tag = 'internal scratch']
  %s0 = inlined_call_operand.vmem [shape: bf16[2,272,16], index: 0, kind: input, shape index: {}, may-alias: {0,1}]
  %s1 = inlined_call_operand.vmem [shape: bf16[2,272,16], index: 1, kind: input, shape index: {}, may-alias: {0,1}]
  %s2 = inlined_call_operand.vmem [shape: bf16[16,160], index: 2, kind: input, shape index: {}]
  %s3 = inlined_call_operand.vmem [shape: f32[1,32], index: 3, kind: input, shape index: {}]
  %s4 = inlined_call_operand.vmem [shape: bf16[2,128,32], index: 4, kind: output, shape index: {}]
  %s5 = sld [smem:[#allocation0]]
  $region49: #{eeg_forward.5} parent=0
    _
  %s7 = ssub.s32 1, %s5
  %s8 = scalar_select 0, %s7, %s5
  loop: start=0, step=1, limit=4
  $region2: #{eeg_forward.5} parent=0 // loop_pre_header
    _
  $region3: #{eeg_forward.5} parent=0 // loop_header
    %s10 = sphi 0, %s14
    %p11 = scmp.ge.s32.totalorder %s10, 4
    %s17 = sphi 0, %s29
    %s18 = sphi 0, %s25
    %s19 = sphi 0, %s17
    %s20 = sphi 0, %s18
    %s21 = sphi 0, %s19
    %s22 = sphi 0, %s20
    %s34 = sphi 0, %s36
    %s37 = sphi 0, %s34
    %s38 = sphi 0, %s37
    %s54 = sphi 0, %s38
    %s66 = sphi 0, %s68
    %s69 = sphi 0, %s66
    %s70 = sphi 0, %s69
    %s86 = sphi 0, %s70
    %s90 = sphi 0, %s90
    %s92 = sphi 0, %s90
    %s93 = sphi 0, %s92
    %s107 = sphi 0, %s93
    %s111 = sphi 0, %s111
    %s113 = sphi 0, %s111
    %s114 = sphi 0, %s113
    %s128 = sphi 0, %s114
    %s136 = sphi 0, %s138
    %s139 = sphi 0, %s136
    %s140 = sphi 0, %s139
    %s156 = sphi 0, %s140
  $region4: #{eeg_forward.5} parent=0 // loop_header_branch
    %13 = sbr.rel (%p11) target = $region8
  $region5: #{eeg_forward.5} parent=0 // loop_body
    %s15 = ssub.s32 %s10, 1
    %s16 = ssub.s32 %s10, 2
    %s23 = sadd.s32 1, %s18
    %p24 = scmp.ge.s32.totalorder %s23, 1
    %s25 = scalar_select %p24, 0, %s23
    %s26 = sadd.s32 1, %s17
    %s27 = scalar_select %p24, %s26, %s17
    %p28 = scmp.ge.s32.totalorder %s27, 2
    %s29 = scalar_select %p28, 0, %s27
    %s30 = ssub.s32 %s17, %s29
    %s31 = ssub.s32 %s18, %s25
    %s32 = sor.u32 %s30, %s31
    %p33 = scmp.eq.s32.totalorder %s32, 0
    %s35 = sadd.s32 %s34, 1
    %s36 = scalar_select %p33, %s34, %s35
    %p39 = pneg %p33
    %p40 = scmp.eq.s32.totalorder %s10, 1
    %p41 = por %p39, %p40
    %p42 = scmp.ne.s32.totalorder %s34, %s37
    %p43 = scmp.eq.s32.totalorder %s10, 0
    %p44 = por %p42, %p43
    %p45 = scmp.ne.s32.totalorder %s34, %s37
    %p46 = scmp.eq.s32.totalorder %s15, 1
    %p47 = por %p45, %p46
    %p48 = scmp.ne.s32.totalorder %s37, %s38
    %p49 = scmp.eq.s32.totalorder %s15, 0
    %p50 = por %p48, %p49
    %p51 = scmp.ne.s32.totalorder %s37, %s38
    %p52 = scmp.eq.s32.totalorder %s16, 1
    %p53 = por %p51, %p52
    %p55 = scmp.ne.s32.totalorder %s38, %s54
    %p56 = scmp.eq.s32.totalorder %s16, 0
    %p57 = por %p55, %p56
    %s58 = sadd.s32 %s18, 1
    %s59 = smul.u32 %s58, 16
    %s60 = sadd.s32 %s25, 1
    %s61 = smul.u32 %s60, 16
    %s62 = ssub.s32 %s17, %s29
    %s63 = ssub.s32 %s59, %s61
    %s64 = sor.u32 %s62, %s63
    %p65 = scmp.eq.s32.totalorder %s64, 0
    %s67 = sadd.s32 %s66, 1
    %s68 = scalar_select %p65, %s66, %s67
    %p71 = pneg %p65
    %p72 = scmp.eq.s32.totalorder %s10, 1
    %p73 = por %p71, %p72
    %p74 = scmp.ne.s32.totalorder %s66, %s69
    %p75 = scmp.eq.s32.totalorder %s10, 0
    %p76 = por %p74, %p75
    %p77 = scmp.ne.s32.totalorder %s66, %s69
    %p78 = scmp.eq.s32.totalorder %s15, 1
    %p79 = por %p77, %p78
    %p80 = scmp.ne.s32.totalorder %s69, %s70
    %p81 = scmp.eq.s32.totalorder %s15, 0
    %p82 = por %p80, %p81
    %p83 = scmp.ne.s32.totalorder %s69, %s70
    %p84 = scmp.eq.s32.totalorder %s16, 1
    %p85 = por %p83, %p84
    %p87 = scmp.ne.s32.totalorder %s70, %s86
    %p88 = scmp.eq.s32.totalorder %s16, 0
    %p89 = por %p87, %p88
    %s91 = sadd.s32 %s90, 1
    %p94 = scmp.eq.s32.totalorder %s10, 1
    %p95 = scmp.ne.s32.totalorder %s90, %s92
    %p96 = scmp.eq.s32.totalorder %s10, 0
    %p97 = por %p95, %p96
    %p98 = scmp.ne.s32.totalorder %s90, %s92
    %p99 = scmp.eq.s32.totalorder %s15, 1
    %p100 = por %p98, %p99
    %p101 = scmp.ne.s32.totalorder %s92, %s93
    %p102 = scmp.eq.s32.totalorder %s15, 0
    %p103 = por %p101, %p102
    %p104 = scmp.ne.s32.totalorder %s92, %s93
    %p105 = scmp.eq.s32.totalorder %s16, 1
    %p106 = por %p104, %p105
    %p108 = scmp.ne.s32.totalorder %s93, %s107
    %p109 = scmp.eq.s32.totalorder %s16, 0
    %p110 = por %p108, %p109
    %s112 = sadd.s32 %s111, 1
    %p115 = scmp.eq.s32.totalorder %s10, 1
    %p116 = scmp.ne.s32.totalorder %s111, %s113
    %p117 = scmp.eq.s32.totalorder %s10, 0
    %p118 = por %p116, %p117
    %p119 = scmp.ne.s32.totalorder %s111, %s113
    %p120 = scmp.eq.s32.totalorder %s15, 1
    %p121 = por %p119, %p120
    %p122 = scmp.ne.s32.totalorder %s113, %s114
    %p123 = scmp.eq.s32.totalorder %s15, 0
    %p124 = por %p122, %p123
    %p125 = scmp.ne.s32.totalorder %s113, %s114
    %p126 = scmp.eq.s32.totalorder %s16, 1
    %p127 = por %p125, %p126
    %p129 = scmp.ne.s32.totalorder %s114, %s128
    %p130 = scmp.eq.s32.totalorder %s16, 0
    %p131 = por %p129, %p130
    %s132 = ssub.s32 %s17, %s29
    %s133 = ssub.s32 %s18, %s25
    %s134 = sor.u32 %s132, %s133
    %p135 = scmp.eq.s32.totalorder %s134, 0
    %s137 = sadd.s32 %s136, 1
    %s138 = scalar_select %p135, %s136, %s137
    %p141 = pneg %p135
    %p142 = scmp.eq.s32.totalorder %s10, 1
    %p143 = por %p141, %p142
    %p144 = scmp.ne.s32.totalorder %s136, %s139
    %p145 = scmp.eq.s32.totalorder %s10, 0
    %p146 = por %p144, %p145
    %p147 = scmp.ne.s32.totalorder %s136, %s139
    %p148 = scmp.eq.s32.totalorder %s15, 1
    %p149 = por %p147, %p148
    %p150 = scmp.ne.s32.totalorder %s139, %s140
    %p151 = scmp.eq.s32.totalorder %s15, 0
    %p152 = por %p150, %p151
    %p153 = scmp.ne.s32.totalorder %s139, %s140
    %p154 = scmp.eq.s32.totalorder %s16, 1
    %p155 = por %p153, %p154
    %p157 = scmp.ne.s32.totalorder %s140, %s156
    %p158 = scmp.eq.s32.totalorder %s16, 0
    %p159 = por %p157, %p158
    %p160 = scmp.le.s32.totalorder 1, %s10
    %p161 = scmp.lt.s32.totalorder %s10, 3
    %p162 = pnand %p160, %p161
    %p163 = pneg %p162
    // Predicated region
    $region9: #{eeg_forward.5} parent=5 // pred_check
      _
    $region10: #{eeg_forward.5} parent=5 // pred_check_branch
      %165 = sbr.rel (%p162) target = $region12
    $region11: #{eeg_forward.5} parent=5 // pred_region
      %s166 = ssub.s32 %s10, 1
      // Predicated region
      $region13: #{eeg_forward.5} parent=11 // pred_check
        %p167 = pneg %p103
      $region14: #{eeg_forward.5} parent=11 // pred_check_branch
        %169 = sbr.rel (%p167) target = $region16
      $region15: #{eeg_forward.5} parent=11 // pred_region
        _
      $region16: #{eeg_forward.5} parent=11 // pred_fallthru
        _
      // Predicated region
      $region17: #{eeg_forward.5} parent=11 // pred_check
        %p170 = pneg %p124
      $region18: #{eeg_forward.5} parent=11 // pred_check_branch
        %172 = sbr.rel (%p170) target = $region20
      $region19: #{eeg_forward.5} parent=11 // pred_region
        _
      $region20: #{eeg_forward.5} parent=11 // pred_fallthru
        _
    $region12: #{eeg_forward.5} parent=5 // pred_fallthru
      _
    %p173 = scmp.lt.s32.totalorder %s10, 2
    // Predicated region
    $region21: #{eeg_forward.5} parent=5 // pred_check
      %p174 = pneg %p173
    $region22: #{eeg_forward.5} parent=5 // pred_check_branch
      %176 = sbr.rel (%p174) target = $region24
    $region23: #{eeg_forward.5} parent=5 // pred_region
      // Predicated region
      $region25: #{eeg_forward.5} parent=23 // pred_check
        %p177 = pneg %p44
      $region26: #{eeg_forward.5} parent=23 // pred_check_branch
        %179 = sbr.rel (%p177) target = $region28
      $region27: #{eeg_forward.5} parent=23 // pred_region
        %s180 = smul.u32 32, %s18
        %s181 = ssub.s32 34, %s180
        %p182 = scmp.lt.s32.totalorder %s181, 32
        %s183 = scalar_select %p182, %s181, 32
        %s184 = smul.u32 64, %s183
        %p185 = scmp.lt.s32.totalorder %s17, 1
        %s186 = scalar_select %p185, %s17, 1
        %p187 = scmp.lt.s32.totalorder %s180, 33
        %s188 = scalar_select %p187, %s180, 33
        %s189 = smul.addr %s186, 34
        %s190 = sadd.s32 %s188, %s189
        %s191 = smul.addr %s190, 4
        %s192 = scalar_lea.vmem %s0, %s191
        %s193 = smul.u32 32, %s18
        %s194 = ssub.s32 34, %s193
        %p195 = scmp.lt.s32.totalorder %s194, 32
        %s196 = scalar_select %p195, %s194, 32
        %s197 = smul.u32 64, %s196
      $region28: #{eeg_forward.5} parent=23 // pred_fallthru
        _
      // Predicated region
      $region29: #{eeg_forward.5} parent=23 // pred_check
        %p198 = pneg %p76
      $region30: #{eeg_forward.5} parent=23 // pred_check_branch
        %200 = sbr.rel (%p198) target = $region32
      $region31: #{eeg_forward.5} parent=23 // pred_region
        %s201 = sadd.s32 %s18, 1
        %s202 = smul.u32 %s201, 16
        %s203 = smul.u32 2, %s202
        %p204 = scmp.lt.s32.totalorder %s17, 1
        %s205 = scalar_select %p204, %s17, 1
        %p206 = scmp.lt.s32.totalorder %s203, 33
        %s207 = scalar_select %p206, %s203, 33
        %s208 = smul.addr %s205, 34
        %s209 = sadd.s32 %s207, %s208
        %s210 = smul.addr %s209, 4
        %s211 = scalar_lea.vmem %s1, %s210
        %s212 = sadd.s32 %s18, 1
        %s213 = smul.u32 %s212, 16
        %s214 = smul.u32 2, %s213
      $region32: #{eeg_forward.5} parent=23 // pred_fallthru
        _
    $region24: #{eeg_forward.5} parent=5 // pred_fallthru
      _
    %p215 = scmp.le.s32.totalorder 1, %s10
    %p216 = scmp.lt.s32.totalorder %s10, 3
    %p217 = pnand %p215, %p216
    %p218 = pneg %p217
    // Predicated region
    $region33: #{eeg_forward.5} parent=5 // pred_check
      _
    $region34: #{eeg_forward.5} parent=5 // pred_check_branch
      %220 = sbr.rel (%p217) target = $region36
    $region35: #{eeg_forward.5} parent=5 // pred_region
      %s221 = ssub.s32 %s10, 1
      %s222 = smul.u32 32, %s20
      %s223 = ssub.s32 34, %s222
      %p224 = scmp.lt.s32.totalorder %s223, 32
      %s225 = scalar_select %p224, %s223, 32
      %s226 = smul.u32 64, %s225
      %p227 = scmp.lt.s32.totalorder %s19, 1
      %s228 = scalar_select %p227, %s19, 1
      %p229 = scmp.lt.s32.totalorder %s222, 33
      %s230 = scalar_select %p229, %s222, 33
      %s231 = smul.addr %s228, 34
      %s232 = sadd.s32 %s230, %s231
      %s233 = smul.addr %s232, 4
      %s234 = scalar_lea.vmem %s0, %s233
      %p235 = pneg %p50
      %p236 = pneg %p47
      %s237 = sadd.s32 %s20, 1
      %s238 = smul.u32 %s237, 16
      %s239 = smul.u32 2, %s238
      %p240 = scmp.lt.s32.totalorder %s19, 1
      %s241 = scalar_select %p240, %s19, 1
      %p242 = scmp.lt.s32.totalorder %s239, 33
      %s243 = scalar_select %p242, %s239, 33
      %s244 = smul.addr %s241, 34
      %s245 = sadd.s32 %s243, %s244
      %s246 = smul.addr %s245, 4
      %s247 = scalar_lea.vmem %s1, %s246
      %p248 = pneg %p82
      %p249 = pneg %p79
      %p250 = pneg %p103
      %p251 = pneg %p100
      %p252 = pneg %p124
      %p253 = pneg %p121
      %p254 = pneg %p152
      %p255 = pneg %p149
      %s256 = smul.u32 16, %s20
      %p257 = scmp.lt.s32.totalorder %s19, 1
      %s258 = scalar_select %p257, %s19, 1
      %p259 = scmp.lt.s32.totalorder %s256, 15
      %s260 = scalar_select %p259, %s256, 15
      %s261 = smul.addr %s258, 16
      %s262 = sadd.s32 %s260, %s261
      %s263 = smul.addr %s262, 4
      %s264 = scalar_lea.vmem %s4, %s263
      %s265 = smul.u32 32, %s20
      %s266 = ssub.s32 34, %s265
      %p267 = scmp.lt.s32.totalorder %s266, 32
      %s268 = scalar_select %p267, %s266, 32
      %s269 = smul.u32 64, %s268
      %p270 = scmp.lt.s32.totalorder %s19, 1
      %s271 = scalar_select %p270, %s19, 1
      %p272 = scmp.lt.s32.totalorder %s265, 33
      %s273 = scalar_select %p272, %s265, 33
      %s274 = smul.addr %s271, 34
      %s275 = sadd.s32 %s273, %s274
      %s276 = smul.addr %s275, 4
      %s277 = scalar_lea.vmem %s0, %s276
      %s278 = smul.u32 32, %s20
      %s279 = ssub.s32 34, %s278
      %p280 = scmp.lt.s32.totalorder %s279, 32
      %s281 = scalar_select %p280, %s279, 32
      %s282 = smul.u32 64, %s281
      %s283 = sadd.s32 %s20, 1
      %s284 = smul.u32 %s283, 16
      %s285 = smul.u32 2, %s284
      %p286 = scmp.lt.s32.totalorder %s19, 1
      %s287 = scalar_select %p286, %s19, 1
      %p288 = scmp.lt.s32.totalorder %s285, 33
      %s289 = scalar_select %p288, %s285, 33
      %s290 = smul.addr %s287, 34
      %s291 = sadd.s32 %s289, %s290
      %s292 = smul.addr %s291, 4
      %s293 = scalar_lea.vmem %s1, %s292
      %s294 = sadd.s32 %s20, 1
      %s295 = smul.u32 %s294, 16
      %s296 = smul.u32 2, %s295
      %s297 = smul.u32 16, %s20
      %p298 = scmp.lt.s32.totalorder %s19, 1
      %s299 = scalar_select %p298, %s19, 1
      %p300 = scmp.lt.s32.totalorder %s297, 15
      %s301 = scalar_select %p300, %s297, 15
      %s302 = smul.addr %s299, 16
      %s303 = sadd.s32 %s301, %s302
      %s304 = smul.addr %s303, 4
      %s305 = scalar_lea.vmem %s4, %s304
      %s306 = smul.u32 16, %s20
      %v308 = vld [vmem:[%s277] sm:$0xf]
      %v309 = vld [vmem:[%s277 + $0x4] sm:$0xf]
      %v310 = vld [vmem:[%s277 + $0x8] sm:$0xf]
      %v311 = vld [vmem:[%s277 + $0xc] sm:$0xf]
      %v312 = vld [vmem:[%s277 + $0x10] sm:$0xf]
      %v313 = vld [vmem:[%s277 + $0x14] sm:$0xf]
      %v314 = vld [vmem:[%s277 + $0x18] sm:$0xf]
      %v315 = vld [vmem:[%s277 + $0x1c] sm:$0xf]
      %v316 = vld [vmem:[%s277 + $0x20] sm:$0xf]
      %v317 = vld [vmem:[%s277 + $0x24] sm:$0xf]
      %v318 = vld [vmem:[%s277 + $0x28] sm:$0xf]
      %v319 = vld [vmem:[%s277 + $0x2c] sm:$0xf]
      %v320 = vld [vmem:[%s277 + $0x30] sm:$0xf]
      %v321 = vld [vmem:[%s277 + $0x34] sm:$0xf]
      %v322 = vld [vmem:[%s277 + $0x38] sm:$0xf]
      %v323 = vld [vmem:[%s277 + $0x3c] sm:$0xf]
      %v324 = vld [vmem:[%s277 + $0x40] sm:$0xf]
      %v325 = vld [vmem:[%s277 + $0x44] sm:$0xf]
      %v326 = vld [vmem:[%s277 + $0x48] sm:$0xf]
      %v327 = vld [vmem:[%s277 + $0x4c] sm:$0xf]
      %v328 = vld [vmem:[%s277 + $0x50] sm:$0xf]
      %v329 = vld [vmem:[%s277 + $0x54] sm:$0xf]
      %v330 = vld [vmem:[%s277 + $0x58] sm:$0xf]
      %v331 = vld [vmem:[%s277 + $0x5c] sm:$0xf]
      %v332 = vld [vmem:[%s277 + $0x60] sm:$0xf]
      %v333 = vld [vmem:[%s277 + $0x64] sm:$0xf]
      %v334 = vld [vmem:[%s277 + $0x68] sm:$0xf]
      %v335 = vld [vmem:[%s277 + $0x6c] sm:$0xf]
      %v336 = vld [vmem:[%s277 + $0x70] sm:$0xf]
      %v337 = vld [vmem:[%s277 + $0x74] sm:$0xf]
      %v338 = vld [vmem:[%s277 + $0x78] sm:$0xf]
      %v339 = vld [vmem:[%s277 + $0x7c] sm:$0xf]
      %v340 = vld [vmem:[%s293] sm:$0xf]
      %v341 = vld [vmem:[%s293 + $0x4] sm:$0xf]
      %v374 = vunpack.c.l.b16 %v308
      %v375 = vunpack.c.l.b16 %v309
      %v376 = vunpack.c.l.b16 %v310
      %v377 = vunpack.c.l.b16 %v311
      %v378 = vunpack.c.l.b16 %v312
      %v379 = vunpack.c.l.b16 %v313
      %v380 = vunpack.c.l.b16 %v314
      %v381 = vunpack.c.l.b16 %v315
      %v382 = vunpack.c.l.b16 %v316
      %v383 = vunpack.c.l.b16 %v317
      %v384 = vunpack.c.l.b16 %v318
      %v385 = vunpack.c.l.b16 %v319
      %v386 = vunpack.c.l.b16 %v320
      %v387 = vunpack.c.l.b16 %v321
      %v388 = vunpack.c.l.b16 %v322
      %v389 = vunpack.c.l.b16 %v323
      %v390 = vunpack.c.l.b16 %v324
      %v391 = vunpack.c.l.b16 %v325
      %v392 = vunpack.c.l.b16 %v326
      %v393 = vunpack.c.l.b16 %v327
      %v394 = vunpack.c.l.b16 %v328
      %v395 = vunpack.c.l.b16 %v329
      %v396 = vunpack.c.l.b16 %v330
      %v397 = vunpack.c.l.b16 %v331
      %v398 = vunpack.c.l.b16 %v332
      %v399 = vunpack.c.l.b16 %v333
      %v400 = vunpack.c.l.b16 %v334
      %v401 = vunpack.c.l.b16 %v335
      %v402 = vunpack.c.l.b16 %v336
      %v403 = vunpack.c.l.b16 %v337
      %v404 = vunpack.c.l.b16 %v338
      %v405 = vunpack.c.l.b16 %v339
      %v406 = vpack.c.b16 %v375, %v374
      %v407 = vpack.c.b16 %v377, %v376
      %v408 = vpack.c.b16 %v379, %v378
      %v409 = vpack.c.b16 %v381, %v380
      %v410 = vpack.c.b16 %v383, %v382
      %v411 = vpack.c.b16 %v385, %v384
      %v412 = vpack.c.b16 %v387, %v386
      %v413 = vpack.c.b16 %v389, %v388
      %v414 = vpack.c.b16 %v391, %v390
      %v415 = vpack.c.b16 %v393, %v392
      %v416 = vpack.c.b16 %v395, %v394
      %v417 = vpack.c.b16 %v397, %v396
      %v418 = vpack.c.b16 %v399, %v398
      %v419 = vpack.c.b16 %v401, %v400
      %v420 = vpack.c.b16 %v403, %v402
      %v421 = vpack.c.b16 %v405, %v404
      %v424 = vunpack.c.l.b16 %v340
      %v425 = vunpack.c.l.b16 %v341
      %v426 = vpack.c.b16 %v425, %v424
      %v427 = vld [vmem:[%s2] sm:$0xff]
      %v428 = vld [vmem:[%s2 + $0x8] sm:$0xff]
      %v431 = vunpack.c.l.b16 %v427
      %v432 = vunpack.c.h.b16 %v427
      %v433 = vunpack.c.l.b16 %v428
      %v434 = vunpack.c.h.b16 %v428
      %v435 = vpack.c.b16 %v433, %v431
      %v436 = vpack.c.b16 %v434, %v432
      %vm439 = vcmask 130048
      %v441 = vsel %vm439, %v406, 0
      %v444 = vsel %vm439, %v407, 0
      %v447 = vsel %vm439, %v408, 0
      %v450 = vsel %vm439, %v409, 0
      %v453 = vsel %vm439, %v410, 0
      %v456 = vsel %vm439, %v411, 0
      %v459 = vsel %vm439, %v412, 0
      %v462 = vsel %vm439, %v413, 0
      %v465 = vsel %vm439, %v414, 0
      %v468 = vsel %vm439, %v415, 0
      %v471 = vsel %vm439, %v416, 0
      %v474 = vsel %vm439, %v417, 0
      %v477 = vsel %vm439, %v418, 0
      %v480 = vsel %vm439, %v419, 0
      %v483 = vsel %vm439, %v420, 0
      %v486 = vsel %vm439, %v421, 0
      %v489 = vsel %vm439, %v426, 0
      %491 = vmatprep.subr.bf16.mxu0 %v436
      %492 = vmatpush1.bf16.msra.mxu0 %v435
      %493 = vmatprep.subr.bf16.mxu0 0
      %494 = vmatpush1.bf16.msra.mxu0 0
      %495 = vmatprep.subr.bf16.mxu0 0
      %496 = vmatpush1.bf16.msra.mxu0 0
      %497 = vmatprep.subr.bf16.mxu0 0
      %498 = vmatpush1.bf16.msra.mxu0 0
      %499 = vmatprep.subr.bf16.mxu0 0
      %500 = vmatpush1.bf16.msra.mxu0 0
      %501 = vmatprep.subr.bf16.mxu0 0
      %502 = vmatpush1.bf16.msra.mxu0 0
      %503 = vmatprep.subr.bf16.mxu0 0
      %504 = vmatpush1.bf16.msra.mxu0 0
      %505 = vmatprep.subr.bf16.mxu0 0
      %506 = vmatpush1.bf16.msra.mxu0 0
      %507 = vmatprep.subr.bf16.mxu0 0
      %508 = vmatpush1.bf16.msra.mxu0 0
      %509 = vmatprep.subr.bf16.mxu0 0
      %510 = vmatpush1.bf16.msra.mxu0 0
      %511 = vmatprep.subr.bf16.mxu0 0
      %512 = vmatpush1.bf16.msra.mxu0 0
      %513 = vmatprep.subr.bf16.mxu0 0
      %514 = vmatpush1.bf16.msra.mxu0 0
      %515 = vmatprep.subr.bf16.mxu0 0
      %516 = vmatpush1.bf16.msra.mxu0 0
      %517 = vmatprep.subr.bf16.mxu0 0
      %518 = vmatpush1.bf16.msra.mxu0 0
      %519 = vmatprep.subr.bf16.mxu0 0
      %520 = vmatpush1.bf16.msra.mxu0 0
      %521 = vmatprep.subr.bf16.mxu0 0
      %522 = vmatpush1.bf16.msra.mxu0 0
      %523 = vmatprep.mubr.bf16.mxu0 0
      %524 = vmatmul.mubr.bf16.gmra.mrb[0].mxu0 %v441
      %v525 = vpop.f32.mrb[0].mxu0
      %v526 = vadd.f32 0.0, %v525
      %v527 = vpop.f32.mrb[0].mxu0
      %v528 = vadd.f32 0.0, %v527
      %v529 = vpop.f32.mrb[0].mxu0
      %v530 = vadd.f32 0.0, %v529
      %v531 = vpop.f32.mrb[0].mxu0
      %v532 = vadd.f32 0.0, %v531
      %533 = vmatprep.mubr.bf16.mxu0 0
      %534 = vmatmul.mubr.bf16.gmra.mrb[0].mxu0 %v444
      %v535 = vpop.f32.mrb[0].mxu0
      %v536 = vadd.f32 0.0, %v535
      %v537 = vpop.f32.mrb[0].mxu0
      %v538 = vadd.f32 0.0, %v537
      %v539 = vpop.f32.mrb[0].mxu0
      %v540 = vadd.f32 0.0, %v539
      %v541 = vpop.f32.mrb[0].mxu0
      %v542 = vadd.f32 0.0, %v541
      %543 = vmatprep.mubr.bf16.mxu0 0
      %544 = vmatmul.mubr.bf16.gmra.mrb[0].mxu0 %v447
      %v545 = vpop.f32.mrb[0].mxu0
      %v546 = vadd.f32 0.0, %v545
      %v547 = vpop.f32.mrb[0].mxu0
      %v548 = vadd.f32 0.0, %v547
      %v549 = vpop.f32.mrb[0].mxu0
      %v550 = vadd.f32 0.0, %v549
      %v551 = vpop.f32.mrb[0].mxu0
      %v552 = vadd.f32 0.0, %v551
      %553 = vmatprep.mubr.bf16.mxu0 0
      %554 = vmatmul.mubr.bf16.gmra.mrb[0].mxu0 %v450
      %v555 = vpop.f32.mrb[0].mxu0
      %v556 = vadd.f32 0.0, %v555
      %v557 = vpop.f32.mrb[0].mxu0
      %v558 = vadd.f32 0.0, %v557
      %v559 = vpop.f32.mrb[0].mxu0
      %v560 = vadd.f32 0.0, %v559
      %v561 = vpop.f32.mrb[0].mxu0
      %v562 = vadd.f32 0.0, %v561
      %563 = vmatprep.mubr.bf16.mxu0 0
      %564 = vmatmul.mubr.bf16.gmra.mrb[0].mxu0 %v453
      %v565 = vpop.f32.mrb[0].mxu0
      %v566 = vadd.f32 0.0, %v565
      %v567 = vpop.f32.mrb[0].mxu0
      %v568 = vadd.f32 0.0, %v567
      %v569 = vpop.f32.mrb[0].mxu0
      %v570 = vadd.f32 0.0, %v569
      %v571 = vpop.f32.mrb[0].mxu0
      %v572 = vadd.f32 0.0, %v571
      %573 = vmatprep.mubr.bf16.mxu0 0
      %574 = vmatmul.mubr.bf16.gmra.mrb[0].mxu0 %v456
      %v575 = vpop.f32.mrb[0].mxu0
      %v576 = vadd.f32 0.0, %v575
      %v577 = vpop.f32.mrb[0].mxu0
      %v578 = vadd.f32 0.0, %v577
      %v579 = vpop.f32.mrb[0].mxu0
      %v580 = vadd.f32 0.0, %v579
      %v581 = vpop.f32.mrb[0].mxu0
      %v582 = vadd.f32 0.0, %v581
      %583 = vmatprep.mubr.bf16.mxu0 0
      %584 = vmatmul.mubr.bf16.gmra.mrb[0].mxu0 %v459
      %v585 = vpop.f32.mrb[0].mxu0
      %v586 = vadd.f32 0.0, %v585
      %v587 = vpop.f32.mrb[0].mxu0
      %v588 = vadd.f32 0.0, %v587
      %v589 = vpop.f32.mrb[0].mxu0
      %v590 = vadd.f32 0.0, %v589
      %v591 = vpop.f32.mrb[0].mxu0
      %v592 = vadd.f32 0.0, %v591
      %593 = vmatprep.mubr.bf16.mxu0 0
      %594 = vmatmul.mubr.bf16.gmra.mrb[0].mxu0 %v462
      %v595 = vpop.f32.mrb[0].mxu0
      %v596 = vadd.f32 0.0, %v595
      %v597 = vpop.f32.mrb[0].mxu0
      %v598 = vadd.f32 0.0, %v597
      %v599 = vpop.f32.mrb[0].mxu0
      %v600 = vadd.f32 0.0, %v599
      %v601 = vpop.f32.mrb[0].mxu0
      %v602 = vadd.f32 0.0, %v601
      %603 = vmatprep.mubr.bf16.mxu0 0
      %604 = vmatmul.mubr.bf16.gmra.mrb[0].mxu0 %v465
      %v605 = vpop.f32.mrb[0].mxu0
      %v606 = vadd.f32 0.0, %v605
      %v607 = vpop.f32.mrb[0].mxu0
      %v608 = vadd.f32 0.0, %v607
      %v609 = vpop.f32.mrb[0].mxu0
      %v610 = vadd.f32 0.0, %v609
      %v611 = vpop.f32.mrb[0].mxu0
      %v612 = vadd.f32 0.0, %v611
      %613 = vmatprep.mubr.bf16.mxu0 0
      %614 = vmatmul.mubr.bf16.gmra.mrb[0].mxu0 %v468
      %v615 = vpop.f32.mrb[0].mxu0
      %v616 = vadd.f32 0.0, %v615
      %v617 = vpop.f32.mrb[0].mxu0
      %v618 = vadd.f32 0.0, %v617
      %v619 = vpop.f32.mrb[0].mxu0
      %v620 = vadd.f32 0.0, %v619
      %v621 = vpop.f32.mrb[0].mxu0
      %v622 = vadd.f32 0.0, %v621
      %623 = vmatprep.mubr.bf16.mxu0 0
      %624 = vmatmul.mubr.bf16.gmra.mrb[0].mxu0 %v471
      %v625 = vpop.f32.mrb[0].mxu0
      %v626 = vadd.f32 0.0, %v625
      %v627 = vpop.f32.mrb[0].mxu0
      %v628 = vadd.f32 0.0, %v627
      %v629 = vpop.f32.mrb[0].mxu0
      %v630 = vadd.f32 0.0, %v629
      %v631 = vpop.f32.mrb[0].mxu0
      %v632 = vadd.f32 0.0, %v631
      %633 = vmatprep.mubr.bf16.mxu0 0
      %634 = vmatmul.mubr.bf16.gmra.mrb[0].mxu0 %v474
      %v635 = vpop.f32.mrb[0].mxu0
      %v636 = vadd.f32 0.0, %v635
      %v637 = vpop.f32.mrb[0].mxu0
      %v638 = vadd.f32 0.0, %v637
      %v639 = vpop.f32.mrb[0].mxu0
      %v640 = vadd.f32 0.0, %v639
      %v641 = vpop.f32.mrb[0].mxu0
      %v642 = vadd.f32 0.0, %v641
      %643 = vmatprep.mubr.bf16.mxu0 0
      %644 = vmatmul.mubr.bf16.gmra.mrb[0].mxu0 %v477
      %v645 = vpop.f32.mrb[0].mxu0
      %v646 = vadd.f32 0.0, %v645
      %v647 = vpop.f32.mrb[0].mxu0
      %v648 = vadd.f32 0.0, %v647
      %v649 = vpop.f32.mrb[0].mxu0
      %v650 = vadd.f32 0.0, %v649
      %v651 = vpop.f32.mrb[0].mxu0
      %v652 = vadd.f32 0.0, %v651
      %653 = vmatprep.mubr.bf16.mxu0 0
      %654 = vmatmul.mubr.bf16.gmra.mrb[0].mxu0 %v480
      %v655 = vpop.f32.mrb[0].mxu0
      %v656 = vadd.f32 0.0, %v655
      %v657 = vpop.f32.mrb[0].mxu0
      %v658 = vadd.f32 0.0, %v657
      %v659 = vpop.f32.mrb[0].mxu0
      %v660 = vadd.f32 0.0, %v659
      %v661 = vpop.f32.mrb[0].mxu0
      %v662 = vadd.f32 0.0, %v661
      %663 = vmatprep.mubr.bf16.mxu0 0
      %664 = vmatmul.mubr.bf16.gmra.mrb[0].mxu0 %v483
      %v665 = vpop.f32.mrb[0].mxu0
      %v666 = vadd.f32 0.0, %v665
      %v667 = vpop.f32.mrb[0].mxu0
      %v668 = vadd.f32 0.0, %v667
      %v669 = vpop.f32.mrb[0].mxu0
      %v670 = vadd.f32 0.0, %v669
      %v671 = vpop.f32.mrb[0].mxu0
      %v672 = vadd.f32 0.0, %v671
      %673 = vmatprep.mubr.bf16.mxu0 0
      %674 = vmatmul.mubr.bf16.gmra.mrb[0].mxu0 %v486
      %v675 = vpop.f32.mrb[0].mxu0
      %v676 = vadd.f32 0.0, %v675
      %v677 = vpop.f32.mrb[0].mxu0
      %v678 = vadd.f32 0.0, %v677
      %v679 = vpop.f32.mrb[0].mxu0
      %v680 = vadd.f32 0.0, %v679
      %v681 = vpop.f32.mrb[0].mxu0
      %v682 = vadd.f32 0.0, %v681
      %683 = vmatprep.mubr.bf16.mxu0 0
      %684 = vmatmul.mubr.bf16.gmra.mrb[0].mxu0 %v489
      %v685 = vpop.f32.mrb[0].mxu0
      %v686 = vadd.f32 0.0, %v685
      %v687 = vpop.f32.mrb[0].mxu0
      %v688 = vadd.f32 0.0, %v687
      %v689 = vpop.f32.mrb[0].mxu0
      %v690 = vpop.f32.mrb[0].mxu0
      %691 = vdwg.mxu0
      %v692 = vadd.f32 %v526, 0.0
      %v693 = vadd.f32 %v530, 0.0
      %v694 = vadd.f32 %v536, 0.0
      %v695 = vadd.f32 %v540, 0.0
      %v696 = vadd.f32 %v546, 0.0
      %v697 = vadd.f32 %v550, 0.0
      %v698 = vadd.f32 %v556, 0.0
      %v699 = vadd.f32 %v560, 0.0
      %v700 = vadd.f32 %v566, 0.0
      %v701 = vadd.f32 %v570, 0.0
      %v702 = vadd.f32 %v576, 0.0
      %v703 = vadd.f32 %v580, 0.0
      %v704 = vadd.f32 %v586, 0.0
      %v705 = vadd.f32 %v590, 0.0
      %v706 = vadd.f32 %v596, 0.0
      %v707 = vadd.f32 %v600, 0.0
      %v708 = vadd.f32 %v606, 0.0
      %v709 = vadd.f32 %v610, 0.0
      %v710 = vadd.f32 %v616, 0.0
      %v711 = vadd.f32 %v620, 0.0
      %v712 = vadd.f32 %v626, 0.0
      %v713 = vadd.f32 %v630, 0.0
      %v714 = vadd.f32 %v636, 0.0
      %v715 = vadd.f32 %v640, 0.0
      %v716 = vadd.f32 %v646, 0.0
      %v717 = vadd.f32 %v650, 0.0
      %v718 = vadd.f32 %v656, 0.0
      %v719 = vadd.f32 %v660, 0.0
      %v720 = vadd.f32 %v666, 0.0
      %v721 = vadd.f32 %v670, 0.0
      %v722 = vadd.f32 %v676, 0.0
      %v723 = vadd.f32 %v680, 0.0
      %vm757 = vcmask 1046528
      %v758 = vrot.slane %v526, 1
      %v759 = vrot.slane %v530, 1
      %v760 = vsel %vm757, %v758, %v759
      %v761 = vrot.slane %v536, 1
      %v762 = vsel %vm757, %v759, %v761
      %v763 = vrot.slane %v540, 1
      %v764 = vsel %vm757, %v761, %v763
      %v765 = vrot.slane %v546, 1
      %v766 = vsel %vm757, %v763, %v765
      %v767 = vrot.slane %v550, 1
      %v768 = vsel %vm757, %v765, %v767
      %v769 = vrot.slane %v556, 1
      %v770 = vsel %vm757, %v767, %v769
      %v771 = vrot.slane %v560, 1
      %v772 = vsel %vm757, %v769, %v771
      %v773 = vrot.slane %v566, 1
      %v774 = vsel %vm757, %v771, %v773
      %v775 = vrot.slane %v570, 1
      %v776 = vsel %vm757, %v773, %v775
      %v777 = vrot.slane %v576, 1
      %v778 = vsel %vm757, %v775, %v777
      %v779 = vrot.slane %v580, 1
      %v780 = vsel %vm757, %v777, %v779
      %v781 = vrot.slane %v586, 1
      %v782 = vsel %vm757, %v779, %v781
      %v783 = vrot.slane %v590, 1
      %v784 = vsel %vm757, %v781, %v783
      %v785 = vrot.slane %v596, 1
      %v786 = vsel %vm757, %v783, %v785
      %v787 = vrot.slane %v600, 1
      %v788 = vsel %vm757, %v785, %v787
      %v789 = vrot.slane %v606, 1
      %v790 = vsel %vm757, %v787, %v789
      %v791 = vrot.slane %v610, 1
      %v792 = vsel %vm757, %v789, %v791
      %v793 = vrot.slane %v616, 1
      %v794 = vsel %vm757, %v791, %v793
      %v795 = vrot.slane %v620, 1
      %v796 = vsel %vm757, %v793, %v795
      %v797 = vrot.slane %v626, 1
      %v798 = vsel %vm757, %v795, %v797
      %v799 = vrot.slane %v630, 1
      %v800 = vsel %vm757, %v797, %v799
      %v801 = vrot.slane %v636, 1
      %v802 = vsel %vm757, %v799, %v801
      %v803 = vrot.slane %v640, 1
      %v804 = vsel %vm757, %v801, %v803
      %v805 = vrot.slane %v646, 1
      %v806 = vsel %vm757, %v803, %v805
      %v807 = vrot.slane %v650, 1
      %v808 = vsel %vm757, %v805, %v807
      %v809 = vrot.slane %v656, 1
      %v810 = vsel %vm757, %v807, %v809
      %v811 = vrot.slane %v660, 1
      %v812 = vsel %vm757, %v809, %v811
      %v813 = vrot.slane %v666, 1
      %v814 = vsel %vm757, %v811, %v813
      %v815 = vrot.slane %v670, 1
      %v816 = vsel %vm757, %v813, %v815
      %v817 = vrot.slane %v676, 1
      %v818 = vsel %vm757, %v815, %v817
      %v819 = vrot.slane %v680, 1
      %v820 = vsel %vm757, %v817, %v819
      %v821 = vrot.slane %v686, 1
      %v822 = vsel %vm757, %v819, %v821
      %823 = vrot.lane.b32.xlu0 %v760, 96
      %v824 = vpop.permute.xlu0 %823
      %825 = vrot.lane.b32.xlu0 %v762, 96
      %v826 = vpop.permute.xlu0 %825
      %827 = vrot.lane.b32.xlu0 %v764, 96
      %v828 = vpop.permute.xlu0 %827
      %829 = vrot.lane.b32.xlu0 %v766, 96
      %v830 = vpop.permute.xlu0 %829
      %831 = vrot.lane.b32.xlu0 %v768, 96
      %v832 = vpop.permute.xlu0 %831
      %833 = vrot.lane.b32.xlu0 %v770, 96
      %v834 = vpop.permute.xlu0 %833
      %835 = vrot.lane.b32.xlu0 %v772, 96
      %v836 = vpop.permute.xlu0 %835
      %837 = vrot.lane.b32.xlu0 %v774, 96
      %v838 = vpop.permute.xlu0 %837
      %839 = vrot.lane.b32.xlu0 %v776, 96
      %v840 = vpop.permute.xlu0 %839
      %841 = vrot.lane.b32.xlu0 %v778, 96
      %v842 = vpop.permute.xlu0 %841
      %843 = vrot.lane.b32.xlu0 %v780, 96
      %v844 = vpop.permute.xlu0 %843
      %845 = vrot.lane.b32.xlu0 %v782, 96
      %v846 = vpop.permute.xlu0 %845
      %847 = vrot.lane.b32.xlu0 %v784, 96
      %v848 = vpop.permute.xlu0 %847
      %849 = vrot.lane.b32.xlu0 %v786, 96
      %v850 = vpop.permute.xlu0 %849
      %851 = vrot.lane.b32.xlu0 %v788, 96
      %v852 = vpop.permute.xlu0 %851
      %853 = vrot.lane.b32.xlu0 %v790, 96
      %v854 = vpop.permute.xlu0 %853
      %855 = vrot.lane.b32.xlu0 %v792, 96
      %v856 = vpop.permute.xlu0 %855
      %857 = vrot.lane.b32.xlu0 %v794, 96
      %v858 = vpop.permute.xlu0 %857
      %859 = vrot.lane.b32.xlu0 %v796, 96
      %v860 = vpop.permute.xlu0 %859
      %861 = vrot.lane.b32.xlu0 %v798, 96
      %v862 = vpop.permute.xlu0 %861
      %863 = vrot.lane.b32.xlu0 %v800, 96
      %v864 = vpop.permute.xlu0 %863
      %865 = vrot.lane.b32.xlu0 %v802, 96
      %v866 = vpop.permute.xlu0 %865
      %867 = vrot.lane.b32.xlu0 %v804, 96
      %v868 = vpop.permute.xlu0 %867
      %869 = vrot.lane.b32.xlu0 %v806, 96
      %v870 = vpop.permute.xlu0 %869
      %871 = vrot.lane.b32.xlu0 %v808, 96
      %v872 = vpop.permute.xlu0 %871
      %873 = vrot.lane.b32.xlu0 %v810, 96
      %v874 = vpop.permute.xlu0 %873
      %875 = vrot.lane.b32.xlu0 %v812, 96
      %v876 = vpop.permute.xlu0 %875
      %877 = vrot.lane.b32.xlu0 %v814, 96
      %v878 = vpop.permute.xlu0 %877
      %879 = vrot.lane.b32.xlu0 %v816, 96
      %v880 = vpop.permute.xlu0 %879
      %881 = vrot.lane.b32.xlu0 %v818, 96
      %v882 = vpop.permute.xlu0 %881
      %883 = vrot.lane.b32.xlu0 %v820, 96
      %v884 = vpop.permute.xlu0 %883
      %885 = vrot.lane.b32.xlu0 %v822, 96
      %v886 = vpop.permute.xlu0 %885
      %v919 = vadd.f32 %v692, %v824
      %v920 = vadd.f32 %v693, %v826
      %v921 = vadd.f32 %v694, %v828
      %v922 = vadd.f32 %v695, %v830
      %v923 = vadd.f32 %v696, %v832
      %v924 = vadd.f32 %v697, %v834
      %v925 = vadd.f32 %v698, %v836
      %v926 = vadd.f32 %v699, %v838
      %v927 = vadd.f32 %v700, %v840
      %v928 = vadd.f32 %v701, %v842
      %v929 = vadd.f32 %v702, %v844
      %v930 = vadd.f32 %v703, %v846
      %v931 = vadd.f32 %v704, %v848
      %v932 = vadd.f32 %v705, %v850
      %v933 = vadd.f32 %v706, %v852
      %v934 = vadd.f32 %v707, %v854
      %v935 = vadd.f32 %v708, %v856
      %v936 = vadd.f32 %v709, %v858
      %v937 = vadd.f32 %v710, %v860
      %v938 = vadd.f32 %v711, %v862
      %v939 = vadd.f32 %v712, %v864
      %v940 = vadd.f32 %v713, %v866
      %v941 = vadd.f32 %v714, %v868
      %v942 = vadd.f32 %v715, %v870
      %v943 = vadd.f32 %v716, %v872
      %v944 = vadd.f32 %v717, %v874
      %v945 = vadd.f32 %v718, %v876
      %v946 = vadd.f32 %v719, %v878
      %v947 = vadd.f32 %v720, %v880
      %v948 = vadd.f32 %v721, %v882
      %v949 = vadd.f32 %v722, %v884
      %v950 = vadd.f32 %v723, %v886
      %vm951 = vcmask 1045504
      %v952 = vrot.slane %v526, 2
      %v953 = vrot.slane %v530, 2
      %v954 = vsel %vm951, %v952, %v953
      %v955 = vrot.slane %v536, 2
      %v956 = vsel %vm951, %v953, %v955
      %v957 = vrot.slane %v540, 2
      %v958 = vsel %vm951, %v955, %v957
      %v959 = vrot.slane %v546, 2
      %v960 = vsel %vm951, %v957, %v959
      %v961 = vrot.slane %v550, 2
      %v962 = vsel %vm951, %v959, %v961
      %v963 = vrot.slane %v556, 2
      %v964 = vsel %vm951, %v961, %v963
      %v965 = vrot.slane %v560, 2
      %v966 = vsel %vm951, %v963, %v965
      %v967 = vrot.slane %v566, 2
      %v968 = vsel %vm951, %v965, %v967
      %v969 = vrot.slane %v570, 2
      %v970 = vsel %vm951, %v967, %v969
      %v971 = vrot.slane %v576, 2
      %v972 = vsel %vm951, %v969, %v971
      %v973 = vrot.slane %v580, 2
      %v974 = vsel %vm951, %v971, %v973
      %v975 = vrot.slane %v586, 2
      %v976 = vsel %vm951, %v973, %v975
      %v977 = vrot.slane %v590, 2
      %v978 = vsel %vm951, %v975, %v977
      %v979 = vrot.slane %v596, 2
      %v980 = vsel %vm951, %v977, %v979
      %v981 = vrot.slane %v600, 2
      %v982 = vsel %vm951, %v979, %v981
      %v983 = vrot.slane %v606, 2
      %v984 = vsel %vm951, %v981, %v983
      %v985 = vrot.slane %v610, 2
      %v986 = vsel %vm951, %v983, %v985
      %v987 = vrot.slane %v616, 2
      %v988 = vsel %vm951, %v985, %v987
      %v989 = vrot.slane %v620, 2
      %v990 = vsel %vm951, %v987, %v989
      %v991 = vrot.slane %v626, 2
      %v992 = vsel %vm951, %v989, %v991
      %v993 = vrot.slane %v630, 2
      %v994 = vsel %vm951, %v991, %v993
      %v995 = vrot.slane %v636, 2
      %v996 = vsel %vm951, %v993, %v995
      %v997 = vrot.slane %v640, 2
      %v998 = vsel %vm951, %v995, %v997
      %v999 = vrot.slane %v646, 2
      %v1000 = vsel %vm951, %v997, %v999
      %v1001 = vrot.slane %v650, 2
      %v1002 = vsel %vm951, %v999, %v1001
      %v1003 = vrot.slane %v656, 2
      %v1004 = vsel %vm951, %v1001, %v1003
      %v1005 = vrot.slane %v660, 2
      %v1006 = vsel %vm951, %v1003, %v1005
      %v1007 = vrot.slane %v666, 2
      %v1008 = vsel %vm951, %v1005, %v1007
      %v1009 = vrot.slane %v670, 2
      %v1010 = vsel %vm951, %v1007, %v1009
      %v1011 = vrot.slane %v676, 2
      %v1012 = vsel %vm951, %v1009, %v1011
      %v1013 = vrot.slane %v680, 2
      %v1014 = vsel %vm951, %v1011, %v1013
      %v1015 = vrot.slane %v686, 2
      %v1016 = vsel %vm951, %v1013, %v1015
      %1017 = vrot.lane.b32.xlu0 %v954, 64
      %v1018 = vpop.permute.xlu0 %1017
      %1019 = vrot.lane.b32.xlu0 %v956, 64
      %v1020 = vpop.permute.xlu0 %1019
      %1021 = vrot.lane.b32.xlu0 %v958, 64
      %v1022 = vpop.permute.xlu0 %1021
      %1023 = vrot.lane.b32.xlu0 %v960, 64
      %v1024 = vpop.permute.xlu0 %1023
      %1025 = vrot.lane.b32.xlu0 %v962, 64
      %v1026 = vpop.permute.xlu0 %1025
      %1027 = vrot.lane.b32.xlu0 %v964, 64
      %v1028 = vpop.permute.xlu0 %1027
      %1029 = vrot.lane.b32.xlu0 %v966, 64
      %v1030 = vpop.permute.xlu0 %1029
      %1031 = vrot.lane.b32.xlu0 %v968, 64
      %v1032 = vpop.permute.xlu0 %1031
      %1033 = vrot.lane.b32.xlu0 %v970, 64
      %v1034 = vpop.permute.xlu0 %1033
      %1035 = vrot.lane.b32.xlu0 %v972, 64
      %v1036 = vpop.permute.xlu0 %1035
      %1037 = vrot.lane.b32.xlu0 %v974, 64
      %v1038 = vpop.permute.xlu0 %1037
      %1039 = vrot.lane.b32.xlu0 %v976, 64
      %v1040 = vpop.permute.xlu0 %1039
      %1041 = vrot.lane.b32.xlu0 %v978, 64
      %v1042 = vpop.permute.xlu0 %1041
      %1043 = vrot.lane.b32.xlu0 %v980, 64
      %v1044 = vpop.permute.xlu0 %1043
      %1045 = vrot.lane.b32.xlu0 %v982, 64
      %v1046 = vpop.permute.xlu0 %1045
      %1047 = vrot.lane.b32.xlu0 %v984, 64
      %v1048 = vpop.permute.xlu0 %1047
      %1049 = vrot.lane.b32.xlu0 %v986, 64
      %v1050 = vpop.permute.xlu0 %1049
      %1051 = vrot.lane.b32.xlu0 %v988, 64
      %v1052 = vpop.permute.xlu0 %1051
      %1053 = vrot.lane.b32.xlu0 %v990, 64
      %v1054 = vpop.permute.xlu0 %1053
      %1055 = vrot.lane.b32.xlu0 %v992, 64
      %v1056 = vpop.permute.xlu0 %1055
      %1057 = vrot.lane.b32.xlu0 %v994, 64
      %v1058 = vpop.permute.xlu0 %1057
      %1059 = vrot.lane.b32.xlu0 %v996, 64
      %v1060 = vpop.permute.xlu0 %1059
      %1061 = vrot.lane.b32.xlu0 %v998, 64
      %v1062 = vpop.permute.xlu0 %1061
      %1063 = vrot.lane.b32.xlu0 %v1000, 64
      %v1064 = vpop.permute.xlu0 %1063
      %1065 = vrot.lane.b32.xlu0 %v1002, 64
      %v1066 = vpop.permute.xlu0 %1065
      %1067 = vrot.lane.b32.xlu0 %v1004, 64
      %v1068 = vpop.permute.xlu0 %1067
      %1069 = vrot.lane.b32.xlu0 %v1006, 64
      %v1070 = vpop.permute.xlu0 %1069
      %1071 = vrot.lane.b32.xlu0 %v1008, 64
      %v1072 = vpop.permute.xlu0 %1071
      %1073 = vrot.lane.b32.xlu0 %v1010, 64
      %v1074 = vpop.permute.xlu0 %1073
      %1075 = vrot.lane.b32.xlu0 %v1012, 64
      %v1076 = vpop.permute.xlu0 %1075
      %1077 = vrot.lane.b32.xlu0 %v1014, 64
      %v1078 = vpop.permute.xlu0 %1077
      %1079 = vrot.lane.b32.xlu0 %v1016, 64
      %v1080 = vpop.permute.xlu0 %1079
      %v1113 = vadd.f32 %v919, %v1018
      %v1114 = vadd.f32 %v920, %v1020
      %v1115 = vadd.f32 %v921, %v1022
      %v1116 = vadd.f32 %v922, %v1024
      %v1117 = vadd.f32 %v923, %v1026
      %v1118 = vadd.f32 %v924, %v1028
      %v1119 = vadd.f32 %v925, %v1030
      %v1120 = vadd.f32 %v926, %v1032
      %v1121 = vadd.f32 %v927, %v1034
      %v1122 = vadd.f32 %v928, %v1036
      %v1123 = vadd.f32 %v929, %v1038
      %v1124 = vadd.f32 %v930, %v1040
      %v1125 = vadd.f32 %v931, %v1042
      %v1126 = vadd.f32 %v932, %v1044
      %v1127 = vadd.f32 %v933, %v1046
      %v1128 = vadd.f32 %v934, %v1048
      %v1129 = vadd.f32 %v935, %v1050
      %v1130 = vadd.f32 %v936, %v1052
      %v1131 = vadd.f32 %v937, %v1054
      %v1132 = vadd.f32 %v938, %v1056
      %v1133 = vadd.f32 %v939, %v1058
      %v1134 = vadd.f32 %v940, %v1060
      %v1135 = vadd.f32 %v941, %v1062
      %v1136 = vadd.f32 %v942, %v1064
      %v1137 = vadd.f32 %v943, %v1066
      %v1138 = vadd.f32 %v944, %v1068
      %v1139 = vadd.f32 %v945, %v1070
      %v1140 = vadd.f32 %v946, %v1072
      %v1141 = vadd.f32 %v947, %v1074
      %v1142 = vadd.f32 %v948, %v1076
      %v1143 = vadd.f32 %v949, %v1078
      %v1144 = vadd.f32 %v950, %v1080
      %vm1145 = vcmask 1044480
      %v1146 = vrot.slane %v526, 3
      %v1147 = vrot.slane %v530, 3
      %v1148 = vsel %vm1145, %v1146, %v1147
      %v1149 = vrot.slane %v536, 3
      %v1150 = vsel %vm1145, %v1147, %v1149
      %v1151 = vrot.slane %v540, 3
      %v1152 = vsel %vm1145, %v1149, %v1151
      %v1153 = vrot.slane %v546, 3
      %v1154 = vsel %vm1145, %v1151, %v1153
      %v1155 = vrot.slane %v550, 3
      %v1156 = vsel %vm1145, %v1153, %v1155
      %v1157 = vrot.slane %v556, 3
      %v1158 = vsel %vm1145, %v1155, %v1157
      %v1159 = vrot.slane %v560, 3
      %v1160 = vsel %vm1145, %v1157, %v1159
      %v1161 = vrot.slane %v566, 3
      %v1162 = vsel %vm1145, %v1159, %v1161
      %v1163 = vrot.slane %v570, 3
      %v1164 = vsel %vm1145, %v1161, %v1163
      %v1165 = vrot.slane %v576, 3
      %v1166 = vsel %vm1145, %v1163, %v1165
      %v1167 = vrot.slane %v580, 3
      %v1168 = vsel %vm1145, %v1165, %v1167
      %v1169 = vrot.slane %v586, 3
      %v1170 = vsel %vm1145, %v1167, %v1169
      %v1171 = vrot.slane %v590, 3
      %v1172 = vsel %vm1145, %v1169, %v1171
      %v1173 = vrot.slane %v596, 3
      %v1174 = vsel %vm1145, %v1171, %v1173
      %v1175 = vrot.slane %v600, 3
      %v1176 = vsel %vm1145, %v1173, %v1175
      %v1177 = vrot.slane %v606, 3
      %v1178 = vsel %vm1145, %v1175, %v1177
      %v1179 = vrot.slane %v610, 3
      %v1180 = vsel %vm1145, %v1177, %v1179
      %v1181 = vrot.slane %v616, 3
      %v1182 = vsel %vm1145, %v1179, %v1181
      %v1183 = vrot.slane %v620, 3
      %v1184 = vsel %vm1145, %v1181, %v1183
      %v1185 = vrot.slane %v626, 3
      %v1186 = vsel %vm1145, %v1183, %v1185
      %v1187 = vrot.slane %v630, 3
      %v1188 = vsel %vm1145, %v1185, %v1187
      %v1189 = vrot.slane %v636, 3
      %v1190 = vsel %vm1145, %v1187, %v1189
      %v1191 = vrot.slane %v640, 3
      %v1192 = vsel %vm1145, %v1189, %v1191
      %v1193 = vrot.slane %v646, 3
      %v1194 = vsel %vm1145, %v1191, %v1193
      %v1195 = vrot.slane %v650, 3
      %v1196 = vsel %vm1145, %v1193, %v1195
      %v1197 = vrot.slane %v656, 3
      %v1198 = vsel %vm1145, %v1195, %v1197
      %v1199 = vrot.slane %v660, 3
      %v1200 = vsel %vm1145, %v1197, %v1199
      %v1201 = vrot.slane %v666, 3
      %v1202 = vsel %vm1145, %v1199, %v1201
      %v1203 = vrot.slane %v670, 3
      %v1204 = vsel %vm1145, %v1201, %v1203
      %v1205 = vrot.slane %v676, 3
      %v1206 = vsel %vm1145, %v1203, %v1205
      %v1207 = vrot.slane %v680, 3
      %v1208 = vsel %vm1145, %v1205, %v1207
      %v1209 = vrot.slane %v686, 3
      %v1210 = vsel %vm1145, %v1207, %v1209
      %1211 = vrot.lane.b32.xlu0 %v1148, 32
      %v1212 = vpop.permute.xlu0 %1211
      %1213 = vrot.lane.b32.xlu0 %v1150, 32
      %v1214 = vpop.permute.xlu0 %1213
      %1215 = vrot.lane.b32.xlu0 %v1152, 32
      %v1216 = vpop.permute.xlu0 %1215
      %1217 = vrot.lane.b32.xlu0 %v1154, 32
      %v1218 = vpop.permute.xlu0 %1217
      %1219 = vrot.lane.b32.xlu0 %v1156, 32
      %v1220 = vpop.permute.xlu0 %1219
      %1221 = vrot.lane.b32.xlu0 %v1158, 32
      %v1222 = vpop.permute.xlu0 %1221
      %1223 = vrot.lane.b32.xlu0 %v1160, 32
      %v1224 = vpop.permute.xlu0 %1223
      %1225 = vrot.lane.b32.xlu0 %v1162, 32
      %v1226 = vpop.permute.xlu0 %1225
      %1227 = vrot.lane.b32.xlu0 %v1164, 32
      %v1228 = vpop.permute.xlu0 %1227
      %1229 = vrot.lane.b32.xlu0 %v1166, 32
      %v1230 = vpop.permute.xlu0 %1229
      %1231 = vrot.lane.b32.xlu0 %v1168, 32
      %v1232 = vpop.permute.xlu0 %1231
      %1233 = vrot.lane.b32.xlu0 %v1170, 32
      %v1234 = vpop.permute.xlu0 %1233
      %1235 = vrot.lane.b32.xlu0 %v1172, 32
      %v1236 = vpop.permute.xlu0 %1235
      %1237 = vrot.lane.b32.xlu0 %v1174, 32
      %v1238 = vpop.permute.xlu0 %1237
      %1239 = vrot.lane.b32.xlu0 %v1176, 32
      %v1240 = vpop.permute.xlu0 %1239
      %1241 = vrot.lane.b32.xlu0 %v1178, 32
      %v1242 = vpop.permute.xlu0 %1241
      %1243 = vrot.lane.b32.xlu0 %v1180, 32
      %v1244 = vpop.permute.xlu0 %1243
      %1245 = vrot.lane.b32.xlu0 %v1182, 32
      %v1246 = vpop.permute.xlu0 %1245
      %1247 = vrot.lane.b32.xlu0 %v1184, 32
      %v1248 = vpop.permute.xlu0 %1247
      %1249 = vrot.lane.b32.xlu0 %v1186, 32
      %v1250 = vpop.permute.xlu0 %1249
      %1251 = vrot.lane.b32.xlu0 %v1188, 32
      %v1252 = vpop.permute.xlu0 %1251
      %1253 = vrot.lane.b32.xlu0 %v1190, 32
      %v1254 = vpop.permute.xlu0 %1253
      %1255 = vrot.lane.b32.xlu0 %v1192, 32
      %v1256 = vpop.permute.xlu0 %1255
      %1257 = vrot.lane.b32.xlu0 %v1194, 32
      %v1258 = vpop.permute.xlu0 %1257
      %1259 = vrot.lane.b32.xlu0 %v1196, 32
      %v1260 = vpop.permute.xlu0 %1259
      %1261 = vrot.lane.b32.xlu0 %v1198, 32
      %v1262 = vpop.permute.xlu0 %1261
      %1263 = vrot.lane.b32.xlu0 %v1200, 32
      %v1264 = vpop.permute.xlu0 %1263
      %1265 = vrot.lane.b32.xlu0 %v1202, 32
      %v1266 = vpop.permute.xlu0 %1265
      %1267 = vrot.lane.b32.xlu0 %v1204, 32
      %v1268 = vpop.permute.xlu0 %1267
      %1269 = vrot.lane.b32.xlu0 %v1206, 32
      %v1270 = vpop.permute.xlu0 %1269
      %1271 = vrot.lane.b32.xlu0 %v1208, 32
      %v1272 = vpop.permute.xlu0 %1271
      %1273 = vrot.lane.b32.xlu0 %v1210, 32
      %v1274 = vpop.permute.xlu0 %1273
      %v1307 = vadd.f32 %v1113, %v1212
      %v1308 = vadd.f32 %v1114, %v1214
      %v1309 = vadd.f32 %v1115, %v1216
      %v1310 = vadd.f32 %v1116, %v1218
      %v1311 = vadd.f32 %v1117, %v1220
      %v1312 = vadd.f32 %v1118, %v1222
      %v1313 = vadd.f32 %v1119, %v1224
      %v1314 = vadd.f32 %v1120, %v1226
      %v1315 = vadd.f32 %v1121, %v1228
      %v1316 = vadd.f32 %v1122, %v1230
      %v1317 = vadd.f32 %v1123, %v1232
      %v1318 = vadd.f32 %v1124, %v1234
      %v1319 = vadd.f32 %v1125, %v1236
      %v1320 = vadd.f32 %v1126, %v1238
      %v1321 = vadd.f32 %v1127, %v1240
      %v1322 = vadd.f32 %v1128, %v1242
      %v1323 = vadd.f32 %v1129, %v1244
      %v1324 = vadd.f32 %v1130, %v1246
      %v1325 = vadd.f32 %v1131, %v1248
      %v1326 = vadd.f32 %v1132, %v1250
      %v1327 = vadd.f32 %v1133, %v1252
      %v1328 = vadd.f32 %v1134, %v1254
      %v1329 = vadd.f32 %v1135, %v1256
      %v1330 = vadd.f32 %v1136, %v1258
      %v1331 = vadd.f32 %v1137, %v1260
      %v1332 = vadd.f32 %v1138, %v1262
      %v1333 = vadd.f32 %v1139, %v1264
      %v1334 = vadd.f32 %v1140, %v1266
      %v1335 = vadd.f32 %v1141, %v1268
      %v1336 = vadd.f32 %v1142, %v1270
      %v1337 = vadd.f32 %v1143, %v1272
      %v1338 = vadd.f32 %v1144, %v1274
      %vm1372 = vcmask 1043456
      %v1373 = vrot.slane %v528, 4
      %v1374 = vrot.slane %v532, 4
      %v1375 = vsel %vm1372, %v1373, %v1374
      %v1376 = vrot.slane %v538, 4
      %v1377 = vsel %vm1372, %v1374, %v1376
      %v1378 = vrot.slane %v542, 4
      %v1379 = vsel %vm1372, %v1376, %v1378
      %v1380 = vrot.slane %v548, 4
      %v1381 = vsel %vm1372, %v1378, %v1380
      %v1382 = vrot.slane %v552, 4
      %v1383 = vsel %vm1372, %v1380, %v1382
      %v1384 = vrot.slane %v558, 4
      %v1385 = vsel %vm1372, %v1382, %v1384
      %v1386 = vrot.slane %v562, 4
      %v1387 = vsel %vm1372, %v1384, %v1386
      %v1388 = vrot.slane %v568, 4
      %v1389 = vsel %vm1372, %v1386, %v1388
      %v1390 = vrot.slane %v572, 4
      %v1391 = vsel %vm1372, %v1388, %v1390
      %v1392 = vrot.slane %v578, 4
      %v1393 = vsel %vm1372, %v1390, %v1392
      %v1394 = vrot.slane %v582, 4
      %v1395 = vsel %vm1372, %v1392, %v1394
      %v1396 = vrot.slane %v588, 4
      %v1397 = vsel %vm1372, %v1394, %v1396
      %v1398 = vrot.slane %v592, 4
      %v1399 = vsel %vm1372, %v1396, %v1398
      %v1400 = vrot.slane %v598, 4
      %v1401 = vsel %vm1372, %v1398, %v1400
      %v1402 = vrot.slane %v602, 4
      %v1403 = vsel %vm1372, %v1400, %v1402
      %v1404 = vrot.slane %v608, 4
      %v1405 = vsel %vm1372, %v1402, %v1404
      %v1406 = vrot.slane %v612, 4
      %v1407 = vsel %vm1372, %v1404, %v1406
      %v1408 = vrot.slane %v618, 4
      %v1409 = vsel %vm1372, %v1406, %v1408
      %v1410 = vrot.slane %v622, 4
      %v1411 = vsel %vm1372, %v1408, %v1410
      %v1412 = vrot.slane %v628, 4
      %v1413 = vsel %vm1372, %v1410, %v1412
      %v1414 = vrot.slane %v632, 4
      %v1415 = vsel %vm1372, %v1412, %v1414
      %v1416 = vrot.slane %v638, 4
      %v1417 = vsel %vm1372, %v1414, %v1416
      %v1418 = vrot.slane %v642, 4
      %v1419 = vsel %vm1372, %v1416, %v1418
      %v1420 = vrot.slane %v648, 4
      %v1421 = vsel %vm1372, %v1418, %v1420
      %v1422 = vrot.slane %v652, 4
      %v1423 = vsel %vm1372, %v1420, %v1422
      %v1424 = vrot.slane %v658, 4
      %v1425 = vsel %vm1372, %v1422, %v1424
      %v1426 = vrot.slane %v662, 4
      %v1427 = vsel %vm1372, %v1424, %v1426
      %v1428 = vrot.slane %v668, 4
      %v1429 = vsel %vm1372, %v1426, %v1428
      %v1430 = vrot.slane %v672, 4
      %v1431 = vsel %vm1372, %v1428, %v1430
      %v1432 = vrot.slane %v678, 4
      %v1433 = vsel %vm1372, %v1430, %v1432
      %v1434 = vrot.slane %v682, 4
      %v1435 = vsel %vm1372, %v1432, %v1434
      %v1436 = vrot.slane %v688, 4
      %v1437 = vsel %vm1372, %v1434, %v1436
      %v1470 = vadd.f32 %v1307, %v1375
      %v1471 = vadd.f32 %v1308, %v1377
      %v1472 = vadd.f32 %v1309, %v1379
      %v1473 = vadd.f32 %v1310, %v1381
      %v1474 = vadd.f32 %v1311, %v1383
      %v1475 = vadd.f32 %v1312, %v1385
      %v1476 = vadd.f32 %v1313, %v1387
      %v1477 = vadd.f32 %v1314, %v1389
      %v1478 = vadd.f32 %v1315, %v1391
      %v1479 = vadd.f32 %v1316, %v1393
      %v1480 = vadd.f32 %v1317, %v1395
      %v1481 = vadd.f32 %v1318, %v1397
      %v1482 = vadd.f32 %v1319, %v1399
      %v1483 = vadd.f32 %v1320, %v1401
      %v1484 = vadd.f32 %v1321, %v1403
      %v1485 = vadd.f32 %v1322, %v1405
      %v1486 = vadd.f32 %v1323, %v1407
      %v1487 = vadd.f32 %v1324, %v1409
      %v1488 = vadd.f32 %v1325, %v1411
      %v1489 = vadd.f32 %v1326, %v1413
      %v1490 = vadd.f32 %v1327, %v1415
      %v1491 = vadd.f32 %v1328, %v1417
      %v1492 = vadd.f32 %v1329, %v1419
      %v1493 = vadd.f32 %v1330, %v1421
      %v1494 = vadd.f32 %v1331, %v1423
      %v1495 = vadd.f32 %v1332, %v1425
      %v1496 = vadd.f32 %v1333, %v1427
      %v1497 = vadd.f32 %v1334, %v1429
      %v1498 = vadd.f32 %v1335, %v1431
      %v1499 = vadd.f32 %v1336, %v1433
      %v1500 = vadd.f32 %v1337, %v1435
      %v1501 = vadd.f32 %v1338, %v1437
      %v1502 = vld [vmem:[%s3] sm:$0x1]
      %v1504 = vlaneseq
      %v1505 = vshrl.u32 %v1504, 7
      %v1506 = vsub.s32 0, %v1505
      %v1507 = vrot.slane %v1502, %v1506
      %v1509 = vadd.f32 %v1470, %v1507
      %v1510 = vadd.f32 %v1471, %v1507
      %v1511 = vadd.f32 %v1472, %v1507
      %v1512 = vadd.f32 %v1473, %v1507
      %v1513 = vadd.f32 %v1474, %v1507
      %v1514 = vadd.f32 %v1475, %v1507
      %v1515 = vadd.f32 %v1476, %v1507
      %v1516 = vadd.f32 %v1477, %v1507
      %v1517 = vadd.f32 %v1478, %v1507
      %v1518 = vadd.f32 %v1479, %v1507
      %v1519 = vadd.f32 %v1480, %v1507
      %v1520 = vadd.f32 %v1481, %v1507
      %v1521 = vadd.f32 %v1482, %v1507
      %v1522 = vadd.f32 %v1483, %v1507
      %v1523 = vadd.f32 %v1484, %v1507
      %v1524 = vadd.f32 %v1485, %v1507
      %v1525 = vadd.f32 %v1486, %v1507
      %v1526 = vadd.f32 %v1487, %v1507
      %v1527 = vadd.f32 %v1488, %v1507
      %v1528 = vadd.f32 %v1489, %v1507
      %v1529 = vadd.f32 %v1490, %v1507
      %v1530 = vadd.f32 %v1491, %v1507
      %v1531 = vadd.f32 %v1492, %v1507
      %v1532 = vadd.f32 %v1493, %v1507
      %v1533 = vadd.f32 %v1494, %v1507
      %v1534 = vadd.f32 %v1495, %v1507
      %v1535 = vadd.f32 %v1496, %v1507
      %v1536 = vadd.f32 %v1497, %v1507
      %v1537 = vadd.f32 %v1498, %v1507
      %v1538 = vadd.f32 %v1499, %v1507
      %v1539 = vadd.f32 %v1500, %v1507
      %v1540 = vadd.f32 %v1501, %v1507
      %v1541 = vmax.f32 %v1509, 0.0
      %v1542 = vmax.f32 %v1510, 0.0
      %v1543 = vmax.f32 %v1511, 0.0
      %v1544 = vmax.f32 %v1512, 0.0
      %v1545 = vmax.f32 %v1513, 0.0
      %v1546 = vmax.f32 %v1514, 0.0
      %v1547 = vmax.f32 %v1515, 0.0
      %v1548 = vmax.f32 %v1516, 0.0
      %v1549 = vmax.f32 %v1517, 0.0
      %v1550 = vmax.f32 %v1518, 0.0
      %v1551 = vmax.f32 %v1519, 0.0
      %v1552 = vmax.f32 %v1520, 0.0
      %v1553 = vmax.f32 %v1521, 0.0
      %v1554 = vmax.f32 %v1522, 0.0
      %v1555 = vmax.f32 %v1523, 0.0
      %v1556 = vmax.f32 %v1524, 0.0
      %v1557 = vmax.f32 %v1525, 0.0
      %v1558 = vmax.f32 %v1526, 0.0
      %v1559 = vmax.f32 %v1527, 0.0
      %v1560 = vmax.f32 %v1528, 0.0
      %v1561 = vmax.f32 %v1529, 0.0
      %v1562 = vmax.f32 %v1530, 0.0
      %v1563 = vmax.f32 %v1531, 0.0
      %v1564 = vmax.f32 %v1532, 0.0
      %v1565 = vmax.f32 %v1533, 0.0
      %v1566 = vmax.f32 %v1534, 0.0
      %v1567 = vmax.f32 %v1535, 0.0
      %v1568 = vmax.f32 %v1536, 0.0
      %v1569 = vmax.f32 %v1537, 0.0
      %v1570 = vmax.f32 %v1538, 0.0
      %v1571 = vmax.f32 %v1539, 0.0
      %v1572 = vmax.f32 %v1540, 0.0
      %v1605 = vcombine.high %v1541, %v1541
      %v1607 = vunpack.c.l.s4 1983009808
      %v1608 = vunpack.c.0.s8 %v1607
      %v1609 = vlaneseq
      %v1610 = vshrl.u32 %v1609, 7
      %v1611 = vsub.s32 %v1608, %v1610
      %v1612 = vrot.slane %v1541, %v1611
      %v1614 = vunpack.c.l.s4 1983009808
      %v1615 = vunpack.c.0.s8 %v1614
      %v1616 = vlaneseq
      %v1617 = vshrl.u32 %v1616, 7
      %v1618 = vsub.s32 %v1615, %v1617
      %v1619 = vrot.slane %v1605, %v1618
      %v1620 = vcombine.high %v1612, %v1612
      %v1621 = vcombine.high %v1619, %v1619
      %v1622 = vcombine.high %v1542, %v1542
      %v1624 = vunpack.c.l.s4 1983009808
      %v1625 = vunpack.c.0.s8 %v1624
      %v1626 = vlaneseq
      %v1627 = vshrl.u32 %v1626, 7
      %v1628 = vsub.s32 %v1625, %v1627
      %v1629 = vrot.slane %v1542, %v1628
      %v1631 = vunpack.c.l.s4 1983009808
      %v1632 = vunpack.c.0.s8 %v1631
      %v1633 = vlaneseq
      %v1634 = vshrl.u32 %v1633, 7
      %v1635 = vsub.s32 %v1632, %v1634
      %v1636 = vrot.slane %v1622, %v1635
      %v1637 = vcombine.high %v1629, %v1629
      %v1638 = vcombine.high %v1636, %v1636
      %v1639 = vcombine.high %v1543, %v1543
      %v1641 = vunpack.c.l.s4 1983009808
      %v1642 = vunpack.c.0.s8 %v1641
      %v1643 = vlaneseq
      %v1644 = vshrl.u32 %v1643, 7
      %v1645 = vsub.s32 %v1642, %v1644
      %v1646 = vrot.slane %v1543, %v1645
      %v1648 = vunpack.c.l.s4 1983009808
      %v1649 = vunpack.c.0.s8 %v1648
      %v1650 = vlaneseq
      %v1651 = vshrl.u32 %v1650, 7
      %v1652 = vsub.s32 %v1649, %v1651
      %v1653 = vrot.slane %v1639, %v1652
      %v1654 = vcombine.high %v1646, %v1646
      %v1655 = vcombine.high %v1653, %v1653
      %v1656 = vcombine.high %v1544, %v1544
      %v1658 = vunpack.c.l.s4 1983009808
      %v1659 = vunpack.c.0.s8 %v1658
      %v1660 = vlaneseq
      %v1661 = vshrl.u32 %v1660, 7
      %v1662 = vsub.s32 %v1659, %v1661
      %v1663 = vrot.slane %v1544, %v1662
      %v1665 = vunpack.c.l.s4 1983009808
      %v1666 = vunpack.c.0.s8 %v1665
      %v1667 = vlaneseq
      %v1668 = vshrl.u32 %v1667, 7
      %v1669 = vsub.s32 %v1666, %v1668
      %v1670 = vrot.slane %v1656, %v1669
      %v1671 = vcombine.high %v1663, %v1663
      %v1672 = vcombine.high %v1670, %v1670
      %v1673 = vcombine.high %v1545, %v1545
      %v1675 = vunpack.c.l.s4 1983009808
      %v1676 = vunpack.c.0.s8 %v1675
      %v1677 = vlaneseq
      %v1678 = vshrl.u32 %v1677, 7
      %v1679 = vsub.s32 %v1676, %v1678
      %v1680 = vrot.slane %v1545, %v1679
      %v1682 = vunpack.c.l.s4 1983009808
      %v1683 = vunpack.c.0.s8 %v1682
      %v1684 = vlaneseq
      %v1685 = vshrl.u32 %v1684, 7
      %v1686 = vsub.s32 %v1683, %v1685
      %v1687 = vrot.slane %v1673, %v1686
      %v1688 = vcombine.high %v1680, %v1680
      %v1689 = vcombine.high %v1687, %v1687
      %v1690 = vcombine.high %v1546, %v1546
      %v1692 = vunpack.c.l.s4 1983009808
      %v1693 = vunpack.c.0.s8 %v1692
      %v1694 = vlaneseq
      %v1695 = vshrl.u32 %v1694, 7
      %v1696 = vsub.s32 %v1693, %v1695
      %v1697 = vrot.slane %v1546, %v1696
      %v1699 = vunpack.c.l.s4 1983009808
      %v1700 = vunpack.c.0.s8 %v1699
      %v1701 = vlaneseq
      %v1702 = vshrl.u32 %v1701, 7
      %v1703 = vsub.s32 %v1700, %v1702
      %v1704 = vrot.slane %v1690, %v1703
      %v1705 = vcombine.high %v1697, %v1697
      %v1706 = vcombine.high %v1704, %v1704
      %v1707 = vcombine.high %v1547, %v1547
      %v1709 = vunpack.c.l.s4 1983009808
      %v1710 = vunpack.c.0.s8 %v1709
      %v1711 = vlaneseq
      %v1712 = vshrl.u32 %v1711, 7
      %v1713 = vsub.s32 %v1710, %v1712
      %v1714 = vrot.slane %v1547, %v1713
      %v1716 = vunpack.c.l.s4 1983009808
      %v1717 = vunpack.c.0.s8 %v1716
      %v1718 = vlaneseq
      %v1719 = vshrl.u32 %v1718, 7
      %v1720 = vsub.s32 %v1717, %v1719
      %v1721 = vrot.slane %v1707, %v1720
      %v1722 = vcombine.high %v1714, %v1714
      %v1723 = vcombine.high %v1721, %v1721
      %v1724 = vcombine.high %v1548, %v1548
      %v1726 = vunpack.c.l.s4 1983009808
      %v1727 = vunpack.c.0.s8 %v1726
      %v1728 = vlaneseq
      %v1729 = vshrl.u32 %v1728, 7
      %v1730 = vsub.s32 %v1727, %v1729
      %v1731 = vrot.slane %v1548, %v1730
      %v1733 = vunpack.c.l.s4 1983009808
      %v1734 = vunpack.c.0.s8 %v1733
      %v1735 = vlaneseq
      %v1736 = vshrl.u32 %v1735, 7
      %v1737 = vsub.s32 %v1734, %v1736
      %v1738 = vrot.slane %v1724, %v1737
      %v1739 = vcombine.high %v1731, %v1731
      %v1740 = vcombine.high %v1738, %v1738
      %v1741 = vcombine.high %v1549, %v1549
      %v1743 = vunpack.c.l.s4 1983009808
      %v1744 = vunpack.c.0.s8 %v1743
      %v1745 = vlaneseq
      %v1746 = vshrl.u32 %v1745, 7
      %v1747 = vsub.s32 %v1744, %v1746
      %v1748 = vrot.slane %v1549, %v1747
      %v1750 = vunpack.c.l.s4 1983009808
      %v1751 = vunpack.c.0.s8 %v1750
      %v1752 = vlaneseq
      %v1753 = vshrl.u32 %v1752, 7
      %v1754 = vsub.s32 %v1751, %v1753
      %v1755 = vrot.slane %v1741, %v1754
      %v1756 = vcombine.high %v1748, %v1748
      %v1757 = vcombine.high %v1755, %v1755
      %v1758 = vcombine.high %v1550, %v1550
      %v1760 = vunpack.c.l.s4 1983009808
      %v1761 = vunpack.c.0.s8 %v1760
      %v1762 = vlaneseq
      %v1763 = vshrl.u32 %v1762, 7
      %v1764 = vsub.s32 %v1761, %v1763
      %v1765 = vrot.slane %v1550, %v1764
      %v1767 = vunpack.c.l.s4 1983009808
      %v1768 = vunpack.c.0.s8 %v1767
      %v1769 = vlaneseq
      %v1770 = vshrl.u32 %v1769, 7
      %v1771 = vsub.s32 %v1768, %v1770
      %v1772 = vrot.slane %v1758, %v1771
      %v1773 = vcombine.high %v1765, %v1765
      %v1774 = vcombine.high %v1772, %v1772
      %v1775 = vcombine.high %v1551, %v1551
      %v1777 = vunpack.c.l.s4 1983009808
      %v1778 = vunpack.c.0.s8 %v1777
      %v1779 = vlaneseq
      %v1780 = vshrl.u32 %v1779, 7
      %v1781 = vsub.s32 %v1778, %v1780
      %v1782 = vrot.slane %v1551, %v1781
      %v1784 = vunpack.c.l.s4 1983009808
      %v1785 = vunpack.c.0.s8 %v1784
      %v1786 = vlaneseq
      %v1787 = vshrl.u32 %v1786, 7
      %v1788 = vsub.s32 %v1785, %v1787
      %v1789 = vrot.slane %v1775, %v1788
      %v1790 = vcombine.high %v1782, %v1782
      %v1791 = vcombine.high %v1789, %v1789
      %v1792 = vcombine.high %v1552, %v1552
      %v1794 = vunpack.c.l.s4 1983009808
      %v1795 = vunpack.c.0.s8 %v1794
      %v1796 = vlaneseq
      %v1797 = vshrl.u32 %v1796, 7
      %v1798 = vsub.s32 %v1795, %v1797
      %v1799 = vrot.slane %v1552, %v1798
      %v1801 = vunpack.c.l.s4 1983009808
      %v1802 = vunpack.c.0.s8 %v1801
      %v1803 = vlaneseq
      %v1804 = vshrl.u32 %v1803, 7
      %v1805 = vsub.s32 %v1802, %v1804
      %v1806 = vrot.slane %v1792, %v1805
      %v1807 = vcombine.high %v1799, %v1799
      %v1808 = vcombine.high %v1806, %v1806
      %v1809 = vcombine.high %v1553, %v1553
      %v1811 = vunpack.c.l.s4 1983009808
      %v1812 = vunpack.c.0.s8 %v1811
      %v1813 = vlaneseq
      %v1814 = vshrl.u32 %v1813, 7
      %v1815 = vsub.s32 %v1812, %v1814
      %v1816 = vrot.slane %v1553, %v1815
      %v1818 = vunpack.c.l.s4 1983009808
      %v1819 = vunpack.c.0.s8 %v1818
      %v1820 = vlaneseq
      %v1821 = vshrl.u32 %v1820, 7
      %v1822 = vsub.s32 %v1819, %v1821
      %v1823 = vrot.slane %v1809, %v1822
      %v1824 = vcombine.high %v1816, %v1816
      %v1825 = vcombine.high %v1823, %v1823
      %v1826 = vcombine.high %v1554, %v1554
      %v1828 = vunpack.c.l.s4 1983009808
      %v1829 = vunpack.c.0.s8 %v1828
      %v1830 = vlaneseq
      %v1831 = vshrl.u32 %v1830, 7
      %v1832 = vsub.s32 %v1829, %v1831
      %v1833 = vrot.slane %v1554, %v1832
      %v1835 = vunpack.c.l.s4 1983009808
      %v1836 = vunpack.c.0.s8 %v1835
      %v1837 = vlaneseq
      %v1838 = vshrl.u32 %v1837, 7
      %v1839 = vsub.s32 %v1836, %v1838
      %v1840 = vrot.slane %v1826, %v1839
      %v1841 = vcombine.high %v1833, %v1833
      %v1842 = vcombine.high %v1840, %v1840
      %v1843 = vcombine.high %v1555, %v1555
      %v1845 = vunpack.c.l.s4 1983009808
      %v1846 = vunpack.c.0.s8 %v1845
      %v1847 = vlaneseq
      %v1848 = vshrl.u32 %v1847, 7
      %v1849 = vsub.s32 %v1846, %v1848
      %v1850 = vrot.slane %v1555, %v1849
      %v1852 = vunpack.c.l.s4 1983009808
      %v1853 = vunpack.c.0.s8 %v1852
      %v1854 = vlaneseq
      %v1855 = vshrl.u32 %v1854, 7
      %v1856 = vsub.s32 %v1853, %v1855
      %v1857 = vrot.slane %v1843, %v1856
      %v1858 = vcombine.high %v1850, %v1850
      %v1859 = vcombine.high %v1857, %v1857
      %v1860 = vcombine.high %v1556, %v1556
      %v1862 = vunpack.c.l.s4 1983009808
      %v1863 = vunpack.c.0.s8 %v1862
      %v1864 = vlaneseq
      %v1865 = vshrl.u32 %v1864, 7
      %v1866 = vsub.s32 %v1863, %v1865
      %v1867 = vrot.slane %v1556, %v1866
      %v1869 = vunpack.c.l.s4 1983009808
      %v1870 = vunpack.c.0.s8 %v1869
      %v1871 = vlaneseq
      %v1872 = vshrl.u32 %v1871, 7
      %v1873 = vsub.s32 %v1870, %v1872
      %v1874 = vrot.slane %v1860, %v1873
      %v1875 = vcombine.high %v1867, %v1867
      %v1876 = vcombine.high %v1874, %v1874
      %v1877 = vcombine.high %v1557, %v1557
      %v1879 = vunpack.c.l.s4 1983009808
      %v1880 = vunpack.c.0.s8 %v1879
      %v1881 = vlaneseq
      %v1882 = vshrl.u32 %v1881, 7
      %v1883 = vsub.s32 %v1880, %v1882
      %v1884 = vrot.slane %v1557, %v1883
      %v1886 = vunpack.c.l.s4 1983009808
      %v1887 = vunpack.c.0.s8 %v1886
      %v1888 = vlaneseq
      %v1889 = vshrl.u32 %v1888, 7
      %v1890 = vsub.s32 %v1887, %v1889
      %v1891 = vrot.slane %v1877, %v1890
      %v1892 = vcombine.high %v1884, %v1884
      %v1893 = vcombine.high %v1891, %v1891
      %v1894 = vcombine.high %v1558, %v1558
      %v1896 = vunpack.c.l.s4 1983009808
      %v1897 = vunpack.c.0.s8 %v1896
      %v1898 = vlaneseq
      %v1899 = vshrl.u32 %v1898, 7
      %v1900 = vsub.s32 %v1897, %v1899
      %v1901 = vrot.slane %v1558, %v1900
      %v1903 = vunpack.c.l.s4 1983009808
      %v1904 = vunpack.c.0.s8 %v1903
      %v1905 = vlaneseq
      %v1906 = vshrl.u32 %v1905, 7
      %v1907 = vsub.s32 %v1904, %v1906
      %v1908 = vrot.slane %v1894, %v1907
      %v1909 = vcombine.high %v1901, %v1901
      %v1910 = vcombine.high %v1908, %v1908
      %v1911 = vcombine.high %v1559, %v1559
      %v1913 = vunpack.c.l.s4 1983009808
      %v1914 = vunpack.c.0.s8 %v1913
      %v1915 = vlaneseq
      %v1916 = vshrl.u32 %v1915, 7
      %v1917 = vsub.s32 %v1914, %v1916
      %v1918 = vrot.slane %v1559, %v1917
      %v1920 = vunpack.c.l.s4 1983009808
      %v1921 = vunpack.c.0.s8 %v1920
      %v1922 = vlaneseq
      %v1923 = vshrl.u32 %v1922, 7
      %v1924 = vsub.s32 %v1921, %v1923
      %v1925 = vrot.slane %v1911, %v1924
      %v1926 = vcombine.high %v1918, %v1918
      %v1927 = vcombine.high %v1925, %v1925
      %v1928 = vcombine.high %v1560, %v1560
      %v1930 = vunpack.c.l.s4 1983009808
      %v1931 = vunpack.c.0.s8 %v1930
      %v1932 = vlaneseq
      %v1933 = vshrl.u32 %v1932, 7
      %v1934 = vsub.s32 %v1931, %v1933
      %v1935 = vrot.slane %v1560, %v1934
      %v1937 = vunpack.c.l.s4 1983009808
      %v1938 = vunpack.c.0.s8 %v1937
      %v1939 = vlaneseq
      %v1940 = vshrl.u32 %v1939, 7
      %v1941 = vsub.s32 %v1938, %v1940
      %v1942 = vrot.slane %v1928, %v1941
      %v1943 = vcombine.high %v1935, %v1935
      %v1944 = vcombine.high %v1942, %v1942
      %v1945 = vcombine.high %v1561, %v1561
      %v1947 = vunpack.c.l.s4 1983009808
      %v1948 = vunpack.c.0.s8 %v1947
      %v1949 = vlaneseq
      %v1950 = vshrl.u32 %v1949, 7
      %v1951 = vsub.s32 %v1948, %v1950
      %v1952 = vrot.slane %v1561, %v1951
      %v1954 = vunpack.c.l.s4 1983009808
      %v1955 = vunpack.c.0.s8 %v1954
      %v1956 = vlaneseq
      %v1957 = vshrl.u32 %v1956, 7
      %v1958 = vsub.s32 %v1955, %v1957
      %v1959 = vrot.slane %v1945, %v1958
      %v1960 = vcombine.high %v1952, %v1952
      %v1961 = vcombine.high %v1959, %v1959
      %v1962 = vcombine.high %v1562, %v1562
      %v1964 = vunpack.c.l.s4 1983009808
      %v1965 = vunpack.c.0.s8 %v1964
      %v1966 = vlaneseq
      %v1967 = vshrl.u32 %v1966, 7
      %v1968 = vsub.s32 %v1965, %v1967
      %v1969 = vrot.slane %v1562, %v1968
      %v1971 = vunpack.c.l.s4 1983009808
      %v1972 = vunpack.c.0.s8 %v1971
      %v1973 = vlaneseq
      %v1974 = vshrl.u32 %v1973, 7
      %v1975 = vsub.s32 %v1972, %v1974
      %v1976 = vrot.slane %v1962, %v1975
      %v1977 = vcombine.high %v1969, %v1969
      %v1978 = vcombine.high %v1976, %v1976
      %v1979 = vcombine.high %v1563, %v1563
      %v1981 = vunpack.c.l.s4 1983009808
      %v1982 = vunpack.c.0.s8 %v1981
      %v1983 = vlaneseq
      %v1984 = vshrl.u32 %v1983, 7
      %v1985 = vsub.s32 %v1982, %v1984
      %v1986 = vrot.slane %v1563, %v1985
      %v1988 = vunpack.c.l.s4 1983009808
      %v1989 = vunpack.c.0.s8 %v1988
      %v1990 = vlaneseq
      %v1991 = vshrl.u32 %v1990, 7
      %v1992 = vsub.s32 %v1989, %v1991
      %v1993 = vrot.slane %v1979, %v1992
      %v1994 = vcombine.high %v1986, %v1986
      %v1995 = vcombine.high %v1993, %v1993
      %v1996 = vcombine.high %v1564, %v1564
      %v1998 = vunpack.c.l.s4 1983009808
      %v1999 = vunpack.c.0.s8 %v1998
      %v2000 = vlaneseq
      %v2001 = vshrl.u32 %v2000, 7
      %v2002 = vsub.s32 %v1999, %v2001
      %v2003 = vrot.slane %v1564, %v2002
      %v2005 = vunpack.c.l.s4 1983009808
      %v2006 = vunpack.c.0.s8 %v2005
      %v2007 = vlaneseq
      %v2008 = vshrl.u32 %v2007, 7
      %v2009 = vsub.s32 %v2006, %v2008
      %v2010 = vrot.slane %v1996, %v2009
      %v2011 = vcombine.high %v2003, %v2003
      %v2012 = vcombine.high %v2010, %v2010
      %v2013 = vcombine.high %v1565, %v1565
      %v2015 = vunpack.c.l.s4 1983009808
      %v2016 = vunpack.c.0.s8 %v2015
      %v2017 = vlaneseq
      %v2018 = vshrl.u32 %v2017, 7
      %v2019 = vsub.s32 %v2016, %v2018
      %v2020 = vrot.slane %v1565, %v2019
      %v2022 = vunpack.c.l.s4 1983009808
      %v2023 = vunpack.c.0.s8 %v2022
      %v2024 = vlaneseq
      %v2025 = vshrl.u32 %v2024, 7
      %v2026 = vsub.s32 %v2023, %v2025
      %v2027 = vrot.slane %v2013, %v2026
      %v2028 = vcombine.high %v2020, %v2020
      %v2029 = vcombine.high %v2027, %v2027
      %v2030 = vcombine.high %v1566, %v1566
      %v2032 = vunpack.c.l.s4 1983009808
      %v2033 = vunpack.c.0.s8 %v2032
      %v2034 = vlaneseq
      %v2035 = vshrl.u32 %v2034, 7
      %v2036 = vsub.s32 %v2033, %v2035
      %v2037 = vrot.slane %v1566, %v2036
      %v2039 = vunpack.c.l.s4 1983009808
      %v2040 = vunpack.c.0.s8 %v2039
      %v2041 = vlaneseq
      %v2042 = vshrl.u32 %v2041, 7
      %v2043 = vsub.s32 %v2040, %v2042
      %v2044 = vrot.slane %v2030, %v2043
      %v2045 = vcombine.high %v2037, %v2037
      %v2046 = vcombine.high %v2044, %v2044
      %v2047 = vcombine.high %v1567, %v1567
      %v2049 = vunpack.c.l.s4 1983009808
      %v2050 = vunpack.c.0.s8 %v2049
      %v2051 = vlaneseq
      %v2052 = vshrl.u32 %v2051, 7
      %v2053 = vsub.s32 %v2050, %v2052
      %v2054 = vrot.slane %v1567, %v2053
      %v2056 = vunpack.c.l.s4 1983009808
      %v2057 = vunpack.c.0.s8 %v2056
      %v2058 = vlaneseq
      %v2059 = vshrl.u32 %v2058, 7
      %v2060 = vsub.s32 %v2057, %v2059
      %v2061 = vrot.slane %v2047, %v2060
      %v2062 = vcombine.high %v2054, %v2054
      %v2063 = vcombine.high %v2061, %v2061
      %v2064 = vcombine.high %v1568, %v1568
      %v2066 = vunpack.c.l.s4 1983009808
      %v2067 = vunpack.c.0.s8 %v2066
      %v2068 = vlaneseq
      %v2069 = vshrl.u32 %v2068, 7
      %v2070 = vsub.s32 %v2067, %v2069
      %v2071 = vrot.slane %v1568, %v2070
      %v2073 = vunpack.c.l.s4 1983009808
      %v2074 = vunpack.c.0.s8 %v2073
      %v2075 = vlaneseq
      %v2076 = vshrl.u32 %v2075, 7
      %v2077 = vsub.s32 %v2074, %v2076
      %v2078 = vrot.slane %v2064, %v2077
      %v2079 = vcombine.high %v2071, %v2071
      %v2080 = vcombine.high %v2078, %v2078
      %v2081 = vcombine.high %v1569, %v1569
      %v2083 = vunpack.c.l.s4 1983009808
      %v2084 = vunpack.c.0.s8 %v2083
      %v2085 = vlaneseq
      %v2086 = vshrl.u32 %v2085, 7
      %v2087 = vsub.s32 %v2084, %v2086
      %v2088 = vrot.slane %v1569, %v2087
      %v2090 = vunpack.c.l.s4 1983009808
      %v2091 = vunpack.c.0.s8 %v2090
      %v2092 = vlaneseq
      %v2093 = vshrl.u32 %v2092, 7
      %v2094 = vsub.s32 %v2091, %v2093
      %v2095 = vrot.slane %v2081, %v2094
      %v2096 = vcombine.high %v2088, %v2088
      %v2097 = vcombine.high %v2095, %v2095
      %v2098 = vcombine.high %v1570, %v1570
      %v2100 = vunpack.c.l.s4 1983009808
      %v2101 = vunpack.c.0.s8 %v2100
      %v2102 = vlaneseq
      %v2103 = vshrl.u32 %v2102, 7
      %v2104 = vsub.s32 %v2101, %v2103
      %v2105 = vrot.slane %v1570, %v2104
      %v2107 = vunpack.c.l.s4 1983009808
      %v2108 = vunpack.c.0.s8 %v2107
      %v2109 = vlaneseq
      %v2110 = vshrl.u32 %v2109, 7
      %v2111 = vsub.s32 %v2108, %v2110
      %v2112 = vrot.slane %v2098, %v2111
      %v2113 = vcombine.high %v2105, %v2105
      %v2114 = vcombine.high %v2112, %v2112
      %v2115 = vcombine.high %v1571, %v1571
      %v2117 = vunpack.c.l.s4 1983009808
      %v2118 = vunpack.c.0.s8 %v2117
      %v2119 = vlaneseq
      %v2120 = vshrl.u32 %v2119, 7
      %v2121 = vsub.s32 %v2118, %v2120
      %v2122 = vrot.slane %v1571, %v2121
      %v2124 = vunpack.c.l.s4 1983009808
      %v2125 = vunpack.c.0.s8 %v2124
      %v2126 = vlaneseq
      %v2127 = vshrl.u32 %v2126, 7
      %v2128 = vsub.s32 %v2125, %v2127
      %v2129 = vrot.slane %v2115, %v2128
      %v2130 = vcombine.high %v2122, %v2122
      %v2131 = vcombine.high %v2129, %v2129
      %v2132 = vcombine.high %v1572, %v1572
      %v2134 = vunpack.c.l.s4 1983009808
      %v2135 = vunpack.c.0.s8 %v2134
      %v2136 = vlaneseq
      %v2137 = vshrl.u32 %v2136, 7
      %v2138 = vsub.s32 %v2135, %v2137
      %v2139 = vrot.slane %v1572, %v2138
      %v2141 = vunpack.c.l.s4 1983009808
      %v2142 = vunpack.c.0.s8 %v2141
      %v2143 = vlaneseq
      %v2144 = vshrl.u32 %v2143, 7
      %v2145 = vsub.s32 %v2142, %v2144
      %v2146 = vrot.slane %v2132, %v2145
      %v2147 = vcombine.high %v2139, %v2139
      %v2148 = vcombine.high %v2146, %v2146
      %vm2277 = vcmask 254976
      %v2278 = vsel %vm2277, %v1612, -inf
      %v2279 = vrot.slane %v2278, 4
      %v2280 = vmax.f32 %v2278, %v2279
      %v2281 = vrot.slane %v2280, 2
      %v2282 = vmax.f32 %v2280, %v2281
      %v2283 = vrot.slane %v2282, 1
      %v2284 = vmax.f32 %v2282, %v2283
      %v2285 = vsel %vm2277, %v1620, -inf
      %v2286 = vrot.slane %v2285, 4
      %v2287 = vmax.f32 %v2285, %v2286
      %v2288 = vrot.slane %v2287, 2
      %v2289 = vmax.f32 %v2287, %v2288
      %v2290 = vrot.slane %v2289, 1
      %v2291 = vmax.f32 %v2289, %v2290
      %v2292 = vsel %vm2277, %v1619, -inf
      %v2293 = vrot.slane %v2292, 4
      %v2294 = vmax.f32 %v2292, %v2293
      %v2295 = vrot.slane %v2294, 2
      %v2296 = vmax.f32 %v2294, %v2295
      %v2297 = vrot.slane %v2296, 1
      %v2298 = vmax.f32 %v2296, %v2297
      %v2299 = vsel %vm2277, %v1621, -inf
      %v2300 = vrot.slane %v2299, 4
      %v2301 = vmax.f32 %v2299, %v2300
      %v2302 = vrot.slane %v2301, 2
      %v2303 = vmax.f32 %v2301, %v2302
      %v2304 = vrot.slane %v2303, 1
      %v2305 = vmax.f32 %v2303, %v2304
      %v2306 = vsel %vm2277, %v1629, -inf
      %v2307 = vrot.slane %v2306, 4
      %v2308 = vmax.f32 %v2306, %v2307
      %v2309 = vrot.slane %v2308, 2
      %v2310 = vmax.f32 %v2308, %v2309
      %v2311 = vrot.slane %v2310, 1
      %v2312 = vmax.f32 %v2310, %v2311
      %v2313 = vsel %vm2277, %v1637, -inf
      %v2314 = vrot.slane %v2313, 4
      %v2315 = vmax.f32 %v2313, %v2314
      %v2316 = vrot.slane %v2315, 2
      %v2317 = vmax.f32 %v2315, %v2316
      %v2318 = vrot.slane %v2317, 1
      %v2319 = vmax.f32 %v2317, %v2318
      %v2320 = vsel %vm2277, %v1636, -inf
      %v2321 = vrot.slane %v2320, 4
      %v2322 = vmax.f32 %v2320, %v2321
      %v2323 = vrot.slane %v2322, 2
      %v2324 = vmax.f32 %v2322, %v2323
      %v2325 = vrot.slane %v2324, 1
      %v2326 = vmax.f32 %v2324, %v2325
      %v2327 = vsel %vm2277, %v1638, -inf
      %v2328 = vrot.slane %v2327, 4
      %v2329 = vmax.f32 %v2327, %v2328
      %v2330 = vrot.slane %v2329, 2
      %v2331 = vmax.f32 %v2329, %v2330
      %v2332 = vrot.slane %v2331, 1
      %v2333 = vmax.f32 %v2331, %v2332
      %v2334 = vsel %vm2277, %v1646, -inf
      %v2335 = vrot.slane %v2334, 4
      %v2336 = vmax.f32 %v2334, %v2335
      %v2337 = vrot.slane %v2336, 2
      %v2338 = vmax.f32 %v2336, %v2337
      %v2339 = vrot.slane %v2338, 1
      %v2340 = vmax.f32 %v2338, %v2339
      %v2341 = vsel %vm2277, %v1654, -inf
      %v2342 = vrot.slane %v2341, 4
      %v2343 = vmax.f32 %v2341, %v2342
      %v2344 = vrot.slane %v2343, 2
      %v2345 = vmax.f32 %v2343, %v2344
      %v2346 = vrot.slane %v2345, 1
      %v2347 = vmax.f32 %v2345, %v2346
      %v2348 = vsel %vm2277, %v1653, -inf
      %v2349 = vrot.slane %v2348, 4
      %v2350 = vmax.f32 %v2348, %v2349
      %v2351 = vrot.slane %v2350, 2
      %v2352 = vmax.f32 %v2350, %v2351
      %v2353 = vrot.slane %v2352, 1
      %v2354 = vmax.f32 %v2352, %v2353
      %v2355 = vsel %vm2277, %v1655, -inf
      %v2356 = vrot.slane %v2355, 4
      %v2357 = vmax.f32 %v2355, %v2356
      %v2358 = vrot.slane %v2357, 2
      %v2359 = vmax.f32 %v2357, %v2358
      %v2360 = vrot.slane %v2359, 1
      %v2361 = vmax.f32 %v2359, %v2360
      %v2362 = vsel %vm2277, %v1663, -inf
      %v2363 = vrot.slane %v2362, 4
      %v2364 = vmax.f32 %v2362, %v2363
      %v2365 = vrot.slane %v2364, 2
      %v2366 = vmax.f32 %v2364, %v2365
      %v2367 = vrot.slane %v2366, 1
      %v2368 = vmax.f32 %v2366, %v2367
      %v2369 = vsel %vm2277, %v1671, -inf
      %v2370 = vrot.slane %v2369, 4
      %v2371 = vmax.f32 %v2369, %v2370
      %v2372 = vrot.slane %v2371, 2
      %v2373 = vmax.f32 %v2371, %v2372
      %v2374 = vrot.slane %v2373, 1
      %v2375 = vmax.f32 %v2373, %v2374
      %v2376 = vsel %vm2277, %v1670, -inf
      %v2377 = vrot.slane %v2376, 4
      %v2378 = vmax.f32 %v2376, %v2377
      %v2379 = vrot.slane %v2378, 2
      %v2380 = vmax.f32 %v2378, %v2379
      %v2381 = vrot.slane %v2380, 1
      %v2382 = vmax.f32 %v2380, %v2381
      %v2383 = vsel %vm2277, %v1672, -inf
      %v2384 = vrot.slane %v2383, 4
      %v2385 = vmax.f32 %v2383, %v2384
      %v2386 = vrot.slane %v2385, 2
      %v2387 = vmax.f32 %v2385, %v2386
      %v2388 = vrot.slane %v2387, 1
      %v2389 = vmax.f32 %v2387, %v2388
      %v2390 = vsel %vm2277, %v1680, -inf
      %v2391 = vrot.slane %v2390, 4
      %v2392 = vmax.f32 %v2390, %v2391
      %v2393 = vrot.slane %v2392, 2
      %v2394 = vmax.f32 %v2392, %v2393
      %v2395 = vrot.slane %v2394, 1
      %v2396 = vmax.f32 %v2394, %v2395
      %v2397 = vsel %vm2277, %v1688, -inf
      %v2398 = vrot.slane %v2397, 4
      %v2399 = vmax.f32 %v2397, %v2398
      %v2400 = vrot.slane %v2399, 2
      %v2401 = vmax.f32 %v2399, %v2400
      %v2402 = vrot.slane %v2401, 1
      %v2403 = vmax.f32 %v2401, %v2402
      %v2404 = vsel %vm2277, %v1687, -inf
      %v2405 = vrot.slane %v2404, 4
      %v2406 = vmax.f32 %v2404, %v2405
      %v2407 = vrot.slane %v2406, 2
      %v2408 = vmax.f32 %v2406, %v2407
      %v2409 = vrot.slane %v2408, 1
      %v2410 = vmax.f32 %v2408, %v2409
      %v2411 = vsel %vm2277, %v1689, -inf
      %v2412 = vrot.slane %v2411, 4
      %v2413 = vmax.f32 %v2411, %v2412
      %v2414 = vrot.slane %v2413, 2
      %v2415 = vmax.f32 %v2413, %v2414
      %v2416 = vrot.slane %v2415, 1
      %v2417 = vmax.f32 %v2415, %v2416
      %v2418 = vsel %vm2277, %v1697, -inf
      %v2419 = vrot.slane %v2418, 4
      %v2420 = vmax.f32 %v2418, %v2419
      %v2421 = vrot.slane %v2420, 2
      %v2422 = vmax.f32 %v2420, %v2421
      %v2423 = vrot.slane %v2422, 1
      %v2424 = vmax.f32 %v2422, %v2423
      %v2425 = vsel %vm2277, %v1705, -inf
      %v2426 = vrot.slane %v2425, 4
      %v2427 = vmax.f32 %v2425, %v2426
      %v2428 = vrot.slane %v2427, 2
      %v2429 = vmax.f32 %v2427, %v2428
      %v2430 = vrot.slane %v2429, 1
      %v2431 = vmax.f32 %v2429, %v2430
      %v2432 = vsel %vm2277, %v1704, -inf
      %v2433 = vrot.slane %v2432, 4
      %v2434 = vmax.f32 %v2432, %v2433
      %v2435 = vrot.slane %v2434, 2
      %v2436 = vmax.f32 %v2434, %v2435
      %v2437 = vrot.slane %v2436, 1
      %v2438 = vmax.f32 %v2436, %v2437
      %v2439 = vsel %vm2277, %v1706, -inf
      %v2440 = vrot.slane %v2439, 4
      %v2441 = vmax.f32 %v2439, %v2440
      %v2442 = vrot.slane %v2441, 2
      %v2443 = vmax.f32 %v2441, %v2442
      %v2444 = vrot.slane %v2443, 1
      %v2445 = vmax.f32 %v2443, %v2444
      %v2446 = vsel %vm2277, %v1714, -inf
      %v2447 = vrot.slane %v2446, 4
      %v2448 = vmax.f32 %v2446, %v2447
      %v2449 = vrot.slane %v2448, 2
      %v2450 = vmax.f32 %v2448, %v2449
      %v2451 = vrot.slane %v2450, 1
      %v2452 = vmax.f32 %v2450, %v2451
      %v2453 = vsel %vm2277, %v1722, -inf
      %v2454 = vrot.slane %v2453, 4
      %v2455 = vmax.f32 %v2453, %v2454
      %v2456 = vrot.slane %v2455, 2
      %v2457 = vmax.f32 %v2455, %v2456
      %v2458 = vrot.slane %v2457, 1
      %v2459 = vmax.f32 %v2457, %v2458
      %v2460 = vsel %vm2277, %v1721, -inf
      %v2461 = vrot.slane %v2460, 4
      %v2462 = vmax.f32 %v2460, %v2461
      %v2463 = vrot.slane %v2462, 2
      %v2464 = vmax.f32 %v2462, %v2463
      %v2465 = vrot.slane %v2464, 1
      %v2466 = vmax.f32 %v2464, %v2465
      %v2467 = vsel %vm2277, %v1723, -inf
      %v2468 = vrot.slane %v2467, 4
      %v2469 = vmax.f32 %v2467, %v2468
      %v2470 = vrot.slane %v2469, 2
      %v2471 = vmax.f32 %v2469, %v2470
      %v2472 = vrot.slane %v2471, 1
      %v2473 = vmax.f32 %v2471, %v2472
      %v2474 = vsel %vm2277, %v1731, -inf
      %v2475 = vrot.slane %v2474, 4
      %v2476 = vmax.f32 %v2474, %v2475
      %v2477 = vrot.slane %v2476, 2
      %v2478 = vmax.f32 %v2476, %v2477
      %v2479 = vrot.slane %v2478, 1
      %v2480 = vmax.f32 %v2478, %v2479
      %v2481 = vsel %vm2277, %v1739, -inf
      %v2482 = vrot.slane %v2481, 4
      %v2483 = vmax.f32 %v2481, %v2482
      %v2484 = vrot.slane %v2483, 2
      %v2485 = vmax.f32 %v2483, %v2484
      %v2486 = vrot.slane %v2485, 1
      %v2487 = vmax.f32 %v2485, %v2486
      %v2488 = vsel %vm2277, %v1738, -inf
      %v2489 = vrot.slane %v2488, 4
      %v2490 = vmax.f32 %v2488, %v2489
      %v2491 = vrot.slane %v2490, 2
      %v2492 = vmax.f32 %v2490, %v2491
      %v2493 = vrot.slane %v2492, 1
      %v2494 = vmax.f32 %v2492, %v2493
      %v2495 = vsel %vm2277, %v1740, -inf
      %v2496 = vrot.slane %v2495, 4
      %v2497 = vmax.f32 %v2495, %v2496
      %v2498 = vrot.slane %v2497, 2
      %v2499 = vmax.f32 %v2497, %v2498
      %v2500 = vrot.slane %v2499, 1
      %v2501 = vmax.f32 %v2499, %v2500
      %v2502 = vsel %vm2277, %v1748, -inf
      %v2503 = vrot.slane %v2502, 4
      %v2504 = vmax.f32 %v2502, %v2503
      %v2505 = vrot.slane %v2504, 2
      %v2506 = vmax.f32 %v2504, %v2505
      %v2507 = vrot.slane %v2506, 1
      %v2508 = vmax.f32 %v2506, %v2507
      %v2509 = vsel %vm2277, %v1756, -inf
      %v2510 = vrot.slane %v2509, 4
      %v2511 = vmax.f32 %v2509, %v2510
      %v2512 = vrot.slane %v2511, 2
      %v2513 = vmax.f32 %v2511, %v2512
      %v2514 = vrot.slane %v2513, 1
      %v2515 = vmax.f32 %v2513, %v2514
      %v2516 = vsel %vm2277, %v1755, -inf
      %v2517 = vrot.slane %v2516, 4
      %v2518 = vmax.f32 %v2516, %v2517
      %v2519 = vrot.slane %v2518, 2
      %v2520 = vmax.f32 %v2518, %v2519
      %v2521 = vrot.slane %v2520, 1
      %v2522 = vmax.f32 %v2520, %v2521
      %v2523 = vsel %vm2277, %v1757, -inf
      %v2524 = vrot.slane %v2523, 4
      %v2525 = vmax.f32 %v2523, %v2524
      %v2526 = vrot.slane %v2525, 2
      %v2527 = vmax.f32 %v2525, %v2526
      %v2528 = vrot.slane %v2527, 1
      %v2529 = vmax.f32 %v2527, %v2528
      %v2530 = vsel %vm2277, %v1765, -inf
      %v2531 = vrot.slane %v2530, 4
      %v2532 = vmax.f32 %v2530, %v2531
      %v2533 = vrot.slane %v2532, 2
      %v2534 = vmax.f32 %v2532, %v2533
      %v2535 = vrot.slane %v2534, 1
      %v2536 = vmax.f32 %v2534, %v2535
      %v2537 = vsel %vm2277, %v1773, -inf
      %v2538 = vrot.slane %v2537, 4
      %v2539 = vmax.f32 %v2537, %v2538
      %v2540 = vrot.slane %v2539, 2
      %v2541 = vmax.f32 %v2539, %v2540
      %v2542 = vrot.slane %v2541, 1
      %v2543 = vmax.f32 %v2541, %v2542
      %v2544 = vsel %vm2277, %v1772, -inf
      %v2545 = vrot.slane %v2544, 4
      %v2546 = vmax.f32 %v2544, %v2545
      %v2547 = vrot.slane %v2546, 2
      %v2548 = vmax.f32 %v2546, %v2547
      %v2549 = vrot.slane %v2548, 1
      %v2550 = vmax.f32 %v2548, %v2549
      %v2551 = vsel %vm2277, %v1774, -inf
      %v2552 = vrot.slane %v2551, 4
      %v2553 = vmax.f32 %v2551, %v2552
      %v2554 = vrot.slane %v2553, 2
      %v2555 = vmax.f32 %v2553, %v2554
      %v2556 = vrot.slane %v2555, 1
      %v2557 = vmax.f32 %v2555, %v2556
      %v2558 = vsel %vm2277, %v1782, -inf
      %v2559 = vrot.slane %v2558, 4
      %v2560 = vmax.f32 %v2558, %v2559
      %v2561 = vrot.slane %v2560, 2
      %v2562 = vmax.f32 %v2560, %v2561
      %v2563 = vrot.slane %v2562, 1
      %v2564 = vmax.f32 %v2562, %v2563
      %v2565 = vsel %vm2277, %v1790, -inf
      %v2566 = vrot.slane %v2565, 4
      %v2567 = vmax.f32 %v2565, %v2566
      %v2568 = vrot.slane %v2567, 2
      %v2569 = vmax.f32 %v2567, %v2568
      %v2570 = vrot.slane %v2569, 1
      %v2571 = vmax.f32 %v2569, %v2570
      %v2572 = vsel %vm2277, %v1789, -inf
      %v2573 = vrot.slane %v2572, 4
      %v2574 = vmax.f32 %v2572, %v2573
      %v2575 = vrot.slane %v2574, 2
      %v2576 = vmax.f32 %v2574, %v2575
      %v2577 = vrot.slane %v2576, 1
      %v2578 = vmax.f32 %v2576, %v2577
      %v2579 = vsel %vm2277, %v1791, -inf
      %v2580 = vrot.slane %v2579, 4
      %v2581 = vmax.f32 %v2579, %v2580
      %v2582 = vrot.slane %v2581, 2
      %v2583 = vmax.f32 %v2581, %v2582
      %v2584 = vrot.slane %v2583, 1
      %v2585 = vmax.f32 %v2583, %v2584
      %v2586 = vsel %vm2277, %v1799, -inf
      %v2587 = vrot.slane %v2586, 4
      %v2588 = vmax.f32 %v2586, %v2587
      %v2589 = vrot.slane %v2588, 2
      %v2590 = vmax.f32 %v2588, %v2589
      %v2591 = vrot.slane %v2590, 1
      %v2592 = vmax.f32 %v2590, %v2591
      %v2593 = vsel %vm2277, %v1807, -inf
      %v2594 = vrot.slane %v2593, 4
      %v2595 = vmax.f32 %v2593, %v2594
      %v2596 = vrot.slane %v2595, 2
      %v2597 = vmax.f32 %v2595, %v2596
      %v2598 = vrot.slane %v2597, 1
      %v2599 = vmax.f32 %v2597, %v2598
      %v2600 = vsel %vm2277, %v1806, -inf
      %v2601 = vrot.slane %v2600, 4
      %v2602 = vmax.f32 %v2600, %v2601
      %v2603 = vrot.slane %v2602, 2
      %v2604 = vmax.f32 %v2602, %v2603
      %v2605 = vrot.slane %v2604, 1
      %v2606 = vmax.f32 %v2604, %v2605
      %v2607 = vsel %vm2277, %v1808, -inf
      %v2608 = vrot.slane %v2607, 4
      %v2609 = vmax.f32 %v2607, %v2608
      %v2610 = vrot.slane %v2609, 2
      %v2611 = vmax.f32 %v2609, %v2610
      %v2612 = vrot.slane %v2611, 1
      %v2613 = vmax.f32 %v2611, %v2612
      %v2614 = vsel %vm2277, %v1816, -inf
      %v2615 = vrot.slane %v2614, 4
      %v2616 = vmax.f32 %v2614, %v2615
      %v2617 = vrot.slane %v2616, 2
      %v2618 = vmax.f32 %v2616, %v2617
      %v2619 = vrot.slane %v2618, 1
      %v2620 = vmax.f32 %v2618, %v2619
      %v2621 = vsel %vm2277, %v1824, -inf
      %v2622 = vrot.slane %v2621, 4
      %v2623 = vmax.f32 %v2621, %v2622
      %v2624 = vrot.slane %v2623, 2
      %v2625 = vmax.f32 %v2623, %v2624
      %v2626 = vrot.slane %v2625, 1
      %v2627 = vmax.f32 %v2625, %v2626
      %v2628 = vsel %vm2277, %v1823, -inf
      %v2629 = vrot.slane %v2628, 4
      %v2630 = vmax.f32 %v2628, %v2629
      %v2631 = vrot.slane %v2630, 2
      %v2632 = vmax.f32 %v2630, %v2631
      %v2633 = vrot.slane %v2632, 1
      %v2634 = vmax.f32 %v2632, %v2633
      %v2635 = vsel %vm2277, %v1825, -inf
      %v2636 = vrot.slane %v2635, 4
      %v2637 = vmax.f32 %v2635, %v2636
      %v2638 = vrot.slane %v2637, 2
      %v2639 = vmax.f32 %v2637, %v2638
      %v2640 = vrot.slane %v2639, 1
      %v2641 = vmax.f32 %v2639, %v2640
      %v2642 = vsel %vm2277, %v1833, -inf
      %v2643 = vrot.slane %v2642, 4
      %v2644 = vmax.f32 %v2642, %v2643
      %v2645 = vrot.slane %v2644, 2
      %v2646 = vmax.f32 %v2644, %v2645
      %v2647 = vrot.slane %v2646, 1
      %v2648 = vmax.f32 %v2646, %v2647
      %v2649 = vsel %vm2277, %v1841, -inf
      %v2650 = vrot.slane %v2649, 4
      %v2651 = vmax.f32 %v2649, %v2650
      %v2652 = vrot.slane %v2651, 2
      %v2653 = vmax.f32 %v2651, %v2652
      %v2654 = vrot.slane %v2653, 1
      %v2655 = vmax.f32 %v2653, %v2654
      %v2656 = vsel %vm2277, %v1840, -inf
      %v2657 = vrot.slane %v2656, 4
      %v2658 = vmax.f32 %v2656, %v2657
      %v2659 = vrot.slane %v2658, 2
      %v2660 = vmax.f32 %v2658, %v2659
      %v2661 = vrot.slane %v2660, 1
      %v2662 = vmax.f32 %v2660, %v2661
      %v2663 = vsel %vm2277, %v1842, -inf
      %v2664 = vrot.slane %v2663, 4
      %v2665 = vmax.f32 %v2663, %v2664
      %v2666 = vrot.slane %v2665, 2
      %v2667 = vmax.f32 %v2665, %v2666
      %v2668 = vrot.slane %v2667, 1
      %v2669 = vmax.f32 %v2667, %v2668
      %v2670 = vsel %vm2277, %v1850, -inf
      %v2671 = vrot.slane %v2670, 4
      %v2672 = vmax.f32 %v2670, %v2671
      %v2673 = vrot.slane %v2672, 2
      %v2674 = vmax.f32 %v2672, %v2673
      %v2675 = vrot.slane %v2674, 1
      %v2676 = vmax.f32 %v2674, %v2675
      %v2677 = vsel %vm2277, %v1858, -inf
      %v2678 = vrot.slane %v2677, 4
      %v2679 = vmax.f32 %v2677, %v2678
      %v2680 = vrot.slane %v2679, 2
      %v2681 = vmax.f32 %v2679, %v2680
      %v2682 = vrot.slane %v2681, 1
      %v2683 = vmax.f32 %v2681, %v2682
      %v2684 = vsel %vm2277, %v1857, -inf
      %v2685 = vrot.slane %v2684, 4
      %v2686 = vmax.f32 %v2684, %v2685
      %v2687 = vrot.slane %v2686, 2
      %v2688 = vmax.f32 %v2686, %v2687
      %v2689 = vrot.slane %v2688, 1
      %v2690 = vmax.f32 %v2688, %v2689
      %v2691 = vsel %vm2277, %v1859, -inf
      %v2692 = vrot.slane %v2691, 4
      %v2693 = vmax.f32 %v2691, %v2692
      %v2694 = vrot.slane %v2693, 2
      %v2695 = vmax.f32 %v2693, %v2694
      %v2696 = vrot.slane %v2695, 1
      %v2697 = vmax.f32 %v2695, %v2696
      %v2698 = vsel %vm2277, %v1867, -inf
      %v2699 = vrot.slane %v2698, 4
      %v2700 = vmax.f32 %v2698, %v2699
      %v2701 = vrot.slane %v2700, 2
      %v2702 = vmax.f32 %v2700, %v2701
      %v2703 = vrot.slane %v2702, 1
      %v2704 = vmax.f32 %v2702, %v2703
      %v2705 = vsel %vm2277, %v1875, -inf
      %v2706 = vrot.slane %v2705, 4
      %v2707 = vmax.f32 %v2705, %v2706
      %v2708 = vrot.slane %v2707, 2
      %v2709 = vmax.f32 %v2707, %v2708
      %v2710 = vrot.slane %v2709, 1
      %v2711 = vmax.f32 %v2709, %v2710
      %v2712 = vsel %vm2277, %v1874, -inf
      %v2713 = vrot.slane %v2712, 4
      %v2714 = vmax.f32 %v2712, %v2713
      %v2715 = vrot.slane %v2714, 2
      %v2716 = vmax.f32 %v2714, %v2715
      %v2717 = vrot.slane %v2716, 1
      %v2718 = vmax.f32 %v2716, %v2717
      %v2719 = vsel %vm2277, %v1876, -inf
      %v2720 = vrot.slane %v2719, 4
      %v2721 = vmax.f32 %v2719, %v2720
      %v2722 = vrot.slane %v2721, 2
      %v2723 = vmax.f32 %v2721, %v2722
      %v2724 = vrot.slane %v2723, 1
      %v2725 = vmax.f32 %v2723, %v2724
      %v2726 = vsel %vm2277, %v1884, -inf
      %v2727 = vrot.slane %v2726, 4
      %v2728 = vmax.f32 %v2726, %v2727
      %v2729 = vrot.slane %v2728, 2
      %v2730 = vmax.f32 %v2728, %v2729
      %v2731 = vrot.slane %v2730, 1
      %v2732 = vmax.f32 %v2730, %v2731
      %v2733 = vsel %vm2277, %v1892, -inf
      %v2734 = vrot.slane %v2733, 4
      %v2735 = vmax.f32 %v2733, %v2734
      %v2736 = vrot.slane %v2735, 2
      %v2737 = vmax.f32 %v2735, %v2736
      %v2738 = vrot.slane %v2737, 1
      %v2739 = vmax.f32 %v2737, %v2738
      %v2740 = vsel %vm2277, %v1891, -inf
      %v2741 = vrot.slane %v2740, 4
      %v2742 = vmax.f32 %v2740, %v2741
      %v2743 = vrot.slane %v2742, 2
      %v2744 = vmax.f32 %v2742, %v2743
      %v2745 = vrot.slane %v2744, 1
      %v2746 = vmax.f32 %v2744, %v2745
      %v2747 = vsel %vm2277, %v1893, -inf
      %v2748 = vrot.slane %v2747, 4
      %v2749 = vmax.f32 %v2747, %v2748
      %v2750 = vrot.slane %v2749, 2
      %v2751 = vmax.f32 %v2749, %v2750
      %v2752 = vrot.slane %v2751, 1
      %v2753 = vmax.f32 %v2751, %v2752
      %v2754 = vsel %vm2277, %v1901, -inf
      %v2755 = vrot.slane %v2754, 4
      %v2756 = vmax.f32 %v2754, %v2755
      %v2757 = vrot.slane %v2756, 2
      %v2758 = vmax.f32 %v2756, %v2757
      %v2759 = vrot.slane %v2758, 1
      %v2760 = vmax.f32 %v2758, %v2759
      %v2761 = vsel %vm2277, %v1909, -inf
      %v2762 = vrot.slane %v2761, 4
      %v2763 = vmax.f32 %v2761, %v2762
      %v2764 = vrot.slane %v2763, 2
      %v2765 = vmax.f32 %v2763, %v2764
      %v2766 = vrot.slane %v2765, 1
      %v2767 = vmax.f32 %v2765, %v2766
      %v2768 = vsel %vm2277, %v1908, -inf
      %v2769 = vrot.slane %v2768, 4
      %v2770 = vmax.f32 %v2768, %v2769
      %v2771 = vrot.slane %v2770, 2
      %v2772 = vmax.f32 %v2770, %v2771
      %v2773 = vrot.slane %v2772, 1
      %v2774 = vmax.f32 %v2772, %v2773
      %v2775 = vsel %vm2277, %v1910, -inf
      %v2776 = vrot.slane %v2775, 4
      %v2777 = vmax.f32 %v2775, %v2776
      %v2778 = vrot.slane %v2777, 2
      %v2779 = vmax.f32 %v2777, %v2778
      %v2780 = vrot.slane %v2779, 1
      %v2781 = vmax.f32 %v2779, %v2780
      %v2782 = vsel %vm2277, %v1918, -inf
      %v2783 = vrot.slane %v2782, 4
      %v2784 = vmax.f32 %v2782, %v2783
      %v2785 = vrot.slane %v2784, 2
      %v2786 = vmax.f32 %v2784, %v2785
      %v2787 = vrot.slane %v2786, 1
      %v2788 = vmax.f32 %v2786, %v2787
      %v2789 = vsel %vm2277, %v1926, -inf
      %v2790 = vrot.slane %v2789, 4
      %v2791 = vmax.f32 %v2789, %v2790
      %v2792 = vrot.slane %v2791, 2
      %v2793 = vmax.f32 %v2791, %v2792
      %v2794 = vrot.slane %v2793, 1
      %v2795 = vmax.f32 %v2793, %v2794
      %v2796 = vsel %vm2277, %v1925, -inf
      %v2797 = vrot.slane %v2796, 4
      %v2798 = vmax.f32 %v2796, %v2797
      %v2799 = vrot.slane %v2798, 2
      %v2800 = vmax.f32 %v2798, %v2799
      %v2801 = vrot.slane %v2800, 1
      %v2802 = vmax.f32 %v2800, %v2801
      %v2803 = vsel %vm2277, %v1927, -inf
      %v2804 = vrot.slane %v2803, 4
      %v2805 = vmax.f32 %v2803, %v2804
      %v2806 = vrot.slane %v2805, 2
      %v2807 = vmax.f32 %v2805, %v2806
      %v2808 = vrot.slane %v2807, 1
      %v2809 = vmax.f32 %v2807, %v2808
      %v2810 = vsel %vm2277, %v1935, -inf
      %v2811 = vrot.slane %v2810, 4
      %v2812 = vmax.f32 %v2810, %v2811
      %v2813 = vrot.slane %v2812, 2
      %v2814 = vmax.f32 %v2812, %v2813
      %v2815 = vrot.slane %v2814, 1
      %v2816 = vmax.f32 %v2814, %v2815
      %v2817 = vsel %vm2277, %v1943, -inf
      %v2818 = vrot.slane %v2817, 4
      %v2819 = vmax.f32 %v2817, %v2818
      %v2820 = vrot.slane %v2819, 2
      %v2821 = vmax.f32 %v2819, %v2820
      %v2822 = vrot.slane %v2821, 1
      %v2823 = vmax.f32 %v2821, %v2822
      %v2824 = vsel %vm2277, %v1942, -inf
      %v2825 = vrot.slane %v2824, 4
      %v2826 = vmax.f32 %v2824, %v2825
      %v2827 = vrot.slane %v2826, 2
      %v2828 = vmax.f32 %v2826, %v2827
      %v2829 = vrot.slane %v2828, 1
      %v2830 = vmax.f32 %v2828, %v2829
      %v2831 = vsel %vm2277, %v1944, -inf
      %v2832 = vrot.slane %v2831, 4
      %v2833 = vmax.f32 %v2831, %v2832
      %v2834 = vrot.slane %v2833, 2
      %v2835 = vmax.f32 %v2833, %v2834
      %v2836 = vrot.slane %v2835, 1
      %v2837 = vmax.f32 %v2835, %v2836
      %v2838 = vsel %vm2277, %v1952, -inf
      %v2839 = vrot.slane %v2838, 4
      %v2840 = vmax.f32 %v2838, %v2839
      %v2841 = vrot.slane %v2840, 2
      %v2842 = vmax.f32 %v2840, %v2841
      %v2843 = vrot.slane %v2842, 1
      %v2844 = vmax.f32 %v2842, %v2843
      %v2845 = vsel %vm2277, %v1960, -inf
      %v2846 = vrot.slane %v2845, 4
      %v2847 = vmax.f32 %v2845, %v2846
      %v2848 = vrot.slane %v2847, 2
      %v2849 = vmax.f32 %v2847, %v2848
      %v2850 = vrot.slane %v2849, 1
      %v2851 = vmax.f32 %v2849, %v2850
      %v2852 = vsel %vm2277, %v1959, -inf
      %v2853 = vrot.slane %v2852, 4
      %v2854 = vmax.f32 %v2852, %v2853
      %v2855 = vrot.slane %v2854, 2
      %v2856 = vmax.f32 %v2854, %v2855
      %v2857 = vrot.slane %v2856, 1
      %v2858 = vmax.f32 %v2856, %v2857
      %v2859 = vsel %vm2277, %v1961, -inf
      %v2860 = vrot.slane %v2859, 4
      %v2861 = vmax.f32 %v2859, %v2860
      %v2862 = vrot.slane %v2861, 2
      %v2863 = vmax.f32 %v2861, %v2862
      %v2864 = vrot.slane %v2863, 1
      %v2865 = vmax.f32 %v2863, %v2864
      %v2866 = vsel %vm2277, %v1969, -inf
      %v2867 = vrot.slane %v2866, 4
      %v2868 = vmax.f32 %v2866, %v2867
      %v2869 = vrot.slane %v2868, 2
      %v2870 = vmax.f32 %v2868, %v2869
      %v2871 = vrot.slane %v2870, 1
      %v2872 = vmax.f32 %v2870, %v2871
      %v2873 = vsel %vm2277, %v1977, -inf
      %v2874 = vrot.slane %v2873, 4
      %v2875 = vmax.f32 %v2873, %v2874
      %v2876 = vrot.slane %v2875, 2
      %v2877 = vmax.f32 %v2875, %v2876
      %v2878 = vrot.slane %v2877, 1
      %v2879 = vmax.f32 %v2877, %v2878
      %v2880 = vsel %vm2277, %v1976, -inf
      %v2881 = vrot.slane %v2880, 4
      %v2882 = vmax.f32 %v2880, %v2881
      %v2883 = vrot.slane %v2882, 2
      %v2884 = vmax.f32 %v2882, %v2883
      %v2885 = vrot.slane %v2884, 1
      %v2886 = vmax.f32 %v2884, %v2885
      %v2887 = vsel %vm2277, %v1978, -inf
      %v2888 = vrot.slane %v2887, 4
      %v2889 = vmax.f32 %v2887, %v2888
      %v2890 = vrot.slane %v2889, 2
      %v2891 = vmax.f32 %v2889, %v2890
      %v2892 = vrot.slane %v2891, 1
      %v2893 = vmax.f32 %v2891, %v2892
      %v2894 = vsel %vm2277, %v1986, -inf
      %v2895 = vrot.slane %v2894, 4
      %v2896 = vmax.f32 %v2894, %v2895
      %v2897 = vrot.slane %v2896, 2
      %v2898 = vmax.f32 %v2896, %v2897
      %v2899 = vrot.slane %v2898, 1
      %v2900 = vmax.f32 %v2898, %v2899
      %v2901 = vsel %vm2277, %v1994, -inf
      %v2902 = vrot.slane %v2901, 4
      %v2903 = vmax.f32 %v2901, %v2902
      %v2904 = vrot.slane %v2903, 2
      %v2905 = vmax.f32 %v2903, %v2904
      %v2906 = vrot.slane %v2905, 1
      %v2907 = vmax.f32 %v2905, %v2906
      %v2908 = vsel %vm2277, %v1993, -inf
      %v2909 = vrot.slane %v2908, 4
      %v2910 = vmax.f32 %v2908, %v2909
      %v2911 = vrot.slane %v2910, 2
      %v2912 = vmax.f32 %v2910, %v2911
      %v2913 = vrot.slane %v2912, 1
      %v2914 = vmax.f32 %v2912, %v2913
      %v2915 = vsel %vm2277, %v1995, -inf
      %v2916 = vrot.slane %v2915, 4
      %v2917 = vmax.f32 %v2915, %v2916
      %v2918 = vrot.slane %v2917, 2
      %v2919 = vmax.f32 %v2917, %v2918
      %v2920 = vrot.slane %v2919, 1
      %v2921 = vmax.f32 %v2919, %v2920
      %v2922 = vsel %vm2277, %v2003, -inf
      %v2923 = vrot.slane %v2922, 4
      %v2924 = vmax.f32 %v2922, %v2923
      %v2925 = vrot.slane %v2924, 2
      %v2926 = vmax.f32 %v2924, %v2925
      %v2927 = vrot.slane %v2926, 1
      %v2928 = vmax.f32 %v2926, %v2927
      %v2929 = vsel %vm2277, %v2011, -inf
      %v2930 = vrot.slane %v2929, 4
      %v2931 = vmax.f32 %v2929, %v2930
      %v2932 = vrot.slane %v2931, 2
      %v2933 = vmax.f32 %v2931, %v2932
      %v2934 = vrot.slane %v2933, 1
      %v2935 = vmax.f32 %v2933, %v2934
      %v2936 = vsel %vm2277, %v2010, -inf
      %v2937 = vrot.slane %v2936, 4
      %v2938 = vmax.f32 %v2936, %v2937
      %v2939 = vrot.slane %v2938, 2
      %v2940 = vmax.f32 %v2938, %v2939
      %v2941 = vrot.slane %v2940, 1
      %v2942 = vmax.f32 %v2940, %v2941
      %v2943 = vsel %vm2277, %v2012, -inf
      %v2944 = vrot.slane %v2943, 4
      %v2945 = vmax.f32 %v2943, %v2944
      %v2946 = vrot.slane %v2945, 2
      %v2947 = vmax.f32 %v2945, %v2946
      %v2948 = vrot.slane %v2947, 1
      %v2949 = vmax.f32 %v2947, %v2948
      %v2950 = vsel %vm2277, %v2020, -inf
      %v2951 = vrot.slane %v2950, 4
      %v2952 = vmax.f32 %v2950, %v2951
      %v2953 = vrot.slane %v2952, 2
      %v2954 = vmax.f32 %v2952, %v2953
      %v2955 = vrot.slane %v2954, 1
      %v2956 = vmax.f32 %v2954, %v2955
      %v2957 = vsel %vm2277, %v2028, -inf
      %v2958 = vrot.slane %v2957, 4
      %v2959 = vmax.f32 %v2957, %v2958
      %v2960 = vrot.slane %v2959, 2
      %v2961 = vmax.f32 %v2959, %v2960
      %v2962 = vrot.slane %v2961, 1
      %v2963 = vmax.f32 %v2961, %v2962
      %v2964 = vsel %vm2277, %v2027, -inf
      %v2965 = vrot.slane %v2964, 4
      %v2966 = vmax.f32 %v2964, %v2965
      %v2967 = vrot.slane %v2966, 2
      %v2968 = vmax.f32 %v2966, %v2967
      %v2969 = vrot.slane %v2968, 1
      %v2970 = vmax.f32 %v2968, %v2969
      %v2971 = vsel %vm2277, %v2029, -inf
      %v2972 = vrot.slane %v2971, 4
      %v2973 = vmax.f32 %v2971, %v2972
      %v2974 = vrot.slane %v2973, 2
      %v2975 = vmax.f32 %v2973, %v2974
      %v2976 = vrot.slane %v2975, 1
      %v2977 = vmax.f32 %v2975, %v2976
      %v2978 = vsel %vm2277, %v2037, -inf
      %v2979 = vrot.slane %v2978, 4
      %v2980 = vmax.f32 %v2978, %v2979
      %v2981 = vrot.slane %v2980, 2
      %v2982 = vmax.f32 %v2980, %v2981
      %v2983 = vrot.slane %v2982, 1
      %v2984 = vmax.f32 %v2982, %v2983
      %v2985 = vsel %vm2277, %v2045, -inf
      %v2986 = vrot.slane %v2985, 4
      %v2987 = vmax.f32 %v2985, %v2986
      %v2988 = vrot.slane %v2987, 2
      %v2989 = vmax.f32 %v2987, %v2988
      %v2990 = vrot.slane %v2989, 1
      %v2991 = vmax.f32 %v2989, %v2990
      %v2992 = vsel %vm2277, %v2044, -inf
      %v2993 = vrot.slane %v2992, 4
      %v2994 = vmax.f32 %v2992, %v2993
      %v2995 = vrot.slane %v2994, 2
      %v2996 = vmax.f32 %v2994, %v2995
      %v2997 = vrot.slane %v2996, 1
      %v2998 = vmax.f32 %v2996, %v2997
      %v2999 = vsel %vm2277, %v2046, -inf
      %v3000 = vrot.slane %v2999, 4
      %v3001 = vmax.f32 %v2999, %v3000
      %v3002 = vrot.slane %v3001, 2
      %v3003 = vmax.f32 %v3001, %v3002
      %v3004 = vrot.slane %v3003, 1
      %v3005 = vmax.f32 %v3003, %v3004
      %v3006 = vsel %vm2277, %v2054, -inf
      %v3007 = vrot.slane %v3006, 4
      %v3008 = vmax.f32 %v3006, %v3007
      %v3009 = vrot.slane %v3008, 2
      %v3010 = vmax.f32 %v3008, %v3009
      %v3011 = vrot.slane %v3010, 1
      %v3012 = vmax.f32 %v3010, %v3011
      %v3013 = vsel %vm2277, %v2062, -inf
      %v3014 = vrot.slane %v3013, 4
      %v3015 = vmax.f32 %v3013, %v3014
      %v3016 = vrot.slane %v3015, 2
      %v3017 = vmax.f32 %v3015, %v3016
      %v3018 = vrot.slane %v3017, 1
      %v3019 = vmax.f32 %v3017, %v3018
      %v3020 = vsel %vm2277, %v2061, -inf
      %v3021 = vrot.slane %v3020, 4
      %v3022 = vmax.f32 %v3020, %v3021
      %v3023 = vrot.slane %v3022, 2
      %v3024 = vmax.f32 %v3022, %v3023
      %v3025 = vrot.slane %v3024, 1
      %v3026 = vmax.f32 %v3024, %v3025
      %v3027 = vsel %vm2277, %v2063, -inf
      %v3028 = vrot.slane %v3027, 4
      %v3029 = vmax.f32 %v3027, %v3028
      %v3030 = vrot.slane %v3029, 2
      %v3031 = vmax.f32 %v3029, %v3030
      %v3032 = vrot.slane %v3031, 1
      %v3033 = vmax.f32 %v3031, %v3032
      %v3034 = vsel %vm2277, %v2071, -inf
      %v3035 = vrot.slane %v3034, 4
      %v3036 = vmax.f32 %v3034, %v3035
      %v3037 = vrot.slane %v3036, 2
      %v3038 = vmax.f32 %v3036, %v3037
      %v3039 = vrot.slane %v3038, 1
      %v3040 = vmax.f32 %v3038, %v3039
      %v3041 = vsel %vm2277, %v2079, -inf
      %v3042 = vrot.slane %v3041, 4
      %v3043 = vmax.f32 %v3041, %v3042
      %v3044 = vrot.slane %v3043, 2
      %v3045 = vmax.f32 %v3043, %v3044
      %v3046 = vrot.slane %v3045, 1
      %v3047 = vmax.f32 %v3045, %v3046
      %v3048 = vsel %vm2277, %v2078, -inf
      %v3049 = vrot.slane %v3048, 4
      %v3050 = vmax.f32 %v3048, %v3049
      %v3051 = vrot.slane %v3050, 2
      %v3052 = vmax.f32 %v3050, %v3051
      %v3053 = vrot.slane %v3052, 1
      %v3054 = vmax.f32 %v3052, %v3053
      %v3055 = vsel %vm2277, %v2080, -inf
      %v3056 = vrot.slane %v3055, 4
      %v3057 = vmax.f32 %v3055, %v3056
      %v3058 = vrot.slane %v3057, 2
      %v3059 = vmax.f32 %v3057, %v3058
      %v3060 = vrot.slane %v3059, 1
      %v3061 = vmax.f32 %v3059, %v3060
      %v3062 = vsel %vm2277, %v2088, -inf
      %v3063 = vrot.slane %v3062, 4
      %v3064 = vmax.f32 %v3062, %v3063
      %v3065 = vrot.slane %v3064, 2
      %v3066 = vmax.f32 %v3064, %v3065
      %v3067 = vrot.slane %v3066, 1
      %v3068 = vmax.f32 %v3066, %v3067
      %v3069 = vsel %vm2277, %v2096, -inf
      %v3070 = vrot.slane %v3069, 4
      %v3071 = vmax.f32 %v3069, %v3070
      %v3072 = vrot.slane %v3071, 2
      %v3073 = vmax.f32 %v3071, %v3072
      %v3074 = vrot.slane %v3073, 1
      %v3075 = vmax.f32 %v3073, %v3074
      %v3076 = vsel %vm2277, %v2095, -inf
      %v3077 = vrot.slane %v3076, 4
      %v3078 = vmax.f32 %v3076, %v3077
      %v3079 = vrot.slane %v3078, 2
      %v3080 = vmax.f32 %v3078, %v3079
      %v3081 = vrot.slane %v3080, 1
      %v3082 = vmax.f32 %v3080, %v3081
      %v3083 = vsel %vm2277, %v2097, -inf
      %v3084 = vrot.slane %v3083, 4
      %v3085 = vmax.f32 %v3083, %v3084
      %v3086 = vrot.slane %v3085, 2
      %v3087 = vmax.f32 %v3085, %v3086
      %v3088 = vrot.slane %v3087, 1
      %v3089 = vmax.f32 %v3087, %v3088
      %v3090 = vsel %vm2277, %v2105, -inf
      %v3091 = vrot.slane %v3090, 4
      %v3092 = vmax.f32 %v3090, %v3091
      %v3093 = vrot.slane %v3092, 2
      %v3094 = vmax.f32 %v3092, %v3093
      %v3095 = vrot.slane %v3094, 1
      %v3096 = vmax.f32 %v3094, %v3095
      %v3097 = vsel %vm2277, %v2113, -inf
      %v3098 = vrot.slane %v3097, 4
      %v3099 = vmax.f32 %v3097, %v3098
      %v3100 = vrot.slane %v3099, 2
      %v3101 = vmax.f32 %v3099, %v3100
      %v3102 = vrot.slane %v3101, 1
      %v3103 = vmax.f32 %v3101, %v3102
      %v3104 = vsel %vm2277, %v2112, -inf
      %v3105 = vrot.slane %v3104, 4
      %v3106 = vmax.f32 %v3104, %v3105
      %v3107 = vrot.slane %v3106, 2
      %v3108 = vmax.f32 %v3106, %v3107
      %v3109 = vrot.slane %v3108, 1
      %v3110 = vmax.f32 %v3108, %v3109
      %v3111 = vsel %vm2277, %v2114, -inf
      %v3112 = vrot.slane %v3111, 4
      %v3113 = vmax.f32 %v3111, %v3112
      %v3114 = vrot.slane %v3113, 2
      %v3115 = vmax.f32 %v3113, %v3114
      %v3116 = vrot.slane %v3115, 1
      %v3117 = vmax.f32 %v3115, %v3116
      %v3118 = vsel %vm2277, %v2122, -inf
      %v3119 = vrot.slane %v3118, 4
      %v3120 = vmax.f32 %v3118, %v3119
      %v3121 = vrot.slane %v3120, 2
      %v3122 = vmax.f32 %v3120, %v3121
      %v3123 = vrot.slane %v3122, 1
      %v3124 = vmax.f32 %v3122, %v3123
      %v3125 = vsel %vm2277, %v2130, -inf
      %v3126 = vrot.slane %v3125, 4
      %v3127 = vmax.f32 %v3125, %v3126
      %v3128 = vrot.slane %v3127, 2
      %v3129 = vmax.f32 %v3127, %v3128
      %v3130 = vrot.slane %v3129, 1
      %v3131 = vmax.f32 %v3129, %v3130
      %v3132 = vsel %vm2277, %v2129, -inf
      %v3133 = vrot.slane %v3132, 4
      %v3134 = vmax.f32 %v3132, %v3133
      %v3135 = vrot.slane %v3134, 2
      %v3136 = vmax.f32 %v3134, %v3135
      %v3137 = vrot.slane %v3136, 1
      %v3138 = vmax.f32 %v3136, %v3137
      %v3139 = vsel %vm2277, %v2131, -inf
      %v3140 = vrot.slane %v3139, 4
      %v3141 = vmax.f32 %v3139, %v3140
      %v3142 = vrot.slane %v3141, 2
      %v3143 = vmax.f32 %v3141, %v3142
      %v3144 = vrot.slane %v3143, 1
      %v3145 = vmax.f32 %v3143, %v3144
      %v3146 = vsel %vm2277, %v2139, -inf
      %v3147 = vrot.slane %v3146, 4
      %v3148 = vmax.f32 %v3146, %v3147
      %v3149 = vrot.slane %v3148, 2
      %v3150 = vmax.f32 %v3148, %v3149
      %v3151 = vrot.slane %v3150, 1
      %v3152 = vmax.f32 %v3150, %v3151
      %v3153 = vsel %vm2277, %v2147, -inf
      %v3154 = vrot.slane %v3153, 4
      %v3155 = vmax.f32 %v3153, %v3154
      %v3156 = vrot.slane %v3155, 2
      %v3157 = vmax.f32 %v3155, %v3156
      %v3158 = vrot.slane %v3157, 1
      %v3159 = vmax.f32 %v3157, %v3158
      %v3160 = vsel %vm2277, %v2146, -inf
      %v3161 = vrot.slane %v3160, 4
      %v3162 = vmax.f32 %v3160, %v3161
      %v3163 = vrot.slane %v3162, 2
      %v3164 = vmax.f32 %v3162, %v3163
      %v3165 = vrot.slane %v3164, 1
      %v3166 = vmax.f32 %v3164, %v3165
      %v3167 = vsel %vm2277, %v2148, -inf
      %v3168 = vrot.slane %v3167, 4
      %v3169 = vmax.f32 %v3167, %v3168
      %v3170 = vrot.slane %v3169, 2
      %v3171 = vmax.f32 %v3169, %v3170
      %v3172 = vrot.slane %v3171, 1
      %v3173 = vmax.f32 %v3171, %v3172
      %v3174 = vpack.c.bf16 %v2284, %v2284
      %v3175 = vpack.c.bf16 %v2291, %v2291
      %v3176 = vpack.c.bf16 %v2298, %v2298
      %v3177 = vpack.c.bf16 %v2305, %v2305
      %v3178 = vpack.c.bf16 %v2312, %v2312
      %v3179 = vpack.c.bf16 %v2319, %v2319
      %v3180 = vpack.c.bf16 %v2326, %v2326
      %v3181 = vpack.c.bf16 %v2333, %v2333
      %v3182 = vpack.c.bf16 %v2340, %v2340
      %v3183 = vpack.c.bf16 %v2347, %v2347
      %v3184 = vpack.c.bf16 %v2354, %v2354
      %v3185 = vpack.c.bf16 %v2361, %v2361
      %v3186 = vpack.c.bf16 %v2368, %v2368
      %v3187 = vpack.c.bf16 %v2375, %v2375
      %v3188 = vpack.c.bf16 %v2382, %v2382
      %v3189 = vpack.c.bf16 %v2389, %v2389
      %v3190 = vpack.c.bf16 %v2396, %v2396
      %v3191 = vpack.c.bf16 %v2403, %v2403
      %v3192 = vpack.c.bf16 %v2410, %v2410
      %v3193 = vpack.c.bf16 %v2417, %v2417
      %v3194 = vpack.c.bf16 %v2424, %v2424
      %v3195 = vpack.c.bf16 %v2431, %v2431
      %v3196 = vpack.c.bf16 %v2438, %v2438
      %v3197 = vpack.c.bf16 %v2445, %v2445
      %v3198 = vpack.c.bf16 %v2452, %v2452
      %v3199 = vpack.c.bf16 %v2459, %v2459
      %v3200 = vpack.c.bf16 %v2466, %v2466
      %v3201 = vpack.c.bf16 %v2473, %v2473
      %v3202 = vpack.c.bf16 %v2480, %v2480
      %v3203 = vpack.c.bf16 %v2487, %v2487
      %v3204 = vpack.c.bf16 %v2494, %v2494
      %v3205 = vpack.c.bf16 %v2501, %v2501
      %v3206 = vpack.c.bf16 %v2508, %v2508
      %v3207 = vpack.c.bf16 %v2515, %v2515
      %v3208 = vpack.c.bf16 %v2522, %v2522
      %v3209 = vpack.c.bf16 %v2529, %v2529
      %v3210 = vpack.c.bf16 %v2536, %v2536
      %v3211 = vpack.c.bf16 %v2543, %v2543
      %v3212 = vpack.c.bf16 %v2550, %v2550
      %v3213 = vpack.c.bf16 %v2557, %v2557
      %v3214 = vpack.c.bf16 %v2564, %v2564
      %v3215 = vpack.c.bf16 %v2571, %v2571
      %v3216 = vpack.c.bf16 %v2578, %v2578
      %v3217 = vpack.c.bf16 %v2585, %v2585
      %v3218 = vpack.c.bf16 %v2592, %v2592
      %v3219 = vpack.c.bf16 %v2599, %v2599
      %v3220 = vpack.c.bf16 %v2606, %v2606
      %v3221 = vpack.c.bf16 %v2613, %v2613
      %v3222 = vpack.c.bf16 %v2620, %v2620
      %v3223 = vpack.c.bf16 %v2627, %v2627
      %v3224 = vpack.c.bf16 %v2634, %v2634
      %v3225 = vpack.c.bf16 %v2641, %v2641
      %v3226 = vpack.c.bf16 %v2648, %v2648
      %v3227 = vpack.c.bf16 %v2655, %v2655
      %v3228 = vpack.c.bf16 %v2662, %v2662
      %v3229 = vpack.c.bf16 %v2669, %v2669
      %v3230 = vpack.c.bf16 %v2676, %v2676
      %v3231 = vpack.c.bf16 %v2683, %v2683
      %v3232 = vpack.c.bf16 %v2690, %v2690
      %v3233 = vpack.c.bf16 %v2697, %v2697
      %v3234 = vpack.c.bf16 %v2704, %v2704
      %v3235 = vpack.c.bf16 %v2711, %v2711
      %v3236 = vpack.c.bf16 %v2718, %v2718
      %v3237 = vpack.c.bf16 %v2725, %v2725
      %v3238 = vpack.c.bf16 %v2732, %v2732
      %v3239 = vpack.c.bf16 %v2739, %v2739
      %v3240 = vpack.c.bf16 %v2746, %v2746
      %v3241 = vpack.c.bf16 %v2753, %v2753
      %v3242 = vpack.c.bf16 %v2760, %v2760
      %v3243 = vpack.c.bf16 %v2767, %v2767
      %v3244 = vpack.c.bf16 %v2774, %v2774
      %v3245 = vpack.c.bf16 %v2781, %v2781
      %v3246 = vpack.c.bf16 %v2788, %v2788
      %v3247 = vpack.c.bf16 %v2795, %v2795
      %v3248 = vpack.c.bf16 %v2802, %v2802
      %v3249 = vpack.c.bf16 %v2809, %v2809
      %v3250 = vpack.c.bf16 %v2816, %v2816
      %v3251 = vpack.c.bf16 %v2823, %v2823
      %v3252 = vpack.c.bf16 %v2830, %v2830
      %v3253 = vpack.c.bf16 %v2837, %v2837
      %v3254 = vpack.c.bf16 %v2844, %v2844
      %v3255 = vpack.c.bf16 %v2851, %v2851
      %v3256 = vpack.c.bf16 %v2858, %v2858
      %v3257 = vpack.c.bf16 %v2865, %v2865
      %v3258 = vpack.c.bf16 %v2872, %v2872
      %v3259 = vpack.c.bf16 %v2879, %v2879
      %v3260 = vpack.c.bf16 %v2886, %v2886
      %v3261 = vpack.c.bf16 %v2893, %v2893
      %v3262 = vpack.c.bf16 %v2900, %v2900
      %v3263 = vpack.c.bf16 %v2907, %v2907
      %v3264 = vpack.c.bf16 %v2914, %v2914
      %v3265 = vpack.c.bf16 %v2921, %v2921
      %v3266 = vpack.c.bf16 %v2928, %v2928
      %v3267 = vpack.c.bf16 %v2935, %v2935
      %v3268 = vpack.c.bf16 %v2942, %v2942
      %v3269 = vpack.c.bf16 %v2949, %v2949
      %v3270 = vpack.c.bf16 %v2956, %v2956
      %v3271 = vpack.c.bf16 %v2963, %v2963
      %v3272 = vpack.c.bf16 %v2970, %v2970
      %v3273 = vpack.c.bf16 %v2977, %v2977
      %v3274 = vpack.c.bf16 %v2984, %v2984
      %v3275 = vpack.c.bf16 %v2991, %v2991
      %v3276 = vpack.c.bf16 %v2998, %v2998
      %v3277 = vpack.c.bf16 %v3005, %v3005
      %v3278 = vpack.c.bf16 %v3012, %v3012
      %v3279 = vpack.c.bf16 %v3019, %v3019
      %v3280 = vpack.c.bf16 %v3026, %v3026
      %v3281 = vpack.c.bf16 %v3033, %v3033
      %v3282 = vpack.c.bf16 %v3040, %v3040
      %v3283 = vpack.c.bf16 %v3047, %v3047
      %v3284 = vpack.c.bf16 %v3054, %v3054
      %v3285 = vpack.c.bf16 %v3061, %v3061
      %v3286 = vpack.c.bf16 %v3068, %v3068
      %v3287 = vpack.c.bf16 %v3075, %v3075
      %v3288 = vpack.c.bf16 %v3082, %v3082
      %v3289 = vpack.c.bf16 %v3089, %v3089
      %v3290 = vpack.c.bf16 %v3096, %v3096
      %v3291 = vpack.c.bf16 %v3103, %v3103
      %v3292 = vpack.c.bf16 %v3110, %v3110
      %v3293 = vpack.c.bf16 %v3117, %v3117
      %v3294 = vpack.c.bf16 %v3124, %v3124
      %v3295 = vpack.c.bf16 %v3131, %v3131
      %v3296 = vpack.c.bf16 %v3138, %v3138
      %v3297 = vpack.c.bf16 %v3145, %v3145
      %v3298 = vpack.c.bf16 %v3152, %v3152
      %v3299 = vpack.c.bf16 %v3159, %v3159
      %v3300 = vpack.c.bf16 %v3166, %v3166
      %v3301 = vpack.c.bf16 %v3173, %v3173
      %v3430 = vunpack.c.l.b16 %v3174
      %v3431 = vunpack.c.l.b16 %v3175
      %v3432 = vunpack.c.l.b16 %v3176
      %v3433 = vunpack.c.l.b16 %v3177
      %v3434 = vunpack.c.l.b16 %v3178
      %v3435 = vunpack.c.l.b16 %v3179
      %v3436 = vunpack.c.l.b16 %v3180
      %v3437 = vunpack.c.l.b16 %v3181
      %v3438 = vunpack.c.l.b16 %v3182
      %v3439 = vunpack.c.l.b16 %v3183
      %v3440 = vunpack.c.l.b16 %v3184
      %v3441 = vunpack.c.l.b16 %v3185
      %v3442 = vunpack.c.l.b16 %v3186
      %v3443 = vunpack.c.l.b16 %v3187
      %v3444 = vunpack.c.l.b16 %v3188
      %v3445 = vunpack.c.l.b16 %v3189
      %v3446 = vunpack.c.l.b16 %v3190
      %v3447 = vunpack.c.l.b16 %v3191
      %v3448 = vunpack.c.l.b16 %v3192
      %v3449 = vunpack.c.l.b16 %v3193
      %v3450 = vunpack.c.l.b16 %v3194
      %v3451 = vunpack.c.l.b16 %v3195
      %v3452 = vunpack.c.l.b16 %v3196
      %v3453 = vunpack.c.l.b16 %v3197
      %v3454 = vunpack.c.l.b16 %v3198
      %v3455 = vunpack.c.l.b16 %v3199
      %v3456 = vunpack.c.l.b16 %v3200
      %v3457 = vunpack.c.l.b16 %v3201
      %v3458 = vunpack.c.l.b16 %v3202
      %v3459 = vunpack.c.l.b16 %v3203
      %v3460 = vunpack.c.l.b16 %v3204
      %v3461 = vunpack.c.l.b16 %v3205
      %v3462 = vunpack.c.l.b16 %v3206
      %v3463 = vunpack.c.l.b16 %v3207
      %v3464 = vunpack.c.l.b16 %v3208
      %v3465 = vunpack.c.l.b16 %v3209
      %v3466 = vunpack.c.l.b16 %v3210
      %v3467 = vunpack.c.l.b16 %v3211
      %v3468 = vunpack.c.l.b16 %v3212
      %v3469 = vunpack.c.l.b16 %v3213
      %v3470 = vunpack.c.l.b16 %v3214
      %v3471 = vunpack.c.l.b16 %v3215
      %v3472 = vunpack.c.l.b16 %v3216
      %v3473 = vunpack.c.l.b16 %v3217
      %v3474 = vunpack.c.l.b16 %v3218
      %v3475 = vunpack.c.l.b16 %v3219
      %v3476 = vunpack.c.l.b16 %v3220
      %v3477 = vunpack.c.l.b16 %v3221
      %v3478 = vunpack.c.l.b16 %v3222
      %v3479 = vunpack.c.l.b16 %v3223
      %v3480 = vunpack.c.l.b16 %v3224
      %v3481 = vunpack.c.l.b16 %v3225
      %v3482 = vunpack.c.l.b16 %v3226
      %v3483 = vunpack.c.l.b16 %v3227
      %v3484 = vunpack.c.l.b16 %v3228
      %v3485 = vunpack.c.l.b16 %v3229
      %v3486 = vunpack.c.l.b16 %v3230
      %v3487 = vunpack.c.l.b16 %v3231
      %v3488 = vunpack.c.l.b16 %v3232
      %v3489 = vunpack.c.l.b16 %v3233
      %v3490 = vunpack.c.l.b16 %v3234
      %v3491 = vunpack.c.l.b16 %v3235
      %v3492 = vunpack.c.l.b16 %v3236
      %v3493 = vunpack.c.l.b16 %v3237
      %v3494 = vunpack.c.l.b16 %v3238
      %v3495 = vunpack.c.l.b16 %v3239
      %v3496 = vunpack.c.l.b16 %v3240
      %v3497 = vunpack.c.l.b16 %v3241
      %v3498 = vunpack.c.l.b16 %v3242
      %v3499 = vunpack.c.l.b16 %v3243
      %v3500 = vunpack.c.l.b16 %v3244
      %v3501 = vunpack.c.l.b16 %v3245
      %v3502 = vunpack.c.l.b16 %v3246
      %v3503 = vunpack.c.l.b16 %v3247
      %v3504 = vunpack.c.l.b16 %v3248
      %v3505 = vunpack.c.l.b16 %v3249
      %v3506 = vunpack.c.l.b16 %v3250
      %v3507 = vunpack.c.l.b16 %v3251
      %v3508 = vunpack.c.l.b16 %v3252
      %v3509 = vunpack.c.l.b16 %v3253
      %v3510 = vunpack.c.l.b16 %v3254
      %v3511 = vunpack.c.l.b16 %v3255
      %v3512 = vunpack.c.l.b16 %v3256
      %v3513 = vunpack.c.l.b16 %v3257
      %v3514 = vunpack.c.l.b16 %v3258
      %v3515 = vunpack.c.l.b16 %v3259
      %v3516 = vunpack.c.l.b16 %v3260
      %v3517 = vunpack.c.l.b16 %v3261
      %v3518 = vunpack.c.l.b16 %v3262
      %v3519 = vunpack.c.l.b16 %v3263
      %v3520 = vunpack.c.l.b16 %v3264
      %v3521 = vunpack.c.l.b16 %v3265
      %v3522 = vunpack.c.l.b16 %v3266
      %v3523 = vunpack.c.l.b16 %v3267
      %v3524 = vunpack.c.l.b16 %v3268
      %v3525 = vunpack.c.l.b16 %v3269
      %v3526 = vunpack.c.l.b16 %v3270
      %v3527 = vunpack.c.l.b16 %v3271
      %v3528 = vunpack.c.l.b16 %v3272
      %v3529 = vunpack.c.l.b16 %v3273
      %v3530 = vunpack.c.l.b16 %v3274
      %v3531 = vunpack.c.l.b16 %v3275
      %v3532 = vunpack.c.l.b16 %v3276
      %v3533 = vunpack.c.l.b16 %v3277
      %v3534 = vunpack.c.l.b16 %v3278
      %v3535 = vunpack.c.l.b16 %v3279
      %v3536 = vunpack.c.l.b16 %v3280
      %v3537 = vunpack.c.l.b16 %v3281
      %v3538 = vunpack.c.l.b16 %v3282
      %v3539 = vunpack.c.l.b16 %v3283
      %v3540 = vunpack.c.l.b16 %v3284
      %v3541 = vunpack.c.l.b16 %v3285
      %v3542 = vunpack.c.l.b16 %v3286
      %v3543 = vunpack.c.l.b16 %v3287
      %v3544 = vunpack.c.l.b16 %v3288
      %v3545 = vunpack.c.l.b16 %v3289
      %v3546 = vunpack.c.l.b16 %v3290
      %v3547 = vunpack.c.l.b16 %v3291
      %v3548 = vunpack.c.l.b16 %v3292
      %v3549 = vunpack.c.l.b16 %v3293
      %v3550 = vunpack.c.l.b16 %v3294
      %v3551 = vunpack.c.l.b16 %v3295
      %v3552 = vunpack.c.l.b16 %v3296
      %v3553 = vunpack.c.l.b16 %v3297
      %v3554 = vunpack.c.l.b16 %v3298
      %v3555 = vunpack.c.l.b16 %v3299
      %v3556 = vunpack.c.l.b16 %v3300
      %v3557 = vunpack.c.l.b16 %v3301
      %v3558 = vpack.c.b16 %v3430, %v3430
      %v3559 = vpack.c.b16 %v3431, %v3431
      %v3560 = vpack.c.b16 %v3432, %v3432
      %v3561 = vpack.c.b16 %v3433, %v3433
      %v3562 = vpack.c.b16 %v3434, %v3434
      %v3563 = vpack.c.b16 %v3435, %v3435
      %v3564 = vpack.c.b16 %v3436, %v3436
      %v3565 = vpack.c.b16 %v3437, %v3437
      %v3566 = vpack.c.b16 %v3438, %v3438
      %v3567 = vpack.c.b16 %v3439, %v3439
      %v3568 = vpack.c.b16 %v3440, %v3440
      %v3569 = vpack.c.b16 %v3441, %v3441
      %v3570 = vpack.c.b16 %v3442, %v3442
      %v3571 = vpack.c.b16 %v3443, %v3443
      %v3572 = vpack.c.b16 %v3444, %v3444
      %v3573 = vpack.c.b16 %v3445, %v3445
      %v3574 = vpack.c.b16 %v3446, %v3446
      %v3575 = vpack.c.b16 %v3447, %v3447
      %v3576 = vpack.c.b16 %v3448, %v3448
      %v3577 = vpack.c.b16 %v3449, %v3449
      %v3578 = vpack.c.b16 %v3450, %v3450
      %v3579 = vpack.c.b16 %v3451, %v3451
      %v3580 = vpack.c.b16 %v3452, %v3452
      %v3581 = vpack.c.b16 %v3453, %v3453
      %v3582 = vpack.c.b16 %v3454, %v3454
      %v3583 = vpack.c.b16 %v3455, %v3455
      %v3584 = vpack.c.b16 %v3456, %v3456
      %v3585 = vpack.c.b16 %v3457, %v3457
      %v3586 = vpack.c.b16 %v3458, %v3458
      %v3587 = vpack.c.b16 %v3459, %v3459
      %v3588 = vpack.c.b16 %v3460, %v3460
      %v3589 = vpack.c.b16 %v3461, %v3461
      %v3590 = vpack.c.b16 %v3462, %v3462
      %v3591 = vpack.c.b16 %v3463, %v3463
      %v3592 = vpack.c.b16 %v3464, %v3464
      %v3593 = vpack.c.b16 %v3465, %v3465
      %v3594 = vpack.c.b16 %v3466, %v3466
      %v3595 = vpack.c.b16 %v3467, %v3467
      %v3596 = vpack.c.b16 %v3468, %v3468
      %v3597 = vpack.c.b16 %v3469, %v3469
      %v3598 = vpack.c.b16 %v3470, %v3470
      %v3599 = vpack.c.b16 %v3471, %v3471
      %v3600 = vpack.c.b16 %v3472, %v3472
      %v3601 = vpack.c.b16 %v3473, %v3473
      %v3602 = vpack.c.b16 %v3474, %v3474
      %v3603 = vpack.c.b16 %v3475, %v3475
      %v3604 = vpack.c.b16 %v3476, %v3476
      %v3605 = vpack.c.b16 %v3477, %v3477
      %v3606 = vpack.c.b16 %v3478, %v3478
      %v3607 = vpack.c.b16 %v3479, %v3479
      %v3608 = vpack.c.b16 %v3480, %v3480
      %v3609 = vpack.c.b16 %v3481, %v3481
      %v3610 = vpack.c.b16 %v3482, %v3482
      %v3611 = vpack.c.b16 %v3483, %v3483
      %v3612 = vpack.c.b16 %v3484, %v3484
      %v3613 = vpack.c.b16 %v3485, %v3485
      %v3614 = vpack.c.b16 %v3486, %v3486
      %v3615 = vpack.c.b16 %v3487, %v3487
      %v3616 = vpack.c.b16 %v3488, %v3488
      %v3617 = vpack.c.b16 %v3489, %v3489
      %v3618 = vpack.c.b16 %v3490, %v3490
      %v3619 = vpack.c.b16 %v3491, %v3491
      %v3620 = vpack.c.b16 %v3492, %v3492
      %v3621 = vpack.c.b16 %v3493, %v3493
      %v3622 = vpack.c.b16 %v3494, %v3494
      %v3623 = vpack.c.b16 %v3495, %v3495
      %v3624 = vpack.c.b16 %v3496, %v3496
      %v3625 = vpack.c.b16 %v3497, %v3497
      %v3626 = vpack.c.b16 %v3498, %v3498
      %v3627 = vpack.c.b16 %v3499, %v3499
      %v3628 = vpack.c.b16 %v3500, %v3500
      %v3629 = vpack.c.b16 %v3501, %v3501
      %v3630 = vpack.c.b16 %v3502, %v3502
      %v3631 = vpack.c.b16 %v3503, %v3503
      %v3632 = vpack.c.b16 %v3504, %v3504
      %v3633 = vpack.c.b16 %v3505, %v3505
      %v3634 = vpack.c.b16 %v3506, %v3506
      %v3635 = vpack.c.b16 %v3507, %v3507
      %v3636 = vpack.c.b16 %v3508, %v3508
      %v3637 = vpack.c.b16 %v3509, %v3509
      %v3638 = vpack.c.b16 %v3510, %v3510
      %v3639 = vpack.c.b16 %v3511, %v3511
      %v3640 = vpack.c.b16 %v3512, %v3512
      %v3641 = vpack.c.b16 %v3513, %v3513
      %v3642 = vpack.c.b16 %v3514, %v3514
      %v3643 = vpack.c.b16 %v3515, %v3515
      %v3644 = vpack.c.b16 %v3516, %v3516
      %v3645 = vpack.c.b16 %v3517, %v3517
      %v3646 = vpack.c.b16 %v3518, %v3518
      %v3647 = vpack.c.b16 %v3519, %v3519
      %v3648 = vpack.c.b16 %v3520, %v3520
      %v3649 = vpack.c.b16 %v3521, %v3521
      %v3650 = vpack.c.b16 %v3522, %v3522
      %v3651 = vpack.c.b16 %v3523, %v3523
      %v3652 = vpack.c.b16 %v3524, %v3524
      %v3653 = vpack.c.b16 %v3525, %v3525
      %v3654 = vpack.c.b16 %v3526, %v3526
      %v3655 = vpack.c.b16 %v3527, %v3527
      %v3656 = vpack.c.b16 %v3528, %v3528
      %v3657 = vpack.c.b16 %v3529, %v3529
      %v3658 = vpack.c.b16 %v3530, %v3530
      %v3659 = vpack.c.b16 %v3531, %v3531
      %v3660 = vpack.c.b16 %v3532, %v3532
      %v3661 = vpack.c.b16 %v3533, %v3533
      %v3662 = vpack.c.b16 %v3534, %v3534
      %v3663 = vpack.c.b16 %v3535, %v3535
      %v3664 = vpack.c.b16 %v3536, %v3536
      %v3665 = vpack.c.b16 %v3537, %v3537
      %v3666 = vpack.c.b16 %v3538, %v3538
      %v3667 = vpack.c.b16 %v3539, %v3539
      %v3668 = vpack.c.b16 %v3540, %v3540
      %v3669 = vpack.c.b16 %v3541, %v3541
      %v3670 = vpack.c.b16 %v3542, %v3542
      %v3671 = vpack.c.b16 %v3543, %v3543
      %v3672 = vpack.c.b16 %v3544, %v3544
      %v3673 = vpack.c.b16 %v3545, %v3545
      %v3674 = vpack.c.b16 %v3546, %v3546
      %v3675 = vpack.c.b16 %v3547, %v3547
      %v3676 = vpack.c.b16 %v3548, %v3548
      %v3677 = vpack.c.b16 %v3549, %v3549
      %v3678 = vpack.c.b16 %v3550, %v3550
      %v3679 = vpack.c.b16 %v3551, %v3551
      %v3680 = vpack.c.b16 %v3552, %v3552
      %v3681 = vpack.c.b16 %v3553, %v3553
      %v3682 = vpack.c.b16 %v3554, %v3554
      %v3683 = vpack.c.b16 %v3555, %v3555
      %v3684 = vpack.c.b16 %v3556, %v3556
      %v3685 = vpack.c.b16 %v3557, %v3557
      %v3686 = vunpack.c.l.b16 %v3558
      %v3687 = vunpack.c.l.b16 %v3559
      %v3688 = vunpack.c.l.b16 %v3560
      %v3689 = vunpack.c.l.b16 %v3561
      %v3690 = vunpack.c.l.b16 %v3562
      %v3691 = vunpack.c.l.b16 %v3563
      %v3692 = vunpack.c.l.b16 %v3564
      %v3693 = vunpack.c.l.b16 %v3565
      %v3694 = vunpack.c.l.b16 %v3566
      %v3695 = vunpack.c.l.b16 %v3567
      %v3696 = vunpack.c.l.b16 %v3568
      %v3697 = vunpack.c.l.b16 %v3569
      %v3698 = vunpack.c.l.b16 %v3570
      %v3699 = vunpack.c.l.b16 %v3571
      %v3700 = vunpack.c.l.b16 %v3572
      %v3701 = vunpack.c.l.b16 %v3573
      %v3702 = vunpack.c.l.b16 %v3574
      %v3703 = vunpack.c.l.b16 %v3575
      %v3704 = vunpack.c.l.b16 %v3576
      %v3705 = vunpack.c.l.b16 %v3577
      %v3706 = vunpack.c.l.b16 %v3578
      %v3707 = vunpack.c.l.b16 %v3579
      %v3708 = vunpack.c.l.b16 %v3580
      %v3709 = vunpack.c.l.b16 %v3581
      %v3710 = vunpack.c.l.b16 %v3582
      %v3711 = vunpack.c.l.b16 %v3583
      %v3712 = vunpack.c.l.b16 %v3584
      %v3713 = vunpack.c.l.b16 %v3585
      %v3714 = vunpack.c.l.b16 %v3586
      %v3715 = vunpack.c.l.b16 %v3587
      %v3716 = vunpack.c.l.b16 %v3588
      %v3717 = vunpack.c.l.b16 %v3589
      %v3718 = vunpack.c.l.b16 %v3590
      %v3719 = vunpack.c.l.b16 %v3591
      %v3720 = vunpack.c.l.b16 %v3592
      %v3721 = vunpack.c.l.b16 %v3593
      %v3722 = vunpack.c.l.b16 %v3594
      %v3723 = vunpack.c.l.b16 %v3595
      %v3724 = vunpack.c.l.b16 %v3596
      %v3725 = vunpack.c.l.b16 %v3597
      %v3726 = vunpack.c.l.b16 %v3598
      %v3727 = vunpack.c.l.b16 %v3599
      %v3728 = vunpack.c.l.b16 %v3600
      %v3729 = vunpack.c.l.b16 %v3601
      %v3730 = vunpack.c.l.b16 %v3602
      %v3731 = vunpack.c.l.b16 %v3603
      %v3732 = vunpack.c.l.b16 %v3604
      %v3733 = vunpack.c.l.b16 %v3605
      %v3734 = vunpack.c.l.b16 %v3606
      %v3735 = vunpack.c.l.b16 %v3607
      %v3736 = vunpack.c.l.b16 %v3608
      %v3737 = vunpack.c.l.b16 %v3609
      %v3738 = vunpack.c.l.b16 %v3610
      %v3739 = vunpack.c.l.b16 %v3611
      %v3740 = vunpack.c.l.b16 %v3612
      %v3741 = vunpack.c.l.b16 %v3613
      %v3742 = vunpack.c.l.b16 %v3614
      %v3743 = vunpack.c.l.b16 %v3615
      %v3744 = vunpack.c.l.b16 %v3616
      %v3745 = vunpack.c.l.b16 %v3617
      %v3746 = vunpack.c.l.b16 %v3618
      %v3747 = vunpack.c.l.b16 %v3619
      %v3748 = vunpack.c.l.b16 %v3620
      %v3749 = vunpack.c.l.b16 %v3621
      %v3750 = vunpack.c.l.b16 %v3622
      %v3751 = vunpack.c.l.b16 %v3623
      %v3752 = vunpack.c.l.b16 %v3624
      %v3753 = vunpack.c.l.b16 %v3625
      %v3754 = vunpack.c.l.b16 %v3626
      %v3755 = vunpack.c.l.b16 %v3627
      %v3756 = vunpack.c.l.b16 %v3628
      %v3757 = vunpack.c.l.b16 %v3629
      %v3758 = vunpack.c.l.b16 %v3630
      %v3759 = vunpack.c.l.b16 %v3631
      %v3760 = vunpack.c.l.b16 %v3632
      %v3761 = vunpack.c.l.b16 %v3633
      %v3762 = vunpack.c.l.b16 %v3634
      %v3763 = vunpack.c.l.b16 %v3635
      %v3764 = vunpack.c.l.b16 %v3636
      %v3765 = vunpack.c.l.b16 %v3637
      %v3766 = vunpack.c.l.b16 %v3638
      %v3767 = vunpack.c.l.b16 %v3639
      %v3768 = vunpack.c.l.b16 %v3640
      %v3769 = vunpack.c.l.b16 %v3641
      %v3770 = vunpack.c.l.b16 %v3642
      %v3771 = vunpack.c.l.b16 %v3643
      %v3772 = vunpack.c.l.b16 %v3644
      %v3773 = vunpack.c.l.b16 %v3645
      %v3774 = vunpack.c.l.b16 %v3646
      %v3775 = vunpack.c.l.b16 %v3647
      %v3776 = vunpack.c.l.b16 %v3648
      %v3777 = vunpack.c.l.b16 %v3649
      %v3778 = vunpack.c.l.b16 %v3650
      %v3779 = vunpack.c.l.b16 %v3651
      %v3780 = vunpack.c.l.b16 %v3652
      %v3781 = vunpack.c.l.b16 %v3653
      %v3782 = vunpack.c.l.b16 %v3654
      %v3783 = vunpack.c.l.b16 %v3655
      %v3784 = vunpack.c.l.b16 %v3656
      %v3785 = vunpack.c.l.b16 %v3657
      %v3786 = vunpack.c.l.b16 %v3658
      %v3787 = vunpack.c.l.b16 %v3659
      %v3788 = vunpack.c.l.b16 %v3660
      %v3789 = vunpack.c.l.b16 %v3661
      %v3790 = vunpack.c.l.b16 %v3662
      %v3791 = vunpack.c.l.b16 %v3663
      %v3792 = vunpack.c.l.b16 %v3664
      %v3793 = vunpack.c.l.b16 %v3665
      %v3794 = vunpack.c.l.b16 %v3666
      %v3795 = vunpack.c.l.b16 %v3667
      %v3796 = vunpack.c.l.b16 %v3668
      %v3797 = vunpack.c.l.b16 %v3669
      %v3798 = vunpack.c.l.b16 %v3670
      %v3799 = vunpack.c.l.b16 %v3671
      %v3800 = vunpack.c.l.b16 %v3672
      %v3801 = vunpack.c.l.b16 %v3673
      %v3802 = vunpack.c.l.b16 %v3674
      %v3803 = vunpack.c.l.b16 %v3675
      %v3804 = vunpack.c.l.b16 %v3676
      %v3805 = vunpack.c.l.b16 %v3677
      %v3806 = vunpack.c.l.b16 %v3678
      %v3807 = vunpack.c.l.b16 %v3679
      %v3808 = vunpack.c.l.b16 %v3680
      %v3809 = vunpack.c.l.b16 %v3681
      %v3810 = vunpack.c.l.b16 %v3682
      %v3811 = vunpack.c.l.b16 %v3683
      %v3812 = vunpack.c.l.b16 %v3684
      %v3813 = vunpack.c.l.b16 %v3685
      %vm3814 = vcmask 1041409
      %v3815 = vsel %vm3814, %v3687, %v3686
      %vm3816 = vcmask 1042434
      %v3817 = vsel %vm3816, %v3688, %v3815
      %vm3818 = vcmask 1043459
      %v3819 = vsel %vm3818, %v3689, %v3817
      %vm3820 = vcmask 1044484
      %v3821 = vsel %vm3820, %v3690, %v3819
      %vm3822 = vcmask 1045509
      %v3823 = vsel %vm3822, %v3691, %v3821
      %vm3824 = vcmask 1046534
      %v3825 = vsel %vm3824, %v3692, %v3823
      %vm3826 = vcmask 1047559
      %v3827 = vsel %vm3826, %v3693, %v3825
      %v3828 = vsel %vm3814, %v3695, %v3694
      %v3829 = vsel %vm3816, %v3696, %v3828
      %v3830 = vsel %vm3818, %v3697, %v3829
      %v3831 = vsel %vm3820, %v3698, %v3830
      %v3832 = vsel %vm3822, %v3699, %v3831
      %v3833 = vsel %vm3824, %v3700, %v3832
      %v3834 = vsel %vm3826, %v3701, %v3833
      %v3835 = vsel %vm3814, %v3703, %v3702
      %v3836 = vsel %vm3816, %v3704, %v3835
      %v3837 = vsel %vm3818, %v3705, %v3836
      %v3838 = vsel %vm3820, %v3706, %v3837
      %v3839 = vsel %vm3822, %v3707, %v3838
      %v3840 = vsel %vm3824, %v3708, %v3839
      %v3841 = vsel %vm3826, %v3709, %v3840
      %v3842 = vsel %vm3814, %v3711, %v3710
      %v3843 = vsel %vm3816, %v3712, %v3842
      %v3844 = vsel %vm3818, %v3713, %v3843
      %v3845 = vsel %vm3820, %v3714, %v3844
      %v3846 = vsel %vm3822, %v3715, %v3845
      %v3847 = vsel %vm3824, %v3716, %v3846
      %v3848 = vsel %vm3826, %v3717, %v3847
      %v3849 = vsel %vm3814, %v3719, %v3718
      %v3850 = vsel %vm3816, %v3720, %v3849
      %v3851 = vsel %vm3818, %v3721, %v3850
      %v3852 = vsel %vm3820, %v3722, %v3851
      %v3853 = vsel %vm3822, %v3723, %v3852
      %v3854 = vsel %vm3824, %v3724, %v3853
      %v3855 = vsel %vm3826, %v3725, %v3854
      %v3856 = vsel %vm3814, %v3727, %v3726
      %v3857 = vsel %vm3816, %v3728, %v3856
      %v3858 = vsel %vm3818, %v3729, %v3857
      %v3859 = vsel %vm3820, %v3730, %v3858
      %v3860 = vsel %vm3822, %v3731, %v3859
      %v3861 = vsel %vm3824, %v3732, %v3860
      %v3862 = vsel %vm3826, %v3733, %v3861
      %v3863 = vsel %vm3814, %v3735, %v3734
      %v3864 = vsel %vm3816, %v3736, %v3863
      %v3865 = vsel %vm3818, %v3737, %v3864
      %v3866 = vsel %vm3820, %v3738, %v3865
      %v3867 = vsel %vm3822, %v3739, %v3866
      %v3868 = vsel %vm3824, %v3740, %v3867
      %v3869 = vsel %vm3826, %v3741, %v3868
      %v3870 = vsel %vm3814, %v3743, %v3742
      %v3871 = vsel %vm3816, %v3744, %v3870
      %v3872 = vsel %vm3818, %v3745, %v3871
      %v3873 = vsel %vm3820, %v3746, %v3872
      %v3874 = vsel %vm3822, %v3747, %v3873
      %v3875 = vsel %vm3824, %v3748, %v3874
      %v3876 = vsel %vm3826, %v3749, %v3875
      %v3877 = vsel %vm3814, %v3751, %v3750
      %v3878 = vsel %vm3816, %v3752, %v3877
      %v3879 = vsel %vm3818, %v3753, %v3878
      %v3880 = vsel %vm3820, %v3754, %v3879
      %v3881 = vsel %vm3822, %v3755, %v3880
      %v3882 = vsel %vm3824, %v3756, %v3881
      %v3883 = vsel %vm3826, %v3757, %v3882
      %v3884 = vsel %vm3814, %v3759, %v3758
      %v3885 = vsel %vm3816, %v3760, %v3884
      %v3886 = vsel %vm3818, %v3761, %v3885
      %v3887 = vsel %vm3820, %v3762, %v3886
      %v3888 = vsel %vm3822, %v3763, %v3887
      %v3889 = vsel %vm3824, %v3764, %v3888
      %v3890 = vsel %vm3826, %v3765, %v3889
      %v3891 = vsel %vm3814, %v3767, %v3766
      %v3892 = vsel %vm3816, %v3768, %v3891
      %v3893 = vsel %vm3818, %v3769, %v3892
      %v3894 = vsel %vm3820, %v3770, %v3893
      %v3895 = vsel %vm3822, %v3771, %v3894
      %v3896 = vsel %vm3824, %v3772, %v3895
      %v3897 = vsel %vm3826, %v3773, %v3896
      %v3898 = vsel %vm3814, %v3775, %v3774
      %v3899 = vsel %vm3816, %v3776, %v3898
      %v3900 = vsel %vm3818, %v3777, %v3899
      %v3901 = vsel %vm3820, %v3778, %v3900
      %v3902 = vsel %vm3822, %v3779, %v3901
      %v3903 = vsel %vm3824, %v3780, %v3902
      %v3904 = vsel %vm3826, %v3781, %v3903
      %v3905 = vsel %vm3814, %v3783, %v3782
      %v3906 = vsel %vm3816, %v3784, %v3905
      %v3907 = vsel %vm3818, %v3785, %v3906
      %v3908 = vsel %vm3820, %v3786, %v3907
      %v3909 = vsel %vm3822, %v3787, %v3908
      %v3910 = vsel %vm3824, %v3788, %v3909
      %v3911 = vsel %vm3826, %v3789, %v3910
      %v3912 = vsel %vm3814, %v3791, %v3790
      %v3913 = vsel %vm3816, %v3792, %v3912
      %v3914 = vsel %vm3818, %v3793, %v3913
      %v3915 = vsel %vm3820, %v3794, %v3914
      %v3916 = vsel %vm3822, %v3795, %v3915
      %v3917 = vsel %vm3824, %v3796, %v3916
      %v3918 = vsel %vm3826, %v3797, %v3917
      %v3919 = vsel %vm3814, %v3799, %v3798
      %v3920 = vsel %vm3816, %v3800, %v3919
      %v3921 = vsel %vm3818, %v3801, %v3920
      %v3922 = vsel %vm3820, %v3802, %v3921
      %v3923 = vsel %vm3822, %v3803, %v3922
      %v3924 = vsel %vm3824, %v3804, %v3923
      %v3925 = vsel %vm3826, %v3805, %v3924
      %v3926 = vsel %vm3814, %v3807, %v3806
      %v3927 = vsel %vm3816, %v3808, %v3926
      %v3928 = vsel %vm3818, %v3809, %v3927
      %v3929 = vsel %vm3820, %v3810, %v3928
      %v3930 = vsel %vm3822, %v3811, %v3929
      %v3931 = vsel %vm3824, %v3812, %v3930
      %v3932 = vsel %vm3826, %v3813, %v3931
      %v3933 = vpack.c.b16 %v3827, %v3827
      %v3934 = vpack.c.b16 %v3834, %v3834
      %v3935 = vpack.c.b16 %v3841, %v3841
      %v3936 = vpack.c.b16 %v3848, %v3848
      %v3937 = vpack.c.b16 %v3855, %v3855
      %v3938 = vpack.c.b16 %v3862, %v3862
      %v3939 = vpack.c.b16 %v3869, %v3869
      %v3940 = vpack.c.b16 %v3876, %v3876
      %v3941 = vpack.c.b16 %v3883, %v3883
      %v3942 = vpack.c.b16 %v3890, %v3890
      %v3943 = vpack.c.b16 %v3897, %v3897
      %v3944 = vpack.c.b16 %v3904, %v3904
      %v3945 = vpack.c.b16 %v3911, %v3911
      %v3946 = vpack.c.b16 %v3918, %v3918
      %v3947 = vpack.c.b16 %v3925, %v3925
      %v3948 = vpack.c.b16 %v3932, %v3932
      %vm3965 = vcmask 257024
      %3966 = vst.msk [vmem:[%s305] sm:$0xf] %vm3965, %v3933
      %3967 = vst.msk [vmem:[%s305 + $0x4] sm:$0xf] %vm3965, %v3934
      %3968 = vst.msk [vmem:[%s305 + $0x8] sm:$0xf] %vm3965, %v3935
      %3969 = vst.msk [vmem:[%s305 + $0xc] sm:$0xf] %vm3965, %v3936
      %3970 = vst.msk [vmem:[%s305 + $0x10] sm:$0xf] %vm3965, %v3937
      %3971 = vst.msk [vmem:[%s305 + $0x14] sm:$0xf] %vm3965, %v3938
      %3972 = vst.msk [vmem:[%s305 + $0x18] sm:$0xf] %vm3965, %v3939
      %3973 = vst.msk [vmem:[%s305 + $0x1c] sm:$0xf] %vm3965, %v3940
      %3974 = vst.msk [vmem:[%s305 + $0x20] sm:$0xf] %vm3965, %v3941
      %3975 = vst.msk [vmem:[%s305 + $0x24] sm:$0xf] %vm3965, %v3942
      %3976 = vst.msk [vmem:[%s305 + $0x28] sm:$0xf] %vm3965, %v3943
      %3977 = vst.msk [vmem:[%s305 + $0x2c] sm:$0xf] %vm3965, %v3944
      %3978 = vst.msk [vmem:[%s305 + $0x30] sm:$0xf] %vm3965, %v3945
      %3979 = vst.msk [vmem:[%s305 + $0x34] sm:$0xf] %vm3965, %v3946
      %3980 = vst.msk [vmem:[%s305 + $0x38] sm:$0xf] %vm3965, %v3947
      %3981 = vst.msk [vmem:[%s305 + $0x3c] sm:$0xf] %vm3965, %v3948
      %s3982 = smul.u32 16, %s20
      %p3983 = scmp.lt.s32.totalorder %s19, 1
      %s3984 = scalar_select %p3983, %s19, 1
      %p3985 = scmp.lt.s32.totalorder %s3982, 15
      %s3986 = scalar_select %p3985, %s3982, 15
      %s3987 = smul.addr %s3984, 16
      %s3988 = sadd.s32 %s3986, %s3987
      %s3989 = smul.addr %s3988, 4
      %s3990 = scalar_lea.vmem %s4, %s3989
      // Predicated region
      $region37: #{eeg_forward.5} parent=35 // pred_check
        %p3991 = pneg %p149
      $region38: #{eeg_forward.5} parent=35 // pred_check_branch
        %3993 = sbr.rel (%p3991) target = $region40
      $region39: #{eeg_forward.5} parent=35 // pred_region
        %s3994 = smul.u32 16, %s20
      $region40: #{eeg_forward.5} parent=35 // pred_fallthru
        _
    $region36: #{eeg_forward.5} parent=5 // pred_fallthru
      _
    %p3995 = scmp.le.s32.totalorder 2, %s10
    // Predicated region
    $region41: #{eeg_forward.5} parent=5 // pred_check
      %p3996 = pneg %p3995
    $region42: #{eeg_forward.5} parent=5 // pred_check_branch
      %3998 = sbr.rel (%p3996) target = $region44
    $region43: #{eeg_forward.5} parent=5 // pred_region
      %s3999 = ssub.s32 %s10, 2
      // Predicated region
      $region45: #{eeg_forward.5} parent=43 // pred_check
        %p4000 = pneg %p155
      $region46: #{eeg_forward.5} parent=43 // pred_check_branch
        %4002 = sbr.rel (%p4000) target = $region48
      $region47: #{eeg_forward.5} parent=43 // pred_region
        %s4003 = smul.u32 16, %s22
        %p4004 = scmp.lt.s32.totalorder %s21, 1
        %s4005 = scalar_select %p4004, %s21, 1
        %p4006 = scmp.lt.s32.totalorder %s4003, 15
        %s4007 = scalar_select %p4006, %s4003, 15
        %s4008 = smul.addr %s4005, 16
        %s4009 = sadd.s32 %s4007, %s4008
        %s4010 = smul.addr %s4009, 4
        %s4011 = scalar_lea.vmem %s4, %s4010
      $region48: #{eeg_forward.5} parent=43 // pred_fallthru
        _
    $region44: #{eeg_forward.5} parent=5 // pred_fallthru
      _
  $region6: #{eeg_forward.5} parent=0 // loop_footer
    %s14 = sadd.s32 1, %s10
  $region7: #{eeg_forward.5} parent=0 // loop_footer_branch
    %9 = sbr.rel target = $region3
  $region8: #{eeg_forward.5} parent=0 // loop_exit
    _

// kernel: eeg_forward.7
$region0: #{eeg_forward.7}
  #allocation0 [shape = 'u32[]', space=smem, size = 0x4, offset = 0x4, fixed_abs, tag = 'smem constant byte address 0x4 - core index']
  #allocation1 [shape = 'u32[144,128]{1,0:T(1,128)}', space=vmem, size = 0x12000, scoped, tag = 'internal scratch']
  #allocation2 [shape = 'bf16[64,8,256]{2,1,0:T(8,128)(2,1)}', space=vmem, size = 0x40000, scoped, tag = 'scratch operand']
  #allocation3 [shape = 'f32[1,1]{1,0:T(1,128)S(1)}', space=vmem, size = 0x200, scoped, tag = 'scoped memory for eeg_forward.7']
  %s0 = inlined_call_operand.vmem [shape: bf16[64,8,64], index: 0, kind: input, shape index: {}]
  %s1 = inlined_call_operand.vmem [shape: bf16[64,256], index: 1, kind: input, shape index: {}]
  %s2 = inlined_call_operand.vmem [shape: bf16[64,256], index: 2, kind: input, shape index: {}]
  %s3 = inlined_call_operand.vmem [shape: f32[1,256], index: 3, kind: input, shape index: {}]
  %s4 = inlined_call_operand.vmem [shape: bf16[64,256], index: 4, kind: input, shape index: {}]
  %s5 = inlined_call_operand.vmem [shape: f32[1,256], index: 5, kind: input, shape index: {}]
  %s6 = inlined_call_operand.vmem [shape: bf16[128,64], index: 6, kind: input, shape index: {}]
  %s7 = inlined_call_operand.vmem [shape: f32[1,64], index: 7, kind: input, shape index: {}]
  %s8 = inlined_call_operand.vmem [shape: bf16[64,1], index: 8, kind: input, shape index: {}]
  %s9 = inlined_call_operand.<no memory space> [shape: f32[1,1], index: 9, kind: input, shape index: {}]
  %s10 = inlined_call_operand.vmem [shape: bf16[128,128], index: 10, kind: input, shape index: {}]
  %s11 = inlined_call_operand.vmem [shape: f32[1,128], index: 11, kind: input, shape index: {}]
  %s12 = inlined_call_operand.vmem [shape: bf16[128,2], index: 12, kind: input, shape index: {}]
  %s13 = inlined_call_operand.vmem [shape: f32[1,2], index: 13, kind: input, shape index: {}]
  %s14 = inlined_call_operand.vmem [shape: f32[8,1], index: 14, kind: output, shape index: {0}]
  %s15 = inlined_call_operand.vmem [shape: f32[8,2], index: 15, kind: output, shape index: {1}]
  %16 = xla_tuple %s14, %s15
  %s17 = sld [smem:[#allocation0]]
  $region81: #{eeg_forward.7} parent=0
    _
  %s19 = ssub.s32 1, %s17
  %s20 = scalar_select 0, %s19, %s17
  %v21 = vstv %s9
  %22 = vst [vmem:[#allocation3] sm:$0x1] %v21
  // Predicated region
  $region2: #{eeg_forward.7} parent=0 // pred_check
    _
  $region3: #{eeg_forward.7} parent=0 // pred_check_branch
    %24 = sbr.rel (0) target = $region5
  $region4: #{eeg_forward.7} parent=0 // pred_region
    _
  $region5: #{eeg_forward.7} parent=0 // pred_fallthru
    _
  // Predicated region
  $region6: #{eeg_forward.7} parent=0 // pred_check
    _
  $region7: #{eeg_forward.7} parent=0 // pred_check_branch
    %26 = sbr.rel (0) target = $region9
  $region8: #{eeg_forward.7} parent=0 // pred_region
    _
  $region9: #{eeg_forward.7} parent=0 // pred_fallthru
    _
  // Predicated region
  $region10: #{eeg_forward.7} parent=0 // pred_check
    _
  $region11: #{eeg_forward.7} parent=0 // pred_check_branch
    %28 = sbr.rel (0) target = $region13
  $region12: #{eeg_forward.7} parent=0 // pred_region
    _
  $region13: #{eeg_forward.7} parent=0 // pred_fallthru
    _
  // Predicated region
  $region14: #{eeg_forward.7} parent=0 // pred_check
    _
  $region15: #{eeg_forward.7} parent=0 // pred_check_branch
    %30 = sbr.rel (0) target = $region17
  $region16: #{eeg_forward.7} parent=0 // pred_region
    _
  $region17: #{eeg_forward.7} parent=0 // pred_fallthru
    _
  // Predicated region
  $region18: #{eeg_forward.7} parent=0 // pred_check
    _
  $region19: #{eeg_forward.7} parent=0 // pred_check_branch
    %32 = sbr.rel (0) target = $region21
  $region20: #{eeg_forward.7} parent=0 // pred_region
    _
  $region21: #{eeg_forward.7} parent=0 // pred_fallthru
    _
  // Predicated region
  $region22: #{eeg_forward.7} parent=0 // pred_check
    _
  $region23: #{eeg_forward.7} parent=0 // pred_check_branch
    %34 = sbr.rel (0) target = $region25
  $region24: #{eeg_forward.7} parent=0 // pred_region
    _
  $region25: #{eeg_forward.7} parent=0 // pred_fallthru
    _
  // Predicated region
  $region26: #{eeg_forward.7} parent=0 // pred_check
    _
  $region27: #{eeg_forward.7} parent=0 // pred_check_branch
    %36 = sbr.rel (0) target = $region29
  $region28: #{eeg_forward.7} parent=0 // pred_region
    _
  $region29: #{eeg_forward.7} parent=0 // pred_fallthru
    _
  // Predicated region
  $region30: #{eeg_forward.7} parent=0 // pred_check
    _
  $region31: #{eeg_forward.7} parent=0 // pred_check_branch
    %38 = sbr.rel (0) target = $region33
  $region32: #{eeg_forward.7} parent=0 // pred_region
    _
  $region33: #{eeg_forward.7} parent=0 // pred_fallthru
    _
  // Predicated region
  $region34: #{eeg_forward.7} parent=0 // pred_check
    _
  $region35: #{eeg_forward.7} parent=0 // pred_check_branch
    %40 = sbr.rel (0) target = $region37
  $region36: #{eeg_forward.7} parent=0 // pred_region
    _
  $region37: #{eeg_forward.7} parent=0 // pred_fallthru
    _
  // Predicated region
  $region38: #{eeg_forward.7} parent=0 // pred_check
    _
  $region39: #{eeg_forward.7} parent=0 // pred_check_branch
    %42 = sbr.rel (0) target = $region41
  $region40: #{eeg_forward.7} parent=0 // pred_region
    _
  $region41: #{eeg_forward.7} parent=0 // pred_fallthru
    _
  // Predicated region
  $region42: #{eeg_forward.7} parent=0 // pred_check
    _
  $region43: #{eeg_forward.7} parent=0 // pred_check_branch
    %44 = sbr.rel (0) target = $region45
  $region44: #{eeg_forward.7} parent=0 // pred_region
    _
  $region45: #{eeg_forward.7} parent=0 // pred_fallthru
    _
  // Predicated region
  $region46: #{eeg_forward.7} parent=0 // pred_check
    _
  $region47: #{eeg_forward.7} parent=0 // pred_check_branch
    %46 = sbr.rel (0) target = $region49
  $region48: #{eeg_forward.7} parent=0 // pred_region
    _
  $region49: #{eeg_forward.7} parent=0 // pred_fallthru
    _
  // Predicated region
  $region50: #{eeg_forward.7} parent=0 // pred_check
    _
  $region51: #{eeg_forward.7} parent=0 // pred_check_branch
    %48 = sbr.rel (0) target = $region53
  $region52: #{eeg_forward.7} parent=0 // pred_region
    _
  $region53: #{eeg_forward.7} parent=0 // pred_fallthru
    _
  // Predicated region
  $region54: #{eeg_forward.7} parent=0 // pred_check
    _
  $region55: #{eeg_forward.7} parent=0 // pred_check_branch
    %50 = sbr.rel (0) target = $region57
  $region56: #{eeg_forward.7} parent=0 // pred_region
    _
  $region57: #{eeg_forward.7} parent=0 // pred_fallthru
    _
  %v52 = vld [vmem:[%s0] sm:$0xf]
  %v53 = vld [vmem:[%s0 + $0x4] sm:$0xf]
  %v54 = vld [vmem:[%s0 + $0x8] sm:$0xf]
  %v55 = vld [vmem:[%s0 + $0xc] sm:$0xf]
  %v56 = vld [vmem:[%s0 + $0x10] sm:$0xf]
  %v57 = vld [vmem:[%s0 + $0x14] sm:$0xf]
  %v58 = vld [vmem:[%s0 + $0x18] sm:$0xf]
  %v59 = vld [vmem:[%s0 + $0x1c] sm:$0xf]
  %v60 = vld [vmem:[%s0 + $0x20] sm:$0xf]
  %v61 = vld [vmem:[%s0 + $0x24] sm:$0xf]
  %v62 = vld [vmem:[%s0 + $0x28] sm:$0xf]
  %v63 = vld [vmem:[%s0 + $0x2c] sm:$0xf]
  %v64 = vld [vmem:[%s0 + $0x30] sm:$0xf]
  %v65 = vld [vmem:[%s0 + $0x34] sm:$0xf]
  %v66 = vld [vmem:[%s0 + $0x38] sm:$0xf]
  %v67 = vld [vmem:[%s0 + $0x3c] sm:$0xf]
  %v68 = vld [vmem:[%s0 + $0x40] sm:$0xf]
  %v69 = vld [vmem:[%s0 + $0x44] sm:$0xf]
  %v70 = vld [vmem:[%s0 + $0x48] sm:$0xf]
  %v71 = vld [vmem:[%s0 + $0x4c] sm:$0xf]
  %v72 = vld [vmem:[%s0 + $0x50] sm:$0xf]
  %v73 = vld [vmem:[%s0 + $0x54] sm:$0xf]
  %v74 = vld [vmem:[%s0 + $0x58] sm:$0xf]
  %v75 = vld [vmem:[%s0 + $0x5c] sm:$0xf]
  %v76 = vld [vmem:[%s0 + $0x60] sm:$0xf]
  %v77 = vld [vmem:[%s0 + $0x64] sm:$0xf]
  %v78 = vld [vmem:[%s0 + $0x68] sm:$0xf]
  %v79 = vld [vmem:[%s0 + $0x6c] sm:$0xf]
  %v80 = vld [vmem:[%s0 + $0x70] sm:$0xf]
  %v81 = vld [vmem:[%s0 + $0x74] sm:$0xf]
  %v82 = vld [vmem:[%s0 + $0x78] sm:$0xf]
  %v83 = vld [vmem:[%s0 + $0x7c] sm:$0xf]
  %v84 = vld [vmem:[%s0 + $0x80] sm:$0xf]
  %v85 = vld [vmem:[%s0 + $0x84] sm:$0xf]
  %v86 = vld [vmem:[%s0 + $0x88] sm:$0xf]
  %v87 = vld [vmem:[%s0 + $0x8c] sm:$0xf]
  %v88 = vld [vmem:[%s0 + $0x90] sm:$0xf]
  %v89 = vld [vmem:[%s0 + $0x94] sm:$0xf]
  %v90 = vld [vmem:[%s0 + $0x98] sm:$0xf]
  %v91 = vld [vmem:[%s0 + $0x9c] sm:$0xf]
  %v92 = vld [vmem:[%s0 + $0xa0] sm:$0xf]
  %v93 = vld [vmem:[%s0 + $0xa4] sm:$0xf]
  %v94 = vld [vmem:[%s0 + $0xa8] sm:$0xf]
  %v95 = vld [vmem:[%s0 + $0xac] sm:$0xf]
  %v96 = vld [vmem:[%s0 + $0xb0] sm:$0xf]
  %v97 = vld [vmem:[%s0 + $0xb4] sm:$0xf]
  %v98 = vld [vmem:[%s0 + $0xb8] sm:$0xf]
  %v99 = vld [vmem:[%s0 + $0xbc] sm:$0xf]
  %v100 = vld [vmem:[%s0 + $0xc0] sm:$0xf]
  %v101 = vld [vmem:[%s0 + $0xc4] sm:$0xf]
  %v102 = vld [vmem:[%s0 + $0xc8] sm:$0xf]
  %v103 = vld [vmem:[%s0 + $0xcc] sm:$0xf]
  %v104 = vld [vmem:[%s0 + $0xd0] sm:$0xf]
  %v105 = vld [vmem:[%s0 + $0xd4] sm:$0xf]
  %v106 = vld [vmem:[%s0 + $0xd8] sm:$0xf]
  %v107 = vld [vmem:[%s0 + $0xdc] sm:$0xf]
  %v108 = vld [vmem:[%s0 + $0xe0] sm:$0xf]
  %v109 = vld [vmem:[%s0 + $0xe4] sm:$0xf]
  %v110 = vld [vmem:[%s0 + $0xe8] sm:$0xf]
  %v111 = vld [vmem:[%s0 + $0xec] sm:$0xf]
  %v112 = vld [vmem:[%s0 + $0xf0] sm:$0xf]
  %v113 = vld [vmem:[%s0 + $0xf4] sm:$0xf]
  %v114 = vld [vmem:[%s0 + $0xf8] sm:$0xf]
  %v115 = vld [vmem:[%s0 + $0xfc] sm:$0xf]
  %v116 = vld [vmem:[%s1] sm:$0xff]
  %v117 = vld [vmem:[%s1 + $0x8] sm:$0xff]
  %v118 = vld [vmem:[%s1 + $0x10] sm:$0xff]
  %v119 = vld [vmem:[%s1 + $0x18] sm:$0xff]
  %v120 = vld [vmem:[%s1 + $0x20] sm:$0xff]
  %v121 = vld [vmem:[%s1 + $0x28] sm:$0xff]
  %v122 = vld [vmem:[%s1 + $0x30] sm:$0xff]
  %v123 = vld [vmem:[%s1 + $0x38] sm:$0xff]
  %v124 = vld [vmem:[%s3] sm:$0x3]
  %v126 = vlaneseq
  %v127 = vshrl.u32 %v126, 7
  %v128 = vsub.s32 0, %v127
  %v129 = vrot.slane %v124, %v128
  %v130 = vlaneseq
  %v131 = vshrl.u32 %v130, 7
  %v132 = vsub.s32 1, %v131
  %v133 = vrot.slane %v124, %v132
  %v200 = vunpack.c.l.b16 %v52
  %v201 = vunpack.c.l.b16 %v53
  %v202 = vunpack.c.l.b16 %v54
  %v203 = vunpack.c.l.b16 %v55
  %v204 = vunpack.c.l.b16 %v56
  %v205 = vunpack.c.l.b16 %v57
  %v206 = vunpack.c.l.b16 %v58
  %v207 = vunpack.c.l.b16 %v59
  %v208 = vunpack.c.l.b16 %v60
  %v209 = vunpack.c.l.b16 %v61
  %v210 = vunpack.c.l.b16 %v62
  %v211 = vunpack.c.l.b16 %v63
  %v212 = vunpack.c.l.b16 %v64
  %v213 = vunpack.c.l.b16 %v65
  %v214 = vunpack.c.l.b16 %v66
  %v215 = vunpack.c.l.b16 %v67
  %v216 = vunpack.c.l.b16 %v68
  %v217 = vunpack.c.l.b16 %v69
  %v218 = vunpack.c.l.b16 %v70
  %v219 = vunpack.c.l.b16 %v71
  %v220 = vunpack.c.l.b16 %v72
  %v221 = vunpack.c.l.b16 %v73
  %v222 = vunpack.c.l.b16 %v74
  %v223 = vunpack.c.l.b16 %v75
  %v224 = vunpack.c.l.b16 %v76
  %v225 = vunpack.c.l.b16 %v77
  %v226 = vunpack.c.l.b16 %v78
  %v227 = vunpack.c.l.b16 %v79
  %v228 = vunpack.c.l.b16 %v80
  %v229 = vunpack.c.l.b16 %v81
  %v230 = vunpack.c.l.b16 %v82
  %v231 = vunpack.c.l.b16 %v83
  %v232 = vunpack.c.l.b16 %v84
  %v233 = vunpack.c.l.b16 %v85
  %v234 = vunpack.c.l.b16 %v86
  %v235 = vunpack.c.l.b16 %v87
  %v236 = vunpack.c.l.b16 %v88
  %v237 = vunpack.c.l.b16 %v89
  %v238 = vunpack.c.l.b16 %v90
  %v239 = vunpack.c.l.b16 %v91
  %v240 = vunpack.c.l.b16 %v92
  %v241 = vunpack.c.l.b16 %v93
  %v242 = vunpack.c.l.b16 %v94
  %v243 = vunpack.c.l.b16 %v95
  %v244 = vunpack.c.l.b16 %v96
  %v245 = vunpack.c.l.b16 %v97
  %v246 = vunpack.c.l.b16 %v98
  %v247 = vunpack.c.l.b16 %v99
  %v248 = vunpack.c.l.b16 %v100
  %v249 = vunpack.c.l.b16 %v101
  %v250 = vunpack.c.l.b16 %v102
  %v251 = vunpack.c.l.b16 %v103
  %v252 = vunpack.c.l.b16 %v104
  %v253 = vunpack.c.l.b16 %v105
  %v254 = vunpack.c.l.b16 %v106
  %v255 = vunpack.c.l.b16 %v107
  %v256 = vunpack.c.l.b16 %v108
  %v257 = vunpack.c.l.b16 %v109
  %v258 = vunpack.c.l.b16 %v110
  %v259 = vunpack.c.l.b16 %v111
  %v260 = vunpack.c.l.b16 %v112
  %v261 = vunpack.c.l.b16 %v113
  %v262 = vunpack.c.l.b16 %v114
  %v263 = vunpack.c.l.b16 %v115
  %v264 = vpack.c.b16 %v201, %v200
  %v265 = vpack.c.b16 %v203, %v202
  %v266 = vpack.c.b16 %v205, %v204
  %v267 = vpack.c.b16 %v207, %v206
  %v268 = vpack.c.b16 %v209, %v208
  %v269 = vpack.c.b16 %v211, %v210
  %v270 = vpack.c.b16 %v213, %v212
  %v271 = vpack.c.b16 %v215, %v214
  %v272 = vpack.c.b16 %v217, %v216
  %v273 = vpack.c.b16 %v219, %v218
  %v274 = vpack.c.b16 %v221, %v220
  %v275 = vpack.c.b16 %v223, %v222
  %v276 = vpack.c.b16 %v225, %v224
  %v277 = vpack.c.b16 %v227, %v226
  %v278 = vpack.c.b16 %v229, %v228
  %v279 = vpack.c.b16 %v231, %v230
  %v280 = vpack.c.b16 %v233, %v232
  %v281 = vpack.c.b16 %v235, %v234
  %v282 = vpack.c.b16 %v237, %v236
  %v283 = vpack.c.b16 %v239, %v238
  %v284 = vpack.c.b16 %v241, %v240
  %v285 = vpack.c.b16 %v243, %v242
  %v286 = vpack.c.b16 %v245, %v244
  %v287 = vpack.c.b16 %v247, %v246
  %v288 = vpack.c.b16 %v249, %v248
  %v289 = vpack.c.b16 %v251, %v250
  %v290 = vpack.c.b16 %v253, %v252
  %v291 = vpack.c.b16 %v255, %v254
  %v292 = vpack.c.b16 %v257, %v256
  %v293 = vpack.c.b16 %v259, %v258
  %v294 = vpack.c.b16 %v261, %v260
  %v295 = vpack.c.b16 %v263, %v262
  %v304 = vunpack.c.l.b16 %v116
  %v305 = vunpack.c.h.b16 %v116
  %v306 = vunpack.c.l.b16 %v117
  %v307 = vunpack.c.h.b16 %v117
  %v308 = vunpack.c.l.b16 %v118
  %v309 = vunpack.c.h.b16 %v118
  %v310 = vunpack.c.l.b16 %v119
  %v311 = vunpack.c.h.b16 %v119
  %v312 = vunpack.c.l.b16 %v120
  %v313 = vunpack.c.h.b16 %v120
  %v314 = vunpack.c.l.b16 %v121
  %v315 = vunpack.c.h.b16 %v121
  %v316 = vunpack.c.l.b16 %v122
  %v317 = vunpack.c.h.b16 %v122
  %v318 = vunpack.c.l.b16 %v123
  %v319 = vunpack.c.h.b16 %v123
  %v320 = vpack.c.b16 %v306, %v304
  %v321 = vpack.c.b16 %v307, %v305
  %v322 = vpack.c.b16 %v310, %v308
  %v323 = vpack.c.b16 %v311, %v309
  %v324 = vpack.c.b16 %v314, %v312
  %v325 = vpack.c.b16 %v315, %v313
  %v326 = vpack.c.b16 %v318, %v316
  %v327 = vpack.c.b16 %v319, %v317
  %vm336 = vcmask 523264
  %v338 = vsel %vm336, %v264, 0
  %v341 = vsel %vm336, %v265, 0
  %v344 = vsel %vm336, %v266, 0
  %v347 = vsel %vm336, %v267, 0
  %v350 = vsel %vm336, %v268, 0
  %v353 = vsel %vm336, %v269, 0
  %v356 = vsel %vm336, %v270, 0
  %v359 = vsel %vm336, %v271, 0
  %v362 = vsel %vm336, %v272, 0
  %v365 = vsel %vm336, %v273, 0
  %v368 = vsel %vm336, %v274, 0
  %v371 = vsel %vm336, %v275, 0
  %v374 = vsel %vm336, %v276, 0
  %v377 = vsel %vm336, %v277, 0
  %v380 = vsel %vm336, %v278, 0
  %v383 = vsel %vm336, %v279, 0
  %v386 = vsel %vm336, %v280, 0
  %v389 = vsel %vm336, %v281, 0
  %v392 = vsel %vm336, %v282, 0
  %v395 = vsel %vm336, %v283, 0
  %v398 = vsel %vm336, %v284, 0
  %v401 = vsel %vm336, %v285, 0
  %v404 = vsel %vm336, %v286, 0
  %v407 = vsel %vm336, %v287, 0
  %v410 = vsel %vm336, %v288, 0
  %v413 = vsel %vm336, %v289, 0
  %v416 = vsel %vm336, %v290, 0
  %v419 = vsel %vm336, %v291, 0
  %v422 = vsel %vm336, %v292, 0
  %v425 = vsel %vm336, %v293, 0
  %v428 = vsel %vm336, %v294, 0
  %v431 = vsel %vm336, %v295, 0
  %433 = vmatprep.subr.bf16.mxu0 %v321
  %434 = vmatpush1.bf16.msra.mxu0 %v320
  %435 = vmatprep.subr.bf16.mxu0 %v323
  %436 = vmatpush1.bf16.msra.mxu0 %v322
  %437 = vmatprep.subr.bf16.mxu0 %v325
  %438 = vmatpush1.bf16.msra.mxu0 %v324
  %439 = vmatprep.subr.bf16.mxu0 %v327
  %440 = vmatpush1.bf16.msra.mxu0 %v326
  %441 = vmatprep.subr.bf16.mxu0 0
  %442 = vmatpush1.bf16.msra.mxu0 0
  %443 = vmatprep.subr.bf16.mxu0 0
  %444 = vmatpush1.bf16.msra.mxu0 0
  %445 = vmatprep.subr.bf16.mxu0 0
  %446 = vmatpush1.bf16.msra.mxu0 0
  %447 = vmatprep.subr.bf16.mxu0 0
  %448 = vmatpush1.bf16.msra.mxu0 0
  %449 = vmatprep.subr.bf16.mxu0 0
  %450 = vmatpush1.bf16.msra.mxu0 0
  %451 = vmatprep.subr.bf16.mxu0 0
  %452 = vmatpush1.bf16.msra.mxu0 0
  %453 = vmatprep.subr.bf16.mxu0 0
  %454 = vmatpush1.bf16.msra.mxu0 0
  %455 = vmatprep.subr.bf16.mxu0 0
  %456 = vmatpush1.bf16.msra.mxu0 0
  %457 = vmatprep.subr.bf16.mxu0 0
  %458 = vmatpush1.bf16.msra.mxu0 0
  %459 = vmatprep.subr.bf16.mxu0 0
  %460 = vmatpush1.bf16.msra.mxu0 0
  %461 = vmatprep.subr.bf16.mxu0 0
  %462 = vmatpush1.bf16.msra.mxu0 0
  %463 = vmatprep.subr.bf16.mxu0 0
  %464 = vmatpush1.bf16.msra.mxu0 0
  %465 = vmatprep.mubr.bf16.mxu0 0
  %466 = vmatmul.mubr.bf16.gmra.mrb[0].mxu0 %v338
  %v467 = vpop.f32.mrb[0].mxu0
  %v468 = vadd.f32 %v129, %v467
  %v469 = vpop.f32.mrb[0].mxu0
  %v470 = vadd.f32 %v133, %v469
  %v471 = vpop.f32.mrb[0].mxu0
  %v472 = vadd.f32 %v129, %v471
  %v473 = vpop.f32.mrb[0].mxu0
  %v474 = vadd.f32 %v133, %v473
  %475 = vmatprep.mubr.bf16.mxu0 0
  %476 = vmatmul.mubr.bf16.gmra.mrb[0].mxu0 %v341
  %v477 = vpop.f32.mrb[0].mxu0
  %v478 = vadd.f32 %v129, %v477
  %v479 = vpop.f32.mrb[0].mxu0
  %v480 = vadd.f32 %v133, %v479
  %v481 = vpop.f32.mrb[0].mxu0
  %v482 = vadd.f32 %v129, %v481
  %v483 = vpop.f32.mrb[0].mxu0
  %v484 = vadd.f32 %v133, %v483
  %485 = vmatprep.mubr.bf16.mxu0 0
  %486 = vmatmul.mubr.bf16.gmra.mrb[0].mxu0 %v344
  %v487 = vpop.f32.mrb[0].mxu0
  %v488 = vadd.f32 %v129, %v487
  %v489 = vpop.f32.mrb[0].mxu0
  %v490 = vadd.f32 %v133, %v489
  %v491 = vpop.f32.mrb[0].mxu0
  %v492 = vadd.f32 %v129, %v491
  %v493 = vpop.f32.mrb[0].mxu0
  %v494 = vadd.f32 %v133, %v493
  %495 = vmatprep.mubr.bf16.mxu0 0
  %496 = vmatmul.mubr.bf16.gmra.mrb[0].mxu0 %v347
  %v497 = vpop.f32.mrb[0].mxu0
  %v498 = vadd.f32 %v129, %v497
  %v499 = vpop.f32.mrb[0].mxu0
  %v500 = vadd.f32 %v133, %v499
  %v501 = vpop.f32.mrb[0].mxu0
  %v502 = vadd.f32 %v129, %v501
  %v503 = vpop.f32.mrb[0].mxu0
  %v504 = vadd.f32 %v133, %v503
  %505 = vmatprep.mubr.bf16.mxu0 0
  %506 = vmatmul.mubr.bf16.gmra.mrb[0].mxu0 %v350
  %v507 = vpop.f32.mrb[0].mxu0
  %v508 = vadd.f32 %v129, %v507
  %v509 = vpop.f32.mrb[0].mxu0
  %v510 = vadd.f32 %v133, %v509
  %v511 = vpop.f32.mrb[0].mxu0
  %v512 = vadd.f32 %v129, %v511
  %v513 = vpop.f32.mrb[0].mxu0
  %v514 = vadd.f32 %v133, %v513
  %515 = vmatprep.mubr.bf16.mxu0 0
  %516 = vmatmul.mubr.bf16.gmra.mrb[0].mxu0 %v353
  %v517 = vpop.f32.mrb[0].mxu0
  %v518 = vadd.f32 %v129, %v517
  %v519 = vpop.f32.mrb[0].mxu0
  %v520 = vadd.f32 %v133, %v519
  %v521 = vpop.f32.mrb[0].mxu0
  %v522 = vadd.f32 %v129, %v521
  %v523 = vpop.f32.mrb[0].mxu0
  %v524 = vadd.f32 %v133, %v523
  %525 = vmatprep.mubr.bf16.mxu0 0
  %526 = vmatmul.mubr.bf16.gmra.mrb[0].mxu0 %v356
  %v527 = vpop.f32.mrb[0].mxu0
  %v528 = vadd.f32 %v129, %v527
  %v529 = vpop.f32.mrb[0].mxu0
  %v530 = vadd.f32 %v133, %v529
  %v531 = vpop.f32.mrb[0].mxu0
  %v532 = vadd.f32 %v129, %v531
  %v533 = vpop.f32.mrb[0].mxu0
  %v534 = vadd.f32 %v133, %v533
  %535 = vmatprep.mubr.bf16.mxu0 0
  %536 = vmatmul.mubr.bf16.gmra.mrb[0].mxu0 %v359
  %v537 = vpop.f32.mrb[0].mxu0
  %v538 = vadd.f32 %v129, %v537
  %v539 = vpop.f32.mrb[0].mxu0
  %v540 = vadd.f32 %v133, %v539
  %v541 = vpop.f32.mrb[0].mxu0
  %v542 = vadd.f32 %v129, %v541
  %v543 = vpop.f32.mrb[0].mxu0
  %v544 = vadd.f32 %v133, %v543
  %545 = vmatprep.mubr.bf16.mxu0 0
  %546 = vmatmul.mubr.bf16.gmra.mrb[0].mxu0 %v362
  %v547 = vpop.f32.mrb[0].mxu0
  %v548 = vadd.f32 %v129, %v547
  %v549 = vpop.f32.mrb[0].mxu0
  %v550 = vadd.f32 %v133, %v549
  %v551 = vpop.f32.mrb[0].mxu0
  %v552 = vadd.f32 %v129, %v551
  %v553 = vpop.f32.mrb[0].mxu0
  %v554 = vadd.f32 %v133, %v553
  %555 = vmatprep.mubr.bf16.mxu0 0
  %556 = vmatmul.mubr.bf16.gmra.mrb[0].mxu0 %v365
  %v557 = vpop.f32.mrb[0].mxu0
  %v558 = vadd.f32 %v129, %v557
  %v559 = vpop.f32.mrb[0].mxu0
  %v560 = vadd.f32 %v133, %v559
  %v561 = vpop.f32.mrb[0].mxu0
  %v562 = vadd.f32 %v129, %v561
  %v563 = vpop.f32.mrb[0].mxu0
  %v564 = vadd.f32 %v133, %v563
  %565 = vmatprep.mubr.bf16.mxu0 0
  %566 = vmatmul.mubr.bf16.gmra.mrb[0].mxu0 %v368
  %v567 = vpop.f32.mrb[0].mxu0
  %v568 = vadd.f32 %v129, %v567
  %v569 = vpop.f32.mrb[0].mxu0
  %v570 = vadd.f32 %v133, %v569
  %v571 = vpop.f32.mrb[0].mxu0
  %v572 = vadd.f32 %v129, %v571
  %v573 = vpop.f32.mrb[0].mxu0
  %v574 = vadd.f32 %v133, %v573
  %575 = vmatprep.mubr.bf16.mxu0 0
  %576 = vmatmul.mubr.bf16.gmra.mrb[0].mxu0 %v371
  %v577 = vpop.f32.mrb[0].mxu0
  %v578 = vadd.f32 %v129, %v577
  %v579 = vpop.f32.mrb[0].mxu0
  %v580 = vadd.f32 %v133, %v579
  %v581 = vpop.f32.mrb[0].mxu0
  %v582 = vadd.f32 %v129, %v581
  %v583 = vpop.f32.mrb[0].mxu0
  %v584 = vadd.f32 %v133, %v583
  %585 = vmatprep.mubr.bf16.mxu0 0
  %586 = vmatmul.mubr.bf16.gmra.mrb[0].mxu0 %v374
  %v587 = vpop.f32.mrb[0].mxu0
  %v588 = vadd.f32 %v129, %v587
  %v589 = vpop.f32.mrb[0].mxu0
  %v590 = vadd.f32 %v133, %v589
  %v591 = vpop.f32.mrb[0].mxu0
  %v592 = vadd.f32 %v129, %v591
  %v593 = vpop.f32.mrb[0].mxu0
  %v594 = vadd.f32 %v133, %v593
  %595 = vmatprep.mubr.bf16.mxu0 0
  %596 = vmatmul.mubr.bf16.gmra.mrb[0].mxu0 %v377
  %v597 = vpop.f32.mrb[0].mxu0
  %v598 = vadd.f32 %v129, %v597
  %v599 = vpop.f32.mrb[0].mxu0
  %v600 = vadd.f32 %v133, %v599
  %v601 = vpop.f32.mrb[0].mxu0
  %v602 = vadd.f32 %v129, %v601
  %v603 = vpop.f32.mrb[0].mxu0
  %v604 = vadd.f32 %v133, %v603
  %605 = vmatprep.mubr.bf16.mxu0 0
  %606 = vmatmul.mubr.bf16.gmra.mrb[0].mxu0 %v380
  %v607 = vpop.f32.mrb[0].mxu0
  %v608 = vadd.f32 %v129, %v607
  %v609 = vpop.f32.mrb[0].mxu0
  %v610 = vadd.f32 %v133, %v609
  %v611 = vpop.f32.mrb[0].mxu0
  %v612 = vadd.f32 %v129, %v611
  %v613 = vpop.f32.mrb[0].mxu0
  %v614 = vadd.f32 %v133, %v613
  %615 = vmatprep.mubr.bf16.mxu0 0
  %616 = vmatmul.mubr.bf16.gmra.mrb[0].mxu0 %v383
  %v617 = vpop.f32.mrb[0].mxu0
  %v618 = vadd.f32 %v129, %v617
  %v619 = vpop.f32.mrb[0].mxu0
  %v620 = vadd.f32 %v133, %v619
  %v621 = vpop.f32.mrb[0].mxu0
  %v622 = vadd.f32 %v129, %v621
  %v623 = vpop.f32.mrb[0].mxu0
  %v624 = vadd.f32 %v133, %v623
  %625 = vmatprep.mubr.bf16.mxu0 0
  %626 = vmatmul.mubr.bf16.gmra.mrb[0].mxu0 %v386
  %v627 = vpop.f32.mrb[0].mxu0
  %v628 = vadd.f32 %v129, %v627
  %v629 = vpop.f32.mrb[0].mxu0
  %v630 = vadd.f32 %v133, %v629
  %v631 = vpop.f32.mrb[0].mxu0
  %v632 = vadd.f32 %v129, %v631
  %v633 = vpop.f32.mrb[0].mxu0
  %v634 = vadd.f32 %v133, %v633
  %635 = vmatprep.mubr.bf16.mxu0 0
  %636 = vmatmul.mubr.bf16.gmra.mrb[0].mxu0 %v389
  %v637 = vpop.f32.mrb[0].mxu0
  %v638 = vadd.f32 %v129, %v637
  %v639 = vpop.f32.mrb[0].mxu0
  %v640 = vadd.f32 %v133, %v639
  %v641 = vpop.f32.mrb[0].mxu0
  %v642 = vadd.f32 %v129, %v641
  %v643 = vpop.f32.mrb[0].mxu0
  %v644 = vadd.f32 %v133, %v643
  %645 = vmatprep.mubr.bf16.mxu0 0
  %646 = vmatmul.mubr.bf16.gmra.mrb[0].mxu0 %v392
  %v647 = vpop.f32.mrb[0].mxu0
  %v648 = vadd.f32 %v129, %v647
  %v649 = vpop.f32.mrb[0].mxu0
  %v650 = vadd.f32 %v133, %v649
  %v651 = vpop.f32.mrb[0].mxu0
  %v652 = vadd.f32 %v129, %v651
  %v653 = vpop.f32.mrb[0].mxu0
  %v654 = vadd.f32 %v133, %v653
  %655 = vmatprep.mubr.bf16.mxu0 0
  %656 = vmatmul.mubr.bf16.gmra.mrb[0].mxu0 %v395
  %v657 = vpop.f32.mrb[0].mxu0
  %v658 = vadd.f32 %v129, %v657
  %v659 = vpop.f32.mrb[0].mxu0
  %v660 = vadd.f32 %v133, %v659
  %v661 = vpop.f32.mrb[0].mxu0
  %v662 = vadd.f32 %v129, %v661
  %v663 = vpop.f32.mrb[0].mxu0
  %v664 = vadd.f32 %v133, %v663
  %665 = vmatprep.mubr.bf16.mxu0 0
  %666 = vmatmul.mubr.bf16.gmra.mrb[0].mxu0 %v398
  %v667 = vpop.f32.mrb[0].mxu0
  %v668 = vadd.f32 %v129, %v667
  %v669 = vpop.f32.mrb[0].mxu0
  %v670 = vadd.f32 %v133, %v669
  %v671 = vpop.f32.mrb[0].mxu0
  %v672 = vadd.f32 %v129, %v671
  %v673 = vpop.f32.mrb[0].mxu0
  %v674 = vadd.f32 %v133, %v673
  %675 = vmatprep.mubr.bf16.mxu0 0
  %676 = vmatmul.mubr.bf16.gmra.mrb[0].mxu0 %v401
  %v677 = vpop.f32.mrb[0].mxu0
  %v678 = vadd.f32 %v129, %v677
  %v679 = vpop.f32.mrb[0].mxu0
  %v680 = vadd.f32 %v133, %v679
  %v681 = vpop.f32.mrb[0].mxu0
  %v682 = vadd.f32 %v129, %v681
  %v683 = vpop.f32.mrb[0].mxu0
  %v684 = vadd.f32 %v133, %v683
  %685 = vmatprep.mubr.bf16.mxu0 0
  %686 = vmatmul.mubr.bf16.gmra.mrb[0].mxu0 %v404
  %v687 = vpop.f32.mrb[0].mxu0
  %v688 = vadd.f32 %v129, %v687
  %v689 = vpop.f32.mrb[0].mxu0
  %v690 = vadd.f32 %v133, %v689
  %v691 = vpop.f32.mrb[0].mxu0
  %v692 = vadd.f32 %v129, %v691
  %v693 = vpop.f32.mrb[0].mxu0
  %v694 = vadd.f32 %v133, %v693
  %695 = vmatprep.mubr.bf16.mxu0 0
  %696 = vmatmul.mubr.bf16.gmra.mrb[0].mxu0 %v407
  %v697 = vpop.f32.mrb[0].mxu0
  %v698 = vadd.f32 %v129, %v697
  %v699 = vpop.f32.mrb[0].mxu0
  %v700 = vadd.f32 %v133, %v699
  %v701 = vpop.f32.mrb[0].mxu0
  %v702 = vadd.f32 %v129, %v701
  %v703 = vpop.f32.mrb[0].mxu0
  %v704 = vadd.f32 %v133, %v703
  %705 = vmatprep.mubr.bf16.mxu0 0
  %706 = vmatmul.mubr.bf16.gmra.mrb[0].mxu0 %v410
  %v707 = vpop.f32.mrb[0].mxu0
  %v708 = vadd.f32 %v129, %v707
  %v709 = vpop.f32.mrb[0].mxu0
  %v710 = vadd.f32 %v133, %v709
  %v711 = vpop.f32.mrb[0].mxu0
  %v712 = vadd.f32 %v129, %v711
  %v713 = vpop.f32.mrb[0].mxu0
  %v714 = vadd.f32 %v133, %v713
  %715 = vmatprep.mubr.bf16.mxu0 0
  %716 = vmatmul.mubr.bf16.gmra.mrb[0].mxu0 %v413
  %v717 = vpop.f32.mrb[0].mxu0
  %v718 = vadd.f32 %v129, %v717
  %v719 = vpop.f32.mrb[0].mxu0
  %v720 = vadd.f32 %v133, %v719
  %v721 = vpop.f32.mrb[0].mxu0
  %v722 = vadd.f32 %v129, %v721
  %v723 = vpop.f32.mrb[0].mxu0
  %v724 = vadd.f32 %v133, %v723
  %725 = vmatprep.mubr.bf16.mxu0 0
  %726 = vmatmul.mubr.bf16.gmra.mrb[0].mxu0 %v416
  %v727 = vpop.f32.mrb[0].mxu0
  %v728 = vadd.f32 %v129, %v727
  %v729 = vpop.f32.mrb[0].mxu0
  %v730 = vadd.f32 %v133, %v729
  %v731 = vpop.f32.mrb[0].mxu0
  %v732 = vadd.f32 %v129, %v731
  %v733 = vpop.f32.mrb[0].mxu0
  %v734 = vadd.f32 %v133, %v733
  %735 = vmatprep.mubr.bf16.mxu0 0
  %736 = vmatmul.mubr.bf16.gmra.mrb[0].mxu0 %v419
  %v737 = vpop.f32.mrb[0].mxu0
  %v738 = vadd.f32 %v129, %v737
  %v739 = vpop.f32.mrb[0].mxu0
  %v740 = vadd.f32 %v133, %v739
  %v741 = vpop.f32.mrb[0].mxu0
  %v742 = vadd.f32 %v129, %v741
  %v743 = vpop.f32.mrb[0].mxu0
  %v744 = vadd.f32 %v133, %v743
  %745 = vmatprep.mubr.bf16.mxu0 0
  %746 = vmatmul.mubr.bf16.gmra.mrb[0].mxu0 %v422
  %v747 = vpop.f32.mrb[0].mxu0
  %v748 = vadd.f32 %v129, %v747
  %v749 = vpop.f32.mrb[0].mxu0
  %v750 = vadd.f32 %v133, %v749
  %v751 = vpop.f32.mrb[0].mxu0
  %v752 = vadd.f32 %v129, %v751
  %v753 = vpop.f32.mrb[0].mxu0
  %v754 = vadd.f32 %v133, %v753
  %755 = vmatprep.mubr.bf16.mxu0 0
  %756 = vmatmul.mubr.bf16.gmra.mrb[0].mxu0 %v425
  %v757 = vpop.f32.mrb[0].mxu0
  %v758 = vadd.f32 %v129, %v757
  %v759 = vpop.f32.mrb[0].mxu0
  %v760 = vadd.f32 %v133, %v759
  %v761 = vpop.f32.mrb[0].mxu0
  %v762 = vadd.f32 %v129, %v761
  %v763 = vpop.f32.mrb[0].mxu0
  %v764 = vadd.f32 %v133, %v763
  %765 = vmatprep.mubr.bf16.mxu0 0
  %766 = vmatmul.mubr.bf16.gmra.mrb[0].mxu0 %v428
  %v767 = vpop.f32.mrb[0].mxu0
  %v768 = vadd.f32 %v129, %v767
  %v769 = vpop.f32.mrb[0].mxu0
  %v770 = vadd.f32 %v133, %v769
  %v771 = vpop.f32.mrb[0].mxu0
  %v772 = vadd.f32 %v129, %v771
  %v773 = vpop.f32.mrb[0].mxu0
  %v774 = vadd.f32 %v133, %v773
  %775 = vmatprep.mubr.bf16.mxu0 0
  %776 = vmatmul.mubr.bf16.gmra.mrb[0].mxu0 %v431
  %v777 = vpop.f32.mrb[0].mxu0
  %v778 = vadd.f32 %v129, %v777
  %v779 = vpop.f32.mrb[0].mxu0
  %v780 = vadd.f32 %v133, %v779
  %v781 = vpop.f32.mrb[0].mxu0
  %v782 = vadd.f32 %v129, %v781
  %v783 = vpop.f32.mrb[0].mxu0
  %v784 = vadd.f32 %v133, %v783
  %785 = vdwg.mxu0
  %v786 = vpack.c.bf16 %v468, %v468
  %v787 = vpack.c.bf16 %v470, %v470
  %v788 = vpack.c.bf16 %v472, %v472
  %v789 = vpack.c.bf16 %v474, %v474
  %v790 = vpack.c.bf16 %v478, %v478
  %v791 = vpack.c.bf16 %v480, %v480
  %v792 = vpack.c.bf16 %v482, %v482
  %v793 = vpack.c.bf16 %v484, %v484
  %v794 = vpack.c.bf16 %v488, %v488
  %v795 = vpack.c.bf16 %v490, %v490
  %v796 = vpack.c.bf16 %v492, %v492
  %v797 = vpack.c.bf16 %v494, %v494
  %v798 = vpack.c.bf16 %v498, %v498
  %v799 = vpack.c.bf16 %v500, %v500
  %v800 = vpack.c.bf16 %v502, %v502
  %v801 = vpack.c.bf16 %v504, %v504
  %v802 = vpack.c.bf16 %v508, %v508
  %v803 = vpack.c.bf16 %v510, %v510
  %v804 = vpack.c.bf16 %v512, %v512
  %v805 = vpack.c.bf16 %v514, %v514
  %v806 = vpack.c.bf16 %v518, %v518
  %v807 = vpack.c.bf16 %v520, %v520
  %v808 = vpack.c.bf16 %v522, %v522
  %v809 = vpack.c.bf16 %v524, %v524
  %v810 = vpack.c.bf16 %v528, %v528
  %v811 = vpack.c.bf16 %v530, %v530
  %v812 = vpack.c.bf16 %v532, %v532
  %v813 = vpack.c.bf16 %v534, %v534
  %v814 = vpack.c.bf16 %v538, %v538
  %v815 = vpack.c.bf16 %v540, %v540
  %v816 = vpack.c.bf16 %v542, %v542
  %v817 = vpack.c.bf16 %v544, %v544
  %v818 = vpack.c.bf16 %v548, %v548
  %v819 = vpack.c.bf16 %v550, %v550
  %v820 = vpack.c.bf16 %v552, %v552
  %v821 = vpack.c.bf16 %v554, %v554
  %v822 = vpack.c.bf16 %v558, %v558
  %v823 = vpack.c.bf16 %v560, %v560
  %v824 = vpack.c.bf16 %v562, %v562
  %v825 = vpack.c.bf16 %v564, %v564
  %v826 = vpack.c.bf16 %v568, %v568
  %v827 = vpack.c.bf16 %v570, %v570
  %v828 = vpack.c.bf16 %v572, %v572
  %v829 = vpack.c.bf16 %v574, %v574
  %v830 = vpack.c.bf16 %v578, %v578
  %v831 = vpack.c.bf16 %v580, %v580
  %v832 = vpack.c.bf16 %v582, %v582
  %v833 = vpack.c.bf16 %v584, %v584
  %v834 = vpack.c.bf16 %v588, %v588
  %v835 = vpack.c.bf16 %v590, %v590
  %v836 = vpack.c.bf16 %v592, %v592
  %v837 = vpack.c.bf16 %v594, %v594
  %v838 = vpack.c.bf16 %v598, %v598
  %v839 = vpack.c.bf16 %v600, %v600
  %v840 = vpack.c.bf16 %v602, %v602
  %v841 = vpack.c.bf16 %v604, %v604
  %v842 = vpack.c.bf16 %v608, %v608
  %v843 = vpack.c.bf16 %v610, %v610
  %v844 = vpack.c.bf16 %v612, %v612
  %v845 = vpack.c.bf16 %v614, %v614
  %v846 = vpack.c.bf16 %v618, %v618
  %v847 = vpack.c.bf16 %v620, %v620
  %v848 = vpack.c.bf16 %v622, %v622
  %v849 = vpack.c.bf16 %v624, %v624
  %v850 = vpack.c.bf16 %v628, %v628
  %v851 = vpack.c.bf16 %v630, %v630
  %v852 = vpack.c.bf16 %v632, %v632
  %v853 = vpack.c.bf16 %v634, %v634
  %v854 = vpack.c.bf16 %v638, %v638
  %v855 = vpack.c.bf16 %v640, %v640
  %v856 = vpack.c.bf16 %v642, %v642
  %v857 = vpack.c.bf16 %v644, %v644
  %v858 = vpack.c.bf16 %v648, %v648
  %v859 = vpack.c.bf16 %v650, %v650
  %v860 = vpack.c.bf16 %v652, %v652
  %v861 = vpack.c.bf16 %v654, %v654
  %v862 = vpack.c.bf16 %v658, %v658
  %v863 = vpack.c.bf16 %v660, %v660
  %v864 = vpack.c.bf16 %v662, %v662
  %v865 = vpack.c.bf16 %v664, %v664
  %v866 = vpack.c.bf16 %v668, %v668
  %v867 = vpack.c.bf16 %v670, %v670
  %v868 = vpack.c.bf16 %v672, %v672
  %v869 = vpack.c.bf16 %v674, %v674
  %v870 = vpack.c.bf16 %v678, %v678
  %v871 = vpack.c.bf16 %v680, %v680
  %v872 = vpack.c.bf16 %v682, %v682
  %v873 = vpack.c.bf16 %v684, %v684
  %v874 = vpack.c.bf16 %v688, %v688
  %v875 = vpack.c.bf16 %v690, %v690
  %v876 = vpack.c.bf16 %v692, %v692
  %v877 = vpack.c.bf16 %v694, %v694
  %v878 = vpack.c.bf16 %v698, %v698
  %v879 = vpack.c.bf16 %v700, %v700
  %v880 = vpack.c.bf16 %v702, %v702
  %v881 = vpack.c.bf16 %v704, %v704
  %v882 = vpack.c.bf16 %v708, %v708
  %v883 = vpack.c.bf16 %v710, %v710
  %v884 = vpack.c.bf16 %v712, %v712
  %v885 = vpack.c.bf16 %v714, %v714
  %v886 = vpack.c.bf16 %v718, %v718
  %v887 = vpack.c.bf16 %v720, %v720
  %v888 = vpack.c.bf16 %v722, %v722
  %v889 = vpack.c.bf16 %v724, %v724
  %v890 = vpack.c.bf16 %v728, %v728
  %v891 = vpack.c.bf16 %v730, %v730
  %v892 = vpack.c.bf16 %v732, %v732
  %v893 = vpack.c.bf16 %v734, %v734
  %v894 = vpack.c.bf16 %v738, %v738
  %v895 = vpack.c.bf16 %v740, %v740
  %v896 = vpack.c.bf16 %v742, %v742
  %v897 = vpack.c.bf16 %v744, %v744
  %v898 = vpack.c.bf16 %v748, %v748
  %v899 = vpack.c.bf16 %v750, %v750
  %v900 = vpack.c.bf16 %v752, %v752
  %v901 = vpack.c.bf16 %v754, %v754
  %v902 = vpack.c.bf16 %v758, %v758
  %v903 = vpack.c.bf16 %v760, %v760
  %v904 = vpack.c.bf16 %v762, %v762
  %v905 = vpack.c.bf16 %v764, %v764
  %v906 = vpack.c.bf16 %v768, %v768
  %v907 = vpack.c.bf16 %v770, %v770
  %v908 = vpack.c.bf16 %v772, %v772
  %v909 = vpack.c.bf16 %v774, %v774
  %v910 = vpack.c.bf16 %v778, %v778
  %v911 = vpack.c.bf16 %v780, %v780
  %v912 = vpack.c.bf16 %v782, %v782
  %v913 = vpack.c.bf16 %v784, %v784
  %v1042 = vunpack.c.l.b16 %v786
  %v1043 = vunpack.c.l.b16 %v787
  %v1044 = vunpack.c.l.b16 %v788
  %v1045 = vunpack.c.l.b16 %v789
  %v1046 = vunpack.c.l.b16 %v790
  %v1047 = vunpack.c.l.b16 %v791
  %v1048 = vunpack.c.l.b16 %v792
  %v1049 = vunpack.c.l.b16 %v793
  %v1050 = vunpack.c.l.b16 %v794
  %v1051 = vunpack.c.l.b16 %v795
  %v1052 = vunpack.c.l.b16 %v796
  %v1053 = vunpack.c.l.b16 %v797
  %v1054 = vunpack.c.l.b16 %v798
  %v1055 = vunpack.c.l.b16 %v799
  %v1056 = vunpack.c.l.b16 %v800
  %v1057 = vunpack.c.l.b16 %v801
  %v1058 = vunpack.c.l.b16 %v802
  %v1059 = vunpack.c.l.b16 %v803
  %v1060 = vunpack.c.l.b16 %v804
  %v1061 = vunpack.c.l.b16 %v805
  %v1062 = vunpack.c.l.b16 %v806
  %v1063 = vunpack.c.l.b16 %v807
  %v1064 = vunpack.c.l.b16 %v808
  %v1065 = vunpack.c.l.b16 %v809
  %v1066 = vunpack.c.l.b16 %v810
  %v1067 = vunpack.c.l.b16 %v811
  %v1068 = vunpack.c.l.b16 %v812
  %v1069 = vunpack.c.l.b16 %v813
  %v1070 = vunpack.c.l.b16 %v814
  %v1071 = vunpack.c.l.b16 %v815
  %v1072 = vunpack.c.l.b16 %v816
  %v1073 = vunpack.c.l.b16 %v817
  %v1074 = vunpack.c.l.b16 %v818
  %v1075 = vunpack.c.l.b16 %v819
  %v1076 = vunpack.c.l.b16 %v820
  %v1077 = vunpack.c.l.b16 %v821
  %v1078 = vunpack.c.l.b16 %v822
  %v1079 = vunpack.c.l.b16 %v823
  %v1080 = vunpack.c.l.b16 %v824
  %v1081 = vunpack.c.l.b16 %v825
  %v1082 = vunpack.c.l.b16 %v826
  %v1083 = vunpack.c.l.b16 %v827
  %v1084 = vunpack.c.l.b16 %v828
  %v1085 = vunpack.c.l.b16 %v829
  %v1086 = vunpack.c.l.b16 %v830
  %v1087 = vunpack.c.l.b16 %v831
  %v1088 = vunpack.c.l.b16 %v832
  %v1089 = vunpack.c.l.b16 %v833
  %v1090 = vunpack.c.l.b16 %v834
  %v1091 = vunpack.c.l.b16 %v835
  %v1092 = vunpack.c.l.b16 %v836
  %v1093 = vunpack.c.l.b16 %v837
  %v1094 = vunpack.c.l.b16 %v838
  %v1095 = vunpack.c.l.b16 %v839
  %v1096 = vunpack.c.l.b16 %v840
  %v1097 = vunpack.c.l.b16 %v841
  %v1098 = vunpack.c.l.b16 %v842
  %v1099 = vunpack.c.l.b16 %v843
  %v1100 = vunpack.c.l.b16 %v844
  %v1101 = vunpack.c.l.b16 %v845
  %v1102 = vunpack.c.l.b16 %v846
  %v1103 = vunpack.c.l.b16 %v847
  %v1104 = vunpack.c.l.b16 %v848
  %v1105 = vunpack.c.l.b16 %v849
  %v1106 = vunpack.c.l.b16 %v850
  %v1107 = vunpack.c.l.b16 %v851
  %v1108 = vunpack.c.l.b16 %v852
  %v1109 = vunpack.c.l.b16 %v853
  %v1110 = vunpack.c.l.b16 %v854
  %v1111 = vunpack.c.l.b16 %v855
  %v1112 = vunpack.c.l.b16 %v856
  %v1113 = vunpack.c.l.b16 %v857
  %v1114 = vunpack.c.l.b16 %v858
  %v1115 = vunpack.c.l.b16 %v859
  %v1116 = vunpack.c.l.b16 %v860
  %v1117 = vunpack.c.l.b16 %v861
  %v1118 = vunpack.c.l.b16 %v862
  %v1119 = vunpack.c.l.b16 %v863
  %v1120 = vunpack.c.l.b16 %v864
  %v1121 = vunpack.c.l.b16 %v865
  %v1122 = vunpack.c.l.b16 %v866
  %v1123 = vunpack.c.l.b16 %v867
  %v1124 = vunpack.c.l.b16 %v868
  %v1125 = vunpack.c.l.b16 %v869
  %v1126 = vunpack.c.l.b16 %v870
  %v1127 = vunpack.c.l.b16 %v871
  %v1128 = vunpack.c.l.b16 %v872
  %v1129 = vunpack.c.l.b16 %v873
  %v1130 = vunpack.c.l.b16 %v874
  %v1131 = vunpack.c.l.b16 %v875
  %v1132 = vunpack.c.l.b16 %v876
  %v1133 = vunpack.c.l.b16 %v877
  %v1134 = vunpack.c.l.b16 %v878
  %v1135 = vunpack.c.l.b16 %v879
  %v1136 = vunpack.c.l.b16 %v880
  %v1137 = vunpack.c.l.b16 %v881
  %v1138 = vunpack.c.l.b16 %v882
  %v1139 = vunpack.c.l.b16 %v883
  %v1140 = vunpack.c.l.b16 %v884
  %v1141 = vunpack.c.l.b16 %v885
  %v1142 = vunpack.c.l.b16 %v886
  %v1143 = vunpack.c.l.b16 %v887
  %v1144 = vunpack.c.l.b16 %v888
  %v1145 = vunpack.c.l.b16 %v889
  %v1146 = vunpack.c.l.b16 %v890
  %v1147 = vunpack.c.l.b16 %v891
  %v1148 = vunpack.c.l.b16 %v892
  %v1149 = vunpack.c.l.b16 %v893
  %v1150 = vunpack.c.l.b16 %v894
  %v1151 = vunpack.c.l.b16 %v895
  %v1152 = vunpack.c.l.b16 %v896
  %v1153 = vunpack.c.l.b16 %v897
  %v1154 = vunpack.c.l.b16 %v898
  %v1155 = vunpack.c.l.b16 %v899
  %v1156 = vunpack.c.l.b16 %v900
  %v1157 = vunpack.c.l.b16 %v901
  %v1158 = vunpack.c.l.b16 %v902
  %v1159 = vunpack.c.l.b16 %v903
  %v1160 = vunpack.c.l.b16 %v904
  %v1161 = vunpack.c.l.b16 %v905
  %v1162 = vunpack.c.l.b16 %v906
  %v1163 = vunpack.c.l.b16 %v907
  %v1164 = vunpack.c.l.b16 %v908
  %v1165 = vunpack.c.l.b16 %v909
  %v1166 = vunpack.c.l.b16 %v910
  %v1167 = vunpack.c.l.b16 %v911
  %v1168 = vunpack.c.l.b16 %v912
  %v1169 = vunpack.c.l.b16 %v913
  %v1170 = vpack.c.b16 %v1043, %v1042
  %v1171 = vpack.c.b16 %v1045, %v1044
  %v1172 = vpack.c.b16 %v1047, %v1046
  %v1173 = vpack.c.b16 %v1049, %v1048
  %v1174 = vpack.c.b16 %v1051, %v1050
  %v1175 = vpack.c.b16 %v1053, %v1052
  %v1176 = vpack.c.b16 %v1055, %v1054
  %v1177 = vpack.c.b16 %v1057, %v1056
  %v1178 = vpack.c.b16 %v1059, %v1058
  %v1179 = vpack.c.b16 %v1061, %v1060
  %v1180 = vpack.c.b16 %v1063, %v1062
  %v1181 = vpack.c.b16 %v1065, %v1064
  %v1182 = vpack.c.b16 %v1067, %v1066
  %v1183 = vpack.c.b16 %v1069, %v1068
  %v1184 = vpack.c.b16 %v1071, %v1070
  %v1185 = vpack.c.b16 %v1073, %v1072
  %v1186 = vpack.c.b16 %v1075, %v1074
  %v1187 = vpack.c.b16 %v1077, %v1076
  %v1188 = vpack.c.b16 %v1079, %v1078
  %v1189 = vpack.c.b16 %v1081, %v1080
  %v1190 = vpack.c.b16 %v1083, %v1082
  %v1191 = vpack.c.b16 %v1085, %v1084
  %v1192 = vpack.c.b16 %v1087, %v1086
  %v1193 = vpack.c.b16 %v1089, %v1088
  %v1194 = vpack.c.b16 %v1091, %v1090
  %v1195 = vpack.c.b16 %v1093, %v1092
  %v1196 = vpack.c.b16 %v1095, %v1094
  %v1197 = vpack.c.b16 %v1097, %v1096
  %v1198 = vpack.c.b16 %v1099, %v1098
  %v1199 = vpack.c.b16 %v1101, %v1100
  %v1200 = vpack.c.b16 %v1103, %v1102
  %v1201 = vpack.c.b16 %v1105, %v1104
  %v1202 = vpack.c.b16 %v1107, %v1106
  %v1203 = vpack.c.b16 %v1109, %v1108
  %v1204 = vpack.c.b16 %v1111, %v1110
  %v1205 = vpack.c.b16 %v1113, %v1112
  %v1206 = vpack.c.b16 %v1115, %v1114
  %v1207 = vpack.c.b16 %v1117, %v1116
  %v1208 = vpack.c.b16 %v1119, %v1118
  %v1209 = vpack.c.b16 %v1121, %v1120
  %v1210 = vpack.c.b16 %v1123, %v1122
  %v1211 = vpack.c.b16 %v1125, %v1124
  %v1212 = vpack.c.b16 %v1127, %v1126
  %v1213 = vpack.c.b16 %v1129, %v1128
  %v1214 = vpack.c.b16 %v1131, %v1130
  %v1215 = vpack.c.b16 %v1133, %v1132
  %v1216 = vpack.c.b16 %v1135, %v1134
  %v1217 = vpack.c.b16 %v1137, %v1136
  %v1218 = vpack.c.b16 %v1139, %v1138
  %v1219 = vpack.c.b16 %v1141, %v1140
  %v1220 = vpack.c.b16 %v1143, %v1142
  %v1221 = vpack.c.b16 %v1145, %v1144
  %v1222 = vpack.c.b16 %v1147, %v1146
  %v1223 = vpack.c.b16 %v1149, %v1148
  %v1224 = vpack.c.b16 %v1151, %v1150
  %v1225 = vpack.c.b16 %v1153, %v1152
  %v1226 = vpack.c.b16 %v1155, %v1154
  %v1227 = vpack.c.b16 %v1157, %v1156
  %v1228 = vpack.c.b16 %v1159, %v1158
  %v1229 = vpack.c.b16 %v1161, %v1160
  %v1230 = vpack.c.b16 %v1163, %v1162
  %v1231 = vpack.c.b16 %v1165, %v1164
  %v1232 = vpack.c.b16 %v1167, %v1166
  %v1233 = vpack.c.b16 %v1169, %v1168
  %1298 = vst [vmem:[#allocation2] sm:$0xff] %v1170
  %1299 = vst [vmem:[#allocation2 + $0x8] sm:$0xff] %v1171
  %1300 = vst [vmem:[#allocation2 + $0x10] sm:$0xff] %v1172
  %1301 = vst [vmem:[#allocation2 + $0x18] sm:$0xff] %v1173
  %1302 = vst [vmem:[#allocation2 + $0x20] sm:$0xff] %v1174
  %1303 = vst [vmem:[#allocation2 + $0x28] sm:$0xff] %v1175
  %1304 = vst [vmem:[#allocation2 + $0x30] sm:$0xff] %v1176
  %1305 = vst [vmem:[#allocation2 + $0x38] sm:$0xff] %v1177
  %1306 = vst [vmem:[#allocation2 + $0x40] sm:$0xff] %v1178
  %1307 = vst [vmem:[#allocation2 + $0x48] sm:$0xff] %v1179
  %1308 = vst [vmem:[#allocation2 + $0x50] sm:$0xff] %v1180
  %1309 = vst [vmem:[#allocation2 + $0x58] sm:$0xff] %v1181
  %1310 = vst [vmem:[#allocation2 + $0x60] sm:$0xff] %v1182
  %1311 = vst [vmem:[#allocation2 + $0x68] sm:$0xff] %v1183
  %1312 = vst [vmem:[#allocation2 + $0x70] sm:$0xff] %v1184
  %1313 = vst [vmem:[#allocation2 + $0x78] sm:$0xff] %v1185
  %1314 = vst [vmem:[#allocation2 + $0x80] sm:$0xff] %v1186
  %1315 = vst [vmem:[#allocation2 + $0x88] sm:$0xff] %v1187
  %1316 = vst [vmem:[#allocation2 + $0x90] sm:$0xff] %v1188
  %1317 = vst [vmem:[#allocation2 + $0x98] sm:$0xff] %v1189
  %1318 = vst [vmem:[#allocation2 + $0xa0] sm:$0xff] %v1190
  %1319 = vst [vmem:[#allocation2 + $0xa8] sm:$0xff] %v1191
  %1320 = vst [vmem:[#allocation2 + $0xb0] sm:$0xff] %v1192
  %1321 = vst [vmem:[#allocation2 + $0xb8] sm:$0xff] %v1193
  %1322 = vst [vmem:[#allocation2 + $0xc0] sm:$0xff] %v1194
  %1323 = vst [vmem:[#allocation2 + $0xc8] sm:$0xff] %v1195
  %1324 = vst [vmem:[#allocation2 + $0xd0] sm:$0xff] %v1196
  %1325 = vst [vmem:[#allocation2 + $0xd8] sm:$0xff] %v1197
  %1326 = vst [vmem:[#allocation2 + $0xe0] sm:$0xff] %v1198
  %1327 = vst [vmem:[#allocation2 + $0xe8] sm:$0xff] %v1199
  %1328 = vst [vmem:[#allocation2 + $0xf0] sm:$0xff] %v1200
  %1329 = vst [vmem:[#allocation2 + $0xf8] sm:$0xff] %v1201
  %1330 = vst [vmem:[#allocation2 + $0x100] sm:$0xff] %v1202
  %1331 = vst [vmem:[#allocation2 + $0x108] sm:$0xff] %v1203
  %1332 = vst [vmem:[#allocation2 + $0x110] sm:$0xff] %v1204
  %1333 = vst [vmem:[#allocation2 + $0x118] sm:$0xff] %v1205
  %1334 = vst [vmem:[#allocation2 + $0x120] sm:$0xff] %v1206
  %1335 = vst [vmem:[#allocation2 + $0x128] sm:$0xff] %v1207
  %1336 = vst [vmem:[#allocation2 + $0x130] sm:$0xff] %v1208
  %1337 = vst [vmem:[#allocation2 + $0x138] sm:$0xff] %v1209
  %1338 = vst [vmem:[#allocation2 + $0x140] sm:$0xff] %v1210
  %1339 = vst [vmem:[#allocation2 + $0x148] sm:$0xff] %v1211
  %1340 = vst [vmem:[#allocation2 + $0x150] sm:$0xff] %v1212
  %1341 = vst [vmem:[#allocation2 + $0x158] sm:$0xff] %v1213
  %1342 = vst [vmem:[#allocation2 + $0x160] sm:$0xff] %v1214
  %1343 = vst [vmem:[#allocation2 + $0x168] sm:$0xff] %v1215
  %1344 = vst [vmem:[#allocation2 + $0x170] sm:$0xff] %v1216
  %1345 = vst [vmem:[#allocation2 + $0x178] sm:$0xff] %v1217
  %1346 = vst [vmem:[#allocation2 + $0x180] sm:$0xff] %v1218
  %1347 = vst [vmem:[#allocation2 + $0x188] sm:$0xff] %v1219
  %1348 = vst [vmem:[#allocation2 + $0x190] sm:$0xff] %v1220
  %1349 = vst [vmem:[#allocation2 + $0x198] sm:$0xff] %v1221
  %1350 = vst [vmem:[#allocation2 + $0x1a0] sm:$0xff] %v1222
  %1351 = vst [vmem:[#allocation2 + $0x1a8] sm:$0xff] %v1223
  %1352 = vst [vmem:[#allocation2 + $0x1b0] sm:$0xff] %v1224
  %1353 = vst [vmem:[#allocation2 + $0x1b8] sm:$0xff] %v1225
  %1354 = vst [vmem:[#allocation2 + $0x1c0] sm:$0xff] %v1226
  %1355 = vst [vmem:[#allocation2 + $0x1c8] sm:$0xff] %v1227
  %1356 = vst [vmem:[#allocation2 + $0x1d0] sm:$0xff] %v1228
  %1357 = vst [vmem:[#allocation2 + $0x1d8] sm:$0xff] %v1229
  %1358 = vst [vmem:[#allocation2 + $0x1e0] sm:$0xff] %v1230
  %1359 = vst [vmem:[#allocation2 + $0x1e8] sm:$0xff] %v1231
  %1360 = vst [vmem:[#allocation2 + $0x1f0] sm:$0xff] %v1232
  %1361 = vst [vmem:[#allocation2 + $0x1f8] sm:$0xff] %v1233
  %v1362 = vld [vmem:[%s2] sm:$0xff]
  %v1363 = vld [vmem:[%s2 + $0x8] sm:$0xff]
  %v1364 = vld [vmem:[%s2 + $0x10] sm:$0xff]
  %v1365 = vld [vmem:[%s2 + $0x18] sm:$0xff]
  %v1366 = vld [vmem:[%s2 + $0x20] sm:$0xff]
  %v1367 = vld [vmem:[%s2 + $0x28] sm:$0xff]
  %v1368 = vld [vmem:[%s2 + $0x30] sm:$0xff]
  %v1369 = vld [vmem:[%s2 + $0x38] sm:$0xff]
  loop: start=0, step=1, limit=16
  $region58: #{eeg_forward.7} parent=0 // loop_pre_header
    _
  $region59: #{eeg_forward.7} parent=0 // loop_header
    %s1371 = sphi 0, %s1375
    %p1372 = scmp.ge.s32.totalorder %s1371, 16
    %v1376 = vphi 0.0, %v1753
    %v1377 = vphi 0.0, %v1747
  $region60: #{eeg_forward.7} parent=0 // loop_header_branch
    %1374 = sbr.rel (%p1372) target = $region64
  $region61: #{eeg_forward.7} parent=0 // loop_body
    %s1378 = smul.u32 %s1371, 4
    %s1379 = smul.u32 %s1378, 2
    %s1380 = smul.addr %s1379, 4
    %s1381 = scalar_lea.vmem [#allocation2], %s1380
    %v1382 = vld [vmem:[%s1381] sm:$0xff]
    %v1383 = vunpack.c.l.bf16 %v1382
    %v1384 = vunpack.c.h.bf16 %v1382
    %v1385 = vpack.c.bf16 %v1376, %v1376
    %v1394 = vunpack.c.l.b16 %v1362
    %v1395 = vunpack.c.h.b16 %v1362
    %v1396 = vunpack.c.l.b16 %v1363
    %v1397 = vunpack.c.h.b16 %v1363
    %v1398 = vunpack.c.l.b16 %v1364
    %v1399 = vunpack.c.h.b16 %v1364
    %v1400 = vunpack.c.l.b16 %v1365
    %v1401 = vunpack.c.h.b16 %v1365
    %v1402 = vunpack.c.l.b16 %v1366
    %v1403 = vunpack.c.h.b16 %v1366
    %v1404 = vunpack.c.l.b16 %v1367
    %v1405 = vunpack.c.h.b16 %v1367
    %v1406 = vunpack.c.l.b16 %v1368
    %v1407 = vunpack.c.h.b16 %v1368
    %v1408 = vunpack.c.l.b16 %v1369
    %v1409 = vunpack.c.h.b16 %v1369
    %v1410 = vpack.c.b16 %v1396, %v1394
    %v1411 = vpack.c.b16 %v1397, %v1395
    %v1412 = vpack.c.b16 %v1400, %v1398
    %v1413 = vpack.c.b16 %v1401, %v1399
    %v1414 = vpack.c.b16 %v1404, %v1402
    %v1415 = vpack.c.b16 %v1405, %v1403
    %v1416 = vpack.c.b16 %v1408, %v1406
    %v1417 = vpack.c.b16 %v1409, %v1407
    %v1427 = vsel %vm336, %v1385, 0
    %1429 = vmatprep.subr.bf16.mxu0 %v1411
    %1430 = vmatpush1.bf16.msra.mxu0 %v1410
    %1431 = vmatprep.subr.bf16.mxu0 %v1413
    %1432 = vmatpush1.bf16.msra.mxu0 %v1412
    %1433 = vmatprep.subr.bf16.mxu0 %v1415
    %1434 = vmatpush1.bf16.msra.mxu0 %v1414
    %1435 = vmatprep.subr.bf16.mxu0 %v1417
    %1436 = vmatpush1.bf16.msra.mxu0 %v1416
    %1437 = vmatprep.subr.bf16.mxu0 0
    %1438 = vmatpush1.bf16.msra.mxu0 0
    %1439 = vmatprep.subr.bf16.mxu0 0
    %1440 = vmatpush1.bf16.msra.mxu0 0
    %1441 = vmatprep.subr.bf16.mxu0 0
    %1442 = vmatpush1.bf16.msra.mxu0 0
    %1443 = vmatprep.subr.bf16.mxu0 0
    %1444 = vmatpush1.bf16.msra.mxu0 0
    %1445 = vmatprep.subr.bf16.mxu0 0
    %1446 = vmatpush1.bf16.msra.mxu0 0
    %1447 = vmatprep.subr.bf16.mxu0 0
    %1448 = vmatpush1.bf16.msra.mxu0 0
    %1449 = vmatprep.subr.bf16.mxu0 0
    %1450 = vmatpush1.bf16.msra.mxu0 0
    %1451 = vmatprep.subr.bf16.mxu0 0
    %1452 = vmatpush1.bf16.msra.mxu0 0
    %1453 = vmatprep.subr.bf16.mxu0 0
    %1454 = vmatpush1.bf16.msra.mxu0 0
    %1455 = vmatprep.subr.bf16.mxu0 0
    %1456 = vmatpush1.bf16.msra.mxu0 0
    %1457 = vmatprep.subr.bf16.mxu0 0
    %1458 = vmatpush1.bf16.msra.mxu0 0
    %1459 = vmatprep.subr.bf16.mxu0 0
    %1460 = vmatpush1.bf16.msra.mxu0 0
    %1461 = vmatprep.mubr.bf16.mxu0 0
    %1462 = vmatmul.mubr.bf16.gmra.mrb[0].mxu0 %v1427
    %v1463 = vpop.f32.mrb[0].mxu0
    %v1464 = vadd.f32 0.0, %v1463
    %v1465 = vpop.f32.mrb[0].mxu0
    %v1466 = vadd.f32 0.0, %v1465
    %v1467 = vpop.f32.mrb[0].mxu0
    %v1468 = vpop.f32.mrb[0].mxu0
    %1469 = vdwg.mxu0
    %v1470 = vadd.f32 %v1383, %v1464
    %v1471 = vadd.f32 %v1384, %v1466
    %v1472 = vxor.u32 %v1470, 2147483648
    %v1473 = vxor.u32 %v1471, 2147483648
    %v1474 = vmul.f32 %v1472, 1.442695
    %v1475 = vpow.pop %v1474
    %v1476 = vmul.f32 %v1473, 1.442695
    %v1477 = vpow.pop %v1476
    %v1478 = vadd.f32 %v1475, 1.0
    %v1479 = vadd.f32 %v1477, 1.0
    %v1480 = vrcp.pop %v1478
    %v1481 = vmul.f32 1.0, %v1480
    %v1482 = vrcp.pop %v1479
    %v1483 = vmul.f32 1.0, %v1482
    %v1484 = vtanh.pop %v1471
    %v1485 = vmul.f32 %v1481, %v1377
    %1487 = vrot.lane.b32.xlu0 %v1484, 64
    %v1488 = vpop.permute.xlu0 %1487
    %v1490 = vmul.f32 %v1481, %v1488
    %1492 = vrot.lane.b32.xlu0 %v1490, 64
    %v1493 = vpop.permute.xlu0 %1492
    %v1495 = vadd.f32 %v1485, %v1493
    %v1496 = vtanh.pop %v1495
    %1498 = vrot.lane.b32.xlu0 %v1496, 64
    %v1499 = vpop.permute.xlu0 %1498
    %v1501 = vmul.f32 %v1483, %v1499
    %s1502 = sadd.s32 %s1378, 1
    %s1503 = smul.u32 %s1502, 2
    %s1504 = smul.addr %s1503, 4
    %s1505 = scalar_lea.vmem [#allocation2], %s1504
    %v1506 = vld [vmem:[%s1505] sm:$0xff]
    %v1507 = vunpack.c.l.bf16 %v1506
    %v1508 = vunpack.c.h.bf16 %v1506
    %v1509 = vpack.c.bf16 %v1501, %v1501
    %v1511 = vsel %vm336, %v1509, 0
    %1513 = vmatprep.subr.bf16.mxu0 %v1411
    %1514 = vmatpush1.bf16.msra.mxu0 %v1410
    %1515 = vmatprep.subr.bf16.mxu0 %v1413
    %1516 = vmatpush1.bf16.msra.mxu0 %v1412
    %1517 = vmatprep.subr.bf16.mxu0 %v1415
    %1518 = vmatpush1.bf16.msra.mxu0 %v1414
    %1519 = vmatprep.subr.bf16.mxu0 %v1417
    %1520 = vmatpush1.bf16.msra.mxu0 %v1416
    %1521 = vmatprep.subr.bf16.mxu0 0
    %1522 = vmatpush1.bf16.msra.mxu0 0
    %1523 = vmatprep.subr.bf16.mxu0 0
    %1524 = vmatpush1.bf16.msra.mxu0 0
    %1525 = vmatprep.subr.bf16.mxu0 0
    %1526 = vmatpush1.bf16.msra.mxu0 0
    %1527 = vmatprep.subr.bf16.mxu0 0
    %1528 = vmatpush1.bf16.msra.mxu0 0
    %1529 = vmatprep.subr.bf16.mxu0 0
    %1530 = vmatpush1.bf16.msra.mxu0 0
    %1531 = vmatprep.subr.bf16.mxu0 0
    %1532 = vmatpush1.bf16.msra.mxu0 0
    %1533 = vmatprep.subr.bf16.mxu0 0
    %1534 = vmatpush1.bf16.msra.mxu0 0
    %1535 = vmatprep.subr.bf16.mxu0 0
    %1536 = vmatpush1.bf16.msra.mxu0 0
    %1537 = vmatprep.subr.bf16.mxu0 0
    %1538 = vmatpush1.bf16.msra.mxu0 0
    %1539 = vmatprep.subr.bf16.mxu0 0
    %1540 = vmatpush1.bf16.msra.mxu0 0
    %1541 = vmatprep.subr.bf16.mxu0 0
    %1542 = vmatpush1.bf16.msra.mxu0 0
    %1543 = vmatprep.subr.bf16.mxu0 0
    %1544 = vmatpush1.bf16.msra.mxu0 0
    %1545 = vmatprep.mubr.bf16.mxu0 0
    %1546 = vmatmul.mubr.bf16.gmra.mrb[0].mxu0 %v1511
    %v1547 = vpop.f32.mrb[0].mxu0
    %v1548 = vadd.f32 0.0, %v1547
    %v1549 = vpop.f32.mrb[0].mxu0
    %v1550 = vadd.f32 0.0, %v1549
    %v1551 = vpop.f32.mrb[0].mxu0
    %v1552 = vpop.f32.mrb[0].mxu0
    %1553 = vdwg.mxu0
    %v1554 = vadd.f32 %v1507, %v1548
    %v1555 = vadd.f32 %v1508, %v1550
    %v1556 = vxor.u32 %v1554, 2147483648
    %v1557 = vxor.u32 %v1555, 2147483648
    %v1558 = vmul.f32 %v1556, 1.442695
    %v1559 = vpow.pop %v1558
    %v1560 = vmul.f32 %v1557, 1.442695
    %v1561 = vpow.pop %v1560
    %v1562 = vadd.f32 %v1559, 1.0
    %v1563 = vadd.f32 %v1561, 1.0
    %v1564 = vrcp.pop %v1562
    %v1565 = vmul.f32 1.0, %v1564
    %v1566 = vrcp.pop %v1563
    %v1567 = vmul.f32 1.0, %v1566
    %v1568 = vtanh.pop %v1555
    %v1569 = vmul.f32 %v1565, %v1495
    %1571 = vrot.lane.b32.xlu0 %v1568, 64
    %v1572 = vpop.permute.xlu0 %1571
    %v1574 = vmul.f32 %v1565, %v1572
    %1576 = vrot.lane.b32.xlu0 %v1574, 64
    %v1577 = vpop.permute.xlu0 %1576
    %v1579 = vadd.f32 %v1569, %v1577
    %v1580 = vtanh.pop %v1579
    %1582 = vrot.lane.b32.xlu0 %v1580, 64
    %v1583 = vpop.permute.xlu0 %1582
    %v1585 = vmul.f32 %v1567, %v1583
    %s1586 = sadd.s32 %s1378, 2
    %s1587 = smul.u32 %s1586, 2
    %s1588 = smul.addr %s1587, 4
    %s1589 = scalar_lea.vmem [#allocation2], %s1588
    %v1590 = vld [vmem:[%s1589] sm:$0xff]
    %v1591 = vunpack.c.l.bf16 %v1590
    %v1592 = vunpack.c.h.bf16 %v1590
    %v1593 = vpack.c.bf16 %v1585, %v1585
    %v1595 = vsel %vm336, %v1593, 0
    %1597 = vmatprep.subr.bf16.mxu0 %v1411
    %1598 = vmatpush1.bf16.msra.mxu0 %v1410
    %1599 = vmatprep.subr.bf16.mxu0 %v1413
    %1600 = vmatpush1.bf16.msra.mxu0 %v1412
    %1601 = vmatprep.subr.bf16.mxu0 %v1415
    %1602 = vmatpush1.bf16.msra.mxu0 %v1414
    %1603 = vmatprep.subr.bf16.mxu0 %v1417
    %1604 = vmatpush1.bf16.msra.mxu0 %v1416
    %1605 = vmatprep.subr.bf16.mxu0 0
    %1606 = vmatpush1.bf16.msra.mxu0 0
    %1607 = vmatprep.subr.bf16.mxu0 0
    %1608 = vmatpush1.bf16.msra.mxu0 0
    %1609 = vmatprep.subr.bf16.mxu0 0
    %1610 = vmatpush1.bf16.msra.mxu0 0
    %1611 = vmatprep.subr.bf16.mxu0 0
    %1612 = vmatpush1.bf16.msra.mxu0 0
    %1613 = vmatprep.subr.bf16.mxu0 0
    %1614 = vmatpush1.bf16.msra.mxu0 0
    %1615 = vmatprep.subr.bf16.mxu0 0
    %1616 = vmatpush1.bf16.msra.mxu0 0
    %1617 = vmatprep.subr.bf16.mxu0 0
    %1618 = vmatpush1.bf16.msra.mxu0 0
    %1619 = vmatprep.subr.bf16.mxu0 0
    %1620 = vmatpush1.bf16.msra.mxu0 0
    %1621 = vmatprep.subr.bf16.mxu0 0
    %1622 = vmatpush1.bf16.msra.mxu0 0
    %1623 = vmatprep.subr.bf16.mxu0 0
    %1624 = vmatpush1.bf16.msra.mxu0 0
    %1625 = vmatprep.subr.bf16.mxu0 0
    %1626 = vmatpush1.bf16.msra.mxu0 0
    %1627 = vmatprep.subr.bf16.mxu0 0
    %1628 = vmatpush1.bf16.msra.mxu0 0
    %1629 = vmatprep.mubr.bf16.mxu0 0
    %1630 = vmatmul.mubr.bf16.gmra.mrb[0].mxu0 %v1595
    %v1631 = vpop.f32.mrb[0].mxu0
    %v1632 = vadd.f32 0.0, %v1631
    %v1633 = vpop.f32.mrb[0].mxu0
    %v1634 = vadd.f32 0.0, %v1633
    %v1635 = vpop.f32.mrb[0].mxu0
    %v1636 = vpop.f32.mrb[0].mxu0
    %1637 = vdwg.mxu0
    %v1638 = vadd.f32 %v1591, %v1632
    %v1639 = vadd.f32 %v1592, %v1634
    %v1640 = vxor.u32 %v1638, 2147483648
    %v1641 = vxor.u32 %v1639, 2147483648
    %v1642 = vmul.f32 %v1640, 1.442695
    %v1643 = vpow.pop %v1642
    %v1644 = vmul.f32 %v1641, 1.442695
    %v1645 = vpow.pop %v1644
    %v1646 = vadd.f32 %v1643, 1.0
    %v1647 = vadd.f32 %v1645, 1.0
    %v1648 = vrcp.pop %v1646
    %v1649 = vmul.f32 1.0, %v1648
    %v1650 = vrcp.pop %v1647
    %v1651 = vmul.f32 1.0, %v1650
    %v1652 = vtanh.pop %v1639
    %v1653 = vmul.f32 %v1649, %v1579
    %1655 = vrot.lane.b32.xlu0 %v1652, 64
    %v1656 = vpop.permute.xlu0 %1655
    %v1658 = vmul.f32 %v1649, %v1656
    %1660 = vrot.lane.b32.xlu0 %v1658, 64
    %v1661 = vpop.permute.xlu0 %1660
    %v1663 = vadd.f32 %v1653, %v1661
    %v1664 = vtanh.pop %v1663
    %1666 = vrot.lane.b32.xlu0 %v1664, 64
    %v1667 = vpop.permute.xlu0 %1666
    %v1669 = vmul.f32 %v1651, %v1667
    %s1670 = sadd.s32 %s1378, 3
    %s1671 = smul.u32 %s1670, 2
    %s1672 = smul.addr %s1671, 4
    %s1673 = scalar_lea.vmem [#allocation2], %s1672
    %v1674 = vld [vmem:[%s1673] sm:$0xff]
    %v1675 = vunpack.c.l.bf16 %v1674
    %v1676 = vunpack.c.h.bf16 %v1674
    %v1677 = vpack.c.bf16 %v1669, %v1669
    %v1679 = vsel %vm336, %v1677, 0
    %1681 = vmatprep.subr.bf16.mxu0 %v1411
    %1682 = vmatpush1.bf16.msra.mxu0 %v1410
    %1683 = vmatprep.subr.bf16.mxu0 %v1413
    %1684 = vmatpush1.bf16.msra.mxu0 %v1412
    %1685 = vmatprep.subr.bf16.mxu0 %v1415
    %1686 = vmatpush1.bf16.msra.mxu0 %v1414
    %1687 = vmatprep.subr.bf16.mxu0 %v1417
    %1688 = vmatpush1.bf16.msra.mxu0 %v1416
    %1689 = vmatprep.subr.bf16.mxu0 0
    %1690 = vmatpush1.bf16.msra.mxu0 0
    %1691 = vmatprep.subr.bf16.mxu0 0
    %1692 = vmatpush1.bf16.msra.mxu0 0
    %1693 = vmatprep.subr.bf16.mxu0 0
    %1694 = vmatpush1.bf16.msra.mxu0 0
    %1695 = vmatprep.subr.bf16.mxu0 0
    %1696 = vmatpush1.bf16.msra.mxu0 0
    %1697 = vmatprep.subr.bf16.mxu0 0
    %1698 = vmatpush1.bf16.msra.mxu0 0
    %1699 = vmatprep.subr.bf16.mxu0 0
    %1700 = vmatpush1.bf16.msra.mxu0 0
    %1701 = vmatprep.subr.bf16.mxu0 0
    %1702 = vmatpush1.bf16.msra.mxu0 0
    %1703 = vmatprep.subr.bf16.mxu0 0
    %1704 = vmatpush1.bf16.msra.mxu0 0
    %1705 = vmatprep.subr.bf16.mxu0 0
    %1706 = vmatpush1.bf16.msra.mxu0 0
    %1707 = vmatprep.subr.bf16.mxu0 0
    %1708 = vmatpush1.bf16.msra.mxu0 0
    %1709 = vmatprep.subr.bf16.mxu0 0
    %1710 = vmatpush1.bf16.msra.mxu0 0
    %1711 = vmatprep.subr.bf16.mxu0 0
    %1712 = vmatpush1.bf16.msra.mxu0 0
    %1713 = vmatprep.mubr.bf16.mxu0 0
    %1714 = vmatmul.mubr.bf16.gmra.mrb[0].mxu0 %v1679
    %v1715 = vpop.f32.mrb[0].mxu0
    %v1716 = vadd.f32 0.0, %v1715
    %v1717 = vpop.f32.mrb[0].mxu0
    %v1718 = vadd.f32 0.0, %v1717
    %v1719 = vpop.f32.mrb[0].mxu0
    %v1720 = vpop.f32.mrb[0].mxu0
    %1721 = vdwg.mxu0
    %v1722 = vadd.f32 %v1675, %v1716
    %v1723 = vadd.f32 %v1676, %v1718
    %v1724 = vxor.u32 %v1722, 2147483648
    %v1725 = vxor.u32 %v1723, 2147483648
    %v1726 = vmul.f32 %v1724, 1.442695
    %v1727 = vpow.pop %v1726
    %v1728 = vmul.f32 %v1725, 1.442695
    %v1729 = vpow.pop %v1728
    %v1730 = vadd.f32 %v1727, 1.0
    %v1731 = vadd.f32 %v1729, 1.0
    %v1732 = vrcp.pop %v1730
    %v1733 = vmul.f32 1.0, %v1732
    %v1734 = vrcp.pop %v1731
    %v1735 = vmul.f32 1.0, %v1734
    %v1736 = vtanh.pop %v1723
    %v1737 = vmul.f32 %v1733, %v1663
    %1739 = vrot.lane.b32.xlu0 %v1736, 64
    %v1740 = vpop.permute.xlu0 %1739
    %v1742 = vmul.f32 %v1733, %v1740
    %1744 = vrot.lane.b32.xlu0 %v1742, 64
    %v1745 = vpop.permute.xlu0 %1744
    %v1747 = vadd.f32 %v1737, %v1745
    %v1748 = vtanh.pop %v1747
    %1750 = vrot.lane.b32.xlu0 %v1748, 64
    %v1751 = vpop.permute.xlu0 %1750
    %v1753 = vmul.f32 %v1735, %v1751
  $region62: #{eeg_forward.7} parent=0 // loop_footer
    %s1375 = sadd.s32 1, %s1371
  $region63: #{eeg_forward.7} parent=0 // loop_footer_branch
    %1370 = sbr.rel target = $region59
  $region64: #{eeg_forward.7} parent=0 // loop_exit
    _
  %s1754 = scalar_lea.vmem %s0, 252
  %v1755 = vld [vmem:[%s1754] sm:$0xf]
  %v1756 = vld [vmem:[%s4] sm:$0xff]
  %v1757 = vld [vmem:[%s4 + $0x8] sm:$0xff]
  %v1758 = vld [vmem:[%s4 + $0x10] sm:$0xff]
  %v1759 = vld [vmem:[%s4 + $0x18] sm:$0xff]
  %v1760 = vld [vmem:[%s4 + $0x20] sm:$0xff]
  %v1761 = vld [vmem:[%s4 + $0x28] sm:$0xff]
  %v1762 = vld [vmem:[%s4 + $0x30] sm:$0xff]
  %v1763 = vld [vmem:[%s4 + $0x38] sm:$0xff]
  %v1764 = vld [vmem:[%s5] sm:$0x3]
  %v1766 = vlaneseq
  %v1767 = vshrl.u32 %v1766, 7
  %v1768 = vsub.s32 0, %v1767
  %v1769 = vrot.slane %v1764, %v1768
  %v1770 = vlaneseq
  %v1771 = vshrl.u32 %v1770, 7
  %v1772 = vsub.s32 1, %v1771
  %v1773 = vrot.slane %v1764, %v1772
  %v1784 = vunpack.c.l.b16 %v1756
  %v1785 = vunpack.c.h.b16 %v1756
  %v1786 = vunpack.c.l.b16 %v1757
  %v1787 = vunpack.c.h.b16 %v1757
  %v1788 = vunpack.c.l.b16 %v1758
  %v1789 = vunpack.c.h.b16 %v1758
  %v1790 = vunpack.c.l.b16 %v1759
  %v1791 = vunpack.c.h.b16 %v1759
  %v1792 = vunpack.c.l.b16 %v1760
  %v1793 = vunpack.c.h.b16 %v1760
  %v1794 = vunpack.c.l.b16 %v1761
  %v1795 = vunpack.c.h.b16 %v1761
  %v1796 = vunpack.c.l.b16 %v1762
  %v1797 = vunpack.c.h.b16 %v1762
  %v1798 = vunpack.c.l.b16 %v1763
  %v1799 = vunpack.c.h.b16 %v1763
  %v1800 = vpack.c.b16 %v1786, %v1784
  %v1801 = vpack.c.b16 %v1787, %v1785
  %v1802 = vpack.c.b16 %v1790, %v1788
  %v1803 = vpack.c.b16 %v1791, %v1789
  %v1804 = vpack.c.b16 %v1794, %v1792
  %v1805 = vpack.c.b16 %v1795, %v1793
  %v1806 = vpack.c.b16 %v1798, %v1796
  %v1807 = vpack.c.b16 %v1799, %v1797
  %v1817 = vsel %vm336, %v1755, 0
  %1819 = vmatprep.subr.bf16.mxu0 %v1801
  %1820 = vmatpush1.bf16.msra.mxu0 %v1800
  %1821 = vmatprep.subr.bf16.mxu0 %v1803
  %1822 = vmatpush1.bf16.msra.mxu0 %v1802
  %1823 = vmatprep.subr.bf16.mxu0 %v1805
  %1824 = vmatpush1.bf16.msra.mxu0 %v1804
  %1825 = vmatprep.subr.bf16.mxu0 %v1807
  %1826 = vmatpush1.bf16.msra.mxu0 %v1806
  %1827 = vmatprep.subr.bf16.mxu0 0
  %1828 = vmatpush1.bf16.msra.mxu0 0
  %1829 = vmatprep.subr.bf16.mxu0 0
  %1830 = vmatpush1.bf16.msra.mxu0 0
  %1831 = vmatprep.subr.bf16.mxu0 0
  %1832 = vmatpush1.bf16.msra.mxu0 0
  %1833 = vmatprep.subr.bf16.mxu0 0
  %1834 = vmatpush1.bf16.msra.mxu0 0
  %1835 = vmatprep.subr.bf16.mxu0 0
  %1836 = vmatpush1.bf16.msra.mxu0 0
  %1837 = vmatprep.subr.bf16.mxu0 0
  %1838 = vmatpush1.bf16.msra.mxu0 0
  %1839 = vmatprep.subr.bf16.mxu0 0
  %1840 = vmatpush1.bf16.msra.mxu0 0
  %1841 = vmatprep.subr.bf16.mxu0 0
  %1842 = vmatpush1.bf16.msra.mxu0 0
  %1843 = vmatprep.subr.bf16.mxu0 0
  %1844 = vmatpush1.bf16.msra.mxu0 0
  %1845 = vmatprep.subr.bf16.mxu0 0
  %1846 = vmatpush1.bf16.msra.mxu0 0
  %1847 = vmatprep.subr.bf16.mxu0 0
  %1848 = vmatpush1.bf16.msra.mxu0 0
  %1849 = vmatprep.subr.bf16.mxu0 0
  %1850 = vmatpush1.bf16.msra.mxu0 0
  %1851 = vmatprep.mubr.bf16.mxu0 0
  %1852 = vmatmul.mubr.bf16.gmra.mrb[0].mxu0 %v1817
  %v1853 = vpop.f32.mrb[0].mxu0
  %v1854 = vadd.f32 %v1769, %v1853
  %v1855 = vpop.f32.mrb[0].mxu0
  %v1856 = vadd.f32 %v1773, %v1855
  %v1857 = vpop.f32.mrb[0].mxu0
  %v1858 = vpop.f32.mrb[0].mxu0
  %1859 = vdwg.mxu0
  %v1860 = vxor.u32 %v1854, 2147483648
  %v1861 = vxor.u32 %v1856, 2147483648
  %v1862 = vmul.f32 %v1860, 1.442695
  %v1863 = vpow.pop %v1862
  %v1864 = vmul.f32 %v1861, 1.442695
  %v1865 = vpow.pop %v1864
  %v1866 = vadd.f32 %v1863, 1.0
  %v1867 = vadd.f32 %v1865, 1.0
  %v1868 = vrcp.pop %v1866
  %v1869 = vmul.f32 1.0, %v1868
  %v1870 = vrcp.pop %v1867
  %v1871 = vmul.f32 1.0, %v1870
  %v1872 = vtanh.pop %v1856
  %v1873 = vmul.f32 %v1869, 0.0
  %1875 = vrot.lane.b32.xlu0 %v1872, 64
  %v1876 = vpop.permute.xlu0 %1875
  %v1878 = vmul.f32 %v1869, %v1876
  %1880 = vrot.lane.b32.xlu0 %v1878, 64
  %v1881 = vpop.permute.xlu0 %1880
  %v1883 = vadd.f32 %v1873, %v1881
  %v1884 = vtanh.pop %v1883
  %1886 = vrot.lane.b32.xlu0 %v1884, 64
  %v1887 = vpop.permute.xlu0 %1886
  %v1889 = vmul.f32 %v1871, %v1887
  %1891 = vrot.lane.b32.xlu0 %v1889, 64
  %v1892 = vpop.permute.xlu0 %1891
  %v1894 = vsel %vm336, %v1376, %v1892
  %v1895 = vpack.c.bf16 %v1894, %v1894
  %v1896 = vld [vmem:[%s6] sm:$0xf]
  %v1897 = vld [vmem:[%s6 + $0x4] sm:$0xf]
  %v1898 = vld [vmem:[%s6 + $0x8] sm:$0xf]
  %v1899 = vld [vmem:[%s6 + $0xc] sm:$0xf]
  %v1900 = vld [vmem:[%s6 + $0x10] sm:$0xf]
  %v1901 = vld [vmem:[%s6 + $0x14] sm:$0xf]
  %v1902 = vld [vmem:[%s6 + $0x18] sm:$0xf]
  %v1903 = vld [vmem:[%s6 + $0x1c] sm:$0xf]
  %v1904 = vld [vmem:[%s6 + $0x20] sm:$0xf]
  %v1905 = vld [vmem:[%s6 + $0x24] sm:$0xf]
  %v1906 = vld [vmem:[%s6 + $0x28] sm:$0xf]
  %v1907 = vld [vmem:[%s6 + $0x2c] sm:$0xf]
  %v1908 = vld [vmem:[%s6 + $0x30] sm:$0xf]
  %v1909 = vld [vmem:[%s6 + $0x34] sm:$0xf]
  %v1910 = vld [vmem:[%s6 + $0x38] sm:$0xf]
  %v1911 = vld [vmem:[%s6 + $0x3c] sm:$0xf]
  %v1912 = vld [vmem:[%s7] sm:$0x1]
  %v1914 = vlaneseq
  %v1915 = vshrl.u32 %v1914, 7
  %v1916 = vsub.s32 0, %v1915
  %v1917 = vrot.slane %v1912, %v1916
  %v1935 = vunpack.c.l.b16 %v1896
  %v1936 = vunpack.c.l.b16 %v1897
  %v1937 = vunpack.c.l.b16 %v1898
  %v1938 = vunpack.c.l.b16 %v1899
  %v1939 = vunpack.c.l.b16 %v1900
  %v1940 = vunpack.c.l.b16 %v1901
  %v1941 = vunpack.c.l.b16 %v1902
  %v1942 = vunpack.c.l.b16 %v1903
  %v1943 = vunpack.c.l.b16 %v1904
  %v1944 = vunpack.c.l.b16 %v1905
  %v1945 = vunpack.c.l.b16 %v1906
  %v1946 = vunpack.c.l.b16 %v1907
  %v1947 = vunpack.c.l.b16 %v1908
  %v1948 = vunpack.c.l.b16 %v1909
  %v1949 = vunpack.c.l.b16 %v1910
  %v1950 = vunpack.c.l.b16 %v1911
  %v1951 = vpack.c.b16 %v1936, %v1935
  %v1952 = vpack.c.b16 %v1938, %v1937
  %v1953 = vpack.c.b16 %v1940, %v1939
  %v1954 = vpack.c.b16 %v1942, %v1941
  %v1955 = vpack.c.b16 %v1944, %v1943
  %v1956 = vpack.c.b16 %v1946, %v1945
  %v1957 = vpack.c.b16 %v1948, %v1947
  %v1958 = vpack.c.b16 %v1950, %v1949
  %1967 = vmatprep.subr.bf16.mxu0 0
  %1968 = vmatpush1.bf16.msra.mxu0 %v1951
  %1969 = vmatprep.subr.bf16.mxu0 0
  %1970 = vmatpush1.bf16.msra.mxu0 %v1952
  %1971 = vmatprep.subr.bf16.mxu0 0
  %1972 = vmatpush1.bf16.msra.mxu0 %v1953
  %1973 = vmatprep.subr.bf16.mxu0 0
  %1974 = vmatpush1.bf16.msra.mxu0 %v1954
  %1975 = vmatprep.subr.bf16.mxu0 0
  %1976 = vmatpush1.bf16.msra.mxu0 %v1955
  %1977 = vmatprep.subr.bf16.mxu0 0
  %1978 = vmatpush1.bf16.msra.mxu0 %v1956
  %1979 = vmatprep.subr.bf16.mxu0 0
  %1980 = vmatpush1.bf16.msra.mxu0 %v1957
  %1981 = vmatprep.subr.bf16.mxu0 0
  %1982 = vmatpush1.bf16.msra.mxu0 %v1958
  %1983 = vmatprep.subr.bf16.mxu0 0
  %1984 = vmatpush1.bf16.msra.mxu0 0
  %1985 = vmatprep.subr.bf16.mxu0 0
  %1986 = vmatpush1.bf16.msra.mxu0 0
  %1987 = vmatprep.subr.bf16.mxu0 0
  %1988 = vmatpush1.bf16.msra.mxu0 0
  %1989 = vmatprep.subr.bf16.mxu0 0
  %1990 = vmatpush1.bf16.msra.mxu0 0
  %1991 = vmatprep.subr.bf16.mxu0 0
  %1992 = vmatpush1.bf16.msra.mxu0 0
  %1993 = vmatprep.subr.bf16.mxu0 0
  %1994 = vmatpush1.bf16.msra.mxu0 0
  %1995 = vmatprep.subr.bf16.mxu0 0
  %1996 = vmatpush1.bf16.msra.mxu0 0
  %1997 = vmatprep.subr.bf16.mxu0 0
  %1998 = vmatpush1.bf16.msra.mxu0 0
  %1999 = vmatprep.mubr.bf16.mxu0 0
  %2000 = vmatmul.mubr.bf16.gmra.mrb[0].mxu0 %v1895
  %v2001 = vpop.f32.mrb[0].mxu0
  %v2002 = vadd.f32 %v1917, %v2001
  %v2003 = vpop.f32.mrb[0].mxu0
  %v2004 = vpop.f32.mrb[0].mxu0
  %v2005 = vpop.f32.mrb[0].mxu0
  %2006 = vdwg.mxu0
  %v2007 = vmax.f32 %v2002, 0.0
  %v2008 = vpack.c.bf16 %v2007, %v2007
  %v2009 = vld [vmem:[%s8] sm:$0xf]
  %v2010 = vld [vmem:[%s8 + $0x4] sm:$0xf]
  %v2011 = vld [vmem:[%s8 + $0x8] sm:$0xf]
  %v2012 = vld [vmem:[%s8 + $0xc] sm:$0xf]
  %v2013 = vld [vmem:[%s8 + $0x10] sm:$0xf]
  %v2014 = vld [vmem:[%s8 + $0x14] sm:$0xf]
  %v2015 = vld [vmem:[%s8 + $0x18] sm:$0xf]
  %v2016 = vld [vmem:[%s8 + $0x1c] sm:$0xf]
  %v2017 = vld [vmem:[#allocation3] sm:$0x1]
  %v2019 = vlaneseq
  %v2020 = vshrl.u32 %v2019, 7
  %v2021 = vsub.s32 0, %v2020
  %v2022 = vrot.slane %v2017, %v2021
  %v2032 = vunpack.c.l.b16 %v2009
  %v2033 = vunpack.c.l.b16 %v2010
  %v2034 = vunpack.c.l.b16 %v2011
  %v2035 = vunpack.c.l.b16 %v2012
  %v2036 = vunpack.c.l.b16 %v2013
  %v2037 = vunpack.c.l.b16 %v2014
  %v2038 = vunpack.c.l.b16 %v2015
  %v2039 = vunpack.c.l.b16 %v2016
  %v2040 = vpack.c.b16 %v2033, %v2032
  %v2041 = vpack.c.b16 %v2035, %v2034
  %v2042 = vpack.c.b16 %v2037, %v2036
  %v2043 = vpack.c.b16 %v2039, %v2038
  %v2049 = vsel %vm336, %v2008, 0
  %2051 = vmatprep.subr.bf16.mxu0 0
  %2052 = vmatpush1.bf16.msra.mxu0 %v2040
  %2053 = vmatprep.subr.bf16.mxu0 0
  %2054 = vmatpush1.bf16.msra.mxu0 %v2041
  %2055 = vmatprep.subr.bf16.mxu0 0
  %2056 = vmatpush1.bf16.msra.mxu0 %v2042
  %2057 = vmatprep.subr.bf16.mxu0 0
  %2058 = vmatpush1.bf16.msra.mxu0 %v2043
  %2059 = vmatprep.subr.bf16.mxu0 0
  %2060 = vmatpush1.bf16.msra.mxu0 0
  %2061 = vmatprep.subr.bf16.mxu0 0
  %2062 = vmatpush1.bf16.msra.mxu0 0
  %2063 = vmatprep.subr.bf16.mxu0 0
  %2064 = vmatpush1.bf16.msra.mxu0 0
  %2065 = vmatprep.subr.bf16.mxu0 0
  %2066 = vmatpush1.bf16.msra.mxu0 0
  %2067 = vmatprep.subr.bf16.mxu0 0
  %2068 = vmatpush1.bf16.msra.mxu0 0
  %2069 = vmatprep.subr.bf16.mxu0 0
  %2070 = vmatpush1.bf16.msra.mxu0 0
  %2071 = vmatprep.subr.bf16.mxu0 0
  %2072 = vmatpush1.bf16.msra.mxu0 0
  %2073 = vmatprep.subr.bf16.mxu0 0
  %2074 = vmatpush1.bf16.msra.mxu0 0
  %2075 = vmatprep.subr.bf16.mxu0 0
  %2076 = vmatpush1.bf16.msra.mxu0 0
  %2077 = vmatprep.subr.bf16.mxu0 0
  %2078 = vmatpush1.bf16.msra.mxu0 0
  %2079 = vmatprep.subr.bf16.mxu0 0
  %2080 = vmatpush1.bf16.msra.mxu0 0
  %2081 = vmatprep.subr.bf16.mxu0 0
  %2082 = vmatpush1.bf16.msra.mxu0 0
  %2083 = vmatprep.mubr.bf16.mxu0 0
  %2084 = vmatmul.mubr.bf16.gmra.mrb[0].mxu0 %v2049
  %v2085 = vpop.f32.mrb[0].mxu0
  %v2086 = vadd.f32 %v2022, %v2085
  %v2087 = vpop.f32.mrb[0].mxu0
  %v2088 = vpop.f32.mrb[0].mxu0
  %v2089 = vpop.f32.mrb[0].mxu0
  %2090 = vdwg.mxu0
  %v2091 = vld [vmem:[%s10] sm:$0xf]
  %v2092 = vld [vmem:[%s10 + $0x4] sm:$0xf]
  %v2093 = vld [vmem:[%s10 + $0x8] sm:$0xf]
  %v2094 = vld [vmem:[%s10 + $0xc] sm:$0xf]
  %v2095 = vld [vmem:[%s10 + $0x10] sm:$0xf]
  %v2096 = vld [vmem:[%s10 + $0x14] sm:$0xf]
  %v2097 = vld [vmem:[%s10 + $0x18] sm:$0xf]
  %v2098 = vld [vmem:[%s10 + $0x1c] sm:$0xf]
  %v2099 = vld [vmem:[%s10 + $0x20] sm:$0xf]
  %v2100 = vld [vmem:[%s10 + $0x24] sm:$0xf]
  %v2101 = vld [vmem:[%s10 + $0x28] sm:$0xf]
  %v2102 = vld [vmem:[%s10 + $0x2c] sm:$0xf]
  %v2103 = vld [vmem:[%s10 + $0x30] sm:$0xf]
  %v2104 = vld [vmem:[%s10 + $0x34] sm:$0xf]
  %v2105 = vld [vmem:[%s10 + $0x38] sm:$0xf]
  %v2106 = vld [vmem:[%s10 + $0x3c] sm:$0xf]
  %v2107 = vld [vmem:[%s11] sm:$0x1]
  %v2109 = vlaneseq
  %v2110 = vshrl.u32 %v2109, 7
  %v2111 = vsub.s32 0, %v2110
  %v2112 = vrot.slane %v2107, %v2111
  %v2130 = vunpack.c.l.b16 %v2091
  %v2131 = vunpack.c.l.b16 %v2092
  %v2132 = vunpack.c.l.b16 %v2093
  %v2133 = vunpack.c.l.b16 %v2094
  %v2134 = vunpack.c.l.b16 %v2095
  %v2135 = vunpack.c.l.b16 %v2096
  %v2136 = vunpack.c.l.b16 %v2097
  %v2137 = vunpack.c.l.b16 %v2098
  %v2138 = vunpack.c.l.b16 %v2099
  %v2139 = vunpack.c.l.b16 %v2100
  %v2140 = vunpack.c.l.b16 %v2101
  %v2141 = vunpack.c.l.b16 %v2102
  %v2142 = vunpack.c.l.b16 %v2103
  %v2143 = vunpack.c.l.b16 %v2104
  %v2144 = vunpack.c.l.b16 %v2105
  %v2145 = vunpack.c.l.b16 %v2106
  %v2146 = vpack.c.b16 %v2131, %v2130
  %v2147 = vpack.c.b16 %v2133, %v2132
  %v2148 = vpack.c.b16 %v2135, %v2134
  %v2149 = vpack.c.b16 %v2137, %v2136
  %v2150 = vpack.c.b16 %v2139, %v2138
  %v2151 = vpack.c.b16 %v2141, %v2140
  %v2152 = vpack.c.b16 %v2143, %v2142
  %v2153 = vpack.c.b16 %v2145, %v2144
  %2162 = vmatprep.subr.bf16.mxu0 0
  %2163 = vmatpush1.bf16.msra.mxu0 %v2146
  %2164 = vmatprep.subr.bf16.mxu0 0
  %2165 = vmatpush1.bf16.msra.mxu0 %v2147
  %2166 = vmatprep.subr.bf16.mxu0 0
  %2167 = vmatpush1.bf16.msra.mxu0 %v2148
  %2168 = vmatprep.subr.bf16.mxu0 0
  %2169 = vmatpush1.bf16.msra.mxu0 %v2149
  %2170 = vmatprep.subr.bf16.mxu0 0
  %2171 = vmatpush1.bf16.msra.mxu0 %v2150
  %2172 = vmatprep.subr.bf16.mxu0 0
  %2173 = vmatpush1.bf16.msra.mxu0 %v2151
  %2174 = vmatprep.subr.bf16.mxu0 0
  %2175 = vmatpush1.bf16.msra.mxu0 %v2152
  %2176 = vmatprep.subr.bf16.mxu0 0
  %2177 = vmatpush1.bf16.msra.mxu0 %v2153
  %2178 = vmatprep.subr.bf16.mxu0 0
  %2179 = vmatpush1.bf16.msra.mxu0 0
  %2180 = vmatprep.subr.bf16.mxu0 0
  %2181 = vmatpush1.bf16.msra.mxu0 0
  %2182 = vmatprep.subr.bf16.mxu0 0
  %2183 = vmatpush1.bf16.msra.mxu0 0
  %2184 = vmatprep.subr.bf16.mxu0 0
  %2185 = vmatpush1.bf16.msra.mxu0 0
  %2186 = vmatprep.subr.bf16.mxu0 0
  %2187 = vmatpush1.bf16.msra.mxu0 0
  %2188 = vmatprep.subr.bf16.mxu0 0
  %2189 = vmatpush1.bf16.msra.mxu0 0
  %2190 = vmatprep.subr.bf16.mxu0 0
  %2191 = vmatpush1.bf16.msra.mxu0 0
  %2192 = vmatprep.subr.bf16.mxu0 0
  %2193 = vmatpush1.bf16.msra.mxu0 0
  %2194 = vmatprep.mubr.bf16.mxu0 0
  %2195 = vmatmul.mubr.bf16.gmra.mrb[0].mxu0 %v1895
  %v2196 = vpop.f32.mrb[0].mxu0
  %v2197 = vadd.f32 %v2112, %v2196
  %v2198 = vpop.f32.mrb[0].mxu0
  %v2199 = vpop.f32.mrb[0].mxu0
  %v2200 = vpop.f32.mrb[0].mxu0
  %2201 = vdwg.mxu0
  %v2202 = vmax.f32 %v2197, 0.0
  %v2203 = vpack.c.bf16 %v2202, %v2202
  %v2204 = vld [vmem:[%s12] sm:$0xf]
  %v2205 = vld [vmem:[%s12 + $0x4] sm:$0xf]
  %v2206 = vld [vmem:[%s12 + $0x8] sm:$0xf]
  %v2207 = vld [vmem:[%s12 + $0xc] sm:$0xf]
  %v2208 = vld [vmem:[%s12 + $0x10] sm:$0xf]
  %v2209 = vld [vmem:[%s12 + $0x14] sm:$0xf]
  %v2210 = vld [vmem:[%s12 + $0x18] sm:$0xf]
  %v2211 = vld [vmem:[%s12 + $0x1c] sm:$0xf]
  %v2212 = vld [vmem:[%s12 + $0x20] sm:$0xf]
  %v2213 = vld [vmem:[%s12 + $0x24] sm:$0xf]
  %v2214 = vld [vmem:[%s12 + $0x28] sm:$0xf]
  %v2215 = vld [vmem:[%s12 + $0x2c] sm:$0xf]
  %v2216 = vld [vmem:[%s12 + $0x30] sm:$0xf]
  %v2217 = vld [vmem:[%s12 + $0x34] sm:$0xf]
  %v2218 = vld [vmem:[%s12 + $0x38] sm:$0xf]
  %v2219 = vld [vmem:[%s12 + $0x3c] sm:$0xf]
  %v2220 = vld [vmem:[%s13] sm:$0x1]
  %v2222 = vlaneseq
  %v2223 = vshrl.u32 %v2222, 7
  %v2224 = vsub.s32 0, %v2223
  %v2225 = vrot.slane %v2220, %v2224
  %v2243 = vunpack.c.l.b16 %v2204
  %v2244 = vunpack.c.l.b16 %v2205
  %v2245 = vunpack.c.l.b16 %v2206
  %v2246 = vunpack.c.l.b16 %v2207
  %v2247 = vunpack.c.l.b16 %v2208
  %v2248 = vunpack.c.l.b16 %v2209
  %v2249 = vunpack.c.l.b16 %v2210
  %v2250 = vunpack.c.l.b16 %v2211
  %v2251 = vunpack.c.l.b16 %v2212
  %v2252 = vunpack.c.l.b16 %v2213
  %v2253 = vunpack.c.l.b16 %v2214
  %v2254 = vunpack.c.l.b16 %v2215
  %v2255 = vunpack.c.l.b16 %v2216
  %v2256 = vunpack.c.l.b16 %v2217
  %v2257 = vunpack.c.l.b16 %v2218
  %v2258 = vunpack.c.l.b16 %v2219
  %v2259 = vpack.c.b16 %v2244, %v2243
  %v2260 = vpack.c.b16 %v2246, %v2245
  %v2261 = vpack.c.b16 %v2248, %v2247
  %v2262 = vpack.c.b16 %v2250, %v2249
  %v2263 = vpack.c.b16 %v2252, %v2251
  %v2264 = vpack.c.b16 %v2254, %v2253
  %v2265 = vpack.c.b16 %v2256, %v2255
  %v2266 = vpack.c.b16 %v2258, %v2257
  %2275 = vmatprep.subr.bf16.mxu0 0
  %2276 = vmatpush1.bf16.msra.mxu0 %v2259
  %2277 = vmatprep.subr.bf16.mxu0 0
  %2278 = vmatpush1.bf16.msra.mxu0 %v2260
  %2279 = vmatprep.subr.bf16.mxu0 0
  %2280 = vmatpush1.bf16.msra.mxu0 %v2261
  %2281 = vmatprep.subr.bf16.mxu0 0
  %2282 = vmatpush1.bf16.msra.mxu0 %v2262
  %2283 = vmatprep.subr.bf16.mxu0 0
  %2284 = vmatpush1.bf16.msra.mxu0 %v2263
  %2285 = vmatprep.subr.bf16.mxu0 0
  %2286 = vmatpush1.bf16.msra.mxu0 %v2264
  %2287 = vmatprep.subr.bf16.mxu0 0
  %2288 = vmatpush1.bf16.msra.mxu0 %v2265
  %2289 = vmatprep.subr.bf16.mxu0 0
  %2290 = vmatpush1.bf16.msra.mxu0 %v2266
  %2291 = vmatprep.subr.bf16.mxu0 0
  %2292 = vmatpush1.bf16.msra.mxu0 0
  %2293 = vmatprep.subr.bf16.mxu0 0
  %2294 = vmatpush1.bf16.msra.mxu0 0
  %2295 = vmatprep.subr.bf16.mxu0 0
  %2296 = vmatpush1.bf16.msra.mxu0 0
  %2297 = vmatprep.subr.bf16.mxu0 0
  %2298 = vmatpush1.bf16.msra.mxu0 0
  %2299 = vmatprep.subr.bf16.mxu0 0
  %2300 = vmatpush1.bf16.msra.mxu0 0
  %2301 = vmatprep.subr.bf16.mxu0 0
  %2302 = vmatpush1.bf16.msra.mxu0 0
  %2303 = vmatprep.subr.bf16.mxu0 0
  %2304 = vmatpush1.bf16.msra.mxu0 0
  %2305 = vmatprep.subr.bf16.mxu0 0
  %2306 = vmatpush1.bf16.msra.mxu0 0
  %2307 = vmatprep.mubr.bf16.mxu0 0
  %2308 = vmatmul.mubr.bf16.gmra.mrb[0].mxu0 %v2203
  %v2309 = vpop.f32.mrb[0].mxu0
  %v2310 = vadd.f32 %v2225, %v2309
  %v2311 = vpop.f32.mrb[0].mxu0
  %v2312 = vpop.f32.mrb[0].mxu0
  %v2313 = vpop.f32.mrb[0].mxu0
  %2314 = vdwg.mxu0
  %vm2315 = vcmask 7168
  %2316 = vst.msk [vmem:[%s14] sm:$0xff] %vm2315, %v2086
  %vm2317 = vcmask 15360
  %2318 = vst.msk [vmem:[%s15] sm:$0xff] %vm2317, %v2310
  // Predicated region
  $region65: #{eeg_forward.7} parent=0 // pred_check
    _
  $region66: #{eeg_forward.7} parent=0 // pred_check_branch
    %2320 = sbr.rel (0) target = $region68
  $region67: #{eeg_forward.7} parent=0 // pred_region
    _
  $region68: #{eeg_forward.7} parent=0 // pred_fallthru
    _
  // Predicated region
  $region69: #{eeg_forward.7} parent=0 // pred_check
    _
  $region70: #{eeg_forward.7} parent=0 // pred_check_branch
    %2322 = sbr.rel (0) target = $region72
  $region71: #{eeg_forward.7} parent=0 // pred_region
    _
  $region72: #{eeg_forward.7} parent=0 // pred_fallthru
    _
  // Predicated region
  $region73: #{eeg_forward.7} parent=0 // pred_check
    _
  $region74: #{eeg_forward.7} parent=0 // pred_check_branch
    %2324 = sbr.rel (0) target = $region76
  $region75: #{eeg_forward.7} parent=0 // pred_region
    _
  $region76: #{eeg_forward.7} parent=0 // pred_fallthru
    _
  // Predicated region
  $region77: #{eeg_forward.7} parent=0 // pred_check
    _
  $region78: #{eeg_forward.7} parent=0 // pred_check_branch
    %2326 = sbr.rel (0) target = $region80
  $region79: #{eeg_forward.7} parent=0 // pred_region
    _
  $region80: #{eeg_forward.7} parent=0 // pred_fallthru
    _

</llo_original>
